<compile_context>
chip_gen: v7x
topology: tpu7x:2x2x1
jax: 0.10.0
libtpu: 0.0.40
codegen_flags: <defaults>
</compile_context>

<pallas_src>
import functools

import jax
import jax.numpy as jnp
from jax import lax
from jax.experimental import pallas as pl
from jax.experimental.pallas import tpu as pltpu

_VMEM_LIMIT = 32 * 1024 * 1024


# ----------------------------------------------------------------------------
# Conv kernel: unrolled tap reduction in channels-first flat layout
# ----------------------------------------------------------------------------
def conv_flat_pallas(xs, ws, bias, *, taps, wp, ho, with_stats=False,
                     valid_w=None):
    """Tap-sum convolution in channels-first flat layout.

    xs   : list of (N, Ci, Lin_i) f32 -- zero-padded images flattened row-major
           with padded row width `wp` (Lin_i >= max_tap_shift + ho*wp).
    ws   : list of (T, Cout, Ci) f32 -- one (Cout, Ci) weight matrix per tap.
    bias : (Cout,) or None.
    taps : tuple of (dh, dw) static offsets; tap t reads x[:, m + dh*wp + dw].

    Returns (N, Cout, ho*wp) f32 (columns >= the valid image width contain
    row-wrap scratch and are discarded by the caller).  If with_stats, also
    returns (N, Cout, 2) with per-image per-channel [sum, sumsq] over the
    valid columns -- the BatchNorm statistics fused into this conv's epilogue.
    """
    n = xs[0].shape[0]
    n_in = len(xs)
    t = len(taps)
    cout = ws[0].shape[1]
    lout = ho * wp
    max_shift = max(dh * wp + dw for dh, dw in taps)
    for x in xs:
        assert x.shape[0] == n and x.shape[2] >= max_shift + lout, x.shape
    for w, x in zip(ws, xs):
        assert w.shape == (t, cout, x.shape[1]), (w.shape, x.shape)
    if with_stats:
        assert valid_w is not None

    if bias is None:
        bias = jnp.zeros((cout,), jnp.float32)
    bias2 = bias.reshape(cout, 1).astype(jnp.float32)

    def kernel(*refs):
        x_refs = refs[:n_in]
        w_refs = refs[n_in:2 * n_in]
        b_ref = refs[2 * n_in]
        if with_stats:
            m_ref = refs[2 * n_in + 1]
            o_ref = refs[2 * n_in + 2]
            s_ref = refs[2 * n_in + 3]
        else:
            o_ref = refs[2 * n_in + 1]

        # Unrolled tap loop: shifted views of the VMEM-resident padded tile
        # feed (Cout, Ci) x (Ci, lout) MXU matmuls; accumulate in registers
        # and store the output block exactly once.
        acc = None
        for ti, (dh, dw) in enumerate(taps):
            shift = dh * wp + dw
            for xi in range(n_in):
                xsl = x_refs[xi][0, :, shift:shift + lout]
                part = jnp.dot(w_refs[xi][ti], xsl,
                               preferred_element_type=jnp.float32)
                acc = part if acc is None else acc + part
        acc = acc + b_ref[...]                      # (Cout, 1) lane broadcast
        o_ref[0] = acc

        if with_stats:                              # fused BatchNorm sum/sumsq
            yv = acc * m_ref[...]                   # zero the padding columns
            s_ref[0, :, 0:1] = jnp.sum(yv, axis=1, keepdims=True)
            s_ref[0, :, 1:2] = jnp.sum(yv * yv, axis=1, keepdims=True)

    in_specs = (
        [pl.BlockSpec((1, x.shape[1], x.shape[2]), lambda i: (i, 0, 0))
         for x in xs]
        + [pl.BlockSpec((t, cout, w.shape[2]), lambda i: (0, 0, 0))
           for w in ws]
        + [pl.BlockSpec((cout, 1), lambda i: (0, 0))]
    )
    args = list(xs) + list(ws) + [bias2]
    out_shape = [jax.ShapeDtypeStruct((n, cout, lout), jnp.float32)]
    out_specs = [pl.BlockSpec((1, cout, lout), lambda i: (i, 0, 0))]
    if with_stats:
        cols = jnp.arange(lout, dtype=jnp.int32) % wp
        mask = (cols < valid_w).astype(jnp.float32).reshape(1, lout)
        in_specs.append(pl.BlockSpec((1, lout), lambda i: (0, 0)))
        args.append(mask)
        out_shape.append(jax.ShapeDtypeStruct((n, cout, 2), jnp.float32))
        out_specs.append(pl.BlockSpec((1, cout, 2), lambda i: (i, 0, 0)))

    return pl.pallas_call(
        kernel,
        out_shape=tuple(out_shape),
        grid_spec=pltpu.PrefetchScalarGridSpec(
            num_scalar_prefetch=0,
            grid=(n,),
            in_specs=in_specs,
            out_specs=tuple(out_specs),
        ),
        compiler_params=pltpu.CompilerParams(
            dimension_semantics=("parallel",),
            vmem_limit_bytes=_VMEM_LIMIT),
    )(*args)


# ----------------------------------------------------------------------------
# BatchNorm-apply + tanh kernel (stats already reduced on the host side)
# ----------------------------------------------------------------------------
def bn_tanh_apply_pallas(y_flat, scale, shift, *, ho, wp, valid_w):
    """y -> tanh(y*scale + shift) per channel; writes the final
    (N, C, ho, valid_w) NCHW tensor directly (dropping scratch columns)."""
    n, c, lflat = y_flat.shape
    assert lflat == ho * wp, (lflat, ho, wp)
    y4 = y_flat.reshape(n, c, ho, wp)               # metadata-only reshape

    def kernel(x_ref, sc_ref, sh_ref, o_ref):
        xv = x_ref[0, :, :, :valid_w]
        o_ref[0] = jnp.tanh(xv * sc_ref[...] + sh_ref[...])

    return pl.pallas_call(
        kernel,
        out_shape=jax.ShapeDtypeStruct((n, c, ho, valid_w), jnp.float32),
        grid_spec=pltpu.PrefetchScalarGridSpec(
            num_scalar_prefetch=0,
            grid=(n,),
            in_specs=[pl.BlockSpec((1, c, ho, wp), lambda i: (i, 0, 0, 0)),
                      pl.BlockSpec((c, 1, 1), lambda i: (0, 0, 0)),
                      pl.BlockSpec((c, 1, 1), lambda i: (0, 0, 0))],
            out_specs=pl.BlockSpec((1, c, ho, valid_w),
                                   lambda i: (i, 0, 0, 0)),
        ),
        compiler_params=pltpu.CompilerParams(
            dimension_semantics=("parallel",),
            vmem_limit_bytes=_VMEM_LIMIT),
    )(y4, scale.reshape(c, 1, 1).astype(jnp.float32),
      shift.reshape(c, 1, 1).astype(jnp.float32))


# ----------------------------------------------------------------------------
# Host-side layout / weight preparation (cheap, one pass each)
# ----------------------------------------------------------------------------
def _pad_flatten(x, pad_t, pad_b, pad_l, pad_r, min_len):
    """NCHW image -> (N, C, L) row-major flat array with zero padding and at
    least `min_len` flat elements (extra zeros cover row-boundary reads)."""
    n, c, h, w = x.shape
    xp = jnp.pad(x, ((0, 0), (0, 0), (pad_t, pad_b), (pad_l, pad_r)))
    xf = xp.reshape(n, c, (h + pad_t + pad_b) * (w + pad_l + pad_r))
    if xf.shape[-1] < min_len:
        xf = jnp.pad(xf, ((0, 0), (0, 0), (0, min_len - xf.shape[-1])))
    return xf


def _tconv_w_taps(w_t):
    """PyTorch ConvTranspose2d weight (Ci, Co, K, K) -> per-tap correlation
    matrices (K*K, Co, Ci).  Stride-1 transposed conv with padding K//2 equals
    a same-size correlation with the spatially flipped, transposed weight."""
    w = jnp.flip(w_t, axis=(2, 3))
    w = jnp.transpose(w, (2, 3, 1, 0))              # (K, K, Co, Ci)
    k = w.shape[0]
    return w.reshape(k * k, w.shape[2], w.shape[3])


def _make_up_weights(w_t, b):
    """4-phase (sub-pixel) decomposition of ConvTranspose2d(Ci, Cm, 3,
    stride=2, padding=1, output_padding=1).  Returns per-tap weights
    (4, 4*Cm, Ci) over the 2x2 input-grid tap window (dh, dw) in {0,1}^2 and
    the tiled bias (4*Cm,).  Output channel ph*Cm+cm, ph = 2*r + c, holds the
    output pixels with (row%2, col%2) == (r, c)."""
    ci, cm = w_t.shape[0], w_t.shape[1]
    # output parity -> ((input offset d, transposed-conv kernel index k), ...)
    par = {0: ((0, 1),), 1: ((1, 0), (0, 2))}
    wup = jnp.zeros((4, 4 * cm, ci), jnp.float32)
    for r in (0, 1):
        for c in (0, 1):
            ph = 2 * r + c
            for dh, kh in par[r]:
                for dw, kw in par[c]:
                    t = 2 * dh + dw
                    wup = wup.at[t, ph * cm:(ph + 1) * cm, :].add(
                        jnp.transpose(w_t[:, :, kh, kw], (1, 0)))
    return wup, jnp.tile(b, 4)


# ----------------------------------------------------------------------------
# ConvTBlock forward
# ----------------------------------------------------------------------------
@functools.partial(jax.jit, static_argnames=("kernel",))
def convt_block_forward(phi_nchw, conn_nchw, params, *, kernel):
    assert kernel % 2 == 1, "padding=k//2 gives 'same' size only for odd k"
    phi = phi_nchw.astype(jnp.float32)              # (N, Cin, H, W)
    conn = conn_nchw.astype(jnp.float32)            # (N, Cin//2, 2H, 2W)
    n, cin, h, w = phi.shape
    k = kernel
    p = k // 2
    cmid = cin // 2

    # --- up: ConvTranspose2d(Cin, Cin//2, 3, stride=2, padding=1, out_pad=1)
    #     via the 4-phase sub-pixel decomposition (no zero-inserted input).
    wp_u = w + 1
    lout_u = h * wp_u
    lin_u = (wp_u + 1) + lout_u                     # max tap shift + lout
    phi_f = _pad_flatten(phi, 0, 2, 0, 1, lin_u)
    taps_u = ((0, 0), (0, 1), (1, 0), (1, 1))
    up4 = conv_flat_pallas([phi_f], [params["up_w"]], params["up_b4"],
                           taps=taps_u, wp=wp_u, ho=h)[0]
    up4 = up4.reshape(n, 2, 2, cmid, h, wp_u)[..., :w]
    up = jnp.transpose(up4, (0, 3, 4, 1, 5, 2)).reshape(n, cmid, 2 * h, 2 * w)

    # --- convt_1 on cat([up, conn], dim=1): the concat is fused as two kernel
    #     inputs with the weight split along the input-channel axis.
    ho1, wimg = 2 * h, 2 * w
    wp1 = wimg + 2 * p
    lout1 = ho1 * wp1
    taps1 = tuple((kh, kw) for kh in range(k) for kw in range(k))
    lin1 = (k - 1) * wp1 + (k - 1) + lout1
    up_f = _pad_flatten(up, p, p, p, p, lin1)
    conn_f = _pad_flatten(conn, p, p, p, p, lin1)
    y1 = conv_flat_pallas([up_f, conn_f],
                          [params["c1_w_up"], params["c1_w_conn"]],
                          params["c1_b"], taps=taps1, wp=wp1, ho=ho1)[0]
    cout = y1.shape[1]
    y1_img = y1.reshape(n, cout, ho1, wp1)[..., :wimg]

    # --- convt_2 (bias=False) with the BatchNorm sum/sumsq fused into its
    #     epilogue (masked to the valid image columns).
    y1_f = _pad_flatten(y1_img, p, p, p, p, lin1)
    y2, stats = conv_flat_pallas([y1_f], [params["c2_w"]], None,
                                 taps=taps1, wp=wp1, ho=ho1,
                                 with_stats=True, valid_w=wimg)

    # --- BatchNorm2d (training-mode batch statistics, eps=1e-5) + tanh.
    # TODO(synk): running_mean/running_var in-place updates (module state,
    # momentum=0.01) are not part of the functional forward and are omitted.
    cnt = jnp.float32(n * ho1 * wimg)
    s = jnp.sum(stats[:, :, 0], axis=0)
    ss = jnp.sum(stats[:, :, 1], axis=0)
    mean = s / cnt
    var = jnp.maximum(ss / cnt - mean * mean, 0.0)  # biased batch variance
    inv = lax.rsqrt(var + 1e-5)
    scale = params["bn_g"] * inv
    shift = params["bn_b"] - mean * scale
    return bn_tanh_apply_pallas(y2, scale, shift,
                                ho=ho1, wp=wp1, valid_w=wimg)  # (N,Cout,2H,2W)


def init_params(key, in_channel, out_channel, kernel):
    """Deterministic synthetic parameters matching the module's shapes,
    preprocessed into the per-tap correlation layouts the kernels consume."""
    ks = jax.random.split(key, 8)
    k = kernel
    cmid = in_channel // 2

    def uni(rk, shape, fan):
        b = 1.0 / jnp.sqrt(jnp.float32(fan))
        return jax.random.uniform(rk, shape, jnp.float32, minval=-b, maxval=b)

    # PyTorch ConvTranspose2d weight layout: (Cin, Cout, K, K)
    up_w_t = uni(ks[0], (in_channel, cmid, 3, 3), in_channel * 9)
    up_b = uni(ks[1], (cmid,), in_channel * 9)
    c1_w_t = uni(ks[2], (in_channel, out_channel, k, k), in_channel * k * k)
    c1_b = uni(ks[3], (out_channel,), in_channel * k * k)
    c2_w_t = uni(ks[4], (out_channel, out_channel, k, k), out_channel * k * k)

    bn_g = 1.0 + 0.1 * jax.random.normal(ks[5], (out_channel,), jnp.float32)
    bn_b = 0.1 * jax.random.normal(ks[6], (out_channel,), jnp.float32)

    up_w, up_b4 = _make_up_weights(up_w_t, up_b)
    return {
        "up_w": up_w,                                # (4, 4*Cmid, Cin)
        "up_b4": up_b4,                              # (4*Cmid,)
        "c1_w_up": _tconv_w_taps(c1_w_t[:cmid]),     # (K*K, Cout, Cmid)
        "c1_w_conn": _tconv_w_taps(c1_w_t[cmid:]),   # (K*K, Cout, Cmid)
        "c1_b": c1_b,
        "c2_w": _tconv_w_taps(c2_w_t),               # (K*K, Cout, Cout)
        "bn_g": bn_g,
        "bn_b": bn_b,
    }


if __name__ == "__main__":
    IN_CH, OUT_CH, KERNEL = 8, 8, 3
    N, H, W = 2, 8, 8

    key = jax.random.PRNGKey(0)
    k_phi, k_conn, k_par = jax.random.split(key, 3)

    phi = jax.random.normal(k_phi, (N, IN_CH, H, W), jnp.float32)          # NCHW
    conn = jax.random.normal(k_conn, (N, IN_CH // 2, 2 * H, 2 * W), jnp.float32)
    params = init_params(k_par, IN_CH, OUT_CH, KERNEL)

    out = convt_block_forward(phi, conn, params, kernel=KERNEL)
    out = jax.block_until_ready(out)

    assert out.shape == (N, OUT_CH, 2 * H, 2 * W), out.shape
    assert bool(jnp.all(jnp.isfinite(out)))
    print("KERNEL_OK")
</pallas_src>

<mosaic_0001>
module attributes {stable_mosaic.version = 11 : i64} {
  func.func @kernel(%arg0: i32, %arg1: memref<1x8x90xf32, #tpu.memory_space<vmem>>, %arg2: memref<4x16x8xf32, #tpu.memory_space<vmem>>, %arg3: memref<16x1xf32, #tpu.memory_space<vmem>>, %arg4: memref<1x16x72xf32, #tpu.memory_space<vmem>>) attributes {dimension_semantics = [#tpu.dimension_semantics<parallel>], iteration_bounds = array<i64: 2>, scalar_prefetch = 0 : i64, scratch_operands = 0 : i64, tpu.core_type = #tpu.core_type<tc>, window_params = [{transform_indices = @transform_0, window_bounds = array<i64: 1, 8, 90>}, {pipeline_mode = #tpu.pipeline_mode<synchronous>, transform_indices = @transform_1, window_bounds = array<i64: 4, 16, 8>}, {pipeline_mode = #tpu.pipeline_mode<synchronous>, transform_indices = @transform_2, window_bounds = array<i64: 16, 1>}, {transform_indices = @transform_3, window_bounds = array<i64: 1, 16, 72>}]} {
    %c0 = arith.constant 0 : index
    %c0_0 = arith.constant 0 : index
    %c0_1 = arith.constant 0 : index
    %0 = vector.load %arg1[%c0, %c0_0, %c0_1] : memref<1x8x90xf32, #tpu.memory_space<vmem>>, vector<1x8x72xf32>
    %1 = vector.shape_cast %0 : vector<1x8x72xf32> to vector<8x72xf32>
    %c0_2 = arith.constant 0 : index
    %c0_3 = arith.constant 0 : index
    %c0_4 = arith.constant 0 : index
    %2 = vector.load %arg2[%c0_2, %c0_3, %c0_4] : memref<4x16x8xf32, #tpu.memory_space<vmem>>, vector<1x16x8xf32>
    %3 = vector.shape_cast %2 : vector<1x16x8xf32> to vector<16x8xf32>
    %cst = arith.constant dense<0.000000e+00> : vector<16x72xf32>
    %4 = tpu.matmul %3, %1, %cst {dimension_numbers = #tpu.dot_dimension_numbers<[1], [0], [0], [1], [0, 0, 1, 1], [], []>} : vector<16x8xf32>, vector<8x72xf32>, vector<16x72xf32> -> vector<16x72xf32>
    %c0_5 = arith.constant 0 : index
    %c0_6 = arith.constant 0 : index
    %c1 = arith.constant 1 : index
    %5 = vector.load %arg1[%c0_5, %c0_6, %c1] : memref<1x8x90xf32, #tpu.memory_space<vmem>>, vector<1x8x72xf32>
    %6 = vector.shape_cast %5 : vector<1x8x72xf32> to vector<8x72xf32>
    %c1_7 = arith.constant 1 : index
    %c0_8 = arith.constant 0 : index
    %c0_9 = arith.constant 0 : index
    %7 = vector.load %arg2[%c1_7, %c0_8, %c0_9] : memref<4x16x8xf32, #tpu.memory_space<vmem>>, vector<1x16x8xf32>
    %8 = vector.shape_cast %7 : vector<1x16x8xf32> to vector<16x8xf32>
    %cst_10 = arith.constant dense<0.000000e+00> : vector<16x72xf32>
    %9 = tpu.matmul %8, %6, %cst_10 {dimension_numbers = #tpu.dot_dimension_numbers<[1], [0], [0], [1], [0, 0, 1, 1], [], []>} : vector<16x8xf32>, vector<8x72xf32>, vector<16x72xf32> -> vector<16x72xf32>
    %10 = arith.addf %4, %9 : vector<16x72xf32>
    %c0_11 = arith.constant 0 : index
    %c0_12 = arith.constant 0 : index
    %c9 = arith.constant 9 : index
    %11 = vector.load %arg1[%c0_11, %c0_12, %c9] : memref<1x8x90xf32, #tpu.memory_space<vmem>>, vector<1x8x72xf32>
    %12 = vector.shape_cast %11 : vector<1x8x72xf32> to vector<8x72xf32>
    %c2 = arith.constant 2 : index
    %c0_13 = arith.constant 0 : index
    %c0_14 = arith.constant 0 : index
    %13 = vector.load %arg2[%c2, %c0_13, %c0_14] : memref<4x16x8xf32, #tpu.memory_space<vmem>>, vector<1x16x8xf32>
    %14 = vector.shape_cast %13 : vector<1x16x8xf32> to vector<16x8xf32>
    %cst_15 = arith.constant dense<0.000000e+00> : vector<16x72xf32>
    %15 = tpu.matmul %14, %12, %cst_15 {dimension_numbers = #tpu.dot_dimension_numbers<[1], [0], [0], [1], [0, 0, 1, 1], [], []>} : vector<16x8xf32>, vector<8x72xf32>, vector<16x72xf32> -> vector<16x72xf32>
    %16 = arith.addf %10, %15 : vector<16x72xf32>
    %c0_16 = arith.constant 0 : index
    %c0_17 = arith.constant 0 : index
    %c10 = arith.constant 10 : index
    %17 = vector.load %arg1[%c0_16, %c0_17, %c10] : memref<1x8x90xf32, #tpu.memory_space<vmem>>, vector<1x8x72xf32>
    %18 = vector.shape_cast %17 : vector<1x8x72xf32> to vector<8x72xf32>
    %c3 = arith.constant 3 : index
    %c0_18 = arith.constant 0 : index
    %c0_19 = arith.constant 0 : index
    %19 = vector.load %arg2[%c3, %c0_18, %c0_19] : memref<4x16x8xf32, #tpu.memory_space<vmem>>, vector<1x16x8xf32>
    %20 = vector.shape_cast %19 : vector<1x16x8xf32> to vector<16x8xf32>
    %cst_20 = arith.constant dense<0.000000e+00> : vector<16x72xf32>
    %21 = tpu.matmul %20, %18, %cst_20 {dimension_numbers = #tpu.dot_dimension_numbers<[1], [0], [0], [1], [0, 0, 1, 1], [], []>} : vector<16x8xf32>, vector<8x72xf32>, vector<16x72xf32> -> vector<16x72xf32>
    %22 = arith.addf %16, %21 : vector<16x72xf32>
    %c0_21 = arith.constant 0 : index
    %c0_22 = arith.constant 0 : index
    %23 = vector.load %arg3[%c0_21, %c0_22] : memref<16x1xf32, #tpu.memory_space<vmem>>, vector<16x1xf32>
    %24 = vector.broadcast %23 : vector<16x1xf32> to vector<16x72xf32>
    %25 = arith.addf %22, %24 : vector<16x72xf32>
    %c0_23 = arith.constant 0 : index
    %c0_24 = arith.constant 0 : index
    %c0_25 = arith.constant 0 : index
    %26 = vector.load %arg4[%c0_23, %c0_24, %c0_25] : memref<1x16x72xf32, #tpu.memory_space<vmem>>, vector<1x16x72xf32>
    %27 = vector.shape_cast %26 : vector<1x16x72xf32> to vector<16x72xf32>
    %28 = vector.shape_cast %25 : vector<16x72xf32> to vector<1x16x72xf32>
    tpu.vector_store %arg4[%c0_23, %c0_24, %c0_25], %28 {strides = array<i32>} : memref<1x16x72xf32, #tpu.memory_space<vmem>>, vector<1x16x72xf32>,
    return
  }
  func.func @transform_0(%arg0: i32) -> (i32, i32, i32) {
    %c0_i32 = arith.constant 0 : i32
    %c0_i32_0 = arith.constant 0 : i32
    %c0_i32_1 = arith.constant 0 : i32
    return %arg0, %c0_i32, %c0_i32_0 : i32, i32, i32
  }
  func.func @transform_1(%arg0: i32) -> (i32, i32, i32) {
    %c0_i32 = arith.constant 0 : i32
    %c0_i32_0 = arith.constant 0 : i32
    %c0_i32_1 = arith.constant 0 : i32
    %c0_i32_2 = arith.constant 0 : i32
    return %c0_i32, %c0_i32_0, %c0_i32_1 : i32, i32, i32
  }
  func.func @transform_2(%arg0: i32) -> (i32, i32) {
    %c0_i32 = arith.constant 0 : i32
    %c0_i32_0 = arith.constant 0 : i32
    %c0_i32_1 = arith.constant 0 : i32
    return %c0_i32, %c0_i32_0 : i32, i32
  }
  func.func @transform_3(%arg0: i32) -> (i32, i32, i32) {
    %c0_i32 = arith.constant 0 : i32
    %c0_i32_0 = arith.constant 0 : i32
    %c0_i32_1 = arith.constant 0 : i32
    return %arg0, %c0_i32, %c0_i32_0 : i32, i32, i32
  }
}

module attributes {stable_mosaic.version = 11 : i64} {
  func.func @kernel(%arg0: i32, %arg1: memref<1x4x326xf32, #tpu.memory_space<vmem>>, %arg2: memref<1x4x326xf32, #tpu.memory_space<vmem>>, %arg3: memref<9x8x4xf32, #tpu.memory_space<vmem>>, %arg4: memref<9x8x4xf32, #tpu.memory_space<vmem>>, %arg5: memref<8x1xf32, #tpu.memory_space<vmem>>, %arg6: memref<1x8x288xf32, #tpu.memory_space<vmem>>) attributes {dimension_semantics = [#tpu.dimension_semantics<parallel>], iteration_bounds = array<i64: 2>, scalar_prefetch = 0 : i64, scratch_operands = 0 : i64, tpu.core_type = #tpu.core_type<tc>, window_params = [{transform_indices = @transform_0, window_bounds = array<i64: 1, 4, 326>}, {transform_indices = @transform_1, window_bounds = array<i64: 1, 4, 326>}, {pipeline_mode = #tpu.pipeline_mode<synchronous>, transform_indices = @transform_2, window_bounds = array<i64: 9, 8, 4>}, {pipeline_mode = #tpu.pipeline_mode<synchronous>, transform_indices = @transform_3, window_bounds = array<i64: 9, 8, 4>}, {pipeline_mode = #tpu.pipeline_mode<synchronous>, transform_indices = @transform_4, window_bounds = array<i64: 8, 1>}, {transform_indices = @transform_5, window_bounds = array<i64: 1, 8, 288>}]} {
    %c0 = arith.constant 0 : index
    %c0_0 = arith.constant 0 : index
    %c0_1 = arith.constant 0 : index
    %0 = vector.load %arg1[%c0, %c0_0, %c0_1] : memref<1x4x326xf32, #tpu.memory_space<vmem>>, vector<1x4x288xf32>
    %1 = vector.shape_cast %0 : vector<1x4x288xf32> to vector<4x288xf32>
    %c0_2 = arith.constant 0 : index
    %c0_3 = arith.constant 0 : index
    %c0_4 = arith.constant 0 : index
    %2 = vector.load %arg3[%c0_2, %c0_3, %c0_4] : memref<9x8x4xf32, #tpu.memory_space<vmem>>, vector<1x8x4xf32>
    %3 = vector.shape_cast %2 : vector<1x8x4xf32> to vector<8x4xf32>
    %cst = arith.constant dense<0.000000e+00> : vector<8x288xf32>
    %4 = tpu.matmul %3, %1, %cst {dimension_numbers = #tpu.dot_dimension_numbers<[1], [0], [0], [1], [0, 0, 1, 1], [], []>} : vector<8x4xf32>, vector<4x288xf32>, vector<8x288xf32> -> vector<8x288xf32>
    %c0_5 = arith.constant 0 : index
    %c0_6 = arith.constant 0 : index
    %c0_7 = arith.constant 0 : index
    %5 = vector.load %arg2[%c0_5, %c0_6, %c0_7] : memref<1x4x326xf32, #tpu.memory_space<vmem>>, vector<1x4x288xf32>
    %6 = vector.shape_cast %5 : vector<1x4x288xf32> to vector<4x288xf32>
    %c0_8 = arith.constant 0 : index
    %c0_9 = arith.constant 0 : index
    %c0_10 = arith.constant 0 : index
    %7 = vector.load %arg4[%c0_8, %c0_9, %c0_10] : memref<9x8x4xf32, #tpu.memory_space<vmem>>, vector<1x8x4xf32>
    %8 = vector.shape_cast %7 : vector<1x8x4xf32> to vector<8x4xf32>
    %cst_11 = arith.constant dense<0.000000e+00> : vector<8x288xf32>
    %9 = tpu.matmul %8, %6, %cst_11 {dimension_numbers = #tpu.dot_dimension_numbers<[1], [0], [0], [1], [0, 0, 1, 1], [], []>} : vector<8x4xf32>, vector<4x288xf32>, vector<8x288xf32> -> vector<8x288xf32>
    %10 = arith.addf %4, %9 : vector<8x288xf32>
    %c0_12 = arith.constant 0 : index
    %c0_13 = arith.constant 0 : index
    %c1 = arith.constant 1 : index
    %11 = vector.load %arg1[%c0_12, %c0_13, %c1] : memref<1x4x326xf32, #tpu.memory_space<vmem>>, vector<1x4x288xf32>
    %12 = vector.shape_cast %11 : vector<1x4x288xf32> to vector<4x288xf32>
    %c1_14 = arith.constant 1 : index
    %c0_15 = arith.constant 0 : index
    %c0_16 = arith.constant 0 : index
    %13 = vector.load %arg3[%c1_14, %c0_15, %c0_16] : memref<9x8x4xf32, #tpu.memory_space<vmem>>, vector<1x8x4xf32>
    %14 = vector.shape_cast %13 : vector<1x8x4xf32> to vector<8x4xf32>
    %cst_17 = arith.constant dense<0.000000e+00> : vector<8x288xf32>
    %15 = tpu.matmul %14, %12, %cst_17 {dimension_numbers = #tpu.dot_dimension_numbers<[1], [0], [0], [1], [0, 0, 1, 1], [], []>} : vector<8x4xf32>, vector<4x288xf32>, vector<8x288xf32> -> vector<8x288xf32>
    %16 = arith.addf %10, %15 : vector<8x288xf32>
    %c0_18 = arith.constant 0 : index
    %c0_19 = arith.constant 0 : index
    %c1_20 = arith.constant 1 : index
    %17 = vector.load %arg2[%c0_18, %c0_19, %c1_20] : memref<1x4x326xf32, #tpu.memory_space<vmem>>, vector<1x4x288xf32>
    %18 = vector.shape_cast %17 : vector<1x4x288xf32> to vector<4x288xf32>
    %c1_21 = arith.constant 1 : index
    %c0_22 = arith.constant 0 : index
    %c0_23 = arith.constant 0 : index
    %19 = vector.load %arg4[%c1_21, %c0_22, %c0_23] : memref<9x8x4xf32, #tpu.memory_space<vmem>>, vector<1x8x4xf32>
    %20 = vector.shape_cast %19 : vector<1x8x4xf32> to vector<8x4xf32>
    %cst_24 = arith.constant dense<0.000000e+00> : vector<8x288xf32>
    %21 = tpu.matmul %20, %18, %cst_24 {dimension_numbers = #tpu.dot_dimension_numbers<[1], [0], [0], [1], [0, 0, 1, 1], [], []>} : vector<8x4xf32>, vector<4x288xf32>, vector<8x288xf32> -> vector<8x288xf32>
    %22 = arith.addf %16, %21 : vector<8x288xf32>
    %c0_25 = arith.constant 0 : index
    %c0_26 = arith.constant 0 : index
    %c2 = arith.constant 2 : index
    %23 = vector.load %arg1[%c0_25, %c0_26, %c2] : memref<1x4x326xf32, #tpu.memory_space<vmem>>, vector<1x4x288xf32>
    %24 = vector.shape_cast %23 : vector<1x4x288xf32> to vector<4x288xf32>
    %c2_27 = arith.constant 2 : index
    %c0_28 = arith.constant 0 : index
    %c0_29 = arith.constant 0 : index
    %25 = vector.load %arg3[%c2_27, %c0_28, %c0_29] : memref<9x8x4xf32, #tpu.memory_space<vmem>>, vector<1x8x4xf32>
    %26 = vector.shape_cast %25 : vector<1x8x4xf32> to vector<8x4xf32>
    %cst_30 = arith.constant dense<0.000000e+00> : vector<8x288xf32>
    %27 = tpu.matmul %26, %24, %cst_30 {dimension_numbers = #tpu.dot_dimension_numbers<[1], [0], [0], [1], [0, 0, 1, 1], [], []>} : vector<8x4xf32>, vector<4x288xf32>, vector<8x288xf32> -> vector<8x288xf32>
    %28 = arith.addf %22, %27 : vector<8x288xf32>
    %c0_31 = arith.constant 0 : index
    %c0_32 = arith.constant 0 : index
    %c2_33 = arith.constant 2 : index
    %29 = vector.load %arg2[%c0_31, %c0_32, %c2_33] : memref<1x4x326xf32, #tpu.memory_space<vmem>>, vector<1x4x288xf32>
    %30 = vector.shape_cast %29 : vector<1x4x288xf32> to vector<4x288xf32>
    %c2_34 = arith.constant 2 : index
    %c0_35 = arith.constant 0 : index
    %c0_36 = arith.constant 0 : index
    %31 = vector.load %arg4[%c2_34, %c0_35, %c0_36] : memref<9x8x4xf32, #tpu.memory_space<vmem>>, vector<1x8x4xf32>
    %32 = vector.shape_cast %31 : vector<1x8x4xf32> to vector<8x4xf32>
    %cst_37 = arith.constant dense<0.000000e+00> : vector<8x288xf32>
    %33 = tpu.matmul %32, %30, %cst_37 {dimension_numbers = #tpu.dot_dimension_numbers<[1], [0], [0], [1], [0, 0, 1, 1], [], []>} : vector<8x4xf32>, vector<4x288xf32>, vector<8x288xf32> -> vector<8x288xf32>
    %34 = arith.addf %28, %33 : vector<8x288xf32>
    %c0_38 = arith.constant 0 : index
    %c0_39 = arith.constant 0 : index
    %c18 = arith.constant 18 : index
    %35 = vector.load %arg1[%c0_38, %c0_39, %c18] : memref<1x4x326xf32, #tpu.memory_space<vmem>>, vector<1x4x288xf32>
    %36 = vector.shape_cast %35 : vector<1x4x288xf32> to vector<4x288xf32>
    %c3 = arith.constant 3 : index
    %c0_40 = arith.constant 0 : index
    %c0_41 = arith.constant 0 : index
    %37 = vector.load %arg3[%c3, %c0_40, %c0_41] : memref<9x8x4xf32, #tpu.memory_space<vmem>>, vector<1x8x4xf32>
    %38 = vector.shape_cast %37 : vector<1x8x4xf32> to vector<8x4xf32>
    %cst_42 = arith.constant dense<0.000000e+00> : vector<8x288xf32>
    %39 = tpu.matmul %38, %36, %cst_42 {dimension_numbers = #tpu.dot_dimension_numbers<[1], [0], [0], [1], [0, 0, 1, 1], [], []>} : vector<8x4xf32>, vector<4x288xf32>, vector<8x288xf32> -> vector<8x288xf32>
    %40 = arith.addf %34, %39 : vector<8x288xf32>
    %c0_43 = arith.constant 0 : index
    %c0_44 = arith.constant 0 : index
    %c18_45 = arith.constant 18 : index
    %41 = vector.load %arg2[%c0_43, %c0_44, %c18_45] : memref<1x4x326xf32, #tpu.memory_space<vmem>>, vector<1x4x288xf32>
    %42 = vector.shape_cast %41 : vector<1x4x288xf32> to vector<4x288xf32>
    %c3_46 = arith.constant 3 : index
    %c0_47 = arith.constant 0 : index
    %c0_48 = arith.constant 0 : index
    %43 = vector.load %arg4[%c3_46, %c0_47, %c0_48] : memref<9x8x4xf32, #tpu.memory_space<vmem>>, vector<1x8x4xf32>
    %44 = vector.shape_cast %43 : vector<1x8x4xf32> to vector<8x4xf32>
    %cst_49 = arith.constant dense<0.000000e+00> : vector<8x288xf32>
    %45 = tpu.matmul %44, %42, %cst_49 {dimension_numbers = #tpu.dot_dimension_numbers<[1], [0], [0], [1], [0, 0, 1, 1], [], []>} : vector<8x4xf32>, vector<4x288xf32>, vector<8x288xf32> -> vector<8x288xf32>
    %46 = arith.addf %40, %45 : vector<8x288xf32>
    %c0_50 = arith.constant 0 : index
    %c0_51 = arith.constant 0 : index
    %c19 = arith.constant 19 : index
    %47 = vector.load %arg1[%c0_50, %c0_51, %c19] : memref<1x4x326xf32, #tpu.memory_space<vmem>>, vector<1x4x288xf32>
    %48 = vector.shape_cast %47 : vector<1x4x288xf32> to vector<4x288xf32>
    %c4 = arith.constant 4 : index
    %c0_52 = arith.constant 0 : index
    %c0_53 = arith.constant 0 : index
    %49 = vector.load %arg3[%c4, %c0_52, %c0_53] : memref<9x8x4xf32, #tpu.memory_space<vmem>>, vector<1x8x4xf32>
    %50 = vector.shape_cast %49 : vector<1x8x4xf32> to vector<8x4xf32>
    %cst_54 = arith.constant dense<0.000000e+00> : vector<8x288xf32>
    %51 = tpu.matmul %50, %48, %cst_54 {dimension_numbers = #tpu.dot_dimension_numbers<[1], [0], [0], [1], [0, 0, 1, 1], [], []>} : vector<8x4xf32>, vector<4x288xf32>, vector<8x288xf32> -> vector<8x288xf32>
    %52 = arith.addf %46, %51 : vector<8x288xf32>
    %c0_55 = arith.constant 0 : index
    %c0_56 = arith.constant 0 : index
    %c19_57 = arith.constant 19 : index
    %53 = vector.load %arg2[%c0_55, %c0_56, %c19_57] : memref<1x4x326xf32, #tpu.memory_space<vmem>>, vector<1x4x288xf32>
    %54 = vector.shape_cast %53 : vector<1x4x288xf32> to vector<4x288xf32>
    %c4_58 = arith.constant 4 : index
    %c0_59 = arith.constant 0 : index
    %c0_60 = arith.constant 0 : index
    %55 = vector.load %arg4[%c4_58, %c0_59, %c0_60] : memref<9x8x4xf32, #tpu.memory_space<vmem>>, vector<1x8x4xf32>
    %56 = vector.shape_cast %55 : vector<1x8x4xf32> to vector<8x4xf32>
    %cst_61 = arith.constant dense<0.000000e+00> : vector<8x288xf32>
    %57 = tpu.matmul %56, %54, %cst_61 {dimension_numbers = #tpu.dot_dimension_numbers<[1], [0], [0], [1], [0, 0, 1, 1], [], []>} : vector<8x4xf32>, vector<4x288xf32>, vector<8x288xf32> -> vector<8x288xf32>
    %58 = arith.addf %52, %57 : vector<8x288xf32>
    %c0_62 = arith.constant 0 : index
    %c0_63 = arith.constant 0 : index
    %c20 = arith.constant 20 : index
    %59 = vector.load %arg1[%c0_62, %c0_63, %c20] : memref<1x4x326xf32, #tpu.memory_space<vmem>>, vector<1x4x288xf32>
    %60 = vector.shape_cast %59 : vector<1x4x288xf32> to vector<4x288xf32>
    %c5 = arith.constant 5 : index
    %c0_64 = arith.constant 0 : index
    %c0_65 = arith.constant 0 : index
    %61 = vector.load %arg3[%c5, %c0_64, %c0_65] : memref<9x8x4xf32, #tpu.memory_space<vmem>>, vector<1x8x4xf32>
    %62 = vector.shape_cast %61 : vector<1x8x4xf32> to vector<8x4xf32>
    %cst_66 = arith.constant dense<0.000000e+00> : vector<8x288xf32>
    %63 = tpu.matmul %62, %60, %cst_66 {dimension_numbers = #tpu.dot_dimension_numbers<[1], [0], [0], [1], [0, 0, 1, 1], [], []>} : vector<8x4xf32>, vector<4x288xf32>, vector<8x288xf32> -> vector<8x288xf32>
    %64 = arith.addf %58, %63 : vector<8x288xf32>
    %c0_67 = arith.constant 0 : index
    %c0_68 = arith.constant 0 : index
    %c20_69 = arith.constant 20 : index
    %65 = vector.load %arg2[%c0_67, %c0_68, %c20_69] : memref<1x4x326xf32, #tpu.memory_space<vmem>>, vector<1x4x288xf32>
    %66 = vector.shape_cast %65 : vector<1x4x288xf32> to vector<4x288xf32>
    %c5_70 = arith.constant 5 : index
    %c0_71 = arith.constant 0 : index
    %c0_72 = arith.constant 0 : index
    %67 = vector.load %arg4[%c5_70, %c0_71, %c0_72] : memref<9x8x4xf32, #tpu.memory_space<vmem>>, vector<1x8x4xf32>
    %68 = vector.shape_cast %67 : vector<1x8x4xf32> to vector<8x4xf32>
    %cst_73 = arith.constant dense<0.000000e+00> : vector<8x288xf32>
    %69 = tpu.matmul %68, %66, %cst_73 {dimension_numbers = #tpu.dot_dimension_numbers<[1], [0], [0], [1], [0, 0, 1, 1], [], []>} : vector<8x4xf32>, vector<4x288xf32>, vector<8x288xf32> -> vector<8x288xf32>
    %70 = arith.addf %64, %69 : vector<8x288xf32>
    %c0_74 = arith.constant 0 : index
    %c0_75 = arith.constant 0 : index
    %c36 = arith.constant 36 : index
    %71 = vector.load %arg1[%c0_74, %c0_75, %c36] : memref<1x4x326xf32, #tpu.memory_space<vmem>>, vector<1x4x288xf32>
    %72 = vector.shape_cast %71 : vector<1x4x288xf32> to vector<4x288xf32>
    %c6 = arith.constant 6 : index
    %c0_76 = arith.constant 0 : index
    %c0_77 = arith.constant 0 : index
    %73 = vector.load %arg3[%c6, %c0_76, %c0_77] : memref<9x8x4xf32, #tpu.memory_space<vmem>>, vector<1x8x4xf32>
    %74 = vector.shape_cast %73 : vector<1x8x4xf32> to vector<8x4xf32>
    %cst_78 = arith.constant dense<0.000000e+00> : vector<8x288xf32>
    %75 = tpu.matmul %74, %72, %cst_78 {dimension_numbers = #tpu.dot_dimension_numbers<[1], [0], [0], [1], [0, 0, 1, 1], [], []>} : vector<8x4xf32>, vector<4x288xf32>, vector<8x288xf32> -> vector<8x288xf32>
    %76 = arith.addf %70, %75 : vector<8x288xf32>
    %c0_79 = arith.constant 0 : index
    %c0_80 = arith.constant 0 : index
    %c36_81 = arith.constant 36 : index
    %77 = vector.load %arg2[%c0_79, %c0_80, %c36_81] : memref<1x4x326xf32, #tpu.memory_space<vmem>>, vector<1x4x288xf32>
    %78 = vector.shape_cast %77 : vector<1x4x288xf32> to vector<4x288xf32>
    %c6_82 = arith.constant 6 : index
    %c0_83 = arith.constant 0 : index
    %c0_84 = arith.constant 0 : index
    %79 = vector.load %arg4[%c6_82, %c0_83, %c0_84] : memref<9x8x4xf32, #tpu.memory_space<vmem>>, vector<1x8x4xf32>
    %80 = vector.shape_cast %79 : vector<1x8x4xf32> to vector<8x4xf32>
    %cst_85 = arith.constant dense<0.000000e+00> : vector<8x288xf32>
    %81 = tpu.matmul %80, %78, %cst_85 {dimension_numbers = #tpu.dot_dimension_numbers<[1], [0], [0], [1], [0, 0, 1, 1], [], []>} : vector<8x4xf32>, vector<4x288xf32>, vector<8x288xf32> -> vector<8x288xf32>
    %82 = arith.addf %76, %81 : vector<8x288xf32>
    %c0_86 = arith.constant 0 : index
    %c0_87 = arith.constant 0 : index
    %c37 = arith.constant 37 : index
    %83 = vector.load %arg1[%c0_86, %c0_87, %c37] : memref<1x4x326xf32, #tpu.memory_space<vmem>>, vector<1x4x288xf32>
    %84 = vector.shape_cast %83 : vector<1x4x288xf32> to vector<4x288xf32>
    %c7 = arith.constant 7 : index
    %c0_88 = arith.constant 0 : index
    %c0_89 = arith.constant 0 : index
    %85 = vector.load %arg3[%c7, %c0_88, %c0_89] : memref<9x8x4xf32, #tpu.memory_space<vmem>>, vector<1x8x4xf32>
    %86 = vector.shape_cast %85 : vector<1x8x4xf32> to vector<8x4xf32>
    %cst_90 = arith.constant dense<0.000000e+00> : vector<8x288xf32>
    %87 = tpu.matmul %86, %84, %cst_90 {dimension_numbers = #tpu.dot_dimension_numbers<[1], [0], [0], [1], [0, 0, 1, 1], [], []>} : vector<8x4xf32>, vector<4x288xf32>, vector<8x288xf32> -> vector<8x288xf32>
    %88 = arith.addf %82, %87 : vector<8x288xf32>
    %c0_91 = arith.constant 0 : index
    %c0_92 = arith.constant 0 : index
    %c37_93 = arith.constant 37 : index
    %89 = vector.load %arg2[%c0_91, %c0_92, %c37_93] : memref<1x4x326xf32, #tpu.memory_space<vmem>>, vector<1x4x288xf32>
    %90 = vector.shape_cast %89 : vector<1x4x288xf32> to vector<4x288xf32>
    %c7_94 = arith.constant 7 : index
    %c0_95 = arith.constant 0 : index
    %c0_96 = arith.constant 0 : index
    %91 = vector.load %arg4[%c7_94, %c0_95, %c0_96] : memref<9x8x4xf32, #tpu.memory_space<vmem>>, vector<1x8x4xf32>
    %92 = vector.shape_cast %91 : vector<1x8x4xf32> to vector<8x4xf32>
    %cst_97 = arith.constant dense<0.000000e+00> : vector<8x288xf32>
    %93 = tpu.matmul %92, %90, %cst_97 {dimension_numbers = #tpu.dot_dimension_numbers<[1], [0], [0], [1], [0, 0, 1, 1], [], []>} : vector<8x4xf32>, vector<4x288xf32>, vector<8x288xf32> -> vector<8x288xf32>
    %94 = arith.addf %88, %93 : vector<8x288xf32>
    %c0_98 = arith.constant 0 : index
    %c0_99 = arith.constant 0 : index
    %c38 = arith.constant 38 : index
    %95 = vector.load %arg1[%c0_98, %c0_99, %c38] : memref<1x4x326xf32, #tpu.memory_space<vmem>>, vector<1x4x288xf32>
    %96 = vector.shape_cast %95 : vector<1x4x288xf32> to vector<4x288xf32>
    %c8 = arith.constant 8 : index
    %c0_100 = arith.constant 0 : index
    %c0_101 = arith.constant 0 : index
    %97 = vector.load %arg3[%c8, %c0_100, %c0_101] : memref<9x8x4xf32, #tpu.memory_space<vmem>>, vector<1x8x4xf32>
    %98 = vector.shape_cast %97 : vector<1x8x4xf32> to vector<8x4xf32>
    %cst_102 = arith.constant dense<0.000000e+00> : vector<8x288xf32>
    %99 = tpu.matmul %98, %96, %cst_102 {dimension_numbers = #tpu.dot_dimension_numbers<[1], [0], [0], [1], [0, 0, 1, 1], [], []>} : vector<8x4xf32>, vector<4x288xf32>, vector<8x288xf32> -> vector<8x288xf32>
    %100 = arith.addf %94, %99 : vector<8x288xf32>
    %c0_103 = arith.constant 0 : index
    %c0_104 = arith.constant 0 : index
    %c38_105 = arith.constant 38 : index
    %101 = vector.load %arg2[%c0_103, %c0_104, %c38_105] : memref<1x4x326xf32, #tpu.memory_space<vmem>>, vector<1x4x288xf32>
    %102 = vector.shape_cast %101 : vector<1x4x288xf32> to vector<4x288xf32>
    %c8_106 = arith.constant 8 : index
    %c0_107 = arith.constant 0 : index
    %c0_108 = arith.constant 0 : index
    %103 = vector.load %arg4[%c8_106, %c0_107, %c0_108] : memref<9x8x4xf32, #tpu.memory_space<vmem>>, vector<1x8x4xf32>
    %104 = vector.shape_cast %103 : vector<1x8x4xf32> to vector<8x4xf32>
    %cst_109 = arith.constant dense<0.000000e+00> : vector<8x288xf32>
    %105 = tpu.matmul %104, %102, %cst_109 {dimension_numbers = #tpu.dot_dimension_numbers<[1], [0], [0], [1], [0, 0, 1, 1], [], []>} : vector<8x4xf32>, vector<4x288xf32>, vector<8x288xf32> -> vector<8x288xf32>
    %106 = arith.addf %100, %105 : vector<8x288xf32>
    %c0_110 = arith.constant 0 : index
    %c0_111 = arith.constant 0 : index
    %107 = vector.load %arg5[%c0_110, %c0_111] : memref<8x1xf32, #tpu.memory_space<vmem>>, vector<8x1xf32>
    %108 = vector.broadcast %107 : vector<8x1xf32> to vector<8x288xf32>
    %109 = arith.addf %106, %108 : vector<8x288xf32>
    %c0_112 = arith.constant 0 : index
    %c0_113 = arith.constant 0 : index
    %c0_114 = arith.constant 0 : index
    %110 = vector.load %arg6[%c0_112, %c0_113, %c0_114] : memref<1x8x288xf32, #tpu.memory_space<vmem>>, vector<1x8x288xf32>
    %111 = vector.shape_cast %110 : vector<1x8x288xf32> to vector<8x288xf32>
    %112 = vector.shape_cast %109 : vector<8x288xf32> to vector<1x8x288xf32>
    tpu.vector_store %arg6[%c0_112, %c0_113, %c0_114], %112 {strides = array<i32>} : memref<1x8x288xf32, #tpu.memory_space<vmem>>, vector<1x8x288xf32>,
    return
  }
  func.func @transform_0(%arg0: i32) -> (i32, i32, i32) {
    %c0_i32 = arith.constant 0 : i32
    %c0_i32_0 = arith.constant 0 : i32
    %c0_i32_1 = arith.constant 0 : i32
    return %arg0, %c0_i32, %c0_i32_0 : i32, i32, i32
  }
  func.func @transform_1(%arg0: i32) -> (i32, i32, i32) {
    %c0_i32 = arith.constant 0 : i32
    %c0_i32_0 = arith.constant 0 : i32
    %c0_i32_1 = arith.constant 0 : i32
    return %arg0, %c0_i32, %c0_i32_0 : i32, i32, i32
  }
  func.func @transform_2(%arg0: i32) -> (i32, i32, i32) {
    %c0_i32 = arith.constant 0 : i32
    %c0_i32_0 = arith.constant 0 : i32
    %c0_i32_1 = arith.constant 0 : i32
    %c0_i32_2 = arith.constant 0 : i32
    return %c0_i32, %c0_i32_0, %c0_i32_1 : i32, i32, i32
  }
  func.func @transform_3(%arg0: i32) -> (i32, i32, i32) {
    %c0_i32 = arith.constant 0 : i32
    %c0_i32_0 = arith.constant 0 : i32
    %c0_i32_1 = arith.constant 0 : i32
    %c0_i32_2 = arith.constant 0 : i32
    return %c0_i32, %c0_i32_0, %c0_i32_1 : i32, i32, i32
  }
  func.func @transform_4(%arg0: i32) -> (i32, i32) {
    %c0_i32 = arith.constant 0 : i32
    %c0_i32_0 = arith.constant 0 : i32
    %c0_i32_1 = arith.constant 0 : i32
    return %c0_i32, %c0_i32_0 : i32, i32
  }
  func.func @transform_5(%arg0: i32) -> (i32, i32, i32) {
    %c0_i32 = arith.constant 0 : i32
    %c0_i32_0 = arith.constant 0 : i32
    %c0_i32_1 = arith.constant 0 : i32
    return %arg0, %c0_i32, %c0_i32_0 : i32, i32, i32
  }
}

module attributes {stable_mosaic.version = 11 : i64} {
  func.func @kernel(%arg0: i32, %arg1: memref<1x8x326xf32, #tpu.memory_space<vmem>>, %arg2: memref<9x8x8xf32, #tpu.memory_space<vmem>>, %arg3: memref<8x1xf32, #tpu.memory_space<vmem>>, %arg4: memref<1x288xf32, #tpu.memory_space<vmem>>, %arg5: memref<1x8x288xf32, #tpu.memory_space<vmem>>, %arg6: memref<1x8x2xf32, #tpu.memory_space<vmem>>) attributes {dimension_semantics = [#tpu.dimension_semantics<parallel>], iteration_bounds = array<i64: 2>, scalar_prefetch = 0 : i64, scratch_operands = 0 : i64, tpu.core_type = #tpu.core_type<tc>, window_params = [{transform_indices = @transform_0, window_bounds = array<i64: 1, 8, 326>}, {pipeline_mode = #tpu.pipeline_mode<synchronous>, transform_indices = @transform_1, window_bounds = array<i64: 9, 8, 8>}, {pipeline_mode = #tpu.pipeline_mode<synchronous>, transform_indices = @transform_2, window_bounds = array<i64: 8, 1>}, {pipeline_mode = #tpu.pipeline_mode<synchronous>, transform_indices = @transform_3, window_bounds = array<i64: 1, 288>}, {transform_indices = @transform_4, window_bounds = array<i64: 1, 8, 288>}, {transform_indices = @transform_5, window_bounds = array<i64: 1, 8, 2>}]} {
    %c0 = arith.constant 0 : index
    %c0_0 = arith.constant 0 : index
    %c0_1 = arith.constant 0 : index
    %0 = vector.load %arg1[%c0, %c0_0, %c0_1] : memref<1x8x326xf32, #tpu.memory_space<vmem>>, vector<1x8x288xf32>
    %1 = vector.shape_cast %0 : vector<1x8x288xf32> to vector<8x288xf32>
    %c0_2 = arith.constant 0 : index
    %c0_3 = arith.constant 0 : index
    %c0_4 = arith.constant 0 : index
    %2 = vector.load %arg2[%c0_2, %c0_3, %c0_4] : memref<9x8x8xf32, #tpu.memory_space<vmem>>, vector<1x8x8xf32>
    %3 = vector.shape_cast %2 : vector<1x8x8xf32> to vector<8x8xf32>
    %cst = arith.constant dense<0.000000e+00> : vector<8x288xf32>
    %4 = tpu.matmul %3, %1, %cst {dimension_numbers = #tpu.dot_dimension_numbers<[1], [0], [0], [1], [0, 0, 1, 1], [], []>} : vector<8x8xf32>, vector<8x288xf32>, vector<8x288xf32> -> vector<8x288xf32>
    %c0_5 = arith.constant 0 : index
    %c0_6 = arith.constant 0 : index
    %c1 = arith.constant 1 : index
    %5 = vector.load %arg1[%c0_5, %c0_6, %c1] : memref<1x8x326xf32, #tpu.memory_space<vmem>>, vector<1x8x288xf32>
    %6 = vector.shape_cast %5 : vector<1x8x288xf32> to vector<8x288xf32>
    %c1_7 = arith.constant 1 : index
    %c0_8 = arith.constant 0 : index
    %c0_9 = arith.constant 0 : index
    %7 = vector.load %arg2[%c1_7, %c0_8, %c0_9] : memref<9x8x8xf32, #tpu.memory_space<vmem>>, vector<1x8x8xf32>
    %8 = vector.shape_cast %7 : vector<1x8x8xf32> to vector<8x8xf32>
    %cst_10 = arith.constant dense<0.000000e+00> : vector<8x288xf32>
    %9 = tpu.matmul %8, %6, %cst_10 {dimension_numbers = #tpu.dot_dimension_numbers<[1], [0], [0], [1], [0, 0, 1, 1], [], []>} : vector<8x8xf32>, vector<8x288xf32>, vector<8x288xf32> -> vector<8x288xf32>
    %10 = arith.addf %4, %9 : vector<8x288xf32>
    %c0_11 = arith.constant 0 : index
    %c0_12 = arith.constant 0 : index
    %c2 = arith.constant 2 : index
    %11 = vector.load %arg1[%c0_11, %c0_12, %c2] : memref<1x8x326xf32, #tpu.memory_space<vmem>>, vector<1x8x288xf32>
    %12 = vector.shape_cast %11 : vector<1x8x288xf32> to vector<8x288xf32>
    %c2_13 = arith.constant 2 : index
    %c0_14 = arith.constant 0 : index
    %c0_15 = arith.constant 0 : index
    %13 = vector.load %arg2[%c2_13, %c0_14, %c0_15] : memref<9x8x8xf32, #tpu.memory_space<vmem>>, vector<1x8x8xf32>
    %14 = vector.shape_cast %13 : vector<1x8x8xf32> to vector<8x8xf32>
    %cst_16 = arith.constant dense<0.000000e+00> : vector<8x288xf32>
    %15 = tpu.matmul %14, %12, %cst_16 {dimension_numbers = #tpu.dot_dimension_numbers<[1], [0], [0], [1], [0, 0, 1, 1], [], []>} : vector<8x8xf32>, vector<8x288xf32>, vector<8x288xf32> -> vector<8x288xf32>
    %16 = arith.addf %10, %15 : vector<8x288xf32>
    %c0_17 = arith.constant 0 : index
    %c0_18 = arith.constant 0 : index
    %c18 = arith.constant 18 : index
    %17 = vector.load %arg1[%c0_17, %c0_18, %c18] : memref<1x8x326xf32, #tpu.memory_space<vmem>>, vector<1x8x288xf32>
    %18 = vector.shape_cast %17 : vector<1x8x288xf32> to vector<8x288xf32>
    %c3 = arith.constant 3 : index
    %c0_19 = arith.constant 0 : index
    %c0_20 = arith.constant 0 : index
    %19 = vector.load %arg2[%c3, %c0_19, %c0_20] : memref<9x8x8xf32, #tpu.memory_space<vmem>>, vector<1x8x8xf32>
    %20 = vector.shape_cast %19 : vector<1x8x8xf32> to vector<8x8xf32>
    %cst_21 = arith.constant dense<0.000000e+00> : vector<8x288xf32>
    %21 = tpu.matmul %20, %18, %cst_21 {dimension_numbers = #tpu.dot_dimension_numbers<[1], [0], [0], [1], [0, 0, 1, 1], [], []>} : vector<8x8xf32>, vector<8x288xf32>, vector<8x288xf32> -> vector<8x288xf32>
    %22 = arith.addf %16, %21 : vector<8x288xf32>
    %c0_22 = arith.constant 0 : index
    %c0_23 = arith.constant 0 : index
    %c19 = arith.constant 19 : index
    %23 = vector.load %arg1[%c0_22, %c0_23, %c19] : memref<1x8x326xf32, #tpu.memory_space<vmem>>, vector<1x8x288xf32>
    %24 = vector.shape_cast %23 : vector<1x8x288xf32> to vector<8x288xf32>
    %c4 = arith.constant 4 : index
    %c0_24 = arith.constant 0 : index
    %c0_25 = arith.constant 0 : index
    %25 = vector.load %arg2[%c4, %c0_24, %c0_25] : memref<9x8x8xf32, #tpu.memory_space<vmem>>, vector<1x8x8xf32>
    %26 = vector.shape_cast %25 : vector<1x8x8xf32> to vector<8x8xf32>
    %cst_26 = arith.constant dense<0.000000e+00> : vector<8x288xf32>
    %27 = tpu.matmul %26, %24, %cst_26 {dimension_numbers = #tpu.dot_dimension_numbers<[1], [0], [0], [1], [0, 0, 1, 1], [], []>} : vector<8x8xf32>, vector<8x288xf32>, vector<8x288xf32> -> vector<8x288xf32>
    %28 = arith.addf %22, %27 : vector<8x288xf32>
    %c0_27 = arith.constant 0 : index
    %c0_28 = arith.constant 0 : index
    %c20 = arith.constant 20 : index
    %29 = vector.load %arg1[%c0_27, %c0_28, %c20] : memref<1x8x326xf32, #tpu.memory_space<vmem>>, vector<1x8x288xf32>
    %30 = vector.shape_cast %29 : vector<1x8x288xf32> to vector<8x288xf32>
    %c5 = arith.constant 5 : index
    %c0_29 = arith.constant 0 : index
    %c0_30 = arith.constant 0 : index
    %31 = vector.load %arg2[%c5, %c0_29, %c0_30] : memref<9x8x8xf32, #tpu.memory_space<vmem>>, vector<1x8x8xf32>
    %32 = vector.shape_cast %31 : vector<1x8x8xf32> to vector<8x8xf32>
    %cst_31 = arith.constant dense<0.000000e+00> : vector<8x288xf32>
    %33 = tpu.matmul %32, %30, %cst_31 {dimension_numbers = #tpu.dot_dimension_numbers<[1], [0], [0], [1], [0, 0, 1, 1], [], []>} : vector<8x8xf32>, vector<8x288xf32>, vector<8x288xf32> -> vector<8x288xf32>
    %34 = arith.addf %28, %33 : vector<8x288xf32>
    %c0_32 = arith.constant 0 : index
    %c0_33 = arith.constant 0 : index
    %c36 = arith.constant 36 : index
    %35 = vector.load %arg1[%c0_32, %c0_33, %c36] : memref<1x8x326xf32, #tpu.memory_space<vmem>>, vector<1x8x288xf32>
    %36 = vector.shape_cast %35 : vector<1x8x288xf32> to vector<8x288xf32>
    %c6 = arith.constant 6 : index
    %c0_34 = arith.constant 0 : index
    %c0_35 = arith.constant 0 : index
    %37 = vector.load %arg2[%c6, %c0_34, %c0_35] : memref<9x8x8xf32, #tpu.memory_space<vmem>>, vector<1x8x8xf32>
    %38 = vector.shape_cast %37 : vector<1x8x8xf32> to vector<8x8xf32>
    %cst_36 = arith.constant dense<0.000000e+00> : vector<8x288xf32>
    %39 = tpu.matmul %38, %36, %cst_36 {dimension_numbers = #tpu.dot_dimension_numbers<[1], [0], [0], [1], [0, 0, 1, 1], [], []>} : vector<8x8xf32>, vector<8x288xf32>, vector<8x288xf32> -> vector<8x288xf32>
    %40 = arith.addf %34, %39 : vector<8x288xf32>
    %c0_37 = arith.constant 0 : index
    %c0_38 = arith.constant 0 : index
    %c37 = arith.constant 37 : index
    %41 = vector.load %arg1[%c0_37, %c0_38, %c37] : memref<1x8x326xf32, #tpu.memory_space<vmem>>, vector<1x8x288xf32>
    %42 = vector.shape_cast %41 : vector<1x8x288xf32> to vector<8x288xf32>
    %c7 = arith.constant 7 : index
    %c0_39 = arith.constant 0 : index
    %c0_40 = arith.constant 0 : index
    %43 = vector.load %arg2[%c7, %c0_39, %c0_40] : memref<9x8x8xf32, #tpu.memory_space<vmem>>, vector<1x8x8xf32>
    %44 = vector.shape_cast %43 : vector<1x8x8xf32> to vector<8x8xf32>
    %cst_41 = arith.constant dense<0.000000e+00> : vector<8x288xf32>
    %45 = tpu.matmul %44, %42, %cst_41 {dimension_numbers = #tpu.dot_dimension_numbers<[1], [0], [0], [1], [0, 0, 1, 1], [], []>} : vector<8x8xf32>, vector<8x288xf32>, vector<8x288xf32> -> vector<8x288xf32>
    %46 = arith.addf %40, %45 : vector<8x288xf32>
    %c0_42 = arith.constant 0 : index
    %c0_43 = arith.constant 0 : index
    %c38 = arith.constant 38 : index
    %47 = vector.load %arg1[%c0_42, %c0_43, %c38] : memref<1x8x326xf32, #tpu.memory_space<vmem>>, vector<1x8x288xf32>
    %48 = vector.shape_cast %47 : vector<1x8x288xf32> to vector<8x288xf32>
    %c8 = arith.constant 8 : index
    %c0_44 = arith.constant 0 : index
    %c0_45 = arith.constant 0 : index
    %49 = vector.load %arg2[%c8, %c0_44, %c0_45] : memref<9x8x8xf32, #tpu.memory_space<vmem>>, vector<1x8x8xf32>
    %50 = vector.shape_cast %49 : vector<1x8x8xf32> to vector<8x8xf32>
    %cst_46 = arith.constant dense<0.000000e+00> : vector<8x288xf32>
    %51 = tpu.matmul %50, %48, %cst_46 {dimension_numbers = #tpu.dot_dimension_numbers<[1], [0], [0], [1], [0, 0, 1, 1], [], []>} : vector<8x8xf32>, vector<8x288xf32>, vector<8x288xf32> -> vector<8x288xf32>
    %52 = arith.addf %46, %51 : vector<8x288xf32>
    %c0_47 = arith.constant 0 : index
    %c0_48 = arith.constant 0 : index
    %53 = vector.load %arg3[%c0_47, %c0_48] : memref<8x1xf32, #tpu.memory_space<vmem>>, vector<8x1xf32>
    %54 = vector.broadcast %53 : vector<8x1xf32> to vector<8x288xf32>
    %55 = arith.addf %52, %54 : vector<8x288xf32>
    %c0_49 = arith.constant 0 : index
    %c0_50 = arith.constant 0 : index
    %c0_51 = arith.constant 0 : index
    %56 = vector.load %arg5[%c0_49, %c0_50, %c0_51] : memref<1x8x288xf32, #tpu.memory_space<vmem>>, vector<1x8x288xf32>
    %57 = vector.shape_cast %56 : vector<1x8x288xf32> to vector<8x288xf32>
    %58 = vector.shape_cast %55 : vector<8x288xf32> to vector<1x8x288xf32>
    tpu.vector_store %arg5[%c0_49, %c0_50, %c0_51], %58 {strides = array<i32>} : memref<1x8x288xf32, #tpu.memory_space<vmem>>, vector<1x8x288xf32>,
    %c0_52 = arith.constant 0 : index
    %c0_53 = arith.constant 0 : index
    %59 = vector.load %arg4[%c0_52, %c0_53] : memref<1x288xf32, #tpu.memory_space<vmem>>, vector<1x288xf32>
    %60 = vector.broadcast %59 : vector<1x288xf32> to vector<8x288xf32>
    %61 = arith.mulf %55, %60 : vector<8x288xf32>
    %cst_54 = arith.constant dense<0.000000e+00> : vector<8xf32>
    %62 = vector.multi_reduction <add>, %61, %cst_54 [1] : vector<8x288xf32> to vector<8xf32>
    %63 = vector.shape_cast %62 : vector<8xf32> to vector<8x1xf32>
    %c0_55 = arith.constant 0 : index
    %c0_56 = arith.constant 0 : index
    %c0_57 = arith.constant 0 : index
    %64 = vector.load %arg6[%c0_55, %c0_56, %c0_57] : memref<1x8x2xf32, #tpu.memory_space<vmem>>, vector<1x8x1xf32>
    %65 = vector.shape_cast %64 : vector<1x8x1xf32> to vector<8x1xf32>
    %66 = vector.shape_cast %63 : vector<8x1xf32> to vector<1x8x1xf32>
    tpu.vector_store %arg6[%c0_55, %c0_56, %c0_57], %66 {strides = array<i32>} : memref<1x8x2xf32, #tpu.memory_space<vmem>>, vector<1x8x1xf32>,
    %67 = arith.mulf %61, %61 : vector<8x288xf32>
    %cst_58 = arith.constant dense<0.000000e+00> : vector<8xf32>
    %68 = vector.multi_reduction <add>, %67, %cst_58 [1] : vector<8x288xf32> to vector<8xf32>
    %69 = vector.shape_cast %68 : vector<8xf32> to vector<8x1xf32>
    %c0_59 = arith.constant 0 : index
    %c0_60 = arith.constant 0 : index
    %c1_61 = arith.constant 1 : index
    %70 = vector.load %arg6[%c0_59, %c0_60, %c1_61] : memref<1x8x2xf32, #tpu.memory_space<vmem>>, vector<1x8x1xf32>
    %71 = vector.shape_cast %70 : vector<1x8x1xf32> to vector<8x1xf32>
    %72 = vector.shape_cast %69 : vector<8x1xf32> to vector<1x8x1xf32>
    tpu.vector_store %arg6[%c0_59, %c0_60, %c1_61], %72 {strides = array<i32>} : memref<1x8x2xf32, #tpu.memory_space<vmem>>, vector<1x8x1xf32>,
    return
  }
  func.func @transform_0(%arg0: i32) -> (i32, i32, i32) {
    %c0_i32 = arith.constant 0 : i32
    %c0_i32_0 = arith.constant 0 : i32
    %c0_i32_1 = arith.constant 0 : i32
    return %arg0, %c0_i32, %c0_i32_0 : i32, i32, i32
  }
  func.func @transform_1(%arg0: i32) -> (i32, i32, i32) {
    %c0_i32 = arith.constant 0 : i32
    %c0_i32_0 = arith.constant 0 : i32
    %c0_i32_1 = arith.constant 0 : i32
    %c0_i32_2 = arith.constant 0 : i32
    return %c0_i32, %c0_i32_0, %c0_i32_1 : i32, i32, i32
  }
  func.func @transform_2(%arg0: i32) -> (i32, i32) {
    %c0_i32 = arith.constant 0 : i32
    %c0_i32_0 = arith.constant 0 : i32
    %c0_i32_1 = arith.constant 0 : i32
    return %c0_i32, %c0_i32_0 : i32, i32
  }
  func.func @transform_3(%arg0: i32) -> (i32, i32) {
    %c0_i32 = arith.constant 0 : i32
    %c0_i32_0 = arith.constant 0 : i32
    %c0_i32_1 = arith.constant 0 : i32
    return %c0_i32, %c0_i32_0 : i32, i32
  }
  func.func @transform_4(%arg0: i32) -> (i32, i32, i32) {
    %c0_i32 = arith.constant 0 : i32
    %c0_i32_0 = arith.constant 0 : i32
    %c0_i32_1 = arith.constant 0 : i32
    return %arg0, %c0_i32, %c0_i32_0 : i32, i32, i32
  }
  func.func @transform_5(%arg0: i32) -> (i32, i32, i32) {
    %c0_i32 = arith.constant 0 : i32
    %c0_i32_0 = arith.constant 0 : i32
    %c0_i32_1 = arith.constant 0 : i32
    return %arg0, %c0_i32, %c0_i32_0 : i32, i32, i32
  }
}

module attributes {stable_mosaic.version = 11 : i64} {
  func.func @kernel(%arg0: i32, %arg1: memref<1x8x16x18xf32, #tpu.memory_space<vmem>>, %arg2: memref<8x1x1xf32, #tpu.memory_space<vmem>>, %arg3: memref<8x1x1xf32, #tpu.memory_space<vmem>>, %arg4: memref<1x8x16x16xf32, #tpu.memory_space<vmem>>) attributes {dimension_semantics = [#tpu.dimension_semantics<parallel>], iteration_bounds = array<i64: 2>, scalar_prefetch = 0 : i64, scratch_operands = 0 : i64, tpu.core_type = #tpu.core_type<tc>, window_params = [{transform_indices = @transform_0, window_bounds = array<i64: 1, 8, 16, 18>}, {pipeline_mode = #tpu.pipeline_mode<synchronous>, transform_indices = @transform_1, window_bounds = array<i64: 8, 1, 1>}, {pipeline_mode = #tpu.pipeline_mode<synchronous>, transform_indices = @transform_2, window_bounds = array<i64: 8, 1, 1>}, {transform_indices = @transform_3, window_bounds = array<i64: 1, 8, 16, 16>}]} {
    %c0 = arith.constant 0 : index
    %c0_0 = arith.constant 0 : index
    %c0_1 = arith.constant 0 : index
    %c0_2 = arith.constant 0 : index
    %0 = vector.load %arg1[%c0, %c0_0, %c0_1, %c0_2] : memref<1x8x16x18xf32, #tpu.memory_space<vmem>>, vector<1x8x16x16xf32>
    %1 = vector.shape_cast %0 : vector<1x8x16x16xf32> to vector<8x16x16xf32>
    %c0_3 = arith.constant 0 : index
    %c0_4 = arith.constant 0 : index
    %c0_5 = arith.constant 0 : index
    %2 = vector.load %arg2[%c0_3, %c0_4, %c0_5] : memref<8x1x1xf32, #tpu.memory_space<vmem>>, vector<8x1x1xf32>
    %3 = vector.broadcast %2 : vector<8x1x1xf32> to vector<8x16x16xf32>
    %4 = arith.mulf %1, %3 : vector<8x16x16xf32>
    %c0_6 = arith.constant 0 : index
    %c0_7 = arith.constant 0 : index
    %c0_8 = arith.constant 0 : index
    %5 = vector.load %arg3[%c0_6, %c0_7, %c0_8] : memref<8x1x1xf32, #tpu.memory_space<vmem>>, vector<8x1x1xf32>
    %6 = vector.broadcast %5 : vector<8x1x1xf32> to vector<8x16x16xf32>
    %7 = arith.addf %4, %6 : vector<8x16x16xf32>
    %8 = math.tanh %7 : vector<8x16x16xf32>
    %c0_9 = arith.constant 0 : index
    %c0_10 = arith.constant 0 : index
    %c0_11 = arith.constant 0 : index
    %c0_12 = arith.constant 0 : index
    %9 = vector.load %arg4[%c0_9, %c0_10, %c0_11, %c0_12] : memref<1x8x16x16xf32, #tpu.memory_space<vmem>>, vector<1x8x16x16xf32>
    %10 = vector.shape_cast %9 : vector<1x8x16x16xf32> to vector<8x16x16xf32>
    %11 = vector.shape_cast %8 : vector<8x16x16xf32> to vector<1x8x16x16xf32>
    tpu.vector_store %arg4[%c0_9, %c0_10, %c0_11, %c0_12], %11 {strides = array<i32>} : memref<1x8x16x16xf32, #tpu.memory_space<vmem>>, vector<1x8x16x16xf32>,
    return
  }
  func.func @transform_0(%arg0: i32) -> (i32, i32, i32, i32) {
    %c0_i32 = arith.constant 0 : i32
    %c0_i32_0 = arith.constant 0 : i32
    %c0_i32_1 = arith.constant 0 : i32
    %c0_i32_2 = arith.constant 0 : i32
    return %arg0, %c0_i32, %c0_i32_0, %c0_i32_1 : i32, i32, i32, i32
  }
  func.func @transform_1(%arg0: i32) -> (i32, i32, i32) {
    %c0_i32 = arith.constant 0 : i32
    %c0_i32_0 = arith.constant 0 : i32
    %c0_i32_1 = arith.constant 0 : i32
    %c0_i32_2 = arith.constant 0 : i32
    return %c0_i32, %c0_i32_0, %c0_i32_1 : i32, i32, i32
  }
  func.func @transform_2(%arg0: i32) -> (i32, i32, i32) {
    %c0_i32 = arith.constant 0 : i32
    %c0_i32_0 = arith.constant 0 : i32
    %c0_i32_1 = arith.constant 0 : i32
    %c0_i32_2 = arith.constant 0 : i32
    return %c0_i32, %c0_i32_0, %c0_i32_1 : i32, i32, i32
  }
  func.func @transform_3(%arg0: i32) -> (i32, i32, i32, i32) {
    %c0_i32 = arith.constant 0 : i32
    %c0_i32_0 = arith.constant 0 : i32
    %c0_i32_1 = arith.constant 0 : i32
    %c0_i32_2 = arith.constant 0 : i32
    return %arg0, %c0_i32, %c0_i32_0, %c0_i32_1 : i32, i32, i32, i32
  }
}

</mosaic_0001>

<llo_original>
// kernel: convt_block_forward.4
$region0: #{convt_block_forward.4}
  #allocation0 [shape = 'u32[]', space=smem, size = 0x4, offset = 0x4, fixed_abs, tag = 'smem constant byte address 0x4 - core index']
  #allocation1 [shape = 'u32[144,128]{1,0:T(1,128)}', space=vmem, size = 0x12000, scoped, tag = 'internal scratch']
  %s0 = inlined_call_operand.vmem [shape: f32[2,8,90], index: 0, kind: input, shape index: {}]
  %s1 = inlined_call_operand.vmem [shape: f32[4,16,8], index: 1, kind: input, shape index: {}]
  %s2 = inlined_call_operand.vmem [shape: f32[16,1], index: 2, kind: input, shape index: {}]
  %s3 = inlined_call_operand.vmem [shape: f32[2,16,72], index: 3, kind: output, shape index: {}]
  %s4 = sld [smem:[#allocation0]]
  $region45: #{convt_block_forward.4} parent=0
    _
  %s6 = ssub.s32 1, %s4
  %s7 = scalar_select 0, %s6, %s4
  loop: start=0, step=1, limit=4
  $region2: #{convt_block_forward.4} parent=0 // loop_pre_header
    _
  $region3: #{convt_block_forward.4} parent=0 // loop_header
    %s9 = sphi 0, %s13
    %p10 = scmp.ge.s32.totalorder %s9, 4
    %s19 = sphi 0, %s21
    %s22 = sphi 0, %s19
    %s23 = sphi 0, %s22
    %s39 = sphi 0, %s23
    %s43 = sphi 0, %s43
    %s45 = sphi 0, %s43
    %s46 = sphi 0, %s45
    %s60 = sphi 0, %s46
    %s64 = sphi 0, %s64
    %s66 = sphi 0, %s64
    %s67 = sphi 0, %s66
    %s81 = sphi 0, %s67
    %s87 = sphi 0, %s89
    %s90 = sphi 0, %s87
    %s91 = sphi 0, %s90
    %s107 = sphi 0, %s91
  $region4: #{convt_block_forward.4} parent=0 // loop_header_branch
    %12 = sbr.rel (%p10) target = $region8
  $region5: #{convt_block_forward.4} parent=0 // loop_body
    %s14 = ssub.s32 %s9, 1
    %s15 = ssub.s32 %s9, 2
    %s16 = sadd.s32 %s9, 1
    %s17 = ssub.s32 %s9, %s16
    %p18 = scmp.eq.s32.totalorder %s17, 0
    %s20 = sadd.s32 %s19, 1
    %s21 = scalar_select %p18, %s19, %s20
    %p24 = pneg %p18
    %p25 = scmp.eq.s32.totalorder %s9, 1
    %p26 = por %p24, %p25
    %p27 = scmp.ne.s32.totalorder %s19, %s22
    %p28 = scmp.eq.s32.totalorder %s9, 0
    %p29 = por %p27, %p28
    %p30 = scmp.ne.s32.totalorder %s19, %s22
    %p31 = scmp.eq.s32.totalorder %s14, 1
    %p32 = por %p30, %p31
    %p33 = scmp.ne.s32.totalorder %s22, %s23
    %p34 = scmp.eq.s32.totalorder %s14, 0
    %p35 = por %p33, %p34
    %p36 = scmp.ne.s32.totalorder %s22, %s23
    %p37 = scmp.eq.s32.totalorder %s15, 1
    %p38 = por %p36, %p37
    %p40 = scmp.ne.s32.totalorder %s23, %s39
    %p41 = scmp.eq.s32.totalorder %s15, 0
    %p42 = por %p40, %p41
    %s44 = sadd.s32 %s43, 1
    %p47 = scmp.eq.s32.totalorder %s9, 1
    %p48 = scmp.ne.s32.totalorder %s43, %s45
    %p49 = scmp.eq.s32.totalorder %s9, 0
    %p50 = por %p48, %p49
    %p51 = scmp.ne.s32.totalorder %s43, %s45
    %p52 = scmp.eq.s32.totalorder %s14, 1
    %p53 = por %p51, %p52
    %p54 = scmp.ne.s32.totalorder %s45, %s46
    %p55 = scmp.eq.s32.totalorder %s14, 0
    %p56 = por %p54, %p55
    %p57 = scmp.ne.s32.totalorder %s45, %s46
    %p58 = scmp.eq.s32.totalorder %s15, 1
    %p59 = por %p57, %p58
    %p61 = scmp.ne.s32.totalorder %s46, %s60
    %p62 = scmp.eq.s32.totalorder %s15, 0
    %p63 = por %p61, %p62
    %s65 = sadd.s32 %s64, 1
    %p68 = scmp.eq.s32.totalorder %s9, 1
    %p69 = scmp.ne.s32.totalorder %s64, %s66
    %p70 = scmp.eq.s32.totalorder %s9, 0
    %p71 = por %p69, %p70
    %p72 = scmp.ne.s32.totalorder %s64, %s66
    %p73 = scmp.eq.s32.totalorder %s14, 1
    %p74 = por %p72, %p73
    %p75 = scmp.ne.s32.totalorder %s66, %s67
    %p76 = scmp.eq.s32.totalorder %s14, 0
    %p77 = por %p75, %p76
    %p78 = scmp.ne.s32.totalorder %s66, %s67
    %p79 = scmp.eq.s32.totalorder %s15, 1
    %p80 = por %p78, %p79
    %p82 = scmp.ne.s32.totalorder %s67, %s81
    %p83 = scmp.eq.s32.totalorder %s15, 0
    %p84 = por %p82, %p83
    %s85 = ssub.s32 %s9, %s16
    %p86 = scmp.eq.s32.totalorder %s85, 0
    %s88 = sadd.s32 %s87, 1
    %s89 = scalar_select %p86, %s87, %s88
    %p92 = pneg %p86
    %p93 = scmp.eq.s32.totalorder %s9, 1
    %p94 = por %p92, %p93
    %p95 = scmp.ne.s32.totalorder %s87, %s90
    %p96 = scmp.eq.s32.totalorder %s9, 0
    %p97 = por %p95, %p96
    %p98 = scmp.ne.s32.totalorder %s87, %s90
    %p99 = scmp.eq.s32.totalorder %s14, 1
    %p100 = por %p98, %p99
    %p101 = scmp.ne.s32.totalorder %s90, %s91
    %p102 = scmp.eq.s32.totalorder %s14, 0
    %p103 = por %p101, %p102
    %p104 = scmp.ne.s32.totalorder %s90, %s91
    %p105 = scmp.eq.s32.totalorder %s15, 1
    %p106 = por %p104, %p105
    %p108 = scmp.ne.s32.totalorder %s91, %s107
    %p109 = scmp.eq.s32.totalorder %s15, 0
    %p110 = por %p108, %p109
    %p111 = scmp.le.s32.totalorder 1, %s9
    %p112 = scmp.lt.s32.totalorder %s9, 3
    %p113 = pnand %p111, %p112
    %p114 = pneg %p113
    // Predicated region
    $region9: #{convt_block_forward.4} parent=5 // pred_check
      _
    $region10: #{convt_block_forward.4} parent=5 // pred_check_branch
      %116 = sbr.rel (%p113) target = $region12
    $region11: #{convt_block_forward.4} parent=5 // pred_region
      %s117 = ssub.s32 %s9, 1
      // Predicated region
      $region13: #{convt_block_forward.4} parent=11 // pred_check
        %p118 = pneg %p56
      $region14: #{convt_block_forward.4} parent=11 // pred_check_branch
        %120 = sbr.rel (%p118) target = $region16
      $region15: #{convt_block_forward.4} parent=11 // pred_region
        _
      $region16: #{convt_block_forward.4} parent=11 // pred_fallthru
        _
      // Predicated region
      $region17: #{convt_block_forward.4} parent=11 // pred_check
        %p121 = pneg %p77
      $region18: #{convt_block_forward.4} parent=11 // pred_check_branch
        %123 = sbr.rel (%p121) target = $region20
      $region19: #{convt_block_forward.4} parent=11 // pred_region
        _
      $region20: #{convt_block_forward.4} parent=11 // pred_fallthru
        _
    $region12: #{convt_block_forward.4} parent=5 // pred_fallthru
      _
    %p124 = scmp.lt.s32.totalorder %s9, 2
    // Predicated region
    $region21: #{convt_block_forward.4} parent=5 // pred_check
      %p125 = pneg %p124
    $region22: #{convt_block_forward.4} parent=5 // pred_check_branch
      %127 = sbr.rel (%p125) target = $region24
    $region23: #{convt_block_forward.4} parent=5 // pred_region
      // Predicated region
      $region25: #{convt_block_forward.4} parent=23 // pred_check
        %p128 = pneg %p29
      $region26: #{convt_block_forward.4} parent=23 // pred_check_branch
        %130 = sbr.rel (%p128) target = $region28
      $region27: #{convt_block_forward.4} parent=23 // pred_region
        %p131 = scmp.lt.s32.totalorder %s9, 1
        %s132 = scalar_select %p131, %s9, 1
        %s133 = smul.addr %s132, 8
        %s134 = scalar_lea.vmem %s0, %s133
      $region28: #{convt_block_forward.4} parent=23 // pred_fallthru
        _
    $region24: #{convt_block_forward.4} parent=5 // pred_fallthru
      _
    %p135 = scmp.le.s32.totalorder 1, %s9
    %p136 = scmp.lt.s32.totalorder %s9, 3
    %p137 = pnand %p135, %p136
    %p138 = pneg %p137
    // Predicated region
    $region29: #{convt_block_forward.4} parent=5 // pred_check
      _
    $region30: #{convt_block_forward.4} parent=5 // pred_check_branch
      %140 = sbr.rel (%p137) target = $region32
    $region31: #{convt_block_forward.4} parent=5 // pred_region
      %s141 = ssub.s32 %s9, 1
      %p142 = scmp.lt.s32.totalorder %s14, 1
      %s143 = scalar_select %p142, %s14, 1
      %s144 = smul.addr %s143, 8
      %s145 = scalar_lea.vmem %s0, %s144
      %p146 = pneg %p35
      %p147 = pneg %p32
      %p148 = pneg %p56
      %p149 = pneg %p53
      %p150 = pneg %p77
      %p151 = pneg %p74
      %p152 = pneg %p103
      %p153 = pneg %p100
      %p154 = scmp.lt.s32.totalorder %s14, 1
      %s155 = scalar_select %p154, %s14, 1
      %s156 = smul.addr %s155, 2
      %s157 = smul.addr %s156, 8
      %s158 = scalar_lea.vmem %s3, %s157
      %p159 = scmp.lt.s32.totalorder %s14, 1
      %s160 = scalar_select %p159, %s14, 1
      %s161 = smul.addr %s160, 8
      %s162 = scalar_lea.vmem %s0, %s161
      %p163 = scmp.lt.s32.totalorder %s14, 1
      %s164 = scalar_select %p163, %s14, 1
      %s165 = smul.addr %s164, 2
      %s166 = smul.addr %s165, 8
      %s167 = scalar_lea.vmem %s3, %s166
      %v168 = vld [vmem:[%s162] sm:$0xff]
      %v169 = vld [vmem:[%s1] sm:$0xff]
      %v170 = vld [vmem:[%s1 + $0x8] sm:$0xff]
      %s171 = scalar_lea.vmem %s1, 16
      %v172 = vld [vmem:[%s171] sm:$0xff]
      %v173 = vld [vmem:[%s171 + $0x8] sm:$0xff]
      %175 = vrot.lane.b32.xlu0 %v168, 127
      %v176 = vpop.permute.xlu0 %175
      %vm178 = vcmask 64512
      %v180 = vsel %vm178, %v172, 0
      %v183 = vsel %vm178, %v173, 0
      %185 = vmatprep.subr.mxu0 0.0
      %186 = vmatpush1.msra.mxu0 %v176
      %187 = vmatprep.subr.mxu0 0.0
      %188 = vmatpush1.msra.mxu0 0.0
      %189 = vmatprep.subr.mxu0 0.0
      %190 = vmatpush1.msra.mxu0 0.0
      %191 = vmatprep.subr.mxu0 0.0
      %192 = vmatpush1.msra.mxu0 0.0
      %193 = vmatprep.subr.mxu0 0.0
      %194 = vmatpush1.msra.mxu0 0.0
      %195 = vmatprep.subr.mxu0 0.0
      %196 = vmatpush1.msra.mxu0 0.0
      %197 = vmatprep.subr.mxu0 0.0
      %198 = vmatpush1.msra.mxu0 0.0
      %199 = vmatprep.subr.mxu0 0.0
      %200 = vmatpush1.msra.mxu0 0.0
      %201 = vmatprep.subr.mxu0 0.0
      %202 = vmatpush1.msra.mxu0 0.0
      %203 = vmatprep.subr.mxu0 0.0
      %204 = vmatpush1.msra.mxu0 0.0
      %205 = vmatprep.subr.mxu0 0.0
      %206 = vmatpush1.msra.mxu0 0.0
      %207 = vmatprep.subr.mxu0 0.0
      %208 = vmatpush1.msra.mxu0 0.0
      %209 = vmatprep.subr.mxu0 0.0
      %210 = vmatpush1.msra.mxu0 0.0
      %211 = vmatprep.subr.mxu0 0.0
      %212 = vmatpush1.msra.mxu0 0.0
      %213 = vmatprep.subr.mxu0 0.0
      %214 = vmatpush1.msra.mxu0 0.0
      %215 = vmatprep.subr.mxu0 0.0
      %216 = vmatpush1.msra.mxu0 0.0
      %217 = vmatprep.subr.mxu0 0.0
      %218 = vmatpush1.msra.mxu0 0.0
      %219 = vmatprep.subr.mxu0 0.0
      %220 = vmatpush1.msra.mxu0 0.0
      %221 = vmatprep.subr.mxu0 0.0
      %222 = vmatpush1.msra.mxu0 0.0
      %223 = vmatprep.subr.mxu0 0.0
      %224 = vmatpush1.msra.mxu0 0.0
      %225 = vmatprep.subr.mxu0 0.0
      %226 = vmatpush1.msra.mxu0 0.0
      %227 = vmatprep.subr.mxu0 0.0
      %228 = vmatpush1.msra.mxu0 0.0
      %229 = vmatprep.subr.mxu0 0.0
      %230 = vmatpush1.msra.mxu0 0.0
      %231 = vmatprep.subr.mxu0 0.0
      %232 = vmatpush1.msra.mxu0 0.0
      %233 = vmatprep.subr.mxu0 0.0
      %234 = vmatpush1.msra.mxu0 0.0
      %235 = vmatprep.subr.mxu0 0.0
      %236 = vmatpush1.msra.mxu0 0.0
      %237 = vmatprep.subr.mxu0 0.0
      %238 = vmatpush1.msra.mxu0 0.0
      %239 = vmatprep.subr.mxu0 0.0
      %240 = vmatpush1.msra.mxu0 0.0
      %241 = vmatprep.subr.mxu0 0.0
      %242 = vmatpush1.msra.mxu0 0.0
      %243 = vmatprep.subr.mxu0 0.0
      %244 = vmatpush1.msra.mxu0 0.0
      %245 = vmatprep.subr.mxu0 0.0
      %246 = vmatpush1.msra.mxu0 0.0
      %247 = vmatprep.subr.mxu0 0.0
      %248 = vmatpush1.msra.mxu0 0.0
      %249 = vmatprep.mubr.f32.mxu0 0.0
      %250 = vmatmul.mubr.f32.gmra.mrb[0].mxu0 %v180
      %v251 = vpop.f32.mrb[0].mxu0
      %v252 = vadd.f32 0.0, %v251
      %v253 = vpop.f32.mrb[0].mxu0
      %254 = vmatprep.mubr.f32.mxu0 0.0
      %255 = vmatmul.mubr.f32.gmra.mrb[0].mxu0 %v183
      %v256 = vpop.f32.mrb[0].mxu0
      %v257 = vadd.f32 0.0, %v256
      %v258 = vpop.f32.mrb[0].mxu0
      %259 = vdwg.mxu0
      %v261 = vsel %vm178, %v169, 0
      %v264 = vsel %vm178, %v170, 0
      %266 = vmatprep.subr.mxu0 0.0
      %267 = vmatpush1.msra.mxu0 %v168
      %268 = vmatprep.subr.mxu0 0.0
      %269 = vmatpush1.msra.mxu0 0.0
      %270 = vmatprep.subr.mxu0 0.0
      %271 = vmatpush1.msra.mxu0 0.0
      %272 = vmatprep.subr.mxu0 0.0
      %273 = vmatpush1.msra.mxu0 0.0
      %274 = vmatprep.subr.mxu0 0.0
      %275 = vmatpush1.msra.mxu0 0.0
      %276 = vmatprep.subr.mxu0 0.0
      %277 = vmatpush1.msra.mxu0 0.0
      %278 = vmatprep.subr.mxu0 0.0
      %279 = vmatpush1.msra.mxu0 0.0
      %280 = vmatprep.subr.mxu0 0.0
      %281 = vmatpush1.msra.mxu0 0.0
      %282 = vmatprep.subr.mxu0 0.0
      %283 = vmatpush1.msra.mxu0 0.0
      %284 = vmatprep.subr.mxu0 0.0
      %285 = vmatpush1.msra.mxu0 0.0
      %286 = vmatprep.subr.mxu0 0.0
      %287 = vmatpush1.msra.mxu0 0.0
      %288 = vmatprep.subr.mxu0 0.0
      %289 = vmatpush1.msra.mxu0 0.0
      %290 = vmatprep.subr.mxu0 0.0
      %291 = vmatpush1.msra.mxu0 0.0
      %292 = vmatprep.subr.mxu0 0.0
      %293 = vmatpush1.msra.mxu0 0.0
      %294 = vmatprep.subr.mxu0 0.0
      %295 = vmatpush1.msra.mxu0 0.0
      %296 = vmatprep.subr.mxu0 0.0
      %297 = vmatpush1.msra.mxu0 0.0
      %298 = vmatprep.subr.mxu0 0.0
      %299 = vmatpush1.msra.mxu0 0.0
      %300 = vmatprep.subr.mxu0 0.0
      %301 = vmatpush1.msra.mxu0 0.0
      %302 = vmatprep.subr.mxu0 0.0
      %303 = vmatpush1.msra.mxu0 0.0
      %304 = vmatprep.subr.mxu0 0.0
      %305 = vmatpush1.msra.mxu0 0.0
      %306 = vmatprep.subr.mxu0 0.0
      %307 = vmatpush1.msra.mxu0 0.0
      %308 = vmatprep.subr.mxu0 0.0
      %309 = vmatpush1.msra.mxu0 0.0
      %310 = vmatprep.subr.mxu0 0.0
      %311 = vmatpush1.msra.mxu0 0.0
      %312 = vmatprep.subr.mxu0 0.0
      %313 = vmatpush1.msra.mxu0 0.0
      %314 = vmatprep.subr.mxu0 0.0
      %315 = vmatpush1.msra.mxu0 0.0
      %316 = vmatprep.subr.mxu0 0.0
      %317 = vmatpush1.msra.mxu0 0.0
      %318 = vmatprep.subr.mxu0 0.0
      %319 = vmatpush1.msra.mxu0 0.0
      %320 = vmatprep.subr.mxu0 0.0
      %321 = vmatpush1.msra.mxu0 0.0
      %322 = vmatprep.subr.mxu0 0.0
      %323 = vmatpush1.msra.mxu0 0.0
      %324 = vmatprep.subr.mxu0 0.0
      %325 = vmatpush1.msra.mxu0 0.0
      %326 = vmatprep.subr.mxu0 0.0
      %327 = vmatpush1.msra.mxu0 0.0
      %328 = vmatprep.subr.mxu0 0.0
      %329 = vmatpush1.msra.mxu0 0.0
      %330 = vmatprep.mubr.f32.mxu0 0.0
      %331 = vmatmul.mubr.f32.gmra.mrb[0].mxu0 %v261
      %v332 = vpop.f32.mrb[0].mxu0
      %v333 = vadd.f32 %v252, %v332
      %v334 = vpop.f32.mrb[0].mxu0
      %335 = vmatprep.mubr.f32.mxu0 0.0
      %336 = vmatmul.mubr.f32.gmra.mrb[0].mxu0 %v264
      %v337 = vpop.f32.mrb[0].mxu0
      %v338 = vadd.f32 %v257, %v337
      %v339 = vpop.f32.mrb[0].mxu0
      %340 = vdwg.mxu0
      %s341 = scalar_lea.vmem %s1, 32
      %v342 = vld [vmem:[%s341] sm:$0xff]
      %v343 = vld [vmem:[%s341 + $0x8] sm:$0xff]
      %344 = vrot.lane.b32.xlu0 %v168, 119
      %v345 = vpop.permute.xlu0 %344
      %v348 = vsel %vm178, %v342, 0
      %v351 = vsel %vm178, %v343, 0
      %353 = vmatprep.subr.mxu0 0.0
      %354 = vmatpush1.msra.mxu0 %v345
      %355 = vmatprep.subr.mxu0 0.0
      %356 = vmatpush1.msra.mxu0 0.0
      %357 = vmatprep.subr.mxu0 0.0
      %358 = vmatpush1.msra.mxu0 0.0
      %359 = vmatprep.subr.mxu0 0.0
      %360 = vmatpush1.msra.mxu0 0.0
      %361 = vmatprep.subr.mxu0 0.0
      %362 = vmatpush1.msra.mxu0 0.0
      %363 = vmatprep.subr.mxu0 0.0
      %364 = vmatpush1.msra.mxu0 0.0
      %365 = vmatprep.subr.mxu0 0.0
      %366 = vmatpush1.msra.mxu0 0.0
      %367 = vmatprep.subr.mxu0 0.0
      %368 = vmatpush1.msra.mxu0 0.0
      %369 = vmatprep.subr.mxu0 0.0
      %370 = vmatpush1.msra.mxu0 0.0
      %371 = vmatprep.subr.mxu0 0.0
      %372 = vmatpush1.msra.mxu0 0.0
      %373 = vmatprep.subr.mxu0 0.0
      %374 = vmatpush1.msra.mxu0 0.0
      %375 = vmatprep.subr.mxu0 0.0
      %376 = vmatpush1.msra.mxu0 0.0
      %377 = vmatprep.subr.mxu0 0.0
      %378 = vmatpush1.msra.mxu0 0.0
      %379 = vmatprep.subr.mxu0 0.0
      %380 = vmatpush1.msra.mxu0 0.0
      %381 = vmatprep.subr.mxu0 0.0
      %382 = vmatpush1.msra.mxu0 0.0
      %383 = vmatprep.subr.mxu0 0.0
      %384 = vmatpush1.msra.mxu0 0.0
      %385 = vmatprep.subr.mxu0 0.0
      %386 = vmatpush1.msra.mxu0 0.0
      %387 = vmatprep.subr.mxu0 0.0
      %388 = vmatpush1.msra.mxu0 0.0
      %389 = vmatprep.subr.mxu0 0.0
      %390 = vmatpush1.msra.mxu0 0.0
      %391 = vmatprep.subr.mxu0 0.0
      %392 = vmatpush1.msra.mxu0 0.0
      %393 = vmatprep.subr.mxu0 0.0
      %394 = vmatpush1.msra.mxu0 0.0
      %395 = vmatprep.subr.mxu0 0.0
      %396 = vmatpush1.msra.mxu0 0.0
      %397 = vmatprep.subr.mxu0 0.0
      %398 = vmatpush1.msra.mxu0 0.0
      %399 = vmatprep.subr.mxu0 0.0
      %400 = vmatpush1.msra.mxu0 0.0
      %401 = vmatprep.subr.mxu0 0.0
      %402 = vmatpush1.msra.mxu0 0.0
      %403 = vmatprep.subr.mxu0 0.0
      %404 = vmatpush1.msra.mxu0 0.0
      %405 = vmatprep.subr.mxu0 0.0
      %406 = vmatpush1.msra.mxu0 0.0
      %407 = vmatprep.subr.mxu0 0.0
      %408 = vmatpush1.msra.mxu0 0.0
      %409 = vmatprep.subr.mxu0 0.0
      %410 = vmatpush1.msra.mxu0 0.0
      %411 = vmatprep.subr.mxu0 0.0
      %412 = vmatpush1.msra.mxu0 0.0
      %413 = vmatprep.subr.mxu0 0.0
      %414 = vmatpush1.msra.mxu0 0.0
      %415 = vmatprep.subr.mxu0 0.0
      %416 = vmatpush1.msra.mxu0 0.0
      %417 = vmatprep.mubr.f32.mxu0 0.0
      %418 = vmatmul.mubr.f32.gmra.mrb[0].mxu0 %v348
      %v419 = vpop.f32.mrb[0].mxu0
      %v420 = vadd.f32 0.0, %v419
      %v421 = vpop.f32.mrb[0].mxu0
      %422 = vmatprep.mubr.f32.mxu0 0.0
      %423 = vmatmul.mubr.f32.gmra.mrb[0].mxu0 %v351
      %v424 = vpop.f32.mrb[0].mxu0
      %v425 = vadd.f32 0.0, %v424
      %v426 = vpop.f32.mrb[0].mxu0
      %427 = vdwg.mxu0
      %v428 = vadd.f32 %v333, %v420
      %v429 = vadd.f32 %v338, %v425
      %s430 = scalar_lea.vmem %s1, 48
      %v431 = vld [vmem:[%s430] sm:$0xff]
      %v432 = vld [vmem:[%s430 + $0x8] sm:$0xff]
      %433 = vrot.lane.b32.xlu0 %v168, 118
      %v434 = vpop.permute.xlu0 %433
      %v437 = vsel %vm178, %v431, 0
      %v440 = vsel %vm178, %v432, 0
      %442 = vmatprep.subr.mxu0 0.0
      %443 = vmatpush1.msra.mxu0 %v434
      %444 = vmatprep.subr.mxu0 0.0
      %445 = vmatpush1.msra.mxu0 0.0
      %446 = vmatprep.subr.mxu0 0.0
      %447 = vmatpush1.msra.mxu0 0.0
      %448 = vmatprep.subr.mxu0 0.0
      %449 = vmatpush1.msra.mxu0 0.0
      %450 = vmatprep.subr.mxu0 0.0
      %451 = vmatpush1.msra.mxu0 0.0
      %452 = vmatprep.subr.mxu0 0.0
      %453 = vmatpush1.msra.mxu0 0.0
      %454 = vmatprep.subr.mxu0 0.0
      %455 = vmatpush1.msra.mxu0 0.0
      %456 = vmatprep.subr.mxu0 0.0
      %457 = vmatpush1.msra.mxu0 0.0
      %458 = vmatprep.subr.mxu0 0.0
      %459 = vmatpush1.msra.mxu0 0.0
      %460 = vmatprep.subr.mxu0 0.0
      %461 = vmatpush1.msra.mxu0 0.0
      %462 = vmatprep.subr.mxu0 0.0
      %463 = vmatpush1.msra.mxu0 0.0
      %464 = vmatprep.subr.mxu0 0.0
      %465 = vmatpush1.msra.mxu0 0.0
      %466 = vmatprep.subr.mxu0 0.0
      %467 = vmatpush1.msra.mxu0 0.0
      %468 = vmatprep.subr.mxu0 0.0
      %469 = vmatpush1.msra.mxu0 0.0
      %470 = vmatprep.subr.mxu0 0.0
      %471 = vmatpush1.msra.mxu0 0.0
      %472 = vmatprep.subr.mxu0 0.0
      %473 = vmatpush1.msra.mxu0 0.0
      %474 = vmatprep.subr.mxu0 0.0
      %475 = vmatpush1.msra.mxu0 0.0
      %476 = vmatprep.subr.mxu0 0.0
      %477 = vmatpush1.msra.mxu0 0.0
      %478 = vmatprep.subr.mxu0 0.0
      %479 = vmatpush1.msra.mxu0 0.0
      %480 = vmatprep.subr.mxu0 0.0
      %481 = vmatpush1.msra.mxu0 0.0
      %482 = vmatprep.subr.mxu0 0.0
      %483 = vmatpush1.msra.mxu0 0.0
      %484 = vmatprep.subr.mxu0 0.0
      %485 = vmatpush1.msra.mxu0 0.0
      %486 = vmatprep.subr.mxu0 0.0
      %487 = vmatpush1.msra.mxu0 0.0
      %488 = vmatprep.subr.mxu0 0.0
      %489 = vmatpush1.msra.mxu0 0.0
      %490 = vmatprep.subr.mxu0 0.0
      %491 = vmatpush1.msra.mxu0 0.0
      %492 = vmatprep.subr.mxu0 0.0
      %493 = vmatpush1.msra.mxu0 0.0
      %494 = vmatprep.subr.mxu0 0.0
      %495 = vmatpush1.msra.mxu0 0.0
      %496 = vmatprep.subr.mxu0 0.0
      %497 = vmatpush1.msra.mxu0 0.0
      %498 = vmatprep.subr.mxu0 0.0
      %499 = vmatpush1.msra.mxu0 0.0
      %500 = vmatprep.subr.mxu0 0.0
      %501 = vmatpush1.msra.mxu0 0.0
      %502 = vmatprep.subr.mxu0 0.0
      %503 = vmatpush1.msra.mxu0 0.0
      %504 = vmatprep.subr.mxu0 0.0
      %505 = vmatpush1.msra.mxu0 0.0
      %506 = vmatprep.mubr.f32.mxu0 0.0
      %507 = vmatmul.mubr.f32.gmra.mrb[0].mxu0 %v437
      %v508 = vpop.f32.mrb[0].mxu0
      %v509 = vadd.f32 0.0, %v508
      %v510 = vpop.f32.mrb[0].mxu0
      %511 = vmatprep.mubr.f32.mxu0 0.0
      %512 = vmatmul.mubr.f32.gmra.mrb[0].mxu0 %v440
      %v513 = vpop.f32.mrb[0].mxu0
      %v514 = vadd.f32 0.0, %v513
      %v515 = vpop.f32.mrb[0].mxu0
      %516 = vdwg.mxu0
      %v517 = vadd.f32 %v428, %v509
      %v518 = vadd.f32 %v429, %v514
      %v519 = vld [vmem:[%s2] sm:$0xff]
      %v520 = vld [vmem:[%s2 + $0x8] sm:$0xff]
      %522 = vset.pattern.permute.xlu0 0
      %523 = vperm.xlu0 %522, %v519
      %v524 = vpop.permute.xlu0 %523
      %527 = vset.pattern.permute.xlu0 0
      %528 = vperm.xlu0 %527, %v520
      %v529 = vpop.permute.xlu0 %528
      %v531 = vadd.f32 %v517, %v524
      %v532 = vadd.f32 %v518, %v529
      %vm533 = vcmask 588800
      %534 = vst.msk [vmem:[%s167] sm:$0xff] %vm533, %v531
      %535 = vst.msk [vmem:[%s167 + $0x8] sm:$0xff] %vm533, %v532
      %p536 = scmp.lt.s32.totalorder %s14, 1
      %s537 = scalar_select %p536, %s14, 1
      %s538 = smul.addr %s537, 2
      %s539 = smul.addr %s538, 8
      %s540 = scalar_lea.vmem %s3, %s539
      // Predicated region
      $region33: #{convt_block_forward.4} parent=31 // pred_check
        %p541 = pneg %p100
      $region34: #{convt_block_forward.4} parent=31 // pred_check_branch
        %543 = sbr.rel (%p541) target = $region36
      $region35: #{convt_block_forward.4} parent=31 // pred_region
        _
      $region36: #{convt_block_forward.4} parent=31 // pred_fallthru
        _
    $region32: #{convt_block_forward.4} parent=5 // pred_fallthru
      _
    %p544 = scmp.le.s32.totalorder 2, %s9
    // Predicated region
    $region37: #{convt_block_forward.4} parent=5 // pred_check
      %p545 = pneg %p544
    $region38: #{convt_block_forward.4} parent=5 // pred_check_branch
      %547 = sbr.rel (%p545) target = $region40
    $region39: #{convt_block_forward.4} parent=5 // pred_region
      %s548 = ssub.s32 %s9, 2
      // Predicated region
      $region41: #{convt_block_forward.4} parent=39 // pred_check
        %p549 = pneg %p106
      $region42: #{convt_block_forward.4} parent=39 // pred_check_branch
        %551 = sbr.rel (%p549) target = $region44
      $region43: #{convt_block_forward.4} parent=39 // pred_region
        %p552 = scmp.lt.s32.totalorder %s15, 1
        %s553 = scalar_select %p552, %s15, 1
        %s554 = smul.addr %s553, 2
        %s555 = smul.addr %s554, 8
        %s556 = scalar_lea.vmem %s3, %s555
      $region44: #{convt_block_forward.4} parent=39 // pred_fallthru
        _
    $region40: #{convt_block_forward.4} parent=5 // pred_fallthru
      _
  $region6: #{convt_block_forward.4} parent=0 // loop_footer
    %s13 = sadd.s32 1, %s9
  $region7: #{convt_block_forward.4} parent=0 // loop_footer_branch
    %8 = sbr.rel target = $region3
  $region8: #{convt_block_forward.4} parent=0 // loop_exit
    _

// kernel: convt_block_forward.7
$region0: #{convt_block_forward.7}
  #allocation0 [shape = 'u32[]', space=smem, size = 0x4, offset = 0x4, fixed_abs, tag = 'smem constant byte address 0x4 - core index']
  #allocation1 [shape = 'u32[144,128]{1,0:T(1,128)}', space=vmem, size = 0x12000, scoped, tag = 'internal scratch']
  %s0 = inlined_call_operand.vmem [shape: f32[2,8,16,18], index: 0, kind: input, shape index: {}]
  %s1 = inlined_call_operand.vmem [shape: f32[8,1,1], index: 1, kind: input, shape index: {}]
  %s2 = inlined_call_operand.vmem [shape: f32[8,1,1], index: 2, kind: input, shape index: {}]
  %s3 = inlined_call_operand.hbm [shape: f32[2,8,16,16], index: 3, kind: output, shape index: {}]
  %s4 = sld [smem:[#allocation0]]
  $region45: #{convt_block_forward.7} parent=0
    _
  %s6 = ssub.s32 1, %s4
  %s7 = scalar_select 0, %s6, %s4
  $region1: #{convt_block_forward.7} parent=0
    #allocation2 [shape = 'u8[131072]{0}', space=vmem, size = 0x20000, scoped, tag = 'output window, operand 0']
    #allocation3 [shape = 's32[2]{0}', space=sflag, size = 0x8, scoped, tag = 'scoped memory for convt_block_forward.7']
    %8 = vsyncpa [#allocation3], 0
    %s9 = scalar_lea.sflag [#allocation3], 1
    %10 = vsyncpa %s9, 0
    loop: start=0, step=1, limit=4
    $region2: #{convt_block_forward.7} parent=1 // loop_pre_header
      _
    $region3: #{convt_block_forward.7} parent=1 // loop_header
      %s12 = sphi 0, %s16
      %p13 = scmp.ge.s32.totalorder %s12, 4
      %s22 = sphi 0, %s24
      %s25 = sphi 0, %s22
      %s26 = sphi 0, %s25
      %s42 = sphi 0, %s26
      %s46 = sphi 0, %s46
      %s48 = sphi 0, %s46
      %s49 = sphi 0, %s48
      %s63 = sphi 0, %s49
      %s67 = sphi 0, %s67
      %s69 = sphi 0, %s67
      %s70 = sphi 0, %s69
      %s84 = sphi 0, %s70
      %s90 = sphi 0, %s92
      %s93 = sphi 0, %s90
      %s94 = sphi 0, %s93
      %s110 = sphi 0, %s94
    $region4: #{convt_block_forward.7} parent=1 // loop_header_branch
      %15 = sbr.rel (%p13) target = $region8
    $region5: #{convt_block_forward.7} parent=1 // loop_body
      %s17 = ssub.s32 %s12, 1
      %s18 = ssub.s32 %s12, 2
      %s19 = sadd.s32 %s12, 1
      %s20 = ssub.s32 %s12, %s19
      %p21 = scmp.eq.s32.totalorder %s20, 0
      %s23 = sadd.s32 %s22, 1
      %s24 = scalar_select %p21, %s22, %s23
      %p27 = pneg %p21
      %p28 = scmp.eq.s32.totalorder %s12, 1
      %p29 = por %p27, %p28
      %p30 = scmp.ne.s32.totalorder %s22, %s25
      %p31 = scmp.eq.s32.totalorder %s12, 0
      %p32 = por %p30, %p31
      %p33 = scmp.ne.s32.totalorder %s22, %s25
      %p34 = scmp.eq.s32.totalorder %s17, 1
      %p35 = por %p33, %p34
      %p36 = scmp.ne.s32.totalorder %s25, %s26
      %p37 = scmp.eq.s32.totalorder %s17, 0
      %p38 = por %p36, %p37
      %p39 = scmp.ne.s32.totalorder %s25, %s26
      %p40 = scmp.eq.s32.totalorder %s18, 1
      %p41 = por %p39, %p40
      %p43 = scmp.ne.s32.totalorder %s26, %s42
      %p44 = scmp.eq.s32.totalorder %s18, 0
      %p45 = por %p43, %p44
      %s47 = sadd.s32 %s46, 1
      %p50 = scmp.eq.s32.totalorder %s12, 1
      %p51 = scmp.ne.s32.totalorder %s46, %s48
      %p52 = scmp.eq.s32.totalorder %s12, 0
      %p53 = por %p51, %p52
      %p54 = scmp.ne.s32.totalorder %s46, %s48
      %p55 = scmp.eq.s32.totalorder %s17, 1
      %p56 = por %p54, %p55
      %p57 = scmp.ne.s32.totalorder %s48, %s49
      %p58 = scmp.eq.s32.totalorder %s17, 0
      %p59 = por %p57, %p58
      %p60 = scmp.ne.s32.totalorder %s48, %s49
      %p61 = scmp.eq.s32.totalorder %s18, 1
      %p62 = por %p60, %p61
      %p64 = scmp.ne.s32.totalorder %s49, %s63
      %p65 = scmp.eq.s32.totalorder %s18, 0
      %p66 = por %p64, %p65
      %s68 = sadd.s32 %s67, 1
      %p71 = scmp.eq.s32.totalorder %s12, 1
      %p72 = scmp.ne.s32.totalorder %s67, %s69
      %p73 = scmp.eq.s32.totalorder %s12, 0
      %p74 = por %p72, %p73
      %p75 = scmp.ne.s32.totalorder %s67, %s69
      %p76 = scmp.eq.s32.totalorder %s17, 1
      %p77 = por %p75, %p76
      %p78 = scmp.ne.s32.totalorder %s69, %s70
      %p79 = scmp.eq.s32.totalorder %s17, 0
      %p80 = por %p78, %p79
      %p81 = scmp.ne.s32.totalorder %s69, %s70
      %p82 = scmp.eq.s32.totalorder %s18, 1
      %p83 = por %p81, %p82
      %p85 = scmp.ne.s32.totalorder %s70, %s84
      %p86 = scmp.eq.s32.totalorder %s18, 0
      %p87 = por %p85, %p86
      %s88 = ssub.s32 %s12, %s19
      %p89 = scmp.eq.s32.totalorder %s88, 0
      %s91 = sadd.s32 %s90, 1
      %s92 = scalar_select %p89, %s90, %s91
      %p95 = pneg %p89
      %p96 = scmp.eq.s32.totalorder %s12, 1
      %p97 = por %p95, %p96
      %p98 = scmp.ne.s32.totalorder %s90, %s93
      %p99 = scmp.eq.s32.totalorder %s12, 0
      %p100 = por %p98, %p99
      %p101 = scmp.ne.s32.totalorder %s90, %s93
      %p102 = scmp.eq.s32.totalorder %s17, 1
      %p103 = por %p101, %p102
      %p104 = scmp.ne.s32.totalorder %s93, %s94
      %p105 = scmp.eq.s32.totalorder %s17, 0
      %p106 = por %p104, %p105
      %p107 = scmp.ne.s32.totalorder %s93, %s94
      %p108 = scmp.eq.s32.totalorder %s18, 1
      %p109 = por %p107, %p108
      %p111 = scmp.ne.s32.totalorder %s94, %s110
      %p112 = scmp.eq.s32.totalorder %s18, 0
      %p113 = por %p111, %p112
      %p114 = scmp.le.s32.totalorder 1, %s12
      %p115 = scmp.lt.s32.totalorder %s12, 3
      %p116 = pnand %p114, %p115
      %p117 = pneg %p116
      // Predicated region
      $region9: #{convt_block_forward.7} parent=5 // pred_check
        _
      $region10: #{convt_block_forward.7} parent=5 // pred_check_branch
        %119 = sbr.rel (%p116) target = $region12
      $region11: #{convt_block_forward.7} parent=5 // pred_region
        %s120 = ssub.s32 %s12, 1
        // Predicated region
        $region13: #{convt_block_forward.7} parent=11 // pred_check
          %p121 = pneg %p59
        $region14: #{convt_block_forward.7} parent=11 // pred_check_branch
          %123 = sbr.rel (%p121) target = $region16
        $region15: #{convt_block_forward.7} parent=11 // pred_region
          _
        $region16: #{convt_block_forward.7} parent=11 // pred_fallthru
          _
        // Predicated region
        $region17: #{convt_block_forward.7} parent=11 // pred_check
          %p124 = pneg %p80
        $region18: #{convt_block_forward.7} parent=11 // pred_check_branch
          %126 = sbr.rel (%p124) target = $region20
        $region19: #{convt_block_forward.7} parent=11 // pred_region
          _
        $region20: #{convt_block_forward.7} parent=11 // pred_fallthru
          _
      $region12: #{convt_block_forward.7} parent=5 // pred_fallthru
        _
      %p127 = scmp.lt.s32.totalorder %s12, 2
      // Predicated region
      $region21: #{convt_block_forward.7} parent=5 // pred_check
        %p128 = pneg %p127
      $region22: #{convt_block_forward.7} parent=5 // pred_check_branch
        %130 = sbr.rel (%p128) target = $region24
      $region23: #{convt_block_forward.7} parent=5 // pred_region
        // Predicated region
        $region25: #{convt_block_forward.7} parent=23 // pred_check
          %p131 = pneg %p32
        $region26: #{convt_block_forward.7} parent=23 // pred_check_branch
          %133 = sbr.rel (%p131) target = $region28
        $region27: #{convt_block_forward.7} parent=23 // pred_region
          %p134 = scmp.lt.s32.totalorder %s12, 1
          %s135 = scalar_select %p134, %s12, 1
          %s136 = smul.addr %s135, 16
          %s137 = smul.addr %s136, 8
          %s138 = scalar_lea.vmem %s0, %s137
        $region28: #{convt_block_forward.7} parent=23 // pred_fallthru
          _
      $region24: #{convt_block_forward.7} parent=5 // pred_fallthru
        _
      %p139 = scmp.le.s32.totalorder 1, %s12
      %p140 = scmp.lt.s32.totalorder %s12, 3
      %p141 = pnand %p139, %p140
      %p142 = pneg %p141
      // Predicated region
      $region29: #{convt_block_forward.7} parent=5 // pred_check
        _
      $region30: #{convt_block_forward.7} parent=5 // pred_check_branch
        %144 = sbr.rel (%p141) target = $region32
      $region31: #{convt_block_forward.7} parent=5 // pred_region
        %s145 = ssub.s32 %s12, 1
        %p146 = scmp.lt.s32.totalorder %s17, 1
        %s147 = scalar_select %p146, %s17, 1
        %s148 = smul.addr %s147, 16
        %s149 = smul.addr %s148, 8
        %s150 = scalar_lea.vmem %s0, %s149
        %p151 = pneg %p38
        %p152 = pneg %p35
        %p153 = pneg %p59
        %p154 = pneg %p56
        %p155 = pneg %p80
        %p156 = pneg %p77
        %p157 = pneg %p106
        %p158 = pneg %p103
        %s159 = sand.u32 %s93, 1
        %s160 = scalar_lea.sflag [#allocation3], %s159
        %s161 = sand.u32 %s93, 1
        %s162 = smul.addr %s161, 128
        %s163 = scalar_lea.vmem [#allocation2], %s162
        %p164 = scmp.lt.s32.totalorder %s17, 1
        %s165 = scalar_select %p164, %s17, 1
        %s166 = smul.addr %s165, 16
        %s167 = smul.addr %s166, 8
        %s168 = scalar_lea.vmem %s0, %s167
        %v169 = vld [vmem:[%s168] sm:$0xff]
        %v170 = vld [vmem:[%s168 + $0x8] sm:$0xff]
        %v171 = vld [vmem:[%s168 + $0x10] sm:$0xff]
        %v172 = vld [vmem:[%s168 + $0x18] sm:$0xff]
        %v173 = vld [vmem:[%s168 + $0x20] sm:$0xff]
        %v174 = vld [vmem:[%s168 + $0x28] sm:$0xff]
        %v175 = vld [vmem:[%s168 + $0x30] sm:$0xff]
        %v176 = vld [vmem:[%s168 + $0x38] sm:$0xff]
        %v177 = vld [vmem:[%s168 + $0x40] sm:$0xff]
        %v178 = vld [vmem:[%s168 + $0x48] sm:$0xff]
        %v179 = vld [vmem:[%s168 + $0x50] sm:$0xff]
        %v180 = vld [vmem:[%s168 + $0x58] sm:$0xff]
        %v181 = vld [vmem:[%s168 + $0x60] sm:$0xff]
        %v182 = vld [vmem:[%s168 + $0x68] sm:$0xff]
        %v183 = vld [vmem:[%s168 + $0x70] sm:$0xff]
        %v184 = vld [vmem:[%s168 + $0x78] sm:$0xff]
        %v185 = vld [vmem:[%s1] sm:$0x1]
        %v186 = vld [vmem:[%s1 + $0x1] sm:$0x1]
        %v187 = vld [vmem:[%s1 + $0x2] sm:$0x1]
        %v188 = vld [vmem:[%s1 + $0x3] sm:$0x1]
        %v189 = vld [vmem:[%s1 + $0x4] sm:$0x1]
        %v190 = vld [vmem:[%s1 + $0x5] sm:$0x1]
        %v191 = vld [vmem:[%s1 + $0x6] sm:$0x1]
        %v192 = vld [vmem:[%s1 + $0x7] sm:$0x1]
        %v201 = vlaneseq
        %v202 = vshrl.u32 %v201, 7
        %v203 = vsub.s32 0, %v202
        %v204 = vrot.slane %v185, %v203
        %v205 = vlaneseq
        %v206 = vshrl.u32 %v205, 7
        %v207 = vsub.s32 0, %v206
        %v208 = vrot.slane %v186, %v207
        %v209 = vlaneseq
        %v210 = vshrl.u32 %v209, 7
        %v211 = vsub.s32 0, %v210
        %v212 = vrot.slane %v187, %v211
        %v213 = vlaneseq
        %v214 = vshrl.u32 %v213, 7
        %v215 = vsub.s32 0, %v214
        %v216 = vrot.slane %v188, %v215
        %v217 = vlaneseq
        %v218 = vshrl.u32 %v217, 7
        %v219 = vsub.s32 0, %v218
        %v220 = vrot.slane %v189, %v219
        %v221 = vlaneseq
        %v222 = vshrl.u32 %v221, 7
        %v223 = vsub.s32 0, %v222
        %v224 = vrot.slane %v190, %v223
        %v225 = vlaneseq
        %v226 = vshrl.u32 %v225, 7
        %v227 = vsub.s32 0, %v226
        %v228 = vrot.slane %v191, %v227
        %v229 = vlaneseq
        %v230 = vshrl.u32 %v229, 7
        %v231 = vsub.s32 0, %v230
        %v232 = vrot.slane %v192, %v231
        %233 = vset.pattern.permute.xlu0 0
        %234 = vperm.xlu0 %233, %v204
        %v235 = vpop.permute.xlu0 %234
        %237 = vset.pattern.permute.xlu0 0
        %238 = vperm.xlu0 %237, %v208
        %v239 = vpop.permute.xlu0 %238
        %241 = vset.pattern.permute.xlu0 0
        %242 = vperm.xlu0 %241, %v212
        %v243 = vpop.permute.xlu0 %242
        %245 = vset.pattern.permute.xlu0 0
        %246 = vperm.xlu0 %245, %v216
        %v247 = vpop.permute.xlu0 %246
        %249 = vset.pattern.permute.xlu0 0
        %250 = vperm.xlu0 %249, %v220
        %v251 = vpop.permute.xlu0 %250
        %253 = vset.pattern.permute.xlu0 0
        %254 = vperm.xlu0 %253, %v224
        %v255 = vpop.permute.xlu0 %254
        %257 = vset.pattern.permute.xlu0 0
        %258 = vperm.xlu0 %257, %v228
        %v259 = vpop.permute.xlu0 %258
        %261 = vset.pattern.permute.xlu0 0
        %262 = vperm.xlu0 %261, %v232
        %v263 = vpop.permute.xlu0 %262
        %v265 = vmul.f32 %v169, %v235
        %v266 = vmul.f32 %v170, %v235
        %v267 = vmul.f32 %v171, %v239
        %v268 = vmul.f32 %v172, %v239
        %v269 = vmul.f32 %v173, %v243
        %v270 = vmul.f32 %v174, %v243
        %v271 = vmul.f32 %v175, %v247
        %v272 = vmul.f32 %v176, %v247
        %v273 = vmul.f32 %v177, %v251
        %v274 = vmul.f32 %v178, %v251
        %v275 = vmul.f32 %v179, %v255
        %v276 = vmul.f32 %v180, %v255
        %v277 = vmul.f32 %v181, %v259
        %v278 = vmul.f32 %v182, %v259
        %v279 = vmul.f32 %v183, %v263
        %v280 = vmul.f32 %v184, %v263
        %v281 = vld [vmem:[%s2] sm:$0x1]
        %v282 = vld [vmem:[%s2 + $0x1] sm:$0x1]
        %v283 = vld [vmem:[%s2 + $0x2] sm:$0x1]
        %v284 = vld [vmem:[%s2 + $0x3] sm:$0x1]
        %v285 = vld [vmem:[%s2 + $0x4] sm:$0x1]
        %v286 = vld [vmem:[%s2 + $0x5] sm:$0x1]
        %v287 = vld [vmem:[%s2 + $0x6] sm:$0x1]
        %v288 = vld [vmem:[%s2 + $0x7] sm:$0x1]
        %v297 = vlaneseq
        %v298 = vshrl.u32 %v297, 7
        %v299 = vsub.s32 0, %v298
        %v300 = vrot.slane %v281, %v299
        %v301 = vlaneseq
        %v302 = vshrl.u32 %v301, 7
        %v303 = vsub.s32 0, %v302
        %v304 = vrot.slane %v282, %v303
        %v305 = vlaneseq
        %v306 = vshrl.u32 %v305, 7
        %v307 = vsub.s32 0, %v306
        %v308 = vrot.slane %v283, %v307
        %v309 = vlaneseq
        %v310 = vshrl.u32 %v309, 7
        %v311 = vsub.s32 0, %v310
        %v312 = vrot.slane %v284, %v311
        %v313 = vlaneseq
        %v314 = vshrl.u32 %v313, 7
        %v315 = vsub.s32 0, %v314
        %v316 = vrot.slane %v285, %v315
        %v317 = vlaneseq
        %v318 = vshrl.u32 %v317, 7
        %v319 = vsub.s32 0, %v318
        %v320 = vrot.slane %v286, %v319
        %v321 = vlaneseq
        %v322 = vshrl.u32 %v321, 7
        %v323 = vsub.s32 0, %v322
        %v324 = vrot.slane %v287, %v323
        %v325 = vlaneseq
        %v326 = vshrl.u32 %v325, 7
        %v327 = vsub.s32 0, %v326
        %v328 = vrot.slane %v288, %v327
        %329 = vset.pattern.permute.xlu0 0
        %330 = vperm.xlu0 %329, %v300
        %v331 = vpop.permute.xlu0 %330
        %333 = vset.pattern.permute.xlu0 0
        %334 = vperm.xlu0 %333, %v304
        %v335 = vpop.permute.xlu0 %334
        %337 = vset.pattern.permute.xlu0 0
        %338 = vperm.xlu0 %337, %v308
        %v339 = vpop.permute.xlu0 %338
        %341 = vset.pattern.permute.xlu0 0
        %342 = vperm.xlu0 %341, %v312
        %v343 = vpop.permute.xlu0 %342
        %345 = vset.pattern.permute.xlu0 0
        %346 = vperm.xlu0 %345, %v316
        %v347 = vpop.permute.xlu0 %346
        %349 = vset.pattern.permute.xlu0 0
        %350 = vperm.xlu0 %349, %v320
        %v351 = vpop.permute.xlu0 %350
        %353 = vset.pattern.permute.xlu0 0
        %354 = vperm.xlu0 %353, %v324
        %v355 = vpop.permute.xlu0 %354
        %357 = vset.pattern.permute.xlu0 0
        %358 = vperm.xlu0 %357, %v328
        %v359 = vpop.permute.xlu0 %358
        %v361 = vadd.f32 %v265, %v331
        %v362 = vadd.f32 %v266, %v331
        %v363 = vadd.f32 %v267, %v335
        %v364 = vadd.f32 %v268, %v335
        %v365 = vadd.f32 %v269, %v339
        %v366 = vadd.f32 %v270, %v339
        %v367 = vadd.f32 %v271, %v343
        %v368 = vadd.f32 %v272, %v343
        %v369 = vadd.f32 %v273, %v347
        %v370 = vadd.f32 %v274, %v347
        %v371 = vadd.f32 %v275, %v351
        %v372 = vadd.f32 %v276, %v351
        %v373 = vadd.f32 %v277, %v355
        %v374 = vadd.f32 %v278, %v355
        %v375 = vadd.f32 %v279, %v359
        %v376 = vadd.f32 %v280, %v359
        %v377 = vtanh.pop %v361
        %v378 = vtanh.pop %v362
        %v379 = vtanh.pop %v363
        %v380 = vtanh.pop %v364
        %v381 = vtanh.pop %v365
        %v382 = vtanh.pop %v366
        %v383 = vtanh.pop %v367
        %v384 = vtanh.pop %v368
        %v385 = vtanh.pop %v369
        %v386 = vtanh.pop %v370
        %v387 = vtanh.pop %v371
        %v388 = vtanh.pop %v372
        %v389 = vtanh.pop %v373
        %v390 = vtanh.pop %v374
        %v391 = vtanh.pop %v375
        %v392 = vtanh.pop %v376
        %vm393 = vcmask 130048
        %394 = vst.msk [vmem:[%s163] sm:$0xff] %vm393, %v377
        %395 = vst.msk [vmem:[%s163 + $0x8] sm:$0xff] %vm393, %v378
        %396 = vst.msk [vmem:[%s163 + $0x10] sm:$0xff] %vm393, %v379
        %397 = vst.msk [vmem:[%s163 + $0x18] sm:$0xff] %vm393, %v380
        %398 = vst.msk [vmem:[%s163 + $0x20] sm:$0xff] %vm393, %v381
        %399 = vst.msk [vmem:[%s163 + $0x28] sm:$0xff] %vm393, %v382
        %400 = vst.msk [vmem:[%s163 + $0x30] sm:$0xff] %vm393, %v383
        %401 = vst.msk [vmem:[%s163 + $0x38] sm:$0xff] %vm393, %v384
        %402 = vst.msk [vmem:[%s163 + $0x40] sm:$0xff] %vm393, %v385
        %403 = vst.msk [vmem:[%s163 + $0x48] sm:$0xff] %vm393, %v386
        %404 = vst.msk [vmem:[%s163 + $0x50] sm:$0xff] %vm393, %v387
        %405 = vst.msk [vmem:[%s163 + $0x58] sm:$0xff] %vm393, %v388
        %406 = vst.msk [vmem:[%s163 + $0x60] sm:$0xff] %vm393, %v389
        %407 = vst.msk [vmem:[%s163 + $0x68] sm:$0xff] %vm393, %v390
        %408 = vst.msk [vmem:[%s163 + $0x70] sm:$0xff] %vm393, %v391
        %409 = vst.msk [vmem:[%s163 + $0x78] sm:$0xff] %vm393, %v392
        %s410 = sand.u32 %s93, 1
        %s411 = scalar_lea.sflag [#allocation3], %s410
        %s412 = sand.u32 %s93, 1
        %s413 = smul.addr %s412, 128
        %s414 = scalar_lea.vmem [#allocation2], %s413
        // Predicated region
        $region33: #{convt_block_forward.7} parent=31 // pred_check
          %p415 = pneg %p103
        $region34: #{convt_block_forward.7} parent=31 // pred_check_branch
          %417 = sbr.rel (%p415) target = $region36
        $region35: #{convt_block_forward.7} parent=31 // pred_region
          %s419 = ssub.s32 2048, 2048
          %420 = vsyncadd %s411, %s419
          %s421 = smul.addr %s17, 16
          %s422 = smul.addr %s421, 128
          %s423 = scalar_lea.hbm %s3, %s422
          %s424 = sshll.u32 %s414, 4
          %s425 = int_to_ptr.vmem [resolvable:$true] %s424
          %430 = dma.vmem_to_hbm [thread:$0]  %s425, 2048, %s423, %s411, 128, 128, 8
        $region36: #{convt_block_forward.7} parent=31 // pred_fallthru
          _
      $region32: #{convt_block_forward.7} parent=5 // pred_fallthru
        _
      %p431 = scmp.le.s32.totalorder 2, %s12
      // Predicated region
      $region37: #{convt_block_forward.7} parent=5 // pred_check
        %p432 = pneg %p431
      $region38: #{convt_block_forward.7} parent=5 // pred_check_branch
        %434 = sbr.rel (%p432) target = $region40
      $region39: #{convt_block_forward.7} parent=5 // pred_region
        %s435 = ssub.s32 %s12, 2
        // Predicated region
        $region41: #{convt_block_forward.7} parent=39 // pred_check
          %p436 = pneg %p109
        $region42: #{convt_block_forward.7} parent=39 // pred_check_branch
          %438 = sbr.rel (%p436) target = $region44
        $region43: #{convt_block_forward.7} parent=39 // pred_region
          %s439 = sand.u32 %s94, 1
          %s440 = scalar_lea.sflag [#allocation3], %s439
          %s441 = sand.u32 %s94, 1
          %s442 = smul.addr %s441, 128
          %s443 = scalar_lea.vmem [#allocation2], %s442
          %444 = dma.done %s440, 2048
        $region44: #{convt_block_forward.7} parent=39 // pred_fallthru
          _
      $region40: #{convt_block_forward.7} parent=5 // pred_fallthru
        _
    $region6: #{convt_block_forward.7} parent=1 // loop_footer
      %s16 = sadd.s32 1, %s12
    $region7: #{convt_block_forward.7} parent=1 // loop_footer_branch
      %11 = sbr.rel target = $region3
    $region8: #{convt_block_forward.7} parent=1 // loop_exit
      _
    %445 = vsyncpa [#allocation3], 1
    %s446 = scalar_lea.sflag [#allocation3], 1
    %447 = vsyncpa %s446, 1

// kernel: convt_block_forward.5
$region0: #{convt_block_forward.5}
  #allocation0 [shape = 'u32[]', space=smem, size = 0x4, offset = 0x4, fixed_abs, tag = 'smem constant byte address 0x4 - core index']
  #allocation1 [shape = 'u32[144,128]{1,0:T(1,128)}', space=vmem, size = 0x12000, scoped, tag = 'internal scratch']
  %s0 = inlined_call_operand.vmem [shape: f32[2,4,326], index: 0, kind: input, shape index: {}]
  %s1 = inlined_call_operand.vmem [shape: f32[2,4,326], index: 1, kind: input, shape index: {}]
  %s2 = inlined_call_operand.vmem [shape: f32[9,8,4], index: 2, kind: input, shape index: {}]
  %s3 = inlined_call_operand.vmem [shape: f32[9,8,4], index: 3, kind: input, shape index: {}]
  %s4 = inlined_call_operand.vmem [shape: f32[8,1], index: 4, kind: input, shape index: {}]
  %s5 = inlined_call_operand.vmem [shape: f32[2,8,288], index: 5, kind: output, shape index: {}]
  %s6 = sld [smem:[#allocation0]]
  $region53: #{convt_block_forward.5} parent=0
    _
  %s8 = ssub.s32 1, %s6
  %s9 = scalar_select 0, %s8, %s6
  loop: start=0, step=1, limit=4
  $region2: #{convt_block_forward.5} parent=0 // loop_pre_header
    _
  $region3: #{convt_block_forward.5} parent=0 // loop_header
    %s11 = sphi 0, %s15
    %p12 = scmp.ge.s32.totalorder %s11, 4
    %s21 = sphi 0, %s23
    %s24 = sphi 0, %s21
    %s25 = sphi 0, %s24
    %s41 = sphi 0, %s25
    %s47 = sphi 0, %s49
    %s50 = sphi 0, %s47
    %s51 = sphi 0, %s50
    %s67 = sphi 0, %s51
    %s71 = sphi 0, %s71
    %s73 = sphi 0, %s71
    %s74 = sphi 0, %s73
    %s88 = sphi 0, %s74
    %s92 = sphi 0, %s92
    %s94 = sphi 0, %s92
    %s95 = sphi 0, %s94
    %s109 = sphi 0, %s95
    %s113 = sphi 0, %s113
    %s115 = sphi 0, %s113
    %s116 = sphi 0, %s115
    %s130 = sphi 0, %s116
    %s136 = sphi 0, %s138
    %s139 = sphi 0, %s136
    %s140 = sphi 0, %s139
    %s156 = sphi 0, %s140
  $region4: #{convt_block_forward.5} parent=0 // loop_header_branch
    %14 = sbr.rel (%p12) target = $region8
  $region5: #{convt_block_forward.5} parent=0 // loop_body
    %s16 = ssub.s32 %s11, 1
    %s17 = ssub.s32 %s11, 2
    %s18 = sadd.s32 %s11, 1
    %s19 = ssub.s32 %s11, %s18
    %p20 = scmp.eq.s32.totalorder %s19, 0
    %s22 = sadd.s32 %s21, 1
    %s23 = scalar_select %p20, %s21, %s22
    %p26 = pneg %p20
    %p27 = scmp.eq.s32.totalorder %s11, 1
    %p28 = por %p26, %p27
    %p29 = scmp.ne.s32.totalorder %s21, %s24
    %p30 = scmp.eq.s32.totalorder %s11, 0
    %p31 = por %p29, %p30
    %p32 = scmp.ne.s32.totalorder %s21, %s24
    %p33 = scmp.eq.s32.totalorder %s16, 1
    %p34 = por %p32, %p33
    %p35 = scmp.ne.s32.totalorder %s24, %s25
    %p36 = scmp.eq.s32.totalorder %s16, 0
    %p37 = por %p35, %p36
    %p38 = scmp.ne.s32.totalorder %s24, %s25
    %p39 = scmp.eq.s32.totalorder %s17, 1
    %p40 = por %p38, %p39
    %p42 = scmp.ne.s32.totalorder %s25, %s41
    %p43 = scmp.eq.s32.totalorder %s17, 0
    %p44 = por %p42, %p43
    %s45 = ssub.s32 %s11, %s18
    %p46 = scmp.eq.s32.totalorder %s45, 0
    %s48 = sadd.s32 %s47, 1
    %s49 = scalar_select %p46, %s47, %s48
    %p52 = pneg %p46
    %p53 = scmp.eq.s32.totalorder %s11, 1
    %p54 = por %p52, %p53
    %p55 = scmp.ne.s32.totalorder %s47, %s50
    %p56 = scmp.eq.s32.totalorder %s11, 0
    %p57 = por %p55, %p56
    %p58 = scmp.ne.s32.totalorder %s47, %s50
    %p59 = scmp.eq.s32.totalorder %s16, 1
    %p60 = por %p58, %p59
    %p61 = scmp.ne.s32.totalorder %s50, %s51
    %p62 = scmp.eq.s32.totalorder %s16, 0
    %p63 = por %p61, %p62
    %p64 = scmp.ne.s32.totalorder %s50, %s51
    %p65 = scmp.eq.s32.totalorder %s17, 1
    %p66 = por %p64, %p65
    %p68 = scmp.ne.s32.totalorder %s51, %s67
    %p69 = scmp.eq.s32.totalorder %s17, 0
    %p70 = por %p68, %p69
    %s72 = sadd.s32 %s71, 1
    %p75 = scmp.eq.s32.totalorder %s11, 1
    %p76 = scmp.ne.s32.totalorder %s71, %s73
    %p77 = scmp.eq.s32.totalorder %s11, 0
    %p78 = por %p76, %p77
    %p79 = scmp.ne.s32.totalorder %s71, %s73
    %p80 = scmp.eq.s32.totalorder %s16, 1
    %p81 = por %p79, %p80
    %p82 = scmp.ne.s32.totalorder %s73, %s74
    %p83 = scmp.eq.s32.totalorder %s16, 0
    %p84 = por %p82, %p83
    %p85 = scmp.ne.s32.totalorder %s73, %s74
    %p86 = scmp.eq.s32.totalorder %s17, 1
    %p87 = por %p85, %p86
    %p89 = scmp.ne.s32.totalorder %s74, %s88
    %p90 = scmp.eq.s32.totalorder %s17, 0
    %p91 = por %p89, %p90
    %s93 = sadd.s32 %s92, 1
    %p96 = scmp.eq.s32.totalorder %s11, 1
    %p97 = scmp.ne.s32.totalorder %s92, %s94
    %p98 = scmp.eq.s32.totalorder %s11, 0
    %p99 = por %p97, %p98
    %p100 = scmp.ne.s32.totalorder %s92, %s94
    %p101 = scmp.eq.s32.totalorder %s16, 1
    %p102 = por %p100, %p101
    %p103 = scmp.ne.s32.totalorder %s94, %s95
    %p104 = scmp.eq.s32.totalorder %s16, 0
    %p105 = por %p103, %p104
    %p106 = scmp.ne.s32.totalorder %s94, %s95
    %p107 = scmp.eq.s32.totalorder %s17, 1
    %p108 = por %p106, %p107
    %p110 = scmp.ne.s32.totalorder %s95, %s109
    %p111 = scmp.eq.s32.totalorder %s17, 0
    %p112 = por %p110, %p111
    %s114 = sadd.s32 %s113, 1
    %p117 = scmp.eq.s32.totalorder %s11, 1
    %p118 = scmp.ne.s32.totalorder %s113, %s115
    %p119 = scmp.eq.s32.totalorder %s11, 0
    %p120 = por %p118, %p119
    %p121 = scmp.ne.s32.totalorder %s113, %s115
    %p122 = scmp.eq.s32.totalorder %s16, 1
    %p123 = por %p121, %p122
    %p124 = scmp.ne.s32.totalorder %s115, %s116
    %p125 = scmp.eq.s32.totalorder %s16, 0
    %p126 = por %p124, %p125
    %p127 = scmp.ne.s32.totalorder %s115, %s116
    %p128 = scmp.eq.s32.totalorder %s17, 1
    %p129 = por %p127, %p128
    %p131 = scmp.ne.s32.totalorder %s116, %s130
    %p132 = scmp.eq.s32.totalorder %s17, 0
    %p133 = por %p131, %p132
    %s134 = ssub.s32 %s11, %s18
    %p135 = scmp.eq.s32.totalorder %s134, 0
    %s137 = sadd.s32 %s136, 1
    %s138 = scalar_select %p135, %s136, %s137
    %p141 = pneg %p135
    %p142 = scmp.eq.s32.totalorder %s11, 1
    %p143 = por %p141, %p142
    %p144 = scmp.ne.s32.totalorder %s136, %s139
    %p145 = scmp.eq.s32.totalorder %s11, 0
    %p146 = por %p144, %p145
    %p147 = scmp.ne.s32.totalorder %s136, %s139
    %p148 = scmp.eq.s32.totalorder %s16, 1
    %p149 = por %p147, %p148
    %p150 = scmp.ne.s32.totalorder %s139, %s140
    %p151 = scmp.eq.s32.totalorder %s16, 0
    %p152 = por %p150, %p151
    %p153 = scmp.ne.s32.totalorder %s139, %s140
    %p154 = scmp.eq.s32.totalorder %s17, 1
    %p155 = por %p153, %p154
    %p157 = scmp.ne.s32.totalorder %s140, %s156
    %p158 = scmp.eq.s32.totalorder %s17, 0
    %p159 = por %p157, %p158
    %p160 = scmp.le.s32.totalorder 1, %s11
    %p161 = scmp.lt.s32.totalorder %s11, 3
    %p162 = pnand %p160, %p161
    %p163 = pneg %p162
    // Predicated region
    $region9: #{convt_block_forward.5} parent=5 // pred_check
      _
    $region10: #{convt_block_forward.5} parent=5 // pred_check_branch
      %165 = sbr.rel (%p162) target = $region12
    $region11: #{convt_block_forward.5} parent=5 // pred_region
      %s166 = ssub.s32 %s11, 1
      // Predicated region
      $region13: #{convt_block_forward.5} parent=11 // pred_check
        %p167 = pneg %p84
      $region14: #{convt_block_forward.5} parent=11 // pred_check_branch
        %169 = sbr.rel (%p167) target = $region16
      $region15: #{convt_block_forward.5} parent=11 // pred_region
        _
      $region16: #{convt_block_forward.5} parent=11 // pred_fallthru
        _
      // Predicated region
      $region17: #{convt_block_forward.5} parent=11 // pred_check
        %p170 = pneg %p105
      $region18: #{convt_block_forward.5} parent=11 // pred_check_branch
        %172 = sbr.rel (%p170) target = $region20
      $region19: #{convt_block_forward.5} parent=11 // pred_region
        _
      $region20: #{convt_block_forward.5} parent=11 // pred_fallthru
        _
      // Predicated region
      $region21: #{convt_block_forward.5} parent=11 // pred_check
        %p173 = pneg %p126
      $region22: #{convt_block_forward.5} parent=11 // pred_check_branch
        %175 = sbr.rel (%p173) target = $region24
      $region23: #{convt_block_forward.5} parent=11 // pred_region
        _
      $region24: #{convt_block_forward.5} parent=11 // pred_fallthru
        _
    $region12: #{convt_block_forward.5} parent=5 // pred_fallthru
      _
    %p176 = scmp.lt.s32.totalorder %s11, 2
    // Predicated region
    $region25: #{convt_block_forward.5} parent=5 // pred_check
      %p177 = pneg %p176
    $region26: #{convt_block_forward.5} parent=5 // pred_check_branch
      %179 = sbr.rel (%p177) target = $region28
    $region27: #{convt_block_forward.5} parent=5 // pred_region
      // Predicated region
      $region29: #{convt_block_forward.5} parent=27 // pred_check
        %p180 = pneg %p31
      $region30: #{convt_block_forward.5} parent=27 // pred_check_branch
        %182 = sbr.rel (%p180) target = $region32
      $region31: #{convt_block_forward.5} parent=27 // pred_region
        %p183 = scmp.lt.s32.totalorder %s11, 1
        %s184 = scalar_select %p183, %s11, 1
        %s185 = smul.addr %s184, 3
        %s186 = smul.addr %s185, 4
        %s187 = scalar_lea.vmem %s0, %s186
      $region32: #{convt_block_forward.5} parent=27 // pred_fallthru
        _
      // Predicated region
      $region33: #{convt_block_forward.5} parent=27 // pred_check
        %p188 = pneg %p57
      $region34: #{convt_block_forward.5} parent=27 // pred_check_branch
        %190 = sbr.rel (%p188) target = $region36
      $region35: #{convt_block_forward.5} parent=27 // pred_region
        %p191 = scmp.lt.s32.totalorder %s11, 1
        %s192 = scalar_select %p191, %s11, 1
        %s193 = smul.addr %s192, 3
        %s194 = smul.addr %s193, 4
        %s195 = scalar_lea.vmem %s1, %s194
      $region36: #{convt_block_forward.5} parent=27 // pred_fallthru
        _
    $region28: #{convt_block_forward.5} parent=5 // pred_fallthru
      _
    %p196 = scmp.le.s32.totalorder 1, %s11
    %p197 = scmp.lt.s32.totalorder %s11, 3
    %p198 = pnand %p196, %p197
    %p199 = pneg %p198
    // Predicated region
    $region37: #{convt_block_forward.5} parent=5 // pred_check
      _
    $region38: #{convt_block_forward.5} parent=5 // pred_check_branch
      %201 = sbr.rel (%p198) target = $region40
    $region39: #{convt_block_forward.5} parent=5 // pred_region
      %s202 = ssub.s32 %s11, 1
      %p203 = scmp.lt.s32.totalorder %s16, 1
      %s204 = scalar_select %p203, %s16, 1
      %s205 = smul.addr %s204, 3
      %s206 = smul.addr %s205, 4
      %s207 = scalar_lea.vmem %s0, %s206
      %p208 = pneg %p37
      %p209 = pneg %p34
      %p210 = scmp.lt.s32.totalorder %s16, 1
      %s211 = scalar_select %p210, %s16, 1
      %s212 = smul.addr %s211, 3
      %s213 = smul.addr %s212, 4
      %s214 = scalar_lea.vmem %s1, %s213
      %p215 = pneg %p63
      %p216 = pneg %p60
      %p217 = pneg %p84
      %p218 = pneg %p81
      %p219 = pneg %p105
      %p220 = pneg %p102
      %p221 = pneg %p126
      %p222 = pneg %p123
      %p223 = pneg %p152
      %p224 = pneg %p149
      %p225 = scmp.lt.s32.totalorder %s16, 1
      %s226 = scalar_select %p225, %s16, 1
      %s227 = smul.addr %s226, 3
      %s228 = smul.addr %s227, 8
      %s229 = scalar_lea.vmem %s5, %s228
      %p230 = scmp.lt.s32.totalorder %s16, 1
      %s231 = scalar_select %p230, %s16, 1
      %s232 = smul.addr %s231, 3
      %s233 = smul.addr %s232, 4
      %s234 = scalar_lea.vmem %s0, %s233
      %p235 = scmp.lt.s32.totalorder %s16, 1
      %s236 = scalar_select %p235, %s16, 1
      %s237 = smul.addr %s236, 3
      %s238 = smul.addr %s237, 4
      %s239 = scalar_lea.vmem %s1, %s238
      %p240 = scmp.lt.s32.totalorder %s16, 1
      %s241 = scalar_select %p240, %s16, 1
      %s242 = smul.addr %s241, 3
      %s243 = smul.addr %s242, 8
      %s244 = scalar_lea.vmem %s5, %s243
      %v245 = vld [vmem:[%s234] sm:$0xff]
      %v246 = vld [vmem:[%s234 + $0x8] sm:$0xf]
      %v247 = vld [vmem:[%s2] sm:$0xff]
      %v248 = vld [vmem:[%s239] sm:$0xff]
      %v249 = vld [vmem:[%s239 + $0x8] sm:$0xf]
      %v250 = vld [vmem:[%s3] sm:$0xff]
      %v253 = vcombine.high %v248, %v248
      %vm254 = vcmask 31744
      %v256 = vsel %vm254, %v250, 0
      %vm258 = vcmask 1043456
      %v259 = vsel %vm258, %v248, 0
      %v261 = vsel %vm258, %v253, 0
      %v263 = vsel %vm258, %v249, 0
      %265 = vmatprep.subr.mxu0 %v261
      %266 = vmatpush1.msra.mxu0 %v259
      %267 = vmatprep.subr.mxu0 0.0
      %268 = vmatpush1.msra.mxu0 0.0
      %269 = vmatprep.subr.mxu0 0.0
      %270 = vmatpush1.msra.mxu0 0.0
      %271 = vmatprep.subr.mxu0 0.0
      %272 = vmatpush1.msra.mxu0 0.0
      %273 = vmatprep.subr.mxu0 0.0
      %274 = vmatpush1.msra.mxu0 0.0
      %275 = vmatprep.subr.mxu0 0.0
      %276 = vmatpush1.msra.mxu0 0.0
      %277 = vmatprep.subr.mxu0 0.0
      %278 = vmatpush1.msra.mxu0 0.0
      %279 = vmatprep.subr.mxu0 0.0
      %280 = vmatpush1.msra.mxu0 0.0
      %281 = vmatprep.subr.mxu0 0.0
      %282 = vmatpush1.msra.mxu0 0.0
      %283 = vmatprep.subr.mxu0 0.0
      %284 = vmatpush1.msra.mxu0 0.0
      %285 = vmatprep.subr.mxu0 0.0
      %286 = vmatpush1.msra.mxu0 0.0
      %287 = vmatprep.subr.mxu0 0.0
      %288 = vmatpush1.msra.mxu0 0.0
      %289 = vmatprep.subr.mxu0 0.0
      %290 = vmatpush1.msra.mxu0 0.0
      %291 = vmatprep.subr.mxu0 0.0
      %292 = vmatpush1.msra.mxu0 0.0
      %293 = vmatprep.subr.mxu0 0.0
      %294 = vmatpush1.msra.mxu0 0.0
      %295 = vmatprep.subr.mxu0 0.0
      %296 = vmatpush1.msra.mxu0 0.0
      %297 = vmatprep.subr.mxu0 0.0
      %298 = vmatpush1.msra.mxu0 0.0
      %299 = vmatprep.subr.mxu0 0.0
      %300 = vmatpush1.msra.mxu0 0.0
      %301 = vmatprep.subr.mxu0 0.0
      %302 = vmatpush1.msra.mxu0 0.0
      %303 = vmatprep.subr.mxu0 0.0
      %304 = vmatpush1.msra.mxu0 0.0
      %305 = vmatprep.subr.mxu0 0.0
      %306 = vmatpush1.msra.mxu0 0.0
      %307 = vmatprep.subr.mxu0 0.0
      %308 = vmatpush1.msra.mxu0 0.0
      %309 = vmatprep.subr.mxu0 0.0
      %310 = vmatpush1.msra.mxu0 0.0
      %311 = vmatprep.subr.mxu0 0.0
      %312 = vmatpush1.msra.mxu0 0.0
      %313 = vmatprep.subr.mxu0 0.0
      %314 = vmatpush1.msra.mxu0 0.0
      %315 = vmatprep.subr.mxu0 0.0
      %316 = vmatpush1.msra.mxu0 0.0
      %317 = vmatprep.subr.mxu0 0.0
      %318 = vmatpush1.msra.mxu0 0.0
      %319 = vmatprep.subr.mxu0 0.0
      %320 = vmatpush1.msra.mxu0 0.0
      %321 = vmatprep.subr.mxu0 0.0
      %322 = vmatpush1.msra.mxu0 0.0
      %323 = vmatprep.subr.mxu0 0.0
      %324 = vmatpush1.msra.mxu0 0.0
      %325 = vmatprep.subr.mxu0 0.0
      %326 = vmatpush1.msra.mxu0 0.0
      %327 = vmatprep.subr.mxu0 0.0
      %328 = vmatpush1.msra.mxu0 0.0
      %329 = vmatprep.mubr.f32.mxu0 0.0
      %330 = vmatmul.mubr.f32.gmra.mrb[0].mxu0 %v256
      %v331 = vpop.f32.mrb[0].mxu0
      %v332 = vadd.f32 0.0, %v331
      %v333 = vpop.f32.mrb[0].mxu0
      %v334 = vadd.f32 0.0, %v333
      %335 = vdwg.mxu0
      %336 = vmatprep.subr.mxu0 0.0
      %337 = vmatpush1.msra.mxu0 %v263
      %338 = vmatprep.subr.mxu0 0.0
      %339 = vmatpush1.msra.mxu0 0.0
      %340 = vmatprep.subr.mxu0 0.0
      %341 = vmatpush1.msra.mxu0 0.0
      %342 = vmatprep.subr.mxu0 0.0
      %343 = vmatpush1.msra.mxu0 0.0
      %344 = vmatprep.subr.mxu0 0.0
      %345 = vmatpush1.msra.mxu0 0.0
      %346 = vmatprep.subr.mxu0 0.0
      %347 = vmatpush1.msra.mxu0 0.0
      %348 = vmatprep.subr.mxu0 0.0
      %349 = vmatpush1.msra.mxu0 0.0
      %350 = vmatprep.subr.mxu0 0.0
      %351 = vmatpush1.msra.mxu0 0.0
      %352 = vmatprep.subr.mxu0 0.0
      %353 = vmatpush1.msra.mxu0 0.0
      %354 = vmatprep.subr.mxu0 0.0
      %355 = vmatpush1.msra.mxu0 0.0
      %356 = vmatprep.subr.mxu0 0.0
      %357 = vmatpush1.msra.mxu0 0.0
      %358 = vmatprep.subr.mxu0 0.0
      %359 = vmatpush1.msra.mxu0 0.0
      %360 = vmatprep.subr.mxu0 0.0
      %361 = vmatpush1.msra.mxu0 0.0
      %362 = vmatprep.subr.mxu0 0.0
      %363 = vmatpush1.msra.mxu0 0.0
      %364 = vmatprep.subr.mxu0 0.0
      %365 = vmatpush1.msra.mxu0 0.0
      %366 = vmatprep.subr.mxu0 0.0
      %367 = vmatpush1.msra.mxu0 0.0
      %368 = vmatprep.subr.mxu0 0.0
      %369 = vmatpush1.msra.mxu0 0.0
      %370 = vmatprep.subr.mxu0 0.0
      %371 = vmatpush1.msra.mxu0 0.0
      %372 = vmatprep.subr.mxu0 0.0
      %373 = vmatpush1.msra.mxu0 0.0
      %374 = vmatprep.subr.mxu0 0.0
      %375 = vmatpush1.msra.mxu0 0.0
      %376 = vmatprep.subr.mxu0 0.0
      %377 = vmatpush1.msra.mxu0 0.0
      %378 = vmatprep.subr.mxu0 0.0
      %379 = vmatpush1.msra.mxu0 0.0
      %380 = vmatprep.subr.mxu0 0.0
      %381 = vmatpush1.msra.mxu0 0.0
      %382 = vmatprep.subr.mxu0 0.0
      %383 = vmatpush1.msra.mxu0 0.0
      %384 = vmatprep.subr.mxu0 0.0
      %385 = vmatpush1.msra.mxu0 0.0
      %386 = vmatprep.subr.mxu0 0.0
      %387 = vmatpush1.msra.mxu0 0.0
      %388 = vmatprep.subr.mxu0 0.0
      %389 = vmatpush1.msra.mxu0 0.0
      %390 = vmatprep.subr.mxu0 0.0
      %391 = vmatpush1.msra.mxu0 0.0
      %392 = vmatprep.subr.mxu0 0.0
      %393 = vmatpush1.msra.mxu0 0.0
      %394 = vmatprep.subr.mxu0 0.0
      %395 = vmatpush1.msra.mxu0 0.0
      %396 = vmatprep.subr.mxu0 0.0
      %397 = vmatpush1.msra.mxu0 0.0
      %398 = vmatprep.subr.mxu0 0.0
      %399 = vmatpush1.msra.mxu0 0.0
      %400 = vmatprep.mubr.f32.mxu0 0.0
      %401 = vmatmul.mubr.f32.gmra.mrb[0].mxu0 %v256
      %v402 = vpop.f32.mrb[0].mxu0
      %v403 = vadd.f32 0.0, %v402
      %v404 = vpop.f32.mrb[0].mxu0
      %405 = vdwg.mxu0
      %v408 = vcombine.high %v245, %v245
      %v410 = vsel %vm254, %v247, 0
      %v412 = vsel %vm258, %v245, 0
      %v414 = vsel %vm258, %v408, 0
      %v416 = vsel %vm258, %v246, 0
      %418 = vmatprep.subr.mxu0 %v414
      %419 = vmatpush1.msra.mxu0 %v412
      %420 = vmatprep.subr.mxu0 0.0
      %421 = vmatpush1.msra.mxu0 0.0
      %422 = vmatprep.subr.mxu0 0.0
      %423 = vmatpush1.msra.mxu0 0.0
      %424 = vmatprep.subr.mxu0 0.0
      %425 = vmatpush1.msra.mxu0 0.0
      %426 = vmatprep.subr.mxu0 0.0
      %427 = vmatpush1.msra.mxu0 0.0
      %428 = vmatprep.subr.mxu0 0.0
      %429 = vmatpush1.msra.mxu0 0.0
      %430 = vmatprep.subr.mxu0 0.0
      %431 = vmatpush1.msra.mxu0 0.0
      %432 = vmatprep.subr.mxu0 0.0
      %433 = vmatpush1.msra.mxu0 0.0
      %434 = vmatprep.subr.mxu0 0.0
      %435 = vmatpush1.msra.mxu0 0.0
      %436 = vmatprep.subr.mxu0 0.0
      %437 = vmatpush1.msra.mxu0 0.0
      %438 = vmatprep.subr.mxu0 0.0
      %439 = vmatpush1.msra.mxu0 0.0
      %440 = vmatprep.subr.mxu0 0.0
      %441 = vmatpush1.msra.mxu0 0.0
      %442 = vmatprep.subr.mxu0 0.0
      %443 = vmatpush1.msra.mxu0 0.0
      %444 = vmatprep.subr.mxu0 0.0
      %445 = vmatpush1.msra.mxu0 0.0
      %446 = vmatprep.subr.mxu0 0.0
      %447 = vmatpush1.msra.mxu0 0.0
      %448 = vmatprep.subr.mxu0 0.0
      %449 = vmatpush1.msra.mxu0 0.0
      %450 = vmatprep.subr.mxu0 0.0
      %451 = vmatpush1.msra.mxu0 0.0
      %452 = vmatprep.subr.mxu0 0.0
      %453 = vmatpush1.msra.mxu0 0.0
      %454 = vmatprep.subr.mxu0 0.0
      %455 = vmatpush1.msra.mxu0 0.0
      %456 = vmatprep.subr.mxu0 0.0
      %457 = vmatpush1.msra.mxu0 0.0
      %458 = vmatprep.subr.mxu0 0.0
      %459 = vmatpush1.msra.mxu0 0.0
      %460 = vmatprep.subr.mxu0 0.0
      %461 = vmatpush1.msra.mxu0 0.0
      %462 = vmatprep.subr.mxu0 0.0
      %463 = vmatpush1.msra.mxu0 0.0
      %464 = vmatprep.subr.mxu0 0.0
      %465 = vmatpush1.msra.mxu0 0.0
      %466 = vmatprep.subr.mxu0 0.0
      %467 = vmatpush1.msra.mxu0 0.0
      %468 = vmatprep.subr.mxu0 0.0
      %469 = vmatpush1.msra.mxu0 0.0
      %470 = vmatprep.subr.mxu0 0.0
      %471 = vmatpush1.msra.mxu0 0.0
      %472 = vmatprep.subr.mxu0 0.0
      %473 = vmatpush1.msra.mxu0 0.0
      %474 = vmatprep.subr.mxu0 0.0
      %475 = vmatpush1.msra.mxu0 0.0
      %476 = vmatprep.subr.mxu0 0.0
      %477 = vmatpush1.msra.mxu0 0.0
      %478 = vmatprep.subr.mxu0 0.0
      %479 = vmatpush1.msra.mxu0 0.0
      %480 = vmatprep.subr.mxu0 0.0
      %481 = vmatpush1.msra.mxu0 0.0
      %482 = vmatprep.mubr.f32.mxu0 0.0
      %483 = vmatmul.mubr.f32.gmra.mrb[0].mxu0 %v410
      %v484 = vpop.f32.mrb[0].mxu0
      %v485 = vadd.f32 %v332, %v484
      %v486 = vpop.f32.mrb[0].mxu0
      %v487 = vadd.f32 %v334, %v486
      %488 = vdwg.mxu0
      %489 = vmatprep.subr.mxu0 0.0
      %490 = vmatpush1.msra.mxu0 %v416
      %491 = vmatprep.subr.mxu0 0.0
      %492 = vmatpush1.msra.mxu0 0.0
      %493 = vmatprep.subr.mxu0 0.0
      %494 = vmatpush1.msra.mxu0 0.0
      %495 = vmatprep.subr.mxu0 0.0
      %496 = vmatpush1.msra.mxu0 0.0
      %497 = vmatprep.subr.mxu0 0.0
      %498 = vmatpush1.msra.mxu0 0.0
      %499 = vmatprep.subr.mxu0 0.0
      %500 = vmatpush1.msra.mxu0 0.0
      %501 = vmatprep.subr.mxu0 0.0
      %502 = vmatpush1.msra.mxu0 0.0
      %503 = vmatprep.subr.mxu0 0.0
      %504 = vmatpush1.msra.mxu0 0.0
      %505 = vmatprep.subr.mxu0 0.0
      %506 = vmatpush1.msra.mxu0 0.0
      %507 = vmatprep.subr.mxu0 0.0
      %508 = vmatpush1.msra.mxu0 0.0
      %509 = vmatprep.subr.mxu0 0.0
      %510 = vmatpush1.msra.mxu0 0.0
      %511 = vmatprep.subr.mxu0 0.0
      %512 = vmatpush1.msra.mxu0 0.0
      %513 = vmatprep.subr.mxu0 0.0
      %514 = vmatpush1.msra.mxu0 0.0
      %515 = vmatprep.subr.mxu0 0.0
      %516 = vmatpush1.msra.mxu0 0.0
      %517 = vmatprep.subr.mxu0 0.0
      %518 = vmatpush1.msra.mxu0 0.0
      %519 = vmatprep.subr.mxu0 0.0
      %520 = vmatpush1.msra.mxu0 0.0
      %521 = vmatprep.subr.mxu0 0.0
      %522 = vmatpush1.msra.mxu0 0.0
      %523 = vmatprep.subr.mxu0 0.0
      %524 = vmatpush1.msra.mxu0 0.0
      %525 = vmatprep.subr.mxu0 0.0
      %526 = vmatpush1.msra.mxu0 0.0
      %527 = vmatprep.subr.mxu0 0.0
      %528 = vmatpush1.msra.mxu0 0.0
      %529 = vmatprep.subr.mxu0 0.0
      %530 = vmatpush1.msra.mxu0 0.0
      %531 = vmatprep.subr.mxu0 0.0
      %532 = vmatpush1.msra.mxu0 0.0
      %533 = vmatprep.subr.mxu0 0.0
      %534 = vmatpush1.msra.mxu0 0.0
      %535 = vmatprep.subr.mxu0 0.0
      %536 = vmatpush1.msra.mxu0 0.0
      %537 = vmatprep.subr.mxu0 0.0
      %538 = vmatpush1.msra.mxu0 0.0
      %539 = vmatprep.subr.mxu0 0.0
      %540 = vmatpush1.msra.mxu0 0.0
      %541 = vmatprep.subr.mxu0 0.0
      %542 = vmatpush1.msra.mxu0 0.0
      %543 = vmatprep.subr.mxu0 0.0
      %544 = vmatpush1.msra.mxu0 0.0
      %545 = vmatprep.subr.mxu0 0.0
      %546 = vmatpush1.msra.mxu0 0.0
      %547 = vmatprep.subr.mxu0 0.0
      %548 = vmatpush1.msra.mxu0 0.0
      %549 = vmatprep.subr.mxu0 0.0
      %550 = vmatpush1.msra.mxu0 0.0
      %551 = vmatprep.subr.mxu0 0.0
      %552 = vmatpush1.msra.mxu0 0.0
      %553 = vmatprep.mubr.f32.mxu0 0.0
      %554 = vmatmul.mubr.f32.gmra.mrb[0].mxu0 %v410
      %v555 = vpop.f32.mrb[0].mxu0
      %v556 = vadd.f32 %v403, %v555
      %v557 = vpop.f32.mrb[0].mxu0
      %558 = vdwg.mxu0
      %v559 = vld [vmem:[%s234] sm:$0xff]
      %v560 = vld [vmem:[%s234 + $0x8] sm:$0xf]
      %s561 = scalar_lea.vmem %s2, 8
      %v562 = vld [vmem:[%s561] sm:$0xff]
      %v565 = vcombine.high %v559, %v559
      %566 = vrot.lane.b32.xlu0 %v559, 127
      %v567 = vpop.permute.xlu0 %566
      %568 = vrot.lane.b32.xlu0 %v565, 127
      %v569 = vpop.permute.xlu0 %568
      %570 = vrot.lane.b32.xlu0 %v560, 127
      %v571 = vpop.permute.xlu0 %570
      %vm572 = vcmask 1039360
      %v573 = vsel %vm572, %v567, %v569
      %v574 = vsel %vm572, %v569, %v571
      %v576 = vsel %vm254, %v562, 0
      %v578 = vsel %vm258, %v573, 0
      %v580 = vsel %vm258, %v574, 0
      %v582 = vsel %vm258, %v571, 0
      %584 = vmatprep.subr.mxu0 %v580
      %585 = vmatpush1.msra.mxu0 %v578
      %586 = vmatprep.subr.mxu0 0.0
      %587 = vmatpush1.msra.mxu0 0.0
      %588 = vmatprep.subr.mxu0 0.0
      %589 = vmatpush1.msra.mxu0 0.0
      %590 = vmatprep.subr.mxu0 0.0
      %591 = vmatpush1.msra.mxu0 0.0
      %592 = vmatprep.subr.mxu0 0.0
      %593 = vmatpush1.msra.mxu0 0.0
      %594 = vmatprep.subr.mxu0 0.0
      %595 = vmatpush1.msra.mxu0 0.0
      %596 = vmatprep.subr.mxu0 0.0
      %597 = vmatpush1.msra.mxu0 0.0
      %598 = vmatprep.subr.mxu0 0.0
      %599 = vmatpush1.msra.mxu0 0.0
      %600 = vmatprep.subr.mxu0 0.0
      %601 = vmatpush1.msra.mxu0 0.0
      %602 = vmatprep.subr.mxu0 0.0
      %603 = vmatpush1.msra.mxu0 0.0
      %604 = vmatprep.subr.mxu0 0.0
      %605 = vmatpush1.msra.mxu0 0.0
      %606 = vmatprep.subr.mxu0 0.0
      %607 = vmatpush1.msra.mxu0 0.0
      %608 = vmatprep.subr.mxu0 0.0
      %609 = vmatpush1.msra.mxu0 0.0
      %610 = vmatprep.subr.mxu0 0.0
      %611 = vmatpush1.msra.mxu0 0.0
      %612 = vmatprep.subr.mxu0 0.0
      %613 = vmatpush1.msra.mxu0 0.0
      %614 = vmatprep.subr.mxu0 0.0
      %615 = vmatpush1.msra.mxu0 0.0
      %616 = vmatprep.subr.mxu0 0.0
      %617 = vmatpush1.msra.mxu0 0.0
      %618 = vmatprep.subr.mxu0 0.0
      %619 = vmatpush1.msra.mxu0 0.0
      %620 = vmatprep.subr.mxu0 0.0
      %621 = vmatpush1.msra.mxu0 0.0
      %622 = vmatprep.subr.mxu0 0.0
      %623 = vmatpush1.msra.mxu0 0.0
      %624 = vmatprep.subr.mxu0 0.0
      %625 = vmatpush1.msra.mxu0 0.0
      %626 = vmatprep.subr.mxu0 0.0
      %627 = vmatpush1.msra.mxu0 0.0
      %628 = vmatprep.subr.mxu0 0.0
      %629 = vmatpush1.msra.mxu0 0.0
      %630 = vmatprep.subr.mxu0 0.0
      %631 = vmatpush1.msra.mxu0 0.0
      %632 = vmatprep.subr.mxu0 0.0
      %633 = vmatpush1.msra.mxu0 0.0
      %634 = vmatprep.subr.mxu0 0.0
      %635 = vmatpush1.msra.mxu0 0.0
      %636 = vmatprep.subr.mxu0 0.0
      %637 = vmatpush1.msra.mxu0 0.0
      %638 = vmatprep.subr.mxu0 0.0
      %639 = vmatpush1.msra.mxu0 0.0
      %640 = vmatprep.subr.mxu0 0.0
      %641 = vmatpush1.msra.mxu0 0.0
      %642 = vmatprep.subr.mxu0 0.0
      %643 = vmatpush1.msra.mxu0 0.0
      %644 = vmatprep.subr.mxu0 0.0
      %645 = vmatpush1.msra.mxu0 0.0
      %646 = vmatprep.subr.mxu0 0.0
      %647 = vmatpush1.msra.mxu0 0.0
      %648 = vmatprep.mubr.f32.mxu0 0.0
      %649 = vmatmul.mubr.f32.gmra.mrb[0].mxu0 %v576
      %v650 = vpop.f32.mrb[0].mxu0
      %v651 = vadd.f32 0.0, %v650
      %v652 = vpop.f32.mrb[0].mxu0
      %v653 = vadd.f32 0.0, %v652
      %654 = vdwg.mxu0
      %655 = vmatprep.subr.mxu0 0.0
      %656 = vmatpush1.msra.mxu0 %v582
      %657 = vmatprep.subr.mxu0 0.0
      %658 = vmatpush1.msra.mxu0 0.0
      %659 = vmatprep.subr.mxu0 0.0
      %660 = vmatpush1.msra.mxu0 0.0
      %661 = vmatprep.subr.mxu0 0.0
      %662 = vmatpush1.msra.mxu0 0.0
      %663 = vmatprep.subr.mxu0 0.0
      %664 = vmatpush1.msra.mxu0 0.0
      %665 = vmatprep.subr.mxu0 0.0
      %666 = vmatpush1.msra.mxu0 0.0
      %667 = vmatprep.subr.mxu0 0.0
      %668 = vmatpush1.msra.mxu0 0.0
      %669 = vmatprep.subr.mxu0 0.0
      %670 = vmatpush1.msra.mxu0 0.0
      %671 = vmatprep.subr.mxu0 0.0
      %672 = vmatpush1.msra.mxu0 0.0
      %673 = vmatprep.subr.mxu0 0.0
      %674 = vmatpush1.msra.mxu0 0.0
      %675 = vmatprep.subr.mxu0 0.0
      %676 = vmatpush1.msra.mxu0 0.0
      %677 = vmatprep.subr.mxu0 0.0
      %678 = vmatpush1.msra.mxu0 0.0
      %679 = vmatprep.subr.mxu0 0.0
      %680 = vmatpush1.msra.mxu0 0.0
      %681 = vmatprep.subr.mxu0 0.0
      %682 = vmatpush1.msra.mxu0 0.0
      %683 = vmatprep.subr.mxu0 0.0
      %684 = vmatpush1.msra.mxu0 0.0
      %685 = vmatprep.subr.mxu0 0.0
      %686 = vmatpush1.msra.mxu0 0.0
      %687 = vmatprep.subr.mxu0 0.0
      %688 = vmatpush1.msra.mxu0 0.0
      %689 = vmatprep.subr.mxu0 0.0
      %690 = vmatpush1.msra.mxu0 0.0
      %691 = vmatprep.subr.mxu0 0.0
      %692 = vmatpush1.msra.mxu0 0.0
      %693 = vmatprep.subr.mxu0 0.0
      %694 = vmatpush1.msra.mxu0 0.0
      %695 = vmatprep.subr.mxu0 0.0
      %696 = vmatpush1.msra.mxu0 0.0
      %697 = vmatprep.subr.mxu0 0.0
      %698 = vmatpush1.msra.mxu0 0.0
      %699 = vmatprep.subr.mxu0 0.0
      %700 = vmatpush1.msra.mxu0 0.0
      %701 = vmatprep.subr.mxu0 0.0
      %702 = vmatpush1.msra.mxu0 0.0
      %703 = vmatprep.subr.mxu0 0.0
      %704 = vmatpush1.msra.mxu0 0.0
      %705 = vmatprep.subr.mxu0 0.0
      %706 = vmatpush1.msra.mxu0 0.0
      %707 = vmatprep.subr.mxu0 0.0
      %708 = vmatpush1.msra.mxu0 0.0
      %709 = vmatprep.subr.mxu0 0.0
      %710 = vmatpush1.msra.mxu0 0.0
      %711 = vmatprep.subr.mxu0 0.0
      %712 = vmatpush1.msra.mxu0 0.0
      %713 = vmatprep.subr.mxu0 0.0
      %714 = vmatpush1.msra.mxu0 0.0
      %715 = vmatprep.subr.mxu0 0.0
      %716 = vmatpush1.msra.mxu0 0.0
      %717 = vmatprep.subr.mxu0 0.0
      %718 = vmatpush1.msra.mxu0 0.0
      %719 = vmatprep.mubr.f32.mxu0 0.0
      %720 = vmatmul.mubr.f32.gmra.mrb[0].mxu0 %v576
      %v721 = vpop.f32.mrb[0].mxu0
      %v722 = vadd.f32 0.0, %v721
      %v723 = vpop.f32.mrb[0].mxu0
      %724 = vdwg.mxu0
      %v725 = vadd.f32 %v485, %v651
      %v726 = vadd.f32 %v487, %v653
      %v727 = vadd.f32 %v556, %v722
      %v728 = vld [vmem:[%s239] sm:$0xff]
      %v729 = vld [vmem:[%s239 + $0x8] sm:$0xf]
      %s730 = scalar_lea.vmem %s3, 8
      %v731 = vld [vmem:[%s730] sm:$0xff]
      %v734 = vcombine.high %v728, %v728
      %735 = vrot.lane.b32.xlu0 %v728, 127
      %v736 = vpop.permute.xlu0 %735
      %737 = vrot.lane.b32.xlu0 %v734, 127
      %v738 = vpop.permute.xlu0 %737
      %739 = vrot.lane.b32.xlu0 %v729, 127
      %v740 = vpop.permute.xlu0 %739
      %v741 = vsel %vm572, %v736, %v738
      %v742 = vsel %vm572, %v738, %v740
      %v744 = vsel %vm254, %v731, 0
      %v746 = vsel %vm258, %v741, 0
      %v748 = vsel %vm258, %v742, 0
      %v750 = vsel %vm258, %v740, 0
      %752 = vmatprep.subr.mxu0 %v748
      %753 = vmatpush1.msra.mxu0 %v746
      %754 = vmatprep.subr.mxu0 0.0
      %755 = vmatpush1.msra.mxu0 0.0
      %756 = vmatprep.subr.mxu0 0.0
      %757 = vmatpush1.msra.mxu0 0.0
      %758 = vmatprep.subr.mxu0 0.0
      %759 = vmatpush1.msra.mxu0 0.0
      %760 = vmatprep.subr.mxu0 0.0
      %761 = vmatpush1.msra.mxu0 0.0
      %762 = vmatprep.subr.mxu0 0.0
      %763 = vmatpush1.msra.mxu0 0.0
      %764 = vmatprep.subr.mxu0 0.0
      %765 = vmatpush1.msra.mxu0 0.0
      %766 = vmatprep.subr.mxu0 0.0
      %767 = vmatpush1.msra.mxu0 0.0
      %768 = vmatprep.subr.mxu0 0.0
      %769 = vmatpush1.msra.mxu0 0.0
      %770 = vmatprep.subr.mxu0 0.0
      %771 = vmatpush1.msra.mxu0 0.0
      %772 = vmatprep.subr.mxu0 0.0
      %773 = vmatpush1.msra.mxu0 0.0
      %774 = vmatprep.subr.mxu0 0.0
      %775 = vmatpush1.msra.mxu0 0.0
      %776 = vmatprep.subr.mxu0 0.0
      %777 = vmatpush1.msra.mxu0 0.0
      %778 = vmatprep.subr.mxu0 0.0
      %779 = vmatpush1.msra.mxu0 0.0
      %780 = vmatprep.subr.mxu0 0.0
      %781 = vmatpush1.msra.mxu0 0.0
      %782 = vmatprep.subr.mxu0 0.0
      %783 = vmatpush1.msra.mxu0 0.0
      %784 = vmatprep.subr.mxu0 0.0
      %785 = vmatpush1.msra.mxu0 0.0
      %786 = vmatprep.subr.mxu0 0.0
      %787 = vmatpush1.msra.mxu0 0.0
      %788 = vmatprep.subr.mxu0 0.0
      %789 = vmatpush1.msra.mxu0 0.0
      %790 = vmatprep.subr.mxu0 0.0
      %791 = vmatpush1.msra.mxu0 0.0
      %792 = vmatprep.subr.mxu0 0.0
      %793 = vmatpush1.msra.mxu0 0.0
      %794 = vmatprep.subr.mxu0 0.0
      %795 = vmatpush1.msra.mxu0 0.0
      %796 = vmatprep.subr.mxu0 0.0
      %797 = vmatpush1.msra.mxu0 0.0
      %798 = vmatprep.subr.mxu0 0.0
      %799 = vmatpush1.msra.mxu0 0.0
      %800 = vmatprep.subr.mxu0 0.0
      %801 = vmatpush1.msra.mxu0 0.0
      %802 = vmatprep.subr.mxu0 0.0
      %803 = vmatpush1.msra.mxu0 0.0
      %804 = vmatprep.subr.mxu0 0.0
      %805 = vmatpush1.msra.mxu0 0.0
      %806 = vmatprep.subr.mxu0 0.0
      %807 = vmatpush1.msra.mxu0 0.0
      %808 = vmatprep.subr.mxu0 0.0
      %809 = vmatpush1.msra.mxu0 0.0
      %810 = vmatprep.subr.mxu0 0.0
      %811 = vmatpush1.msra.mxu0 0.0
      %812 = vmatprep.subr.mxu0 0.0
      %813 = vmatpush1.msra.mxu0 0.0
      %814 = vmatprep.subr.mxu0 0.0
      %815 = vmatpush1.msra.mxu0 0.0
      %816 = vmatprep.mubr.f32.mxu0 0.0
      %817 = vmatmul.mubr.f32.gmra.mrb[0].mxu0 %v744
      %v818 = vpop.f32.mrb[0].mxu0
      %v819 = vadd.f32 0.0, %v818
      %v820 = vpop.f32.mrb[0].mxu0
      %v821 = vadd.f32 0.0, %v820
      %822 = vdwg.mxu0
      %823 = vmatprep.subr.mxu0 0.0
      %824 = vmatpush1.msra.mxu0 %v750
      %825 = vmatprep.subr.mxu0 0.0
      %826 = vmatpush1.msra.mxu0 0.0
      %827 = vmatprep.subr.mxu0 0.0
      %828 = vmatpush1.msra.mxu0 0.0
      %829 = vmatprep.subr.mxu0 0.0
      %830 = vmatpush1.msra.mxu0 0.0
      %831 = vmatprep.subr.mxu0 0.0
      %832 = vmatpush1.msra.mxu0 0.0
      %833 = vmatprep.subr.mxu0 0.0
      %834 = vmatpush1.msra.mxu0 0.0
      %835 = vmatprep.subr.mxu0 0.0
      %836 = vmatpush1.msra.mxu0 0.0
      %837 = vmatprep.subr.mxu0 0.0
      %838 = vmatpush1.msra.mxu0 0.0
      %839 = vmatprep.subr.mxu0 0.0
      %840 = vmatpush1.msra.mxu0 0.0
      %841 = vmatprep.subr.mxu0 0.0
      %842 = vmatpush1.msra.mxu0 0.0
      %843 = vmatprep.subr.mxu0 0.0
      %844 = vmatpush1.msra.mxu0 0.0
      %845 = vmatprep.subr.mxu0 0.0
      %846 = vmatpush1.msra.mxu0 0.0
      %847 = vmatprep.subr.mxu0 0.0
      %848 = vmatpush1.msra.mxu0 0.0
      %849 = vmatprep.subr.mxu0 0.0
      %850 = vmatpush1.msra.mxu0 0.0
      %851 = vmatprep.subr.mxu0 0.0
      %852 = vmatpush1.msra.mxu0 0.0
      %853 = vmatprep.subr.mxu0 0.0
      %854 = vmatpush1.msra.mxu0 0.0
      %855 = vmatprep.subr.mxu0 0.0
      %856 = vmatpush1.msra.mxu0 0.0
      %857 = vmatprep.subr.mxu0 0.0
      %858 = vmatpush1.msra.mxu0 0.0
      %859 = vmatprep.subr.mxu0 0.0
      %860 = vmatpush1.msra.mxu0 0.0
      %861 = vmatprep.subr.mxu0 0.0
      %862 = vmatpush1.msra.mxu0 0.0
      %863 = vmatprep.subr.mxu0 0.0
      %864 = vmatpush1.msra.mxu0 0.0
      %865 = vmatprep.subr.mxu0 0.0
      %866 = vmatpush1.msra.mxu0 0.0
      %867 = vmatprep.subr.mxu0 0.0
      %868 = vmatpush1.msra.mxu0 0.0
      %869 = vmatprep.subr.mxu0 0.0
      %870 = vmatpush1.msra.mxu0 0.0
      %871 = vmatprep.subr.mxu0 0.0
      %872 = vmatpush1.msra.mxu0 0.0
      %873 = vmatprep.subr.mxu0 0.0
      %874 = vmatpush1.msra.mxu0 0.0
      %875 = vmatprep.subr.mxu0 0.0
      %876 = vmatpush1.msra.mxu0 0.0
      %877 = vmatprep.subr.mxu0 0.0
      %878 = vmatpush1.msra.mxu0 0.0
      %879 = vmatprep.subr.mxu0 0.0
      %880 = vmatpush1.msra.mxu0 0.0
      %881 = vmatprep.subr.mxu0 0.0
      %882 = vmatpush1.msra.mxu0 0.0
      %883 = vmatprep.subr.mxu0 0.0
      %884 = vmatpush1.msra.mxu0 0.0
      %885 = vmatprep.subr.mxu0 0.0
      %886 = vmatpush1.msra.mxu0 0.0
      %887 = vmatprep.mubr.f32.mxu0 0.0
      %888 = vmatmul.mubr.f32.gmra.mrb[0].mxu0 %v744
      %v889 = vpop.f32.mrb[0].mxu0
      %v890 = vadd.f32 0.0, %v889
      %v891 = vpop.f32.mrb[0].mxu0
      %892 = vdwg.mxu0
      %v893 = vadd.f32 %v725, %v819
      %v894 = vadd.f32 %v726, %v821
      %v895 = vadd.f32 %v727, %v890
      %v896 = vld [vmem:[%s234] sm:$0xff]
      %v897 = vld [vmem:[%s234 + $0x8] sm:$0xf]
      %s898 = scalar_lea.vmem %s2, 16
      %v899 = vld [vmem:[%s898] sm:$0xff]
      %v902 = vcombine.high %v896, %v896
      %903 = vrot.lane.b32.xlu0 %v896, 126
      %v904 = vpop.permute.xlu0 %903
      %905 = vrot.lane.b32.xlu0 %v902, 126
      %v906 = vpop.permute.xlu0 %905
      %907 = vrot.lane.b32.xlu0 %v897, 126
      %v908 = vpop.permute.xlu0 %907
      %vm909 = vcmask 1031168
      %v910 = vsel %vm909, %v904, %v906
      %v911 = vsel %vm909, %v906, %v908
      %v913 = vsel %vm254, %v899, 0
      %v915 = vsel %vm258, %v910, 0
      %v917 = vsel %vm258, %v911, 0
      %v919 = vsel %vm258, %v908, 0
      %921 = vmatprep.subr.mxu0 %v917
      %922 = vmatpush1.msra.mxu0 %v915
      %923 = vmatprep.subr.mxu0 0.0
      %924 = vmatpush1.msra.mxu0 0.0
      %925 = vmatprep.subr.mxu0 0.0
      %926 = vmatpush1.msra.mxu0 0.0
      %927 = vmatprep.subr.mxu0 0.0
      %928 = vmatpush1.msra.mxu0 0.0
      %929 = vmatprep.subr.mxu0 0.0
      %930 = vmatpush1.msra.mxu0 0.0
      %931 = vmatprep.subr.mxu0 0.0
      %932 = vmatpush1.msra.mxu0 0.0
      %933 = vmatprep.subr.mxu0 0.0
      %934 = vmatpush1.msra.mxu0 0.0
      %935 = vmatprep.subr.mxu0 0.0
      %936 = vmatpush1.msra.mxu0 0.0
      %937 = vmatprep.subr.mxu0 0.0
      %938 = vmatpush1.msra.mxu0 0.0
      %939 = vmatprep.subr.mxu0 0.0
      %940 = vmatpush1.msra.mxu0 0.0
      %941 = vmatprep.subr.mxu0 0.0
      %942 = vmatpush1.msra.mxu0 0.0
      %943 = vmatprep.subr.mxu0 0.0
      %944 = vmatpush1.msra.mxu0 0.0
      %945 = vmatprep.subr.mxu0 0.0
      %946 = vmatpush1.msra.mxu0 0.0
      %947 = vmatprep.subr.mxu0 0.0
      %948 = vmatpush1.msra.mxu0 0.0
      %949 = vmatprep.subr.mxu0 0.0
      %950 = vmatpush1.msra.mxu0 0.0
      %951 = vmatprep.subr.mxu0 0.0
      %952 = vmatpush1.msra.mxu0 0.0
      %953 = vmatprep.subr.mxu0 0.0
      %954 = vmatpush1.msra.mxu0 0.0
      %955 = vmatprep.subr.mxu0 0.0
      %956 = vmatpush1.msra.mxu0 0.0
      %957 = vmatprep.subr.mxu0 0.0
      %958 = vmatpush1.msra.mxu0 0.0
      %959 = vmatprep.subr.mxu0 0.0
      %960 = vmatpush1.msra.mxu0 0.0
      %961 = vmatprep.subr.mxu0 0.0
      %962 = vmatpush1.msra.mxu0 0.0
      %963 = vmatprep.subr.mxu0 0.0
      %964 = vmatpush1.msra.mxu0 0.0
      %965 = vmatprep.subr.mxu0 0.0
      %966 = vmatpush1.msra.mxu0 0.0
      %967 = vmatprep.subr.mxu0 0.0
      %968 = vmatpush1.msra.mxu0 0.0
      %969 = vmatprep.subr.mxu0 0.0
      %970 = vmatpush1.msra.mxu0 0.0
      %971 = vmatprep.subr.mxu0 0.0
      %972 = vmatpush1.msra.mxu0 0.0
      %973 = vmatprep.subr.mxu0 0.0
      %974 = vmatpush1.msra.mxu0 0.0
      %975 = vmatprep.subr.mxu0 0.0
      %976 = vmatpush1.msra.mxu0 0.0
      %977 = vmatprep.subr.mxu0 0.0
      %978 = vmatpush1.msra.mxu0 0.0
      %979 = vmatprep.subr.mxu0 0.0
      %980 = vmatpush1.msra.mxu0 0.0
      %981 = vmatprep.subr.mxu0 0.0
      %982 = vmatpush1.msra.mxu0 0.0
      %983 = vmatprep.subr.mxu0 0.0
      %984 = vmatpush1.msra.mxu0 0.0
      %985 = vmatprep.mubr.f32.mxu0 0.0
      %986 = vmatmul.mubr.f32.gmra.mrb[0].mxu0 %v913
      %v987 = vpop.f32.mrb[0].mxu0
      %v988 = vadd.f32 0.0, %v987
      %v989 = vpop.f32.mrb[0].mxu0
      %v990 = vadd.f32 0.0, %v989
      %991 = vdwg.mxu0
      %992 = vmatprep.subr.mxu0 0.0
      %993 = vmatpush1.msra.mxu0 %v919
      %994 = vmatprep.subr.mxu0 0.0
      %995 = vmatpush1.msra.mxu0 0.0
      %996 = vmatprep.subr.mxu0 0.0
      %997 = vmatpush1.msra.mxu0 0.0
      %998 = vmatprep.subr.mxu0 0.0
      %999 = vmatpush1.msra.mxu0 0.0
      %1000 = vmatprep.subr.mxu0 0.0
      %1001 = vmatpush1.msra.mxu0 0.0
      %1002 = vmatprep.subr.mxu0 0.0
      %1003 = vmatpush1.msra.mxu0 0.0
      %1004 = vmatprep.subr.mxu0 0.0
      %1005 = vmatpush1.msra.mxu0 0.0
      %1006 = vmatprep.subr.mxu0 0.0
      %1007 = vmatpush1.msra.mxu0 0.0
      %1008 = vmatprep.subr.mxu0 0.0
      %1009 = vmatpush1.msra.mxu0 0.0
      %1010 = vmatprep.subr.mxu0 0.0
      %1011 = vmatpush1.msra.mxu0 0.0
      %1012 = vmatprep.subr.mxu0 0.0
      %1013 = vmatpush1.msra.mxu0 0.0
      %1014 = vmatprep.subr.mxu0 0.0
      %1015 = vmatpush1.msra.mxu0 0.0
      %1016 = vmatprep.subr.mxu0 0.0
      %1017 = vmatpush1.msra.mxu0 0.0
      %1018 = vmatprep.subr.mxu0 0.0
      %1019 = vmatpush1.msra.mxu0 0.0
      %1020 = vmatprep.subr.mxu0 0.0
      %1021 = vmatpush1.msra.mxu0 0.0
      %1022 = vmatprep.subr.mxu0 0.0
      %1023 = vmatpush1.msra.mxu0 0.0
      %1024 = vmatprep.subr.mxu0 0.0
      %1025 = vmatpush1.msra.mxu0 0.0
      %1026 = vmatprep.subr.mxu0 0.0
      %1027 = vmatpush1.msra.mxu0 0.0
      %1028 = vmatprep.subr.mxu0 0.0
      %1029 = vmatpush1.msra.mxu0 0.0
      %1030 = vmatprep.subr.mxu0 0.0
      %1031 = vmatpush1.msra.mxu0 0.0
      %1032 = vmatprep.subr.mxu0 0.0
      %1033 = vmatpush1.msra.mxu0 0.0
      %1034 = vmatprep.subr.mxu0 0.0
      %1035 = vmatpush1.msra.mxu0 0.0
      %1036 = vmatprep.subr.mxu0 0.0
      %1037 = vmatpush1.msra.mxu0 0.0
      %1038 = vmatprep.subr.mxu0 0.0
      %1039 = vmatpush1.msra.mxu0 0.0
      %1040 = vmatprep.subr.mxu0 0.0
      %1041 = vmatpush1.msra.mxu0 0.0
      %1042 = vmatprep.subr.mxu0 0.0
      %1043 = vmatpush1.msra.mxu0 0.0
      %1044 = vmatprep.subr.mxu0 0.0
      %1045 = vmatpush1.msra.mxu0 0.0
      %1046 = vmatprep.subr.mxu0 0.0
      %1047 = vmatpush1.msra.mxu0 0.0
      %1048 = vmatprep.subr.mxu0 0.0
      %1049 = vmatpush1.msra.mxu0 0.0
      %1050 = vmatprep.subr.mxu0 0.0
      %1051 = vmatpush1.msra.mxu0 0.0
      %1052 = vmatprep.subr.mxu0 0.0
      %1053 = vmatpush1.msra.mxu0 0.0
      %1054 = vmatprep.subr.mxu0 0.0
      %1055 = vmatpush1.msra.mxu0 0.0
      %1056 = vmatprep.mubr.f32.mxu0 0.0
      %1057 = vmatmul.mubr.f32.gmra.mrb[0].mxu0 %v913
      %v1058 = vpop.f32.mrb[0].mxu0
      %v1059 = vadd.f32 0.0, %v1058
      %v1060 = vpop.f32.mrb[0].mxu0
      %1061 = vdwg.mxu0
      %v1062 = vadd.f32 %v893, %v988
      %v1063 = vadd.f32 %v894, %v990
      %v1064 = vadd.f32 %v895, %v1059
      %v1065 = vld [vmem:[%s239] sm:$0xff]
      %v1066 = vld [vmem:[%s239 + $0x8] sm:$0xf]
      %s1067 = scalar_lea.vmem %s3, 16
      %v1068 = vld [vmem:[%s1067] sm:$0xff]
      %v1071 = vcombine.high %v1065, %v1065
      %1072 = vrot.lane.b32.xlu0 %v1065, 126
      %v1073 = vpop.permute.xlu0 %1072
      %1074 = vrot.lane.b32.xlu0 %v1071, 126
      %v1075 = vpop.permute.xlu0 %1074
      %1076 = vrot.lane.b32.xlu0 %v1066, 126
      %v1077 = vpop.permute.xlu0 %1076
      %v1078 = vsel %vm909, %v1073, %v1075
      %v1079 = vsel %vm909, %v1075, %v1077
      %v1081 = vsel %vm254, %v1068, 0
      %v1083 = vsel %vm258, %v1078, 0
      %v1085 = vsel %vm258, %v1079, 0
      %v1087 = vsel %vm258, %v1077, 0
      %1089 = vmatprep.subr.mxu0 %v1085
      %1090 = vmatpush1.msra.mxu0 %v1083
      %1091 = vmatprep.subr.mxu0 0.0
      %1092 = vmatpush1.msra.mxu0 0.0
      %1093 = vmatprep.subr.mxu0 0.0
      %1094 = vmatpush1.msra.mxu0 0.0
      %1095 = vmatprep.subr.mxu0 0.0
      %1096 = vmatpush1.msra.mxu0 0.0
      %1097 = vmatprep.subr.mxu0 0.0
      %1098 = vmatpush1.msra.mxu0 0.0
      %1099 = vmatprep.subr.mxu0 0.0
      %1100 = vmatpush1.msra.mxu0 0.0
      %1101 = vmatprep.subr.mxu0 0.0
      %1102 = vmatpush1.msra.mxu0 0.0
      %1103 = vmatprep.subr.mxu0 0.0
      %1104 = vmatpush1.msra.mxu0 0.0
      %1105 = vmatprep.subr.mxu0 0.0
      %1106 = vmatpush1.msra.mxu0 0.0
      %1107 = vmatprep.subr.mxu0 0.0
      %1108 = vmatpush1.msra.mxu0 0.0
      %1109 = vmatprep.subr.mxu0 0.0
      %1110 = vmatpush1.msra.mxu0 0.0
      %1111 = vmatprep.subr.mxu0 0.0
      %1112 = vmatpush1.msra.mxu0 0.0
      %1113 = vmatprep.subr.mxu0 0.0
      %1114 = vmatpush1.msra.mxu0 0.0
      %1115 = vmatprep.subr.mxu0 0.0
      %1116 = vmatpush1.msra.mxu0 0.0
      %1117 = vmatprep.subr.mxu0 0.0
      %1118 = vmatpush1.msra.mxu0 0.0
      %1119 = vmatprep.subr.mxu0 0.0
      %1120 = vmatpush1.msra.mxu0 0.0
      %1121 = vmatprep.subr.mxu0 0.0
      %1122 = vmatpush1.msra.mxu0 0.0
      %1123 = vmatprep.subr.mxu0 0.0
      %1124 = vmatpush1.msra.mxu0 0.0
      %1125 = vmatprep.subr.mxu0 0.0
      %1126 = vmatpush1.msra.mxu0 0.0
      %1127 = vmatprep.subr.mxu0 0.0
      %1128 = vmatpush1.msra.mxu0 0.0
      %1129 = vmatprep.subr.mxu0 0.0
      %1130 = vmatpush1.msra.mxu0 0.0
      %1131 = vmatprep.subr.mxu0 0.0
      %1132 = vmatpush1.msra.mxu0 0.0
      %1133 = vmatprep.subr.mxu0 0.0
      %1134 = vmatpush1.msra.mxu0 0.0
      %1135 = vmatprep.subr.mxu0 0.0
      %1136 = vmatpush1.msra.mxu0 0.0
      %1137 = vmatprep.subr.mxu0 0.0
      %1138 = vmatpush1.msra.mxu0 0.0
      %1139 = vmatprep.subr.mxu0 0.0
      %1140 = vmatpush1.msra.mxu0 0.0
      %1141 = vmatprep.subr.mxu0 0.0
      %1142 = vmatpush1.msra.mxu0 0.0
      %1143 = vmatprep.subr.mxu0 0.0
      %1144 = vmatpush1.msra.mxu0 0.0
      %1145 = vmatprep.subr.mxu0 0.0
      %1146 = vmatpush1.msra.mxu0 0.0
      %1147 = vmatprep.subr.mxu0 0.0
      %1148 = vmatpush1.msra.mxu0 0.0
      %1149 = vmatprep.subr.mxu0 0.0
      %1150 = vmatpush1.msra.mxu0 0.0
      %1151 = vmatprep.subr.mxu0 0.0
      %1152 = vmatpush1.msra.mxu0 0.0
      %1153 = vmatprep.mubr.f32.mxu0 0.0
      %1154 = vmatmul.mubr.f32.gmra.mrb[0].mxu0 %v1081
      %v1155 = vpop.f32.mrb[0].mxu0
      %v1156 = vadd.f32 0.0, %v1155
      %v1157 = vpop.f32.mrb[0].mxu0
      %v1158 = vadd.f32 0.0, %v1157
      %1159 = vdwg.mxu0
      %1160 = vmatprep.subr.mxu0 0.0
      %1161 = vmatpush1.msra.mxu0 %v1087
      %1162 = vmatprep.subr.mxu0 0.0
      %1163 = vmatpush1.msra.mxu0 0.0
      %1164 = vmatprep.subr.mxu0 0.0
      %1165 = vmatpush1.msra.mxu0 0.0
      %1166 = vmatprep.subr.mxu0 0.0
      %1167 = vmatpush1.msra.mxu0 0.0
      %1168 = vmatprep.subr.mxu0 0.0
      %1169 = vmatpush1.msra.mxu0 0.0
      %1170 = vmatprep.subr.mxu0 0.0
      %1171 = vmatpush1.msra.mxu0 0.0
      %1172 = vmatprep.subr.mxu0 0.0
      %1173 = vmatpush1.msra.mxu0 0.0
      %1174 = vmatprep.subr.mxu0 0.0
      %1175 = vmatpush1.msra.mxu0 0.0
      %1176 = vmatprep.subr.mxu0 0.0
      %1177 = vmatpush1.msra.mxu0 0.0
      %1178 = vmatprep.subr.mxu0 0.0
      %1179 = vmatpush1.msra.mxu0 0.0
      %1180 = vmatprep.subr.mxu0 0.0
      %1181 = vmatpush1.msra.mxu0 0.0
      %1182 = vmatprep.subr.mxu0 0.0
      %1183 = vmatpush1.msra.mxu0 0.0
      %1184 = vmatprep.subr.mxu0 0.0
      %1185 = vmatpush1.msra.mxu0 0.0
      %1186 = vmatprep.subr.mxu0 0.0
      %1187 = vmatpush1.msra.mxu0 0.0
      %1188 = vmatprep.subr.mxu0 0.0
      %1189 = vmatpush1.msra.mxu0 0.0
      %1190 = vmatprep.subr.mxu0 0.0
      %1191 = vmatpush1.msra.mxu0 0.0
      %1192 = vmatprep.subr.mxu0 0.0
      %1193 = vmatpush1.msra.mxu0 0.0
      %1194 = vmatprep.subr.mxu0 0.0
      %1195 = vmatpush1.msra.mxu0 0.0
      %1196 = vmatprep.subr.mxu0 0.0
      %1197 = vmatpush1.msra.mxu0 0.0
      %1198 = vmatprep.subr.mxu0 0.0
      %1199 = vmatpush1.msra.mxu0 0.0
      %1200 = vmatprep.subr.mxu0 0.0
      %1201 = vmatpush1.msra.mxu0 0.0
      %1202 = vmatprep.subr.mxu0 0.0
      %1203 = vmatpush1.msra.mxu0 0.0
      %1204 = vmatprep.subr.mxu0 0.0
      %1205 = vmatpush1.msra.mxu0 0.0
      %1206 = vmatprep.subr.mxu0 0.0
      %1207 = vmatpush1.msra.mxu0 0.0
      %1208 = vmatprep.subr.mxu0 0.0
      %1209 = vmatpush1.msra.mxu0 0.0
      %1210 = vmatprep.subr.mxu0 0.0
      %1211 = vmatpush1.msra.mxu0 0.0
      %1212 = vmatprep.subr.mxu0 0.0
      %1213 = vmatpush1.msra.mxu0 0.0
      %1214 = vmatprep.subr.mxu0 0.0
      %1215 = vmatpush1.msra.mxu0 0.0
      %1216 = vmatprep.subr.mxu0 0.0
      %1217 = vmatpush1.msra.mxu0 0.0
      %1218 = vmatprep.subr.mxu0 0.0
      %1219 = vmatpush1.msra.mxu0 0.0
      %1220 = vmatprep.subr.mxu0 0.0
      %1221 = vmatpush1.msra.mxu0 0.0
      %1222 = vmatprep.subr.mxu0 0.0
      %1223 = vmatpush1.msra.mxu0 0.0
      %1224 = vmatprep.mubr.f32.mxu0 0.0
      %1225 = vmatmul.mubr.f32.gmra.mrb[0].mxu0 %v1081
      %v1226 = vpop.f32.mrb[0].mxu0
      %v1227 = vadd.f32 0.0, %v1226
      %v1228 = vpop.f32.mrb[0].mxu0
      %1229 = vdwg.mxu0
      %v1230 = vadd.f32 %v1062, %v1156
      %v1231 = vadd.f32 %v1063, %v1158
      %v1232 = vadd.f32 %v1064, %v1227
      %v1233 = vld [vmem:[%s234] sm:$0xff]
      %v1234 = vld [vmem:[%s234 + $0x8] sm:$0xf]
      %s1235 = scalar_lea.vmem %s2, 24
      %v1236 = vld [vmem:[%s1235] sm:$0xff]
      %v1239 = vcombine.high %v1233, %v1233
      %1240 = vrot.lane.b32.xlu0 %v1233, 110
      %v1241 = vpop.permute.xlu0 %1240
      %1242 = vrot.lane.b32.xlu0 %v1239, 110
      %v1243 = vpop.permute.xlu0 %1242
      %1244 = vrot.lane.b32.xlu0 %v1234, 110
      %v1245 = vpop.permute.xlu0 %1244
      %vm1246 = vcmask 900096
      %v1247 = vsel %vm1246, %v1241, %v1243
      %v1248 = vsel %vm1246, %v1243, %v1245
      %v1250 = vsel %vm254, %v1236, 0
      %v1252 = vsel %vm258, %v1247, 0
      %v1254 = vsel %vm258, %v1248, 0
      %v1256 = vsel %vm258, %v1245, 0
      %1258 = vmatprep.subr.mxu0 %v1254
      %1259 = vmatpush1.msra.mxu0 %v1252
      %1260 = vmatprep.subr.mxu0 0.0
      %1261 = vmatpush1.msra.mxu0 0.0
      %1262 = vmatprep.subr.mxu0 0.0
      %1263 = vmatpush1.msra.mxu0 0.0
      %1264 = vmatprep.subr.mxu0 0.0
      %1265 = vmatpush1.msra.mxu0 0.0
      %1266 = vmatprep.subr.mxu0 0.0
      %1267 = vmatpush1.msra.mxu0 0.0
      %1268 = vmatprep.subr.mxu0 0.0
      %1269 = vmatpush1.msra.mxu0 0.0
      %1270 = vmatprep.subr.mxu0 0.0
      %1271 = vmatpush1.msra.mxu0 0.0
      %1272 = vmatprep.subr.mxu0 0.0
      %1273 = vmatpush1.msra.mxu0 0.0
      %1274 = vmatprep.subr.mxu0 0.0
      %1275 = vmatpush1.msra.mxu0 0.0
      %1276 = vmatprep.subr.mxu0 0.0
      %1277 = vmatpush1.msra.mxu0 0.0
      %1278 = vmatprep.subr.mxu0 0.0
      %1279 = vmatpush1.msra.mxu0 0.0
      %1280 = vmatprep.subr.mxu0 0.0
      %1281 = vmatpush1.msra.mxu0 0.0
      %1282 = vmatprep.subr.mxu0 0.0
      %1283 = vmatpush1.msra.mxu0 0.0
      %1284 = vmatprep.subr.mxu0 0.0
      %1285 = vmatpush1.msra.mxu0 0.0
      %1286 = vmatprep.subr.mxu0 0.0
      %1287 = vmatpush1.msra.mxu0 0.0
      %1288 = vmatprep.subr.mxu0 0.0
      %1289 = vmatpush1.msra.mxu0 0.0
      %1290 = vmatprep.subr.mxu0 0.0
      %1291 = vmatpush1.msra.mxu0 0.0
      %1292 = vmatprep.subr.mxu0 0.0
      %1293 = vmatpush1.msra.mxu0 0.0
      %1294 = vmatprep.subr.mxu0 0.0
      %1295 = vmatpush1.msra.mxu0 0.0
      %1296 = vmatprep.subr.mxu0 0.0
      %1297 = vmatpush1.msra.mxu0 0.0
      %1298 = vmatprep.subr.mxu0 0.0
      %1299 = vmatpush1.msra.mxu0 0.0
      %1300 = vmatprep.subr.mxu0 0.0
      %1301 = vmatpush1.msra.mxu0 0.0
      %1302 = vmatprep.subr.mxu0 0.0
      %1303 = vmatpush1.msra.mxu0 0.0
      %1304 = vmatprep.subr.mxu0 0.0
      %1305 = vmatpush1.msra.mxu0 0.0
      %1306 = vmatprep.subr.mxu0 0.0
      %1307 = vmatpush1.msra.mxu0 0.0
      %1308 = vmatprep.subr.mxu0 0.0
      %1309 = vmatpush1.msra.mxu0 0.0
      %1310 = vmatprep.subr.mxu0 0.0
      %1311 = vmatpush1.msra.mxu0 0.0
      %1312 = vmatprep.subr.mxu0 0.0
      %1313 = vmatpush1.msra.mxu0 0.0
      %1314 = vmatprep.subr.mxu0 0.0
      %1315 = vmatpush1.msra.mxu0 0.0
      %1316 = vmatprep.subr.mxu0 0.0
      %1317 = vmatpush1.msra.mxu0 0.0
      %1318 = vmatprep.subr.mxu0 0.0
      %1319 = vmatpush1.msra.mxu0 0.0
      %1320 = vmatprep.subr.mxu0 0.0
      %1321 = vmatpush1.msra.mxu0 0.0
      %1322 = vmatprep.mubr.f32.mxu0 0.0
      %1323 = vmatmul.mubr.f32.gmra.mrb[0].mxu0 %v1250
      %v1324 = vpop.f32.mrb[0].mxu0
      %v1325 = vadd.f32 0.0, %v1324
      %v1326 = vpop.f32.mrb[0].mxu0
      %v1327 = vadd.f32 0.0, %v1326
      %1328 = vdwg.mxu0
      %1329 = vmatprep.subr.mxu0 0.0
      %1330 = vmatpush1.msra.mxu0 %v1256
      %1331 = vmatprep.subr.mxu0 0.0
      %1332 = vmatpush1.msra.mxu0 0.0
      %1333 = vmatprep.subr.mxu0 0.0
      %1334 = vmatpush1.msra.mxu0 0.0
      %1335 = vmatprep.subr.mxu0 0.0
      %1336 = vmatpush1.msra.mxu0 0.0
      %1337 = vmatprep.subr.mxu0 0.0
      %1338 = vmatpush1.msra.mxu0 0.0
      %1339 = vmatprep.subr.mxu0 0.0
      %1340 = vmatpush1.msra.mxu0 0.0
      %1341 = vmatprep.subr.mxu0 0.0
      %1342 = vmatpush1.msra.mxu0 0.0
      %1343 = vmatprep.subr.mxu0 0.0
      %1344 = vmatpush1.msra.mxu0 0.0
      %1345 = vmatprep.subr.mxu0 0.0
      %1346 = vmatpush1.msra.mxu0 0.0
      %1347 = vmatprep.subr.mxu0 0.0
      %1348 = vmatpush1.msra.mxu0 0.0
      %1349 = vmatprep.subr.mxu0 0.0
      %1350 = vmatpush1.msra.mxu0 0.0
      %1351 = vmatprep.subr.mxu0 0.0
      %1352 = vmatpush1.msra.mxu0 0.0
      %1353 = vmatprep.subr.mxu0 0.0
      %1354 = vmatpush1.msra.mxu0 0.0
      %1355 = vmatprep.subr.mxu0 0.0
      %1356 = vmatpush1.msra.mxu0 0.0
      %1357 = vmatprep.subr.mxu0 0.0
      %1358 = vmatpush1.msra.mxu0 0.0
      %1359 = vmatprep.subr.mxu0 0.0
      %1360 = vmatpush1.msra.mxu0 0.0
      %1361 = vmatprep.subr.mxu0 0.0
      %1362 = vmatpush1.msra.mxu0 0.0
      %1363 = vmatprep.subr.mxu0 0.0
      %1364 = vmatpush1.msra.mxu0 0.0
      %1365 = vmatprep.subr.mxu0 0.0
      %1366 = vmatpush1.msra.mxu0 0.0
      %1367 = vmatprep.subr.mxu0 0.0
      %1368 = vmatpush1.msra.mxu0 0.0
      %1369 = vmatprep.subr.mxu0 0.0
      %1370 = vmatpush1.msra.mxu0 0.0
      %1371 = vmatprep.subr.mxu0 0.0
      %1372 = vmatpush1.msra.mxu0 0.0
      %1373 = vmatprep.subr.mxu0 0.0
      %1374 = vmatpush1.msra.mxu0 0.0
      %1375 = vmatprep.subr.mxu0 0.0
      %1376 = vmatpush1.msra.mxu0 0.0
      %1377 = vmatprep.subr.mxu0 0.0
      %1378 = vmatpush1.msra.mxu0 0.0
      %1379 = vmatprep.subr.mxu0 0.0
      %1380 = vmatpush1.msra.mxu0 0.0
      %1381 = vmatprep.subr.mxu0 0.0
      %1382 = vmatpush1.msra.mxu0 0.0
      %1383 = vmatprep.subr.mxu0 0.0
      %1384 = vmatpush1.msra.mxu0 0.0
      %1385 = vmatprep.subr.mxu0 0.0
      %1386 = vmatpush1.msra.mxu0 0.0
      %1387 = vmatprep.subr.mxu0 0.0
      %1388 = vmatpush1.msra.mxu0 0.0
      %1389 = vmatprep.subr.mxu0 0.0
      %1390 = vmatpush1.msra.mxu0 0.0
      %1391 = vmatprep.subr.mxu0 0.0
      %1392 = vmatpush1.msra.mxu0 0.0
      %1393 = vmatprep.mubr.f32.mxu0 0.0
      %1394 = vmatmul.mubr.f32.gmra.mrb[0].mxu0 %v1250
      %v1395 = vpop.f32.mrb[0].mxu0
      %v1396 = vadd.f32 0.0, %v1395
      %v1397 = vpop.f32.mrb[0].mxu0
      %1398 = vdwg.mxu0
      %v1399 = vadd.f32 %v1230, %v1325
      %v1400 = vadd.f32 %v1231, %v1327
      %v1401 = vadd.f32 %v1232, %v1396
      %v1402 = vld [vmem:[%s239] sm:$0xff]
      %v1403 = vld [vmem:[%s239 + $0x8] sm:$0xf]
      %s1404 = scalar_lea.vmem %s3, 24
      %v1405 = vld [vmem:[%s1404] sm:$0xff]
      %v1408 = vcombine.high %v1402, %v1402
      %1409 = vrot.lane.b32.xlu0 %v1402, 110
      %v1410 = vpop.permute.xlu0 %1409
      %1411 = vrot.lane.b32.xlu0 %v1408, 110
      %v1412 = vpop.permute.xlu0 %1411
      %1413 = vrot.lane.b32.xlu0 %v1403, 110
      %v1414 = vpop.permute.xlu0 %1413
      %v1415 = vsel %vm1246, %v1410, %v1412
      %v1416 = vsel %vm1246, %v1412, %v1414
      %v1418 = vsel %vm254, %v1405, 0
      %v1420 = vsel %vm258, %v1415, 0
      %v1422 = vsel %vm258, %v1416, 0
      %v1424 = vsel %vm258, %v1414, 0
      %1426 = vmatprep.subr.mxu0 %v1422
      %1427 = vmatpush1.msra.mxu0 %v1420
      %1428 = vmatprep.subr.mxu0 0.0
      %1429 = vmatpush1.msra.mxu0 0.0
      %1430 = vmatprep.subr.mxu0 0.0
      %1431 = vmatpush1.msra.mxu0 0.0
      %1432 = vmatprep.subr.mxu0 0.0
      %1433 = vmatpush1.msra.mxu0 0.0
      %1434 = vmatprep.subr.mxu0 0.0
      %1435 = vmatpush1.msra.mxu0 0.0
      %1436 = vmatprep.subr.mxu0 0.0
      %1437 = vmatpush1.msra.mxu0 0.0
      %1438 = vmatprep.subr.mxu0 0.0
      %1439 = vmatpush1.msra.mxu0 0.0
      %1440 = vmatprep.subr.mxu0 0.0
      %1441 = vmatpush1.msra.mxu0 0.0
      %1442 = vmatprep.subr.mxu0 0.0
      %1443 = vmatpush1.msra.mxu0 0.0
      %1444 = vmatprep.subr.mxu0 0.0
      %1445 = vmatpush1.msra.mxu0 0.0
      %1446 = vmatprep.subr.mxu0 0.0
      %1447 = vmatpush1.msra.mxu0 0.0
      %1448 = vmatprep.subr.mxu0 0.0
      %1449 = vmatpush1.msra.mxu0 0.0
      %1450 = vmatprep.subr.mxu0 0.0
      %1451 = vmatpush1.msra.mxu0 0.0
      %1452 = vmatprep.subr.mxu0 0.0
      %1453 = vmatpush1.msra.mxu0 0.0
      %1454 = vmatprep.subr.mxu0 0.0
      %1455 = vmatpush1.msra.mxu0 0.0
      %1456 = vmatprep.subr.mxu0 0.0
      %1457 = vmatpush1.msra.mxu0 0.0
      %1458 = vmatprep.subr.mxu0 0.0
      %1459 = vmatpush1.msra.mxu0 0.0
      %1460 = vmatprep.subr.mxu0 0.0
      %1461 = vmatpush1.msra.mxu0 0.0
      %1462 = vmatprep.subr.mxu0 0.0
      %1463 = vmatpush1.msra.mxu0 0.0
      %1464 = vmatprep.subr.mxu0 0.0
      %1465 = vmatpush1.msra.mxu0 0.0
      %1466 = vmatprep.subr.mxu0 0.0
      %1467 = vmatpush1.msra.mxu0 0.0
      %1468 = vmatprep.subr.mxu0 0.0
      %1469 = vmatpush1.msra.mxu0 0.0
      %1470 = vmatprep.subr.mxu0 0.0
      %1471 = vmatpush1.msra.mxu0 0.0
      %1472 = vmatprep.subr.mxu0 0.0
      %1473 = vmatpush1.msra.mxu0 0.0
      %1474 = vmatprep.subr.mxu0 0.0
      %1475 = vmatpush1.msra.mxu0 0.0
      %1476 = vmatprep.subr.mxu0 0.0
      %1477 = vmatpush1.msra.mxu0 0.0
      %1478 = vmatprep.subr.mxu0 0.0
      %1479 = vmatpush1.msra.mxu0 0.0
      %1480 = vmatprep.subr.mxu0 0.0
      %1481 = vmatpush1.msra.mxu0 0.0
      %1482 = vmatprep.subr.mxu0 0.0
      %1483 = vmatpush1.msra.mxu0 0.0
      %1484 = vmatprep.subr.mxu0 0.0
      %1485 = vmatpush1.msra.mxu0 0.0
      %1486 = vmatprep.subr.mxu0 0.0
      %1487 = vmatpush1.msra.mxu0 0.0
      %1488 = vmatprep.subr.mxu0 0.0
      %1489 = vmatpush1.msra.mxu0 0.0
      %1490 = vmatprep.mubr.f32.mxu0 0.0
      %1491 = vmatmul.mubr.f32.gmra.mrb[0].mxu0 %v1418
      %v1492 = vpop.f32.mrb[0].mxu0
      %v1493 = vadd.f32 0.0, %v1492
      %v1494 = vpop.f32.mrb[0].mxu0
      %v1495 = vadd.f32 0.0, %v1494
      %1496 = vdwg.mxu0
      %1497 = vmatprep.subr.mxu0 0.0
      %1498 = vmatpush1.msra.mxu0 %v1424
      %1499 = vmatprep.subr.mxu0 0.0
      %1500 = vmatpush1.msra.mxu0 0.0
      %1501 = vmatprep.subr.mxu0 0.0
      %1502 = vmatpush1.msra.mxu0 0.0
      %1503 = vmatprep.subr.mxu0 0.0
      %1504 = vmatpush1.msra.mxu0 0.0
      %1505 = vmatprep.subr.mxu0 0.0
      %1506 = vmatpush1.msra.mxu0 0.0
      %1507 = vmatprep.subr.mxu0 0.0
      %1508 = vmatpush1.msra.mxu0 0.0
      %1509 = vmatprep.subr.mxu0 0.0
      %1510 = vmatpush1.msra.mxu0 0.0
      %1511 = vmatprep.subr.mxu0 0.0
      %1512 = vmatpush1.msra.mxu0 0.0
      %1513 = vmatprep.subr.mxu0 0.0
      %1514 = vmatpush1.msra.mxu0 0.0
      %1515 = vmatprep.subr.mxu0 0.0
      %1516 = vmatpush1.msra.mxu0 0.0
      %1517 = vmatprep.subr.mxu0 0.0
      %1518 = vmatpush1.msra.mxu0 0.0
      %1519 = vmatprep.subr.mxu0 0.0
      %1520 = vmatpush1.msra.mxu0 0.0
      %1521 = vmatprep.subr.mxu0 0.0
      %1522 = vmatpush1.msra.mxu0 0.0
      %1523 = vmatprep.subr.mxu0 0.0
      %1524 = vmatpush1.msra.mxu0 0.0
      %1525 = vmatprep.subr.mxu0 0.0
      %1526 = vmatpush1.msra.mxu0 0.0
      %1527 = vmatprep.subr.mxu0 0.0
      %1528 = vmatpush1.msra.mxu0 0.0
      %1529 = vmatprep.subr.mxu0 0.0
      %1530 = vmatpush1.msra.mxu0 0.0
      %1531 = vmatprep.subr.mxu0 0.0
      %1532 = vmatpush1.msra.mxu0 0.0
      %1533 = vmatprep.subr.mxu0 0.0
      %1534 = vmatpush1.msra.mxu0 0.0
      %1535 = vmatprep.subr.mxu0 0.0
      %1536 = vmatpush1.msra.mxu0 0.0
      %1537 = vmatprep.subr.mxu0 0.0
      %1538 = vmatpush1.msra.mxu0 0.0
      %1539 = vmatprep.subr.mxu0 0.0
      %1540 = vmatpush1.msra.mxu0 0.0
      %1541 = vmatprep.subr.mxu0 0.0
      %1542 = vmatpush1.msra.mxu0 0.0
      %1543 = vmatprep.subr.mxu0 0.0
      %1544 = vmatpush1.msra.mxu0 0.0
      %1545 = vmatprep.subr.mxu0 0.0
      %1546 = vmatpush1.msra.mxu0 0.0
      %1547 = vmatprep.subr.mxu0 0.0
      %1548 = vmatpush1.msra.mxu0 0.0
      %1549 = vmatprep.subr.mxu0 0.0
      %1550 = vmatpush1.msra.mxu0 0.0
      %1551 = vmatprep.subr.mxu0 0.0
      %1552 = vmatpush1.msra.mxu0 0.0
      %1553 = vmatprep.subr.mxu0 0.0
      %1554 = vmatpush1.msra.mxu0 0.0
      %1555 = vmatprep.subr.mxu0 0.0
      %1556 = vmatpush1.msra.mxu0 0.0
      %1557 = vmatprep.subr.mxu0 0.0
      %1558 = vmatpush1.msra.mxu0 0.0
      %1559 = vmatprep.subr.mxu0 0.0
      %1560 = vmatpush1.msra.mxu0 0.0
      %1561 = vmatprep.mubr.f32.mxu0 0.0
      %1562 = vmatmul.mubr.f32.gmra.mrb[0].mxu0 %v1418
      %v1563 = vpop.f32.mrb[0].mxu0
      %v1564 = vadd.f32 0.0, %v1563
      %v1565 = vpop.f32.mrb[0].mxu0
      %1566 = vdwg.mxu0
      %v1567 = vadd.f32 %v1399, %v1493
      %v1568 = vadd.f32 %v1400, %v1495
      %v1569 = vadd.f32 %v1401, %v1564
      %v1570 = vld [vmem:[%s234] sm:$0xff]
      %v1571 = vld [vmem:[%s234 + $0x8] sm:$0xf]
      %s1572 = scalar_lea.vmem %s2, 32
      %v1573 = vld [vmem:[%s1572] sm:$0xff]
      %v1576 = vcombine.high %v1570, %v1570
      %1577 = vrot.lane.b32.xlu0 %v1570, 109
      %v1578 = vpop.permute.xlu0 %1577
      %1579 = vrot.lane.b32.xlu0 %v1576, 109
      %v1580 = vpop.permute.xlu0 %1579
      %1581 = vrot.lane.b32.xlu0 %v1571, 109
      %v1582 = vpop.permute.xlu0 %1581
      %vm1583 = vcmask 891904
      %v1584 = vsel %vm1583, %v1578, %v1580
      %v1585 = vsel %vm1583, %v1580, %v1582
      %v1587 = vsel %vm254, %v1573, 0
      %v1589 = vsel %vm258, %v1584, 0
      %v1591 = vsel %vm258, %v1585, 0
      %v1593 = vsel %vm258, %v1582, 0
      %1595 = vmatprep.subr.mxu0 %v1591
      %1596 = vmatpush1.msra.mxu0 %v1589
      %1597 = vmatprep.subr.mxu0 0.0
      %1598 = vmatpush1.msra.mxu0 0.0
      %1599 = vmatprep.subr.mxu0 0.0
      %1600 = vmatpush1.msra.mxu0 0.0
      %1601 = vmatprep.subr.mxu0 0.0
      %1602 = vmatpush1.msra.mxu0 0.0
      %1603 = vmatprep.subr.mxu0 0.0
      %1604 = vmatpush1.msra.mxu0 0.0
      %1605 = vmatprep.subr.mxu0 0.0
      %1606 = vmatpush1.msra.mxu0 0.0
      %1607 = vmatprep.subr.mxu0 0.0
      %1608 = vmatpush1.msra.mxu0 0.0
      %1609 = vmatprep.subr.mxu0 0.0
      %1610 = vmatpush1.msra.mxu0 0.0
      %1611 = vmatprep.subr.mxu0 0.0
      %1612 = vmatpush1.msra.mxu0 0.0
      %1613 = vmatprep.subr.mxu0 0.0
      %1614 = vmatpush1.msra.mxu0 0.0
      %1615 = vmatprep.subr.mxu0 0.0
      %1616 = vmatpush1.msra.mxu0 0.0
      %1617 = vmatprep.subr.mxu0 0.0
      %1618 = vmatpush1.msra.mxu0 0.0
      %1619 = vmatprep.subr.mxu0 0.0
      %1620 = vmatpush1.msra.mxu0 0.0
      %1621 = vmatprep.subr.mxu0 0.0
      %1622 = vmatpush1.msra.mxu0 0.0
      %1623 = vmatprep.subr.mxu0 0.0
      %1624 = vmatpush1.msra.mxu0 0.0
      %1625 = vmatprep.subr.mxu0 0.0
      %1626 = vmatpush1.msra.mxu0 0.0
      %1627 = vmatprep.subr.mxu0 0.0
      %1628 = vmatpush1.msra.mxu0 0.0
      %1629 = vmatprep.subr.mxu0 0.0
      %1630 = vmatpush1.msra.mxu0 0.0
      %1631 = vmatprep.subr.mxu0 0.0
      %1632 = vmatpush1.msra.mxu0 0.0
      %1633 = vmatprep.subr.mxu0 0.0
      %1634 = vmatpush1.msra.mxu0 0.0
      %1635 = vmatprep.subr.mxu0 0.0
      %1636 = vmatpush1.msra.mxu0 0.0
      %1637 = vmatprep.subr.mxu0 0.0
      %1638 = vmatpush1.msra.mxu0 0.0
      %1639 = vmatprep.subr.mxu0 0.0
      %1640 = vmatpush1.msra.mxu0 0.0
      %1641 = vmatprep.subr.mxu0 0.0
      %1642 = vmatpush1.msra.mxu0 0.0
      %1643 = vmatprep.subr.mxu0 0.0
      %1644 = vmatpush1.msra.mxu0 0.0
      %1645 = vmatprep.subr.mxu0 0.0
      %1646 = vmatpush1.msra.mxu0 0.0
      %1647 = vmatprep.subr.mxu0 0.0
      %1648 = vmatpush1.msra.mxu0 0.0
      %1649 = vmatprep.subr.mxu0 0.0
      %1650 = vmatpush1.msra.mxu0 0.0
      %1651 = vmatprep.subr.mxu0 0.0
      %1652 = vmatpush1.msra.mxu0 0.0
      %1653 = vmatprep.subr.mxu0 0.0
      %1654 = vmatpush1.msra.mxu0 0.0
      %1655 = vmatprep.subr.mxu0 0.0
      %1656 = vmatpush1.msra.mxu0 0.0
      %1657 = vmatprep.subr.mxu0 0.0
      %1658 = vmatpush1.msra.mxu0 0.0
      %1659 = vmatprep.mubr.f32.mxu0 0.0
      %1660 = vmatmul.mubr.f32.gmra.mrb[0].mxu0 %v1587
      %v1661 = vpop.f32.mrb[0].mxu0
      %v1662 = vadd.f32 0.0, %v1661
      %v1663 = vpop.f32.mrb[0].mxu0
      %v1664 = vadd.f32 0.0, %v1663
      %1665 = vdwg.mxu0
      %1666 = vmatprep.subr.mxu0 0.0
      %1667 = vmatpush1.msra.mxu0 %v1593
      %1668 = vmatprep.subr.mxu0 0.0
      %1669 = vmatpush1.msra.mxu0 0.0
      %1670 = vmatprep.subr.mxu0 0.0
      %1671 = vmatpush1.msra.mxu0 0.0
      %1672 = vmatprep.subr.mxu0 0.0
      %1673 = vmatpush1.msra.mxu0 0.0
      %1674 = vmatprep.subr.mxu0 0.0
      %1675 = vmatpush1.msra.mxu0 0.0
      %1676 = vmatprep.subr.mxu0 0.0
      %1677 = vmatpush1.msra.mxu0 0.0
      %1678 = vmatprep.subr.mxu0 0.0
      %1679 = vmatpush1.msra.mxu0 0.0
      %1680 = vmatprep.subr.mxu0 0.0
      %1681 = vmatpush1.msra.mxu0 0.0
      %1682 = vmatprep.subr.mxu0 0.0
      %1683 = vmatpush1.msra.mxu0 0.0
      %1684 = vmatprep.subr.mxu0 0.0
      %1685 = vmatpush1.msra.mxu0 0.0
      %1686 = vmatprep.subr.mxu0 0.0
      %1687 = vmatpush1.msra.mxu0 0.0
      %1688 = vmatprep.subr.mxu0 0.0
      %1689 = vmatpush1.msra.mxu0 0.0
      %1690 = vmatprep.subr.mxu0 0.0
      %1691 = vmatpush1.msra.mxu0 0.0
      %1692 = vmatprep.subr.mxu0 0.0
      %1693 = vmatpush1.msra.mxu0 0.0
      %1694 = vmatprep.subr.mxu0 0.0
      %1695 = vmatpush1.msra.mxu0 0.0
      %1696 = vmatprep.subr.mxu0 0.0
      %1697 = vmatpush1.msra.mxu0 0.0
      %1698 = vmatprep.subr.mxu0 0.0
      %1699 = vmatpush1.msra.mxu0 0.0
      %1700 = vmatprep.subr.mxu0 0.0
      %1701 = vmatpush1.msra.mxu0 0.0
      %1702 = vmatprep.subr.mxu0 0.0
      %1703 = vmatpush1.msra.mxu0 0.0
      %1704 = vmatprep.subr.mxu0 0.0
      %1705 = vmatpush1.msra.mxu0 0.0
      %1706 = vmatprep.subr.mxu0 0.0
      %1707 = vmatpush1.msra.mxu0 0.0
      %1708 = vmatprep.subr.mxu0 0.0
      %1709 = vmatpush1.msra.mxu0 0.0
      %1710 = vmatprep.subr.mxu0 0.0
      %1711 = vmatpush1.msra.mxu0 0.0
      %1712 = vmatprep.subr.mxu0 0.0
      %1713 = vmatpush1.msra.mxu0 0.0
      %1714 = vmatprep.subr.mxu0 0.0
      %1715 = vmatpush1.msra.mxu0 0.0
      %1716 = vmatprep.subr.mxu0 0.0
      %1717 = vmatpush1.msra.mxu0 0.0
      %1718 = vmatprep.subr.mxu0 0.0
      %1719 = vmatpush1.msra.mxu0 0.0
      %1720 = vmatprep.subr.mxu0 0.0
      %1721 = vmatpush1.msra.mxu0 0.0
      %1722 = vmatprep.subr.mxu0 0.0
      %1723 = vmatpush1.msra.mxu0 0.0
      %1724 = vmatprep.subr.mxu0 0.0
      %1725 = vmatpush1.msra.mxu0 0.0
      %1726 = vmatprep.subr.mxu0 0.0
      %1727 = vmatpush1.msra.mxu0 0.0
      %1728 = vmatprep.subr.mxu0 0.0
      %1729 = vmatpush1.msra.mxu0 0.0
      %1730 = vmatprep.mubr.f32.mxu0 0.0
      %1731 = vmatmul.mubr.f32.gmra.mrb[0].mxu0 %v1587
      %v1732 = vpop.f32.mrb[0].mxu0
      %v1733 = vadd.f32 0.0, %v1732
      %v1734 = vpop.f32.mrb[0].mxu0
      %1735 = vdwg.mxu0
      %v1736 = vadd.f32 %v1567, %v1662
      %v1737 = vadd.f32 %v1568, %v1664
      %v1738 = vadd.f32 %v1569, %v1733
      %v1739 = vld [vmem:[%s239] sm:$0xff]
      %v1740 = vld [vmem:[%s239 + $0x8] sm:$0xf]
      %s1741 = scalar_lea.vmem %s3, 32
      %v1742 = vld [vmem:[%s1741] sm:$0xff]
      %v1745 = vcombine.high %v1739, %v1739
      %1746 = vrot.lane.b32.xlu0 %v1739, 109
      %v1747 = vpop.permute.xlu0 %1746
      %1748 = vrot.lane.b32.xlu0 %v1745, 109
      %v1749 = vpop.permute.xlu0 %1748
      %1750 = vrot.lane.b32.xlu0 %v1740, 109
      %v1751 = vpop.permute.xlu0 %1750
      %v1752 = vsel %vm1583, %v1747, %v1749
      %v1753 = vsel %vm1583, %v1749, %v1751
      %v1755 = vsel %vm254, %v1742, 0
      %v1757 = vsel %vm258, %v1752, 0
      %v1759 = vsel %vm258, %v1753, 0
      %v1761 = vsel %vm258, %v1751, 0
      %1763 = vmatprep.subr.mxu0 %v1759
      %1764 = vmatpush1.msra.mxu0 %v1757
      %1765 = vmatprep.subr.mxu0 0.0
      %1766 = vmatpush1.msra.mxu0 0.0
      %1767 = vmatprep.subr.mxu0 0.0
      %1768 = vmatpush1.msra.mxu0 0.0
      %1769 = vmatprep.subr.mxu0 0.0
      %1770 = vmatpush1.msra.mxu0 0.0
      %1771 = vmatprep.subr.mxu0 0.0
      %1772 = vmatpush1.msra.mxu0 0.0
      %1773 = vmatprep.subr.mxu0 0.0
      %1774 = vmatpush1.msra.mxu0 0.0
      %1775 = vmatprep.subr.mxu0 0.0
      %1776 = vmatpush1.msra.mxu0 0.0
      %1777 = vmatprep.subr.mxu0 0.0
      %1778 = vmatpush1.msra.mxu0 0.0
      %1779 = vmatprep.subr.mxu0 0.0
      %1780 = vmatpush1.msra.mxu0 0.0
      %1781 = vmatprep.subr.mxu0 0.0
      %1782 = vmatpush1.msra.mxu0 0.0
      %1783 = vmatprep.subr.mxu0 0.0
      %1784 = vmatpush1.msra.mxu0 0.0
      %1785 = vmatprep.subr.mxu0 0.0
      %1786 = vmatpush1.msra.mxu0 0.0
      %1787 = vmatprep.subr.mxu0 0.0
      %1788 = vmatpush1.msra.mxu0 0.0
      %1789 = vmatprep.subr.mxu0 0.0
      %1790 = vmatpush1.msra.mxu0 0.0
      %1791 = vmatprep.subr.mxu0 0.0
      %1792 = vmatpush1.msra.mxu0 0.0
      %1793 = vmatprep.subr.mxu0 0.0
      %1794 = vmatpush1.msra.mxu0 0.0
      %1795 = vmatprep.subr.mxu0 0.0
      %1796 = vmatpush1.msra.mxu0 0.0
      %1797 = vmatprep.subr.mxu0 0.0
      %1798 = vmatpush1.msra.mxu0 0.0
      %1799 = vmatprep.subr.mxu0 0.0
      %1800 = vmatpush1.msra.mxu0 0.0
      %1801 = vmatprep.subr.mxu0 0.0
      %1802 = vmatpush1.msra.mxu0 0.0
      %1803 = vmatprep.subr.mxu0 0.0
      %1804 = vmatpush1.msra.mxu0 0.0
      %1805 = vmatprep.subr.mxu0 0.0
      %1806 = vmatpush1.msra.mxu0 0.0
      %1807 = vmatprep.subr.mxu0 0.0
      %1808 = vmatpush1.msra.mxu0 0.0
      %1809 = vmatprep.subr.mxu0 0.0
      %1810 = vmatpush1.msra.mxu0 0.0
      %1811 = vmatprep.subr.mxu0 0.0
      %1812 = vmatpush1.msra.mxu0 0.0
      %1813 = vmatprep.subr.mxu0 0.0
      %1814 = vmatpush1.msra.mxu0 0.0
      %1815 = vmatprep.subr.mxu0 0.0
      %1816 = vmatpush1.msra.mxu0 0.0
      %1817 = vmatprep.subr.mxu0 0.0
      %1818 = vmatpush1.msra.mxu0 0.0
      %1819 = vmatprep.subr.mxu0 0.0
      %1820 = vmatpush1.msra.mxu0 0.0
      %1821 = vmatprep.subr.mxu0 0.0
      %1822 = vmatpush1.msra.mxu0 0.0
      %1823 = vmatprep.subr.mxu0 0.0
      %1824 = vmatpush1.msra.mxu0 0.0
      %1825 = vmatprep.subr.mxu0 0.0
      %1826 = vmatpush1.msra.mxu0 0.0
      %1827 = vmatprep.mubr.f32.mxu0 0.0
      %1828 = vmatmul.mubr.f32.gmra.mrb[0].mxu0 %v1755
      %v1829 = vpop.f32.mrb[0].mxu0
      %v1830 = vadd.f32 0.0, %v1829
      %v1831 = vpop.f32.mrb[0].mxu0
      %v1832 = vadd.f32 0.0, %v1831
      %1833 = vdwg.mxu0
      %1834 = vmatprep.subr.mxu0 0.0
      %1835 = vmatpush1.msra.mxu0 %v1761
      %1836 = vmatprep.subr.mxu0 0.0
      %1837 = vmatpush1.msra.mxu0 0.0
      %1838 = vmatprep.subr.mxu0 0.0
      %1839 = vmatpush1.msra.mxu0 0.0
      %1840 = vmatprep.subr.mxu0 0.0
      %1841 = vmatpush1.msra.mxu0 0.0
      %1842 = vmatprep.subr.mxu0 0.0
      %1843 = vmatpush1.msra.mxu0 0.0
      %1844 = vmatprep.subr.mxu0 0.0
      %1845 = vmatpush1.msra.mxu0 0.0
      %1846 = vmatprep.subr.mxu0 0.0
      %1847 = vmatpush1.msra.mxu0 0.0
      %1848 = vmatprep.subr.mxu0 0.0
      %1849 = vmatpush1.msra.mxu0 0.0
      %1850 = vmatprep.subr.mxu0 0.0
      %1851 = vmatpush1.msra.mxu0 0.0
      %1852 = vmatprep.subr.mxu0 0.0
      %1853 = vmatpush1.msra.mxu0 0.0
      %1854 = vmatprep.subr.mxu0 0.0
      %1855 = vmatpush1.msra.mxu0 0.0
      %1856 = vmatprep.subr.mxu0 0.0
      %1857 = vmatpush1.msra.mxu0 0.0
      %1858 = vmatprep.subr.mxu0 0.0
      %1859 = vmatpush1.msra.mxu0 0.0
      %1860 = vmatprep.subr.mxu0 0.0
      %1861 = vmatpush1.msra.mxu0 0.0
      %1862 = vmatprep.subr.mxu0 0.0
      %1863 = vmatpush1.msra.mxu0 0.0
      %1864 = vmatprep.subr.mxu0 0.0
      %1865 = vmatpush1.msra.mxu0 0.0
      %1866 = vmatprep.subr.mxu0 0.0
      %1867 = vmatpush1.msra.mxu0 0.0
      %1868 = vmatprep.subr.mxu0 0.0
      %1869 = vmatpush1.msra.mxu0 0.0
      %1870 = vmatprep.subr.mxu0 0.0
      %1871 = vmatpush1.msra.mxu0 0.0
      %1872 = vmatprep.subr.mxu0 0.0
      %1873 = vmatpush1.msra.mxu0 0.0
      %1874 = vmatprep.subr.mxu0 0.0
      %1875 = vmatpush1.msra.mxu0 0.0
      %1876 = vmatprep.subr.mxu0 0.0
      %1877 = vmatpush1.msra.mxu0 0.0
      %1878 = vmatprep.subr.mxu0 0.0
      %1879 = vmatpush1.msra.mxu0 0.0
      %1880 = vmatprep.subr.mxu0 0.0
      %1881 = vmatpush1.msra.mxu0 0.0
      %1882 = vmatprep.subr.mxu0 0.0
      %1883 = vmatpush1.msra.mxu0 0.0
      %1884 = vmatprep.subr.mxu0 0.0
      %1885 = vmatpush1.msra.mxu0 0.0
      %1886 = vmatprep.subr.mxu0 0.0
      %1887 = vmatpush1.msra.mxu0 0.0
      %1888 = vmatprep.subr.mxu0 0.0
      %1889 = vmatpush1.msra.mxu0 0.0
      %1890 = vmatprep.subr.mxu0 0.0
      %1891 = vmatpush1.msra.mxu0 0.0
      %1892 = vmatprep.subr.mxu0 0.0
      %1893 = vmatpush1.msra.mxu0 0.0
      %1894 = vmatprep.subr.mxu0 0.0
      %1895 = vmatpush1.msra.mxu0 0.0
      %1896 = vmatprep.subr.mxu0 0.0
      %1897 = vmatpush1.msra.mxu0 0.0
      %1898 = vmatprep.mubr.f32.mxu0 0.0
      %1899 = vmatmul.mubr.f32.gmra.mrb[0].mxu0 %v1755
      %v1900 = vpop.f32.mrb[0].mxu0
      %v1901 = vadd.f32 0.0, %v1900
      %v1902 = vpop.f32.mrb[0].mxu0
      %1903 = vdwg.mxu0
      %v1904 = vadd.f32 %v1736, %v1830
      %v1905 = vadd.f32 %v1737, %v1832
      %v1906 = vadd.f32 %v1738, %v1901
      %v1907 = vld [vmem:[%s234] sm:$0xff]
      %v1908 = vld [vmem:[%s234 + $0x8] sm:$0xf]
      %s1909 = scalar_lea.vmem %s2, 40
      %v1910 = vld [vmem:[%s1909] sm:$0xff]
      %v1913 = vcombine.high %v1907, %v1907
      %1914 = vrot.lane.b32.xlu0 %v1907, 108
      %v1915 = vpop.permute.xlu0 %1914
      %1916 = vrot.lane.b32.xlu0 %v1913, 108
      %v1917 = vpop.permute.xlu0 %1916
      %1918 = vrot.lane.b32.xlu0 %v1908, 108
      %v1919 = vpop.permute.xlu0 %1918
      %vm1920 = vcmask 883712
      %v1921 = vsel %vm1920, %v1915, %v1917
      %v1922 = vsel %vm1920, %v1917, %v1919
      %v1924 = vsel %vm254, %v1910, 0
      %v1926 = vsel %vm258, %v1921, 0
      %v1928 = vsel %vm258, %v1922, 0
      %v1930 = vsel %vm258, %v1919, 0
      %1932 = vmatprep.subr.mxu0 %v1928
      %1933 = vmatpush1.msra.mxu0 %v1926
      %1934 = vmatprep.subr.mxu0 0.0
      %1935 = vmatpush1.msra.mxu0 0.0
      %1936 = vmatprep.subr.mxu0 0.0
      %1937 = vmatpush1.msra.mxu0 0.0
      %1938 = vmatprep.subr.mxu0 0.0
      %1939 = vmatpush1.msra.mxu0 0.0
      %1940 = vmatprep.subr.mxu0 0.0
      %1941 = vmatpush1.msra.mxu0 0.0
      %1942 = vmatprep.subr.mxu0 0.0
      %1943 = vmatpush1.msra.mxu0 0.0
      %1944 = vmatprep.subr.mxu0 0.0
      %1945 = vmatpush1.msra.mxu0 0.0
      %1946 = vmatprep.subr.mxu0 0.0
      %1947 = vmatpush1.msra.mxu0 0.0
      %1948 = vmatprep.subr.mxu0 0.0
      %1949 = vmatpush1.msra.mxu0 0.0
      %1950 = vmatprep.subr.mxu0 0.0
      %1951 = vmatpush1.msra.mxu0 0.0
      %1952 = vmatprep.subr.mxu0 0.0
      %1953 = vmatpush1.msra.mxu0 0.0
      %1954 = vmatprep.subr.mxu0 0.0
      %1955 = vmatpush1.msra.mxu0 0.0
      %1956 = vmatprep.subr.mxu0 0.0
      %1957 = vmatpush1.msra.mxu0 0.0
      %1958 = vmatprep.subr.mxu0 0.0
      %1959 = vmatpush1.msra.mxu0 0.0
      %1960 = vmatprep.subr.mxu0 0.0
      %1961 = vmatpush1.msra.mxu0 0.0
      %1962 = vmatprep.subr.mxu0 0.0
      %1963 = vmatpush1.msra.mxu0 0.0
      %1964 = vmatprep.subr.mxu0 0.0
      %1965 = vmatpush1.msra.mxu0 0.0
      %1966 = vmatprep.subr.mxu0 0.0
      %1967 = vmatpush1.msra.mxu0 0.0
      %1968 = vmatprep.subr.mxu0 0.0
      %1969 = vmatpush1.msra.mxu0 0.0
      %1970 = vmatprep.subr.mxu0 0.0
      %1971 = vmatpush1.msra.mxu0 0.0
      %1972 = vmatprep.subr.mxu0 0.0
      %1973 = vmatpush1.msra.mxu0 0.0
      %1974 = vmatprep.subr.mxu0 0.0
      %1975 = vmatpush1.msra.mxu0 0.0
      %1976 = vmatprep.subr.mxu0 0.0
      %1977 = vmatpush1.msra.mxu0 0.0
      %1978 = vmatprep.subr.mxu0 0.0
      %1979 = vmatpush1.msra.mxu0 0.0
      %1980 = vmatprep.subr.mxu0 0.0
      %1981 = vmatpush1.msra.mxu0 0.0
      %1982 = vmatprep.subr.mxu0 0.0
      %1983 = vmatpush1.msra.mxu0 0.0
      %1984 = vmatprep.subr.mxu0 0.0
      %1985 = vmatpush1.msra.mxu0 0.0
      %1986 = vmatprep.subr.mxu0 0.0
      %1987 = vmatpush1.msra.mxu0 0.0
      %1988 = vmatprep.subr.mxu0 0.0
      %1989 = vmatpush1.msra.mxu0 0.0
      %1990 = vmatprep.subr.mxu0 0.0
      %1991 = vmatpush1.msra.mxu0 0.0
      %1992 = vmatprep.subr.mxu0 0.0
      %1993 = vmatpush1.msra.mxu0 0.0
      %1994 = vmatprep.subr.mxu0 0.0
      %1995 = vmatpush1.msra.mxu0 0.0
      %1996 = vmatprep.mubr.f32.mxu0 0.0
      %1997 = vmatmul.mubr.f32.gmra.mrb[0].mxu0 %v1924
      %v1998 = vpop.f32.mrb[0].mxu0
      %v1999 = vadd.f32 0.0, %v1998
      %v2000 = vpop.f32.mrb[0].mxu0
      %v2001 = vadd.f32 0.0, %v2000
      %2002 = vdwg.mxu0
      %2003 = vmatprep.subr.mxu0 0.0
      %2004 = vmatpush1.msra.mxu0 %v1930
      %2005 = vmatprep.subr.mxu0 0.0
      %2006 = vmatpush1.msra.mxu0 0.0
      %2007 = vmatprep.subr.mxu0 0.0
      %2008 = vmatpush1.msra.mxu0 0.0
      %2009 = vmatprep.subr.mxu0 0.0
      %2010 = vmatpush1.msra.mxu0 0.0
      %2011 = vmatprep.subr.mxu0 0.0
      %2012 = vmatpush1.msra.mxu0 0.0
      %2013 = vmatprep.subr.mxu0 0.0
      %2014 = vmatpush1.msra.mxu0 0.0
      %2015 = vmatprep.subr.mxu0 0.0
      %2016 = vmatpush1.msra.mxu0 0.0
      %2017 = vmatprep.subr.mxu0 0.0
      %2018 = vmatpush1.msra.mxu0 0.0
      %2019 = vmatprep.subr.mxu0 0.0
      %2020 = vmatpush1.msra.mxu0 0.0
      %2021 = vmatprep.subr.mxu0 0.0
      %2022 = vmatpush1.msra.mxu0 0.0
      %2023 = vmatprep.subr.mxu0 0.0
      %2024 = vmatpush1.msra.mxu0 0.0
      %2025 = vmatprep.subr.mxu0 0.0
      %2026 = vmatpush1.msra.mxu0 0.0
      %2027 = vmatprep.subr.mxu0 0.0
      %2028 = vmatpush1.msra.mxu0 0.0
      %2029 = vmatprep.subr.mxu0 0.0
      %2030 = vmatpush1.msra.mxu0 0.0
      %2031 = vmatprep.subr.mxu0 0.0
      %2032 = vmatpush1.msra.mxu0 0.0
      %2033 = vmatprep.subr.mxu0 0.0
      %2034 = vmatpush1.msra.mxu0 0.0
      %2035 = vmatprep.subr.mxu0 0.0
      %2036 = vmatpush1.msra.mxu0 0.0
      %2037 = vmatprep.subr.mxu0 0.0
      %2038 = vmatpush1.msra.mxu0 0.0
      %2039 = vmatprep.subr.mxu0 0.0
      %2040 = vmatpush1.msra.mxu0 0.0
      %2041 = vmatprep.subr.mxu0 0.0
      %2042 = vmatpush1.msra.mxu0 0.0
      %2043 = vmatprep.subr.mxu0 0.0
      %2044 = vmatpush1.msra.mxu0 0.0
      %2045 = vmatprep.subr.mxu0 0.0
      %2046 = vmatpush1.msra.mxu0 0.0
      %2047 = vmatprep.subr.mxu0 0.0
      %2048 = vmatpush1.msra.mxu0 0.0
      %2049 = vmatprep.subr.mxu0 0.0
      %2050 = vmatpush1.msra.mxu0 0.0
      %2051 = vmatprep.subr.mxu0 0.0
      %2052 = vmatpush1.msra.mxu0 0.0
      %2053 = vmatprep.subr.mxu0 0.0
      %2054 = vmatpush1.msra.mxu0 0.0
      %2055 = vmatprep.subr.mxu0 0.0
      %2056 = vmatpush1.msra.mxu0 0.0
      %2057 = vmatprep.subr.mxu0 0.0
      %2058 = vmatpush1.msra.mxu0 0.0
      %2059 = vmatprep.subr.mxu0 0.0
      %2060 = vmatpush1.msra.mxu0 0.0
      %2061 = vmatprep.subr.mxu0 0.0
      %2062 = vmatpush1.msra.mxu0 0.0
      %2063 = vmatprep.subr.mxu0 0.0
      %2064 = vmatpush1.msra.mxu0 0.0
      %2065 = vmatprep.subr.mxu0 0.0
      %2066 = vmatpush1.msra.mxu0 0.0
      %2067 = vmatprep.mubr.f32.mxu0 0.0
      %2068 = vmatmul.mubr.f32.gmra.mrb[0].mxu0 %v1924
      %v2069 = vpop.f32.mrb[0].mxu0
      %v2070 = vadd.f32 0.0, %v2069
      %v2071 = vpop.f32.mrb[0].mxu0
      %2072 = vdwg.mxu0
      %v2073 = vadd.f32 %v1904, %v1999
      %v2074 = vadd.f32 %v1905, %v2001
      %v2075 = vadd.f32 %v1906, %v2070
      %v2076 = vld [vmem:[%s239] sm:$0xff]
      %v2077 = vld [vmem:[%s239 + $0x8] sm:$0xf]
      %s2078 = scalar_lea.vmem %s3, 40
      %v2079 = vld [vmem:[%s2078] sm:$0xff]
      %v2082 = vcombine.high %v2076, %v2076
      %2083 = vrot.lane.b32.xlu0 %v2076, 108
      %v2084 = vpop.permute.xlu0 %2083
      %2085 = vrot.lane.b32.xlu0 %v2082, 108
      %v2086 = vpop.permute.xlu0 %2085
      %2087 = vrot.lane.b32.xlu0 %v2077, 108
      %v2088 = vpop.permute.xlu0 %2087
      %v2089 = vsel %vm1920, %v2084, %v2086
      %v2090 = vsel %vm1920, %v2086, %v2088
      %v2092 = vsel %vm254, %v2079, 0
      %v2094 = vsel %vm258, %v2089, 0
      %v2096 = vsel %vm258, %v2090, 0
      %v2098 = vsel %vm258, %v2088, 0
      %2100 = vmatprep.subr.mxu0 %v2096
      %2101 = vmatpush1.msra.mxu0 %v2094
      %2102 = vmatprep.subr.mxu0 0.0
      %2103 = vmatpush1.msra.mxu0 0.0
      %2104 = vmatprep.subr.mxu0 0.0
      %2105 = vmatpush1.msra.mxu0 0.0
      %2106 = vmatprep.subr.mxu0 0.0
      %2107 = vmatpush1.msra.mxu0 0.0
      %2108 = vmatprep.subr.mxu0 0.0
      %2109 = vmatpush1.msra.mxu0 0.0
      %2110 = vmatprep.subr.mxu0 0.0
      %2111 = vmatpush1.msra.mxu0 0.0
      %2112 = vmatprep.subr.mxu0 0.0
      %2113 = vmatpush1.msra.mxu0 0.0
      %2114 = vmatprep.subr.mxu0 0.0
      %2115 = vmatpush1.msra.mxu0 0.0
      %2116 = vmatprep.subr.mxu0 0.0
      %2117 = vmatpush1.msra.mxu0 0.0
      %2118 = vmatprep.subr.mxu0 0.0
      %2119 = vmatpush1.msra.mxu0 0.0
      %2120 = vmatprep.subr.mxu0 0.0
      %2121 = vmatpush1.msra.mxu0 0.0
      %2122 = vmatprep.subr.mxu0 0.0
      %2123 = vmatpush1.msra.mxu0 0.0
      %2124 = vmatprep.subr.mxu0 0.0
      %2125 = vmatpush1.msra.mxu0 0.0
      %2126 = vmatprep.subr.mxu0 0.0
      %2127 = vmatpush1.msra.mxu0 0.0
      %2128 = vmatprep.subr.mxu0 0.0
      %2129 = vmatpush1.msra.mxu0 0.0
      %2130 = vmatprep.subr.mxu0 0.0
      %2131 = vmatpush1.msra.mxu0 0.0
      %2132 = vmatprep.subr.mxu0 0.0
      %2133 = vmatpush1.msra.mxu0 0.0
      %2134 = vmatprep.subr.mxu0 0.0
      %2135 = vmatpush1.msra.mxu0 0.0
      %2136 = vmatprep.subr.mxu0 0.0
      %2137 = vmatpush1.msra.mxu0 0.0
      %2138 = vmatprep.subr.mxu0 0.0
      %2139 = vmatpush1.msra.mxu0 0.0
      %2140 = vmatprep.subr.mxu0 0.0
      %2141 = vmatpush1.msra.mxu0 0.0
      %2142 = vmatprep.subr.mxu0 0.0
      %2143 = vmatpush1.msra.mxu0 0.0
      %2144 = vmatprep.subr.mxu0 0.0
      %2145 = vmatpush1.msra.mxu0 0.0
      %2146 = vmatprep.subr.mxu0 0.0
      %2147 = vmatpush1.msra.mxu0 0.0
      %2148 = vmatprep.subr.mxu0 0.0
      %2149 = vmatpush1.msra.mxu0 0.0
      %2150 = vmatprep.subr.mxu0 0.0
      %2151 = vmatpush1.msra.mxu0 0.0
      %2152 = vmatprep.subr.mxu0 0.0
      %2153 = vmatpush1.msra.mxu0 0.0
      %2154 = vmatprep.subr.mxu0 0.0
      %2155 = vmatpush1.msra.mxu0 0.0
      %2156 = vmatprep.subr.mxu0 0.0
      %2157 = vmatpush1.msra.mxu0 0.0
      %2158 = vmatprep.subr.mxu0 0.0
      %2159 = vmatpush1.msra.mxu0 0.0
      %2160 = vmatprep.subr.mxu0 0.0
      %2161 = vmatpush1.msra.mxu0 0.0
      %2162 = vmatprep.subr.mxu0 0.0
      %2163 = vmatpush1.msra.mxu0 0.0
      %2164 = vmatprep.mubr.f32.mxu0 0.0
      %2165 = vmatmul.mubr.f32.gmra.mrb[0].mxu0 %v2092
      %v2166 = vpop.f32.mrb[0].mxu0
      %v2167 = vadd.f32 0.0, %v2166
      %v2168 = vpop.f32.mrb[0].mxu0
      %v2169 = vadd.f32 0.0, %v2168
      %2170 = vdwg.mxu0
      %2171 = vmatprep.subr.mxu0 0.0
      %2172 = vmatpush1.msra.mxu0 %v2098
      %2173 = vmatprep.subr.mxu0 0.0
      %2174 = vmatpush1.msra.mxu0 0.0
      %2175 = vmatprep.subr.mxu0 0.0
      %2176 = vmatpush1.msra.mxu0 0.0
      %2177 = vmatprep.subr.mxu0 0.0
      %2178 = vmatpush1.msra.mxu0 0.0
      %2179 = vmatprep.subr.mxu0 0.0
      %2180 = vmatpush1.msra.mxu0 0.0
      %2181 = vmatprep.subr.mxu0 0.0
      %2182 = vmatpush1.msra.mxu0 0.0
      %2183 = vmatprep.subr.mxu0 0.0
      %2184 = vmatpush1.msra.mxu0 0.0
      %2185 = vmatprep.subr.mxu0 0.0
      %2186 = vmatpush1.msra.mxu0 0.0
      %2187 = vmatprep.subr.mxu0 0.0
      %2188 = vmatpush1.msra.mxu0 0.0
      %2189 = vmatprep.subr.mxu0 0.0
      %2190 = vmatpush1.msra.mxu0 0.0
      %2191 = vmatprep.subr.mxu0 0.0
      %2192 = vmatpush1.msra.mxu0 0.0
      %2193 = vmatprep.subr.mxu0 0.0
      %2194 = vmatpush1.msra.mxu0 0.0
      %2195 = vmatprep.subr.mxu0 0.0
      %2196 = vmatpush1.msra.mxu0 0.0
      %2197 = vmatprep.subr.mxu0 0.0
      %2198 = vmatpush1.msra.mxu0 0.0
      %2199 = vmatprep.subr.mxu0 0.0
      %2200 = vmatpush1.msra.mxu0 0.0
      %2201 = vmatprep.subr.mxu0 0.0
      %2202 = vmatpush1.msra.mxu0 0.0
      %2203 = vmatprep.subr.mxu0 0.0
      %2204 = vmatpush1.msra.mxu0 0.0
      %2205 = vmatprep.subr.mxu0 0.0
      %2206 = vmatpush1.msra.mxu0 0.0
      %2207 = vmatprep.subr.mxu0 0.0
      %2208 = vmatpush1.msra.mxu0 0.0
      %2209 = vmatprep.subr.mxu0 0.0
      %2210 = vmatpush1.msra.mxu0 0.0
      %2211 = vmatprep.subr.mxu0 0.0
      %2212 = vmatpush1.msra.mxu0 0.0
      %2213 = vmatprep.subr.mxu0 0.0
      %2214 = vmatpush1.msra.mxu0 0.0
      %2215 = vmatprep.subr.mxu0 0.0
      %2216 = vmatpush1.msra.mxu0 0.0
      %2217 = vmatprep.subr.mxu0 0.0
      %2218 = vmatpush1.msra.mxu0 0.0
      %2219 = vmatprep.subr.mxu0 0.0
      %2220 = vmatpush1.msra.mxu0 0.0
      %2221 = vmatprep.subr.mxu0 0.0
      %2222 = vmatpush1.msra.mxu0 0.0
      %2223 = vmatprep.subr.mxu0 0.0
      %2224 = vmatpush1.msra.mxu0 0.0
      %2225 = vmatprep.subr.mxu0 0.0
      %2226 = vmatpush1.msra.mxu0 0.0
      %2227 = vmatprep.subr.mxu0 0.0
      %2228 = vmatpush1.msra.mxu0 0.0
      %2229 = vmatprep.subr.mxu0 0.0
      %2230 = vmatpush1.msra.mxu0 0.0
      %2231 = vmatprep.subr.mxu0 0.0
      %2232 = vmatpush1.msra.mxu0 0.0
      %2233 = vmatprep.subr.mxu0 0.0
      %2234 = vmatpush1.msra.mxu0 0.0
      %2235 = vmatprep.mubr.f32.mxu0 0.0
      %2236 = vmatmul.mubr.f32.gmra.mrb[0].mxu0 %v2092
      %v2237 = vpop.f32.mrb[0].mxu0
      %v2238 = vadd.f32 0.0, %v2237
      %v2239 = vpop.f32.mrb[0].mxu0
      %2240 = vdwg.mxu0
      %v2241 = vadd.f32 %v2073, %v2167
      %v2242 = vadd.f32 %v2074, %v2169
      %v2243 = vadd.f32 %v2075, %v2238
      %v2244 = vld [vmem:[%s234] sm:$0xff]
      %v2245 = vld [vmem:[%s234 + $0x8] sm:$0xf]
      %s2246 = scalar_lea.vmem %s2, 48
      %v2247 = vld [vmem:[%s2246] sm:$0xff]
      %v2250 = vcombine.high %v2244, %v2244
      %2251 = vrot.lane.b32.xlu0 %v2244, 92
      %v2252 = vpop.permute.xlu0 %2251
      %2253 = vrot.lane.b32.xlu0 %v2250, 92
      %v2254 = vpop.permute.xlu0 %2253
      %2255 = vrot.lane.b32.xlu0 %v2245, 92
      %v2256 = vpop.permute.xlu0 %2255
      %vm2257 = vcmask 752640
      %v2258 = vsel %vm2257, %v2252, %v2254
      %v2259 = vsel %vm2257, %v2254, %v2256
      %v2261 = vsel %vm254, %v2247, 0
      %v2263 = vsel %vm258, %v2258, 0
      %v2265 = vsel %vm258, %v2259, 0
      %v2267 = vsel %vm258, %v2256, 0
      %2269 = vmatprep.subr.mxu0 %v2265
      %2270 = vmatpush1.msra.mxu0 %v2263
      %2271 = vmatprep.subr.mxu0 0.0
      %2272 = vmatpush1.msra.mxu0 0.0
      %2273 = vmatprep.subr.mxu0 0.0
      %2274 = vmatpush1.msra.mxu0 0.0
      %2275 = vmatprep.subr.mxu0 0.0
      %2276 = vmatpush1.msra.mxu0 0.0
      %2277 = vmatprep.subr.mxu0 0.0
      %2278 = vmatpush1.msra.mxu0 0.0
      %2279 = vmatprep.subr.mxu0 0.0
      %2280 = vmatpush1.msra.mxu0 0.0
      %2281 = vmatprep.subr.mxu0 0.0
      %2282 = vmatpush1.msra.mxu0 0.0
      %2283 = vmatprep.subr.mxu0 0.0
      %2284 = vmatpush1.msra.mxu0 0.0
      %2285 = vmatprep.subr.mxu0 0.0
      %2286 = vmatpush1.msra.mxu0 0.0
      %2287 = vmatprep.subr.mxu0 0.0
      %2288 = vmatpush1.msra.mxu0 0.0
      %2289 = vmatprep.subr.mxu0 0.0
      %2290 = vmatpush1.msra.mxu0 0.0
      %2291 = vmatprep.subr.mxu0 0.0
      %2292 = vmatpush1.msra.mxu0 0.0
      %2293 = vmatprep.subr.mxu0 0.0
      %2294 = vmatpush1.msra.mxu0 0.0
      %2295 = vmatprep.subr.mxu0 0.0
      %2296 = vmatpush1.msra.mxu0 0.0
      %2297 = vmatprep.subr.mxu0 0.0
      %2298 = vmatpush1.msra.mxu0 0.0
      %2299 = vmatprep.subr.mxu0 0.0
      %2300 = vmatpush1.msra.mxu0 0.0
      %2301 = vmatprep.subr.mxu0 0.0
      %2302 = vmatpush1.msra.mxu0 0.0
      %2303 = vmatprep.subr.mxu0 0.0
      %2304 = vmatpush1.msra.mxu0 0.0
      %2305 = vmatprep.subr.mxu0 0.0
      %2306 = vmatpush1.msra.mxu0 0.0
      %2307 = vmatprep.subr.mxu0 0.0
      %2308 = vmatpush1.msra.mxu0 0.0
      %2309 = vmatprep.subr.mxu0 0.0
      %2310 = vmatpush1.msra.mxu0 0.0
      %2311 = vmatprep.subr.mxu0 0.0
      %2312 = vmatpush1.msra.mxu0 0.0
      %2313 = vmatprep.subr.mxu0 0.0
      %2314 = vmatpush1.msra.mxu0 0.0
      %2315 = vmatprep.subr.mxu0 0.0
      %2316 = vmatpush1.msra.mxu0 0.0
      %2317 = vmatprep.subr.mxu0 0.0
      %2318 = vmatpush1.msra.mxu0 0.0
      %2319 = vmatprep.subr.mxu0 0.0
      %2320 = vmatpush1.msra.mxu0 0.0
      %2321 = vmatprep.subr.mxu0 0.0
      %2322 = vmatpush1.msra.mxu0 0.0
      %2323 = vmatprep.subr.mxu0 0.0
      %2324 = vmatpush1.msra.mxu0 0.0
      %2325 = vmatprep.subr.mxu0 0.0
      %2326 = vmatpush1.msra.mxu0 0.0
      %2327 = vmatprep.subr.mxu0 0.0
      %2328 = vmatpush1.msra.mxu0 0.0
      %2329 = vmatprep.subr.mxu0 0.0
      %2330 = vmatpush1.msra.mxu0 0.0
      %2331 = vmatprep.subr.mxu0 0.0
      %2332 = vmatpush1.msra.mxu0 0.0
      %2333 = vmatprep.mubr.f32.mxu0 0.0
      %2334 = vmatmul.mubr.f32.gmra.mrb[0].mxu0 %v2261
      %v2335 = vpop.f32.mrb[0].mxu0
      %v2336 = vadd.f32 0.0, %v2335
      %v2337 = vpop.f32.mrb[0].mxu0
      %v2338 = vadd.f32 0.0, %v2337
      %2339 = vdwg.mxu0
      %2340 = vmatprep.subr.mxu0 0.0
      %2341 = vmatpush1.msra.mxu0 %v2267
      %2342 = vmatprep.subr.mxu0 0.0
      %2343 = vmatpush1.msra.mxu0 0.0
      %2344 = vmatprep.subr.mxu0 0.0
      %2345 = vmatpush1.msra.mxu0 0.0
      %2346 = vmatprep.subr.mxu0 0.0
      %2347 = vmatpush1.msra.mxu0 0.0
      %2348 = vmatprep.subr.mxu0 0.0
      %2349 = vmatpush1.msra.mxu0 0.0
      %2350 = vmatprep.subr.mxu0 0.0
      %2351 = vmatpush1.msra.mxu0 0.0
      %2352 = vmatprep.subr.mxu0 0.0
      %2353 = vmatpush1.msra.mxu0 0.0
      %2354 = vmatprep.subr.mxu0 0.0
      %2355 = vmatpush1.msra.mxu0 0.0
      %2356 = vmatprep.subr.mxu0 0.0
      %2357 = vmatpush1.msra.mxu0 0.0
      %2358 = vmatprep.subr.mxu0 0.0
      %2359 = vmatpush1.msra.mxu0 0.0
      %2360 = vmatprep.subr.mxu0 0.0
      %2361 = vmatpush1.msra.mxu0 0.0
      %2362 = vmatprep.subr.mxu0 0.0
      %2363 = vmatpush1.msra.mxu0 0.0
      %2364 = vmatprep.subr.mxu0 0.0
      %2365 = vmatpush1.msra.mxu0 0.0
      %2366 = vmatprep.subr.mxu0 0.0
      %2367 = vmatpush1.msra.mxu0 0.0
      %2368 = vmatprep.subr.mxu0 0.0
      %2369 = vmatpush1.msra.mxu0 0.0
      %2370 = vmatprep.subr.mxu0 0.0
      %2371 = vmatpush1.msra.mxu0 0.0
      %2372 = vmatprep.subr.mxu0 0.0
      %2373 = vmatpush1.msra.mxu0 0.0
      %2374 = vmatprep.subr.mxu0 0.0
      %2375 = vmatpush1.msra.mxu0 0.0
      %2376 = vmatprep.subr.mxu0 0.0
      %2377 = vmatpush1.msra.mxu0 0.0
      %2378 = vmatprep.subr.mxu0 0.0
      %2379 = vmatpush1.msra.mxu0 0.0
      %2380 = vmatprep.subr.mxu0 0.0
      %2381 = vmatpush1.msra.mxu0 0.0
      %2382 = vmatprep.subr.mxu0 0.0
      %2383 = vmatpush1.msra.mxu0 0.0
      %2384 = vmatprep.subr.mxu0 0.0
      %2385 = vmatpush1.msra.mxu0 0.0
      %2386 = vmatprep.subr.mxu0 0.0
      %2387 = vmatpush1.msra.mxu0 0.0
      %2388 = vmatprep.subr.mxu0 0.0
      %2389 = vmatpush1.msra.mxu0 0.0
      %2390 = vmatprep.subr.mxu0 0.0
      %2391 = vmatpush1.msra.mxu0 0.0
      %2392 = vmatprep.subr.mxu0 0.0
      %2393 = vmatpush1.msra.mxu0 0.0
      %2394 = vmatprep.subr.mxu0 0.0
      %2395 = vmatpush1.msra.mxu0 0.0
      %2396 = vmatprep.subr.mxu0 0.0
      %2397 = vmatpush1.msra.mxu0 0.0
      %2398 = vmatprep.subr.mxu0 0.0
      %2399 = vmatpush1.msra.mxu0 0.0
      %2400 = vmatprep.subr.mxu0 0.0
      %2401 = vmatpush1.msra.mxu0 0.0
      %2402 = vmatprep.subr.mxu0 0.0
      %2403 = vmatpush1.msra.mxu0 0.0
      %2404 = vmatprep.mubr.f32.mxu0 0.0
      %2405 = vmatmul.mubr.f32.gmra.mrb[0].mxu0 %v2261
      %v2406 = vpop.f32.mrb[0].mxu0
      %v2407 = vadd.f32 0.0, %v2406
      %v2408 = vpop.f32.mrb[0].mxu0
      %2409 = vdwg.mxu0
      %v2410 = vadd.f32 %v2241, %v2336
      %v2411 = vadd.f32 %v2242, %v2338
      %v2412 = vadd.f32 %v2243, %v2407
      %v2413 = vld [vmem:[%s239] sm:$0xff]
      %v2414 = vld [vmem:[%s239 + $0x8] sm:$0xf]
      %s2415 = scalar_lea.vmem %s3, 48
      %v2416 = vld [vmem:[%s2415] sm:$0xff]
      %v2419 = vcombine.high %v2413, %v2413
      %2420 = vrot.lane.b32.xlu0 %v2413, 92
      %v2421 = vpop.permute.xlu0 %2420
      %2422 = vrot.lane.b32.xlu0 %v2419, 92
      %v2423 = vpop.permute.xlu0 %2422
      %2424 = vrot.lane.b32.xlu0 %v2414, 92
      %v2425 = vpop.permute.xlu0 %2424
      %v2426 = vsel %vm2257, %v2421, %v2423
      %v2427 = vsel %vm2257, %v2423, %v2425
      %v2429 = vsel %vm254, %v2416, 0
      %v2431 = vsel %vm258, %v2426, 0
      %v2433 = vsel %vm258, %v2427, 0
      %v2435 = vsel %vm258, %v2425, 0
      %2437 = vmatprep.subr.mxu0 %v2433
      %2438 = vmatpush1.msra.mxu0 %v2431
      %2439 = vmatprep.subr.mxu0 0.0
      %2440 = vmatpush1.msra.mxu0 0.0
      %2441 = vmatprep.subr.mxu0 0.0
      %2442 = vmatpush1.msra.mxu0 0.0
      %2443 = vmatprep.subr.mxu0 0.0
      %2444 = vmatpush1.msra.mxu0 0.0
      %2445 = vmatprep.subr.mxu0 0.0
      %2446 = vmatpush1.msra.mxu0 0.0
      %2447 = vmatprep.subr.mxu0 0.0
      %2448 = vmatpush1.msra.mxu0 0.0
      %2449 = vmatprep.subr.mxu0 0.0
      %2450 = vmatpush1.msra.mxu0 0.0
      %2451 = vmatprep.subr.mxu0 0.0
      %2452 = vmatpush1.msra.mxu0 0.0
      %2453 = vmatprep.subr.mxu0 0.0
      %2454 = vmatpush1.msra.mxu0 0.0
      %2455 = vmatprep.subr.mxu0 0.0
      %2456 = vmatpush1.msra.mxu0 0.0
      %2457 = vmatprep.subr.mxu0 0.0
      %2458 = vmatpush1.msra.mxu0 0.0
      %2459 = vmatprep.subr.mxu0 0.0
      %2460 = vmatpush1.msra.mxu0 0.0
      %2461 = vmatprep.subr.mxu0 0.0
      %2462 = vmatpush1.msra.mxu0 0.0
      %2463 = vmatprep.subr.mxu0 0.0
      %2464 = vmatpush1.msra.mxu0 0.0
      %2465 = vmatprep.subr.mxu0 0.0
      %2466 = vmatpush1.msra.mxu0 0.0
      %2467 = vmatprep.subr.mxu0 0.0
      %2468 = vmatpush1.msra.mxu0 0.0
      %2469 = vmatprep.subr.mxu0 0.0
      %2470 = vmatpush1.msra.mxu0 0.0
      %2471 = vmatprep.subr.mxu0 0.0
      %2472 = vmatpush1.msra.mxu0 0.0
      %2473 = vmatprep.subr.mxu0 0.0
      %2474 = vmatpush1.msra.mxu0 0.0
      %2475 = vmatprep.subr.mxu0 0.0
      %2476 = vmatpush1.msra.mxu0 0.0
      %2477 = vmatprep.subr.mxu0 0.0
      %2478 = vmatpush1.msra.mxu0 0.0
      %2479 = vmatprep.subr.mxu0 0.0
      %2480 = vmatpush1.msra.mxu0 0.0
      %2481 = vmatprep.subr.mxu0 0.0
      %2482 = vmatpush1.msra.mxu0 0.0
      %2483 = vmatprep.subr.mxu0 0.0
      %2484 = vmatpush1.msra.mxu0 0.0
      %2485 = vmatprep.subr.mxu0 0.0
      %2486 = vmatpush1.msra.mxu0 0.0
      %2487 = vmatprep.subr.mxu0 0.0
      %2488 = vmatpush1.msra.mxu0 0.0
      %2489 = vmatprep.subr.mxu0 0.0
      %2490 = vmatpush1.msra.mxu0 0.0
      %2491 = vmatprep.subr.mxu0 0.0
      %2492 = vmatpush1.msra.mxu0 0.0
      %2493 = vmatprep.subr.mxu0 0.0
      %2494 = vmatpush1.msra.mxu0 0.0
      %2495 = vmatprep.subr.mxu0 0.0
      %2496 = vmatpush1.msra.mxu0 0.0
      %2497 = vmatprep.subr.mxu0 0.0
      %2498 = vmatpush1.msra.mxu0 0.0
      %2499 = vmatprep.subr.mxu0 0.0
      %2500 = vmatpush1.msra.mxu0 0.0
      %2501 = vmatprep.mubr.f32.mxu0 0.0
      %2502 = vmatmul.mubr.f32.gmra.mrb[0].mxu0 %v2429
      %v2503 = vpop.f32.mrb[0].mxu0
      %v2504 = vadd.f32 0.0, %v2503
      %v2505 = vpop.f32.mrb[0].mxu0
      %v2506 = vadd.f32 0.0, %v2505
      %2507 = vdwg.mxu0
      %2508 = vmatprep.subr.mxu0 0.0
      %2509 = vmatpush1.msra.mxu0 %v2435
      %2510 = vmatprep.subr.mxu0 0.0
      %2511 = vmatpush1.msra.mxu0 0.0
      %2512 = vmatprep.subr.mxu0 0.0
      %2513 = vmatpush1.msra.mxu0 0.0
      %2514 = vmatprep.subr.mxu0 0.0
      %2515 = vmatpush1.msra.mxu0 0.0
      %2516 = vmatprep.subr.mxu0 0.0
      %2517 = vmatpush1.msra.mxu0 0.0
      %2518 = vmatprep.subr.mxu0 0.0
      %2519 = vmatpush1.msra.mxu0 0.0
      %2520 = vmatprep.subr.mxu0 0.0
      %2521 = vmatpush1.msra.mxu0 0.0
      %2522 = vmatprep.subr.mxu0 0.0
      %2523 = vmatpush1.msra.mxu0 0.0
      %2524 = vmatprep.subr.mxu0 0.0
      %2525 = vmatpush1.msra.mxu0 0.0
      %2526 = vmatprep.subr.mxu0 0.0
      %2527 = vmatpush1.msra.mxu0 0.0
      %2528 = vmatprep.subr.mxu0 0.0
      %2529 = vmatpush1.msra.mxu0 0.0
      %2530 = vmatprep.subr.mxu0 0.0
      %2531 = vmatpush1.msra.mxu0 0.0
      %2532 = vmatprep.subr.mxu0 0.0
      %2533 = vmatpush1.msra.mxu0 0.0
      %2534 = vmatprep.subr.mxu0 0.0
      %2535 = vmatpush1.msra.mxu0 0.0
      %2536 = vmatprep.subr.mxu0 0.0
      %2537 = vmatpush1.msra.mxu0 0.0
      %2538 = vmatprep.subr.mxu0 0.0
      %2539 = vmatpush1.msra.mxu0 0.0
      %2540 = vmatprep.subr.mxu0 0.0
      %2541 = vmatpush1.msra.mxu0 0.0
      %2542 = vmatprep.subr.mxu0 0.0
      %2543 = vmatpush1.msra.mxu0 0.0
      %2544 = vmatprep.subr.mxu0 0.0
      %2545 = vmatpush1.msra.mxu0 0.0
      %2546 = vmatprep.subr.mxu0 0.0
      %2547 = vmatpush1.msra.mxu0 0.0
      %2548 = vmatprep.subr.mxu0 0.0
      %2549 = vmatpush1.msra.mxu0 0.0
      %2550 = vmatprep.subr.mxu0 0.0
      %2551 = vmatpush1.msra.mxu0 0.0
      %2552 = vmatprep.subr.mxu0 0.0
      %2553 = vmatpush1.msra.mxu0 0.0
      %2554 = vmatprep.subr.mxu0 0.0
      %2555 = vmatpush1.msra.mxu0 0.0
      %2556 = vmatprep.subr.mxu0 0.0
      %2557 = vmatpush1.msra.mxu0 0.0
      %2558 = vmatprep.subr.mxu0 0.0
      %2559 = vmatpush1.msra.mxu0 0.0
      %2560 = vmatprep.subr.mxu0 0.0
      %2561 = vmatpush1.msra.mxu0 0.0
      %2562 = vmatprep.subr.mxu0 0.0
      %2563 = vmatpush1.msra.mxu0 0.0
      %2564 = vmatprep.subr.mxu0 0.0
      %2565 = vmatpush1.msra.mxu0 0.0
      %2566 = vmatprep.subr.mxu0 0.0
      %2567 = vmatpush1.msra.mxu0 0.0
      %2568 = vmatprep.subr.mxu0 0.0
      %2569 = vmatpush1.msra.mxu0 0.0
      %2570 = vmatprep.subr.mxu0 0.0
      %2571 = vmatpush1.msra.mxu0 0.0
      %2572 = vmatprep.mubr.f32.mxu0 0.0
      %2573 = vmatmul.mubr.f32.gmra.mrb[0].mxu0 %v2429
      %v2574 = vpop.f32.mrb[0].mxu0
      %v2575 = vadd.f32 0.0, %v2574
      %v2576 = vpop.f32.mrb[0].mxu0
      %2577 = vdwg.mxu0
      %v2578 = vadd.f32 %v2410, %v2504
      %v2579 = vadd.f32 %v2411, %v2506
      %v2580 = vadd.f32 %v2412, %v2575
      %v2581 = vld [vmem:[%s234] sm:$0xff]
      %v2582 = vld [vmem:[%s234 + $0x8] sm:$0xf]
      %s2583 = scalar_lea.vmem %s2, 56
      %v2584 = vld [vmem:[%s2583] sm:$0xff]
      %v2587 = vcombine.high %v2581, %v2581
      %2588 = vrot.lane.b32.xlu0 %v2581, 91
      %v2589 = vpop.permute.xlu0 %2588
      %2590 = vrot.lane.b32.xlu0 %v2587, 91
      %v2591 = vpop.permute.xlu0 %2590
      %2592 = vrot.lane.b32.xlu0 %v2582, 91
      %v2593 = vpop.permute.xlu0 %2592
      %vm2594 = vcmask 744448
      %v2595 = vsel %vm2594, %v2589, %v2591
      %v2596 = vsel %vm2594, %v2591, %v2593
      %v2598 = vsel %vm254, %v2584, 0
      %v2600 = vsel %vm258, %v2595, 0
      %v2602 = vsel %vm258, %v2596, 0
      %v2604 = vsel %vm258, %v2593, 0
      %2606 = vmatprep.subr.mxu0 %v2602
      %2607 = vmatpush1.msra.mxu0 %v2600
      %2608 = vmatprep.subr.mxu0 0.0
      %2609 = vmatpush1.msra.mxu0 0.0
      %2610 = vmatprep.subr.mxu0 0.0
      %2611 = vmatpush1.msra.mxu0 0.0
      %2612 = vmatprep.subr.mxu0 0.0
      %2613 = vmatpush1.msra.mxu0 0.0
      %2614 = vmatprep.subr.mxu0 0.0
      %2615 = vmatpush1.msra.mxu0 0.0
      %2616 = vmatprep.subr.mxu0 0.0
      %2617 = vmatpush1.msra.mxu0 0.0
      %2618 = vmatprep.subr.mxu0 0.0
      %2619 = vmatpush1.msra.mxu0 0.0
      %2620 = vmatprep.subr.mxu0 0.0
      %2621 = vmatpush1.msra.mxu0 0.0
      %2622 = vmatprep.subr.mxu0 0.0
      %2623 = vmatpush1.msra.mxu0 0.0
      %2624 = vmatprep.subr.mxu0 0.0
      %2625 = vmatpush1.msra.mxu0 0.0
      %2626 = vmatprep.subr.mxu0 0.0
      %2627 = vmatpush1.msra.mxu0 0.0
      %2628 = vmatprep.subr.mxu0 0.0
      %2629 = vmatpush1.msra.mxu0 0.0
      %2630 = vmatprep.subr.mxu0 0.0
      %2631 = vmatpush1.msra.mxu0 0.0
      %2632 = vmatprep.subr.mxu0 0.0
      %2633 = vmatpush1.msra.mxu0 0.0
      %2634 = vmatprep.subr.mxu0 0.0
      %2635 = vmatpush1.msra.mxu0 0.0
      %2636 = vmatprep.subr.mxu0 0.0
      %2637 = vmatpush1.msra.mxu0 0.0
      %2638 = vmatprep.subr.mxu0 0.0
      %2639 = vmatpush1.msra.mxu0 0.0
      %2640 = vmatprep.subr.mxu0 0.0
      %2641 = vmatpush1.msra.mxu0 0.0
      %2642 = vmatprep.subr.mxu0 0.0
      %2643 = vmatpush1.msra.mxu0 0.0
      %2644 = vmatprep.subr.mxu0 0.0
      %2645 = vmatpush1.msra.mxu0 0.0
      %2646 = vmatprep.subr.mxu0 0.0
      %2647 = vmatpush1.msra.mxu0 0.0
      %2648 = vmatprep.subr.mxu0 0.0
      %2649 = vmatpush1.msra.mxu0 0.0
      %2650 = vmatprep.subr.mxu0 0.0
      %2651 = vmatpush1.msra.mxu0 0.0
      %2652 = vmatprep.subr.mxu0 0.0
      %2653 = vmatpush1.msra.mxu0 0.0
      %2654 = vmatprep.subr.mxu0 0.0
      %2655 = vmatpush1.msra.mxu0 0.0
      %2656 = vmatprep.subr.mxu0 0.0
      %2657 = vmatpush1.msra.mxu0 0.0
      %2658 = vmatprep.subr.mxu0 0.0
      %2659 = vmatpush1.msra.mxu0 0.0
      %2660 = vmatprep.subr.mxu0 0.0
      %2661 = vmatpush1.msra.mxu0 0.0
      %2662 = vmatprep.subr.mxu0 0.0
      %2663 = vmatpush1.msra.mxu0 0.0
      %2664 = vmatprep.subr.mxu0 0.0
      %2665 = vmatpush1.msra.mxu0 0.0
      %2666 = vmatprep.subr.mxu0 0.0
      %2667 = vmatpush1.msra.mxu0 0.0
      %2668 = vmatprep.subr.mxu0 0.0
      %2669 = vmatpush1.msra.mxu0 0.0
      %2670 = vmatprep.mubr.f32.mxu0 0.0
      %2671 = vmatmul.mubr.f32.gmra.mrb[0].mxu0 %v2598
      %v2672 = vpop.f32.mrb[0].mxu0
      %v2673 = vadd.f32 0.0, %v2672
      %v2674 = vpop.f32.mrb[0].mxu0
      %v2675 = vadd.f32 0.0, %v2674
      %2676 = vdwg.mxu0
      %2677 = vmatprep.subr.mxu0 0.0
      %2678 = vmatpush1.msra.mxu0 %v2604
      %2679 = vmatprep.subr.mxu0 0.0
      %2680 = vmatpush1.msra.mxu0 0.0
      %2681 = vmatprep.subr.mxu0 0.0
      %2682 = vmatpush1.msra.mxu0 0.0
      %2683 = vmatprep.subr.mxu0 0.0
      %2684 = vmatpush1.msra.mxu0 0.0
      %2685 = vmatprep.subr.mxu0 0.0
      %2686 = vmatpush1.msra.mxu0 0.0
      %2687 = vmatprep.subr.mxu0 0.0
      %2688 = vmatpush1.msra.mxu0 0.0
      %2689 = vmatprep.subr.mxu0 0.0
      %2690 = vmatpush1.msra.mxu0 0.0
      %2691 = vmatprep.subr.mxu0 0.0
      %2692 = vmatpush1.msra.mxu0 0.0
      %2693 = vmatprep.subr.mxu0 0.0
      %2694 = vmatpush1.msra.mxu0 0.0
      %2695 = vmatprep.subr.mxu0 0.0
      %2696 = vmatpush1.msra.mxu0 0.0
      %2697 = vmatprep.subr.mxu0 0.0
      %2698 = vmatpush1.msra.mxu0 0.0
      %2699 = vmatprep.subr.mxu0 0.0
      %2700 = vmatpush1.msra.mxu0 0.0
      %2701 = vmatprep.subr.mxu0 0.0
      %2702 = vmatpush1.msra.mxu0 0.0
      %2703 = vmatprep.subr.mxu0 0.0
      %2704 = vmatpush1.msra.mxu0 0.0
      %2705 = vmatprep.subr.mxu0 0.0
      %2706 = vmatpush1.msra.mxu0 0.0
      %2707 = vmatprep.subr.mxu0 0.0
      %2708 = vmatpush1.msra.mxu0 0.0
      %2709 = vmatprep.subr.mxu0 0.0
      %2710 = vmatpush1.msra.mxu0 0.0
      %2711 = vmatprep.subr.mxu0 0.0
      %2712 = vmatpush1.msra.mxu0 0.0
      %2713 = vmatprep.subr.mxu0 0.0
      %2714 = vmatpush1.msra.mxu0 0.0
      %2715 = vmatprep.subr.mxu0 0.0
      %2716 = vmatpush1.msra.mxu0 0.0
      %2717 = vmatprep.subr.mxu0 0.0
      %2718 = vmatpush1.msra.mxu0 0.0
      %2719 = vmatprep.subr.mxu0 0.0
      %2720 = vmatpush1.msra.mxu0 0.0
      %2721 = vmatprep.subr.mxu0 0.0
      %2722 = vmatpush1.msra.mxu0 0.0
      %2723 = vmatprep.subr.mxu0 0.0
      %2724 = vmatpush1.msra.mxu0 0.0
      %2725 = vmatprep.subr.mxu0 0.0
      %2726 = vmatpush1.msra.mxu0 0.0
      %2727 = vmatprep.subr.mxu0 0.0
      %2728 = vmatpush1.msra.mxu0 0.0
      %2729 = vmatprep.subr.mxu0 0.0
      %2730 = vmatpush1.msra.mxu0 0.0
      %2731 = vmatprep.subr.mxu0 0.0
      %2732 = vmatpush1.msra.mxu0 0.0
      %2733 = vmatprep.subr.mxu0 0.0
      %2734 = vmatpush1.msra.mxu0 0.0
      %2735 = vmatprep.subr.mxu0 0.0
      %2736 = vmatpush1.msra.mxu0 0.0
      %2737 = vmatprep.subr.mxu0 0.0
      %2738 = vmatpush1.msra.mxu0 0.0
      %2739 = vmatprep.subr.mxu0 0.0
      %2740 = vmatpush1.msra.mxu0 0.0
      %2741 = vmatprep.mubr.f32.mxu0 0.0
      %2742 = vmatmul.mubr.f32.gmra.mrb[0].mxu0 %v2598
      %v2743 = vpop.f32.mrb[0].mxu0
      %v2744 = vadd.f32 0.0, %v2743
      %v2745 = vpop.f32.mrb[0].mxu0
      %2746 = vdwg.mxu0
      %v2747 = vadd.f32 %v2578, %v2673
      %v2748 = vadd.f32 %v2579, %v2675
      %v2749 = vadd.f32 %v2580, %v2744
      %v2750 = vld [vmem:[%s239] sm:$0xff]
      %v2751 = vld [vmem:[%s239 + $0x8] sm:$0xf]
      %s2752 = scalar_lea.vmem %s3, 56
      %v2753 = vld [vmem:[%s2752] sm:$0xff]
      %v2756 = vcombine.high %v2750, %v2750
      %2757 = vrot.lane.b32.xlu0 %v2750, 91
      %v2758 = vpop.permute.xlu0 %2757
      %2759 = vrot.lane.b32.xlu0 %v2756, 91
      %v2760 = vpop.permute.xlu0 %2759
      %2761 = vrot.lane.b32.xlu0 %v2751, 91
      %v2762 = vpop.permute.xlu0 %2761
      %v2763 = vsel %vm2594, %v2758, %v2760
      %v2764 = vsel %vm2594, %v2760, %v2762
      %v2766 = vsel %vm254, %v2753, 0
      %v2768 = vsel %vm258, %v2763, 0
      %v2770 = vsel %vm258, %v2764, 0
      %v2772 = vsel %vm258, %v2762, 0
      %2774 = vmatprep.subr.mxu0 %v2770
      %2775 = vmatpush1.msra.mxu0 %v2768
      %2776 = vmatprep.subr.mxu0 0.0
      %2777 = vmatpush1.msra.mxu0 0.0
      %2778 = vmatprep.subr.mxu0 0.0
      %2779 = vmatpush1.msra.mxu0 0.0
      %2780 = vmatprep.subr.mxu0 0.0
      %2781 = vmatpush1.msra.mxu0 0.0
      %2782 = vmatprep.subr.mxu0 0.0
      %2783 = vmatpush1.msra.mxu0 0.0
      %2784 = vmatprep.subr.mxu0 0.0
      %2785 = vmatpush1.msra.mxu0 0.0
      %2786 = vmatprep.subr.mxu0 0.0
      %2787 = vmatpush1.msra.mxu0 0.0
      %2788 = vmatprep.subr.mxu0 0.0
      %2789 = vmatpush1.msra.mxu0 0.0
      %2790 = vmatprep.subr.mxu0 0.0
      %2791 = vmatpush1.msra.mxu0 0.0
      %2792 = vmatprep.subr.mxu0 0.0
      %2793 = vmatpush1.msra.mxu0 0.0
      %2794 = vmatprep.subr.mxu0 0.0
      %2795 = vmatpush1.msra.mxu0 0.0
      %2796 = vmatprep.subr.mxu0 0.0
      %2797 = vmatpush1.msra.mxu0 0.0
      %2798 = vmatprep.subr.mxu0 0.0
      %2799 = vmatpush1.msra.mxu0 0.0
      %2800 = vmatprep.subr.mxu0 0.0
      %2801 = vmatpush1.msra.mxu0 0.0
      %2802 = vmatprep.subr.mxu0 0.0
      %2803 = vmatpush1.msra.mxu0 0.0
      %2804 = vmatprep.subr.mxu0 0.0
      %2805 = vmatpush1.msra.mxu0 0.0
      %2806 = vmatprep.subr.mxu0 0.0
      %2807 = vmatpush1.msra.mxu0 0.0
      %2808 = vmatprep.subr.mxu0 0.0
      %2809 = vmatpush1.msra.mxu0 0.0
      %2810 = vmatprep.subr.mxu0 0.0
      %2811 = vmatpush1.msra.mxu0 0.0
      %2812 = vmatprep.subr.mxu0 0.0
      %2813 = vmatpush1.msra.mxu0 0.0
      %2814 = vmatprep.subr.mxu0 0.0
      %2815 = vmatpush1.msra.mxu0 0.0
      %2816 = vmatprep.subr.mxu0 0.0
      %2817 = vmatpush1.msra.mxu0 0.0
      %2818 = vmatprep.subr.mxu0 0.0
      %2819 = vmatpush1.msra.mxu0 0.0
      %2820 = vmatprep.subr.mxu0 0.0
      %2821 = vmatpush1.msra.mxu0 0.0
      %2822 = vmatprep.subr.mxu0 0.0
      %2823 = vmatpush1.msra.mxu0 0.0
      %2824 = vmatprep.subr.mxu0 0.0
      %2825 = vmatpush1.msra.mxu0 0.0
      %2826 = vmatprep.subr.mxu0 0.0
      %2827 = vmatpush1.msra.mxu0 0.0
      %2828 = vmatprep.subr.mxu0 0.0
      %2829 = vmatpush1.msra.mxu0 0.0
      %2830 = vmatprep.subr.mxu0 0.0
      %2831 = vmatpush1.msra.mxu0 0.0
      %2832 = vmatprep.subr.mxu0 0.0
      %2833 = vmatpush1.msra.mxu0 0.0
      %2834 = vmatprep.subr.mxu0 0.0
      %2835 = vmatpush1.msra.mxu0 0.0
      %2836 = vmatprep.subr.mxu0 0.0
      %2837 = vmatpush1.msra.mxu0 0.0
      %2838 = vmatprep.mubr.f32.mxu0 0.0
      %2839 = vmatmul.mubr.f32.gmra.mrb[0].mxu0 %v2766
      %v2840 = vpop.f32.mrb[0].mxu0
      %v2841 = vadd.f32 0.0, %v2840
      %v2842 = vpop.f32.mrb[0].mxu0
      %v2843 = vadd.f32 0.0, %v2842
      %2844 = vdwg.mxu0
      %2845 = vmatprep.subr.mxu0 0.0
      %2846 = vmatpush1.msra.mxu0 %v2772
      %2847 = vmatprep.subr.mxu0 0.0
      %2848 = vmatpush1.msra.mxu0 0.0
      %2849 = vmatprep.subr.mxu0 0.0
      %2850 = vmatpush1.msra.mxu0 0.0
      %2851 = vmatprep.subr.mxu0 0.0
      %2852 = vmatpush1.msra.mxu0 0.0
      %2853 = vmatprep.subr.mxu0 0.0
      %2854 = vmatpush1.msra.mxu0 0.0
      %2855 = vmatprep.subr.mxu0 0.0
      %2856 = vmatpush1.msra.mxu0 0.0
      %2857 = vmatprep.subr.mxu0 0.0
      %2858 = vmatpush1.msra.mxu0 0.0
      %2859 = vmatprep.subr.mxu0 0.0
      %2860 = vmatpush1.msra.mxu0 0.0
      %2861 = vmatprep.subr.mxu0 0.0
      %2862 = vmatpush1.msra.mxu0 0.0
      %2863 = vmatprep.subr.mxu0 0.0
      %2864 = vmatpush1.msra.mxu0 0.0
      %2865 = vmatprep.subr.mxu0 0.0
      %2866 = vmatpush1.msra.mxu0 0.0
      %2867 = vmatprep.subr.mxu0 0.0
      %2868 = vmatpush1.msra.mxu0 0.0
      %2869 = vmatprep.subr.mxu0 0.0
      %2870 = vmatpush1.msra.mxu0 0.0
      %2871 = vmatprep.subr.mxu0 0.0
      %2872 = vmatpush1.msra.mxu0 0.0
      %2873 = vmatprep.subr.mxu0 0.0
      %2874 = vmatpush1.msra.mxu0 0.0
      %2875 = vmatprep.subr.mxu0 0.0
      %2876 = vmatpush1.msra.mxu0 0.0
      %2877 = vmatprep.subr.mxu0 0.0
      %2878 = vmatpush1.msra.mxu0 0.0
      %2879 = vmatprep.subr.mxu0 0.0
      %2880 = vmatpush1.msra.mxu0 0.0
      %2881 = vmatprep.subr.mxu0 0.0
      %2882 = vmatpush1.msra.mxu0 0.0
      %2883 = vmatprep.subr.mxu0 0.0
      %2884 = vmatpush1.msra.mxu0 0.0
      %2885 = vmatprep.subr.mxu0 0.0
      %2886 = vmatpush1.msra.mxu0 0.0
      %2887 = vmatprep.subr.mxu0 0.0
      %2888 = vmatpush1.msra.mxu0 0.0
      %2889 = vmatprep.subr.mxu0 0.0
      %2890 = vmatpush1.msra.mxu0 0.0
      %2891 = vmatprep.subr.mxu0 0.0
      %2892 = vmatpush1.msra.mxu0 0.0
      %2893 = vmatprep.subr.mxu0 0.0
      %2894 = vmatpush1.msra.mxu0 0.0
      %2895 = vmatprep.subr.mxu0 0.0
      %2896 = vmatpush1.msra.mxu0 0.0
      %2897 = vmatprep.subr.mxu0 0.0
      %2898 = vmatpush1.msra.mxu0 0.0
      %2899 = vmatprep.subr.mxu0 0.0
      %2900 = vmatpush1.msra.mxu0 0.0
      %2901 = vmatprep.subr.mxu0 0.0
      %2902 = vmatpush1.msra.mxu0 0.0
      %2903 = vmatprep.subr.mxu0 0.0
      %2904 = vmatpush1.msra.mxu0 0.0
      %2905 = vmatprep.subr.mxu0 0.0
      %2906 = vmatpush1.msra.mxu0 0.0
      %2907 = vmatprep.subr.mxu0 0.0
      %2908 = vmatpush1.msra.mxu0 0.0
      %2909 = vmatprep.mubr.f32.mxu0 0.0
      %2910 = vmatmul.mubr.f32.gmra.mrb[0].mxu0 %v2766
      %v2911 = vpop.f32.mrb[0].mxu0
      %v2912 = vadd.f32 0.0, %v2911
      %v2913 = vpop.f32.mrb[0].mxu0
      %2914 = vdwg.mxu0
      %v2915 = vadd.f32 %v2747, %v2841
      %v2916 = vadd.f32 %v2748, %v2843
      %v2917 = vadd.f32 %v2749, %v2912
      %v2918 = vld [vmem:[%s234] sm:$0xff]
      %v2919 = vld [vmem:[%s234 + $0x8] sm:$0xf]
      %s2920 = scalar_lea.vmem %s2, 64
      %v2921 = vld [vmem:[%s2920] sm:$0xff]
      %v2924 = vcombine.high %v2918, %v2918
      %2925 = vrot.lane.b32.xlu0 %v2918, 90
      %v2926 = vpop.permute.xlu0 %2925
      %2927 = vrot.lane.b32.xlu0 %v2924, 90
      %v2928 = vpop.permute.xlu0 %2927
      %2929 = vrot.lane.b32.xlu0 %v2919, 90
      %v2930 = vpop.permute.xlu0 %2929
      %vm2931 = vcmask 736256
      %v2932 = vsel %vm2931, %v2926, %v2928
      %v2933 = vsel %vm2931, %v2928, %v2930
      %v2935 = vsel %vm254, %v2921, 0
      %v2937 = vsel %vm258, %v2932, 0
      %v2939 = vsel %vm258, %v2933, 0
      %v2941 = vsel %vm258, %v2930, 0
      %2943 = vmatprep.subr.mxu0 %v2939
      %2944 = vmatpush1.msra.mxu0 %v2937
      %2945 = vmatprep.subr.mxu0 0.0
      %2946 = vmatpush1.msra.mxu0 0.0
      %2947 = vmatprep.subr.mxu0 0.0
      %2948 = vmatpush1.msra.mxu0 0.0
      %2949 = vmatprep.subr.mxu0 0.0
      %2950 = vmatpush1.msra.mxu0 0.0
      %2951 = vmatprep.subr.mxu0 0.0
      %2952 = vmatpush1.msra.mxu0 0.0
      %2953 = vmatprep.subr.mxu0 0.0
      %2954 = vmatpush1.msra.mxu0 0.0
      %2955 = vmatprep.subr.mxu0 0.0
      %2956 = vmatpush1.msra.mxu0 0.0
      %2957 = vmatprep.subr.mxu0 0.0
      %2958 = vmatpush1.msra.mxu0 0.0
      %2959 = vmatprep.subr.mxu0 0.0
      %2960 = vmatpush1.msra.mxu0 0.0
      %2961 = vmatprep.subr.mxu0 0.0
      %2962 = vmatpush1.msra.mxu0 0.0
      %2963 = vmatprep.subr.mxu0 0.0
      %2964 = vmatpush1.msra.mxu0 0.0
      %2965 = vmatprep.subr.mxu0 0.0
      %2966 = vmatpush1.msra.mxu0 0.0
      %2967 = vmatprep.subr.mxu0 0.0
      %2968 = vmatpush1.msra.mxu0 0.0
      %2969 = vmatprep.subr.mxu0 0.0
      %2970 = vmatpush1.msra.mxu0 0.0
      %2971 = vmatprep.subr.mxu0 0.0
      %2972 = vmatpush1.msra.mxu0 0.0
      %2973 = vmatprep.subr.mxu0 0.0
      %2974 = vmatpush1.msra.mxu0 0.0
      %2975 = vmatprep.subr.mxu0 0.0
      %2976 = vmatpush1.msra.mxu0 0.0
      %2977 = vmatprep.subr.mxu0 0.0
      %2978 = vmatpush1.msra.mxu0 0.0
      %2979 = vmatprep.subr.mxu0 0.0
      %2980 = vmatpush1.msra.mxu0 0.0
      %2981 = vmatprep.subr.mxu0 0.0
      %2982 = vmatpush1.msra.mxu0 0.0
      %2983 = vmatprep.subr.mxu0 0.0
      %2984 = vmatpush1.msra.mxu0 0.0
      %2985 = vmatprep.subr.mxu0 0.0
      %2986 = vmatpush1.msra.mxu0 0.0
      %2987 = vmatprep.subr.mxu0 0.0
      %2988 = vmatpush1.msra.mxu0 0.0
      %2989 = vmatprep.subr.mxu0 0.0
      %2990 = vmatpush1.msra.mxu0 0.0
      %2991 = vmatprep.subr.mxu0 0.0
      %2992 = vmatpush1.msra.mxu0 0.0
      %2993 = vmatprep.subr.mxu0 0.0
      %2994 = vmatpush1.msra.mxu0 0.0
      %2995 = vmatprep.subr.mxu0 0.0
      %2996 = vmatpush1.msra.mxu0 0.0
      %2997 = vmatprep.subr.mxu0 0.0
      %2998 = vmatpush1.msra.mxu0 0.0
      %2999 = vmatprep.subr.mxu0 0.0
      %3000 = vmatpush1.msra.mxu0 0.0
      %3001 = vmatprep.subr.mxu0 0.0
      %3002 = vmatpush1.msra.mxu0 0.0
      %3003 = vmatprep.subr.mxu0 0.0
      %3004 = vmatpush1.msra.mxu0 0.0
      %3005 = vmatprep.subr.mxu0 0.0
      %3006 = vmatpush1.msra.mxu0 0.0
      %3007 = vmatprep.mubr.f32.mxu0 0.0
      %3008 = vmatmul.mubr.f32.gmra.mrb[0].mxu0 %v2935
      %v3009 = vpop.f32.mrb[0].mxu0
      %v3010 = vadd.f32 0.0, %v3009
      %v3011 = vpop.f32.mrb[0].mxu0
      %v3012 = vadd.f32 0.0, %v3011
      %3013 = vdwg.mxu0
      %3014 = vmatprep.subr.mxu0 0.0
      %3015 = vmatpush1.msra.mxu0 %v2941
      %3016 = vmatprep.subr.mxu0 0.0
      %3017 = vmatpush1.msra.mxu0 0.0
      %3018 = vmatprep.subr.mxu0 0.0
      %3019 = vmatpush1.msra.mxu0 0.0
      %3020 = vmatprep.subr.mxu0 0.0
      %3021 = vmatpush1.msra.mxu0 0.0
      %3022 = vmatprep.subr.mxu0 0.0
      %3023 = vmatpush1.msra.mxu0 0.0
      %3024 = vmatprep.subr.mxu0 0.0
      %3025 = vmatpush1.msra.mxu0 0.0
      %3026 = vmatprep.subr.mxu0 0.0
      %3027 = vmatpush1.msra.mxu0 0.0
      %3028 = vmatprep.subr.mxu0 0.0
      %3029 = vmatpush1.msra.mxu0 0.0
      %3030 = vmatprep.subr.mxu0 0.0
      %3031 = vmatpush1.msra.mxu0 0.0
      %3032 = vmatprep.subr.mxu0 0.0
      %3033 = vmatpush1.msra.mxu0 0.0
      %3034 = vmatprep.subr.mxu0 0.0
      %3035 = vmatpush1.msra.mxu0 0.0
      %3036 = vmatprep.subr.mxu0 0.0
      %3037 = vmatpush1.msra.mxu0 0.0
      %3038 = vmatprep.subr.mxu0 0.0
      %3039 = vmatpush1.msra.mxu0 0.0
      %3040 = vmatprep.subr.mxu0 0.0
      %3041 = vmatpush1.msra.mxu0 0.0
      %3042 = vmatprep.subr.mxu0 0.0
      %3043 = vmatpush1.msra.mxu0 0.0
      %3044 = vmatprep.subr.mxu0 0.0
      %3045 = vmatpush1.msra.mxu0 0.0
      %3046 = vmatprep.subr.mxu0 0.0
      %3047 = vmatpush1.msra.mxu0 0.0
      %3048 = vmatprep.subr.mxu0 0.0
      %3049 = vmatpush1.msra.mxu0 0.0
      %3050 = vmatprep.subr.mxu0 0.0
      %3051 = vmatpush1.msra.mxu0 0.0
      %3052 = vmatprep.subr.mxu0 0.0
      %3053 = vmatpush1.msra.mxu0 0.0
      %3054 = vmatprep.subr.mxu0 0.0
      %3055 = vmatpush1.msra.mxu0 0.0
      %3056 = vmatprep.subr.mxu0 0.0
      %3057 = vmatpush1.msra.mxu0 0.0
      %3058 = vmatprep.subr.mxu0 0.0
      %3059 = vmatpush1.msra.mxu0 0.0
      %3060 = vmatprep.subr.mxu0 0.0
      %3061 = vmatpush1.msra.mxu0 0.0
      %3062 = vmatprep.subr.mxu0 0.0
      %3063 = vmatpush1.msra.mxu0 0.0
      %3064 = vmatprep.subr.mxu0 0.0
      %3065 = vmatpush1.msra.mxu0 0.0
      %3066 = vmatprep.subr.mxu0 0.0
      %3067 = vmatpush1.msra.mxu0 0.0
      %3068 = vmatprep.subr.mxu0 0.0
      %3069 = vmatpush1.msra.mxu0 0.0
      %3070 = vmatprep.subr.mxu0 0.0
      %3071 = vmatpush1.msra.mxu0 0.0
      %3072 = vmatprep.subr.mxu0 0.0
      %3073 = vmatpush1.msra.mxu0 0.0
      %3074 = vmatprep.subr.mxu0 0.0
      %3075 = vmatpush1.msra.mxu0 0.0
      %3076 = vmatprep.subr.mxu0 0.0
      %3077 = vmatpush1.msra.mxu0 0.0
      %3078 = vmatprep.mubr.f32.mxu0 0.0
      %3079 = vmatmul.mubr.f32.gmra.mrb[0].mxu0 %v2935
      %v3080 = vpop.f32.mrb[0].mxu0
      %v3081 = vadd.f32 0.0, %v3080
      %v3082 = vpop.f32.mrb[0].mxu0
      %3083 = vdwg.mxu0
      %v3084 = vadd.f32 %v2915, %v3010
      %v3085 = vadd.f32 %v2916, %v3012
      %v3086 = vadd.f32 %v2917, %v3081
      %v3087 = vld [vmem:[%s239] sm:$0xff]
      %v3088 = vld [vmem:[%s239 + $0x8] sm:$0xf]
      %s3089 = scalar_lea.vmem %s3, 64
      %v3090 = vld [vmem:[%s3089] sm:$0xff]
      %v3093 = vcombine.high %v3087, %v3087
      %3094 = vrot.lane.b32.xlu0 %v3087, 90
      %v3095 = vpop.permute.xlu0 %3094
      %3096 = vrot.lane.b32.xlu0 %v3093, 90
      %v3097 = vpop.permute.xlu0 %3096
      %3098 = vrot.lane.b32.xlu0 %v3088, 90
      %v3099 = vpop.permute.xlu0 %3098
      %v3100 = vsel %vm2931, %v3095, %v3097
      %v3101 = vsel %vm2931, %v3097, %v3099
      %v3103 = vsel %vm254, %v3090, 0
      %v3105 = vsel %vm258, %v3100, 0
      %v3107 = vsel %vm258, %v3101, 0
      %v3109 = vsel %vm258, %v3099, 0
      %3111 = vmatprep.subr.mxu0 %v3107
      %3112 = vmatpush1.msra.mxu0 %v3105
      %3113 = vmatprep.subr.mxu0 0.0
      %3114 = vmatpush1.msra.mxu0 0.0
      %3115 = vmatprep.subr.mxu0 0.0
      %3116 = vmatpush1.msra.mxu0 0.0
      %3117 = vmatprep.subr.mxu0 0.0
      %3118 = vmatpush1.msra.mxu0 0.0
      %3119 = vmatprep.subr.mxu0 0.0
      %3120 = vmatpush1.msra.mxu0 0.0
      %3121 = vmatprep.subr.mxu0 0.0
      %3122 = vmatpush1.msra.mxu0 0.0
      %3123 = vmatprep.subr.mxu0 0.0
      %3124 = vmatpush1.msra.mxu0 0.0
      %3125 = vmatprep.subr.mxu0 0.0
      %3126 = vmatpush1.msra.mxu0 0.0
      %3127 = vmatprep.subr.mxu0 0.0
      %3128 = vmatpush1.msra.mxu0 0.0
      %3129 = vmatprep.subr.mxu0 0.0
      %3130 = vmatpush1.msra.mxu0 0.0
      %3131 = vmatprep.subr.mxu0 0.0
      %3132 = vmatpush1.msra.mxu0 0.0
      %3133 = vmatprep.subr.mxu0 0.0
      %3134 = vmatpush1.msra.mxu0 0.0
      %3135 = vmatprep.subr.mxu0 0.0
      %3136 = vmatpush1.msra.mxu0 0.0
      %3137 = vmatprep.subr.mxu0 0.0
      %3138 = vmatpush1.msra.mxu0 0.0
      %3139 = vmatprep.subr.mxu0 0.0
      %3140 = vmatpush1.msra.mxu0 0.0
      %3141 = vmatprep.subr.mxu0 0.0
      %3142 = vmatpush1.msra.mxu0 0.0
      %3143 = vmatprep.subr.mxu0 0.0
      %3144 = vmatpush1.msra.mxu0 0.0
      %3145 = vmatprep.subr.mxu0 0.0
      %3146 = vmatpush1.msra.mxu0 0.0
      %3147 = vmatprep.subr.mxu0 0.0
      %3148 = vmatpush1.msra.mxu0 0.0
      %3149 = vmatprep.subr.mxu0 0.0
      %3150 = vmatpush1.msra.mxu0 0.0
      %3151 = vmatprep.subr.mxu0 0.0
      %3152 = vmatpush1.msra.mxu0 0.0
      %3153 = vmatprep.subr.mxu0 0.0
      %3154 = vmatpush1.msra.mxu0 0.0
      %3155 = vmatprep.subr.mxu0 0.0
      %3156 = vmatpush1.msra.mxu0 0.0
      %3157 = vmatprep.subr.mxu0 0.0
      %3158 = vmatpush1.msra.mxu0 0.0
      %3159 = vmatprep.subr.mxu0 0.0
      %3160 = vmatpush1.msra.mxu0 0.0
      %3161 = vmatprep.subr.mxu0 0.0
      %3162 = vmatpush1.msra.mxu0 0.0
      %3163 = vmatprep.subr.mxu0 0.0
      %3164 = vmatpush1.msra.mxu0 0.0
      %3165 = vmatprep.subr.mxu0 0.0
      %3166 = vmatpush1.msra.mxu0 0.0
      %3167 = vmatprep.subr.mxu0 0.0
      %3168 = vmatpush1.msra.mxu0 0.0
      %3169 = vmatprep.subr.mxu0 0.0
      %3170 = vmatpush1.msra.mxu0 0.0
      %3171 = vmatprep.subr.mxu0 0.0
      %3172 = vmatpush1.msra.mxu0 0.0
      %3173 = vmatprep.subr.mxu0 0.0
      %3174 = vmatpush1.msra.mxu0 0.0
      %3175 = vmatprep.mubr.f32.mxu0 0.0
      %3176 = vmatmul.mubr.f32.gmra.mrb[0].mxu0 %v3103
      %v3177 = vpop.f32.mrb[0].mxu0
      %v3178 = vadd.f32 0.0, %v3177
      %v3179 = vpop.f32.mrb[0].mxu0
      %v3180 = vadd.f32 0.0, %v3179
      %3181 = vdwg.mxu0
      %3182 = vmatprep.subr.mxu0 0.0
      %3183 = vmatpush1.msra.mxu0 %v3109
      %3184 = vmatprep.subr.mxu0 0.0
      %3185 = vmatpush1.msra.mxu0 0.0
      %3186 = vmatprep.subr.mxu0 0.0
      %3187 = vmatpush1.msra.mxu0 0.0
      %3188 = vmatprep.subr.mxu0 0.0
      %3189 = vmatpush1.msra.mxu0 0.0
      %3190 = vmatprep.subr.mxu0 0.0
      %3191 = vmatpush1.msra.mxu0 0.0
      %3192 = vmatprep.subr.mxu0 0.0
      %3193 = vmatpush1.msra.mxu0 0.0
      %3194 = vmatprep.subr.mxu0 0.0
      %3195 = vmatpush1.msra.mxu0 0.0
      %3196 = vmatprep.subr.mxu0 0.0
      %3197 = vmatpush1.msra.mxu0 0.0
      %3198 = vmatprep.subr.mxu0 0.0
      %3199 = vmatpush1.msra.mxu0 0.0
      %3200 = vmatprep.subr.mxu0 0.0
      %3201 = vmatpush1.msra.mxu0 0.0
      %3202 = vmatprep.subr.mxu0 0.0
      %3203 = vmatpush1.msra.mxu0 0.0
      %3204 = vmatprep.subr.mxu0 0.0
      %3205 = vmatpush1.msra.mxu0 0.0
      %3206 = vmatprep.subr.mxu0 0.0
      %3207 = vmatpush1.msra.mxu0 0.0
      %3208 = vmatprep.subr.mxu0 0.0
      %3209 = vmatpush1.msra.mxu0 0.0
      %3210 = vmatprep.subr.mxu0 0.0
      %3211 = vmatpush1.msra.mxu0 0.0
      %3212 = vmatprep.subr.mxu0 0.0
      %3213 = vmatpush1.msra.mxu0 0.0
      %3214 = vmatprep.subr.mxu0 0.0
      %3215 = vmatpush1.msra.mxu0 0.0
      %3216 = vmatprep.subr.mxu0 0.0
      %3217 = vmatpush1.msra.mxu0 0.0
      %3218 = vmatprep.subr.mxu0 0.0
      %3219 = vmatpush1.msra.mxu0 0.0
      %3220 = vmatprep.subr.mxu0 0.0
      %3221 = vmatpush1.msra.mxu0 0.0
      %3222 = vmatprep.subr.mxu0 0.0
      %3223 = vmatpush1.msra.mxu0 0.0
      %3224 = vmatprep.subr.mxu0 0.0
      %3225 = vmatpush1.msra.mxu0 0.0
      %3226 = vmatprep.subr.mxu0 0.0
      %3227 = vmatpush1.msra.mxu0 0.0
      %3228 = vmatprep.subr.mxu0 0.0
      %3229 = vmatpush1.msra.mxu0 0.0
      %3230 = vmatprep.subr.mxu0 0.0
      %3231 = vmatpush1.msra.mxu0 0.0
      %3232 = vmatprep.subr.mxu0 0.0
      %3233 = vmatpush1.msra.mxu0 0.0
      %3234 = vmatprep.subr.mxu0 0.0
      %3235 = vmatpush1.msra.mxu0 0.0
      %3236 = vmatprep.subr.mxu0 0.0
      %3237 = vmatpush1.msra.mxu0 0.0
      %3238 = vmatprep.subr.mxu0 0.0
      %3239 = vmatpush1.msra.mxu0 0.0
      %3240 = vmatprep.subr.mxu0 0.0
      %3241 = vmatpush1.msra.mxu0 0.0
      %3242 = vmatprep.subr.mxu0 0.0
      %3243 = vmatpush1.msra.mxu0 0.0
      %3244 = vmatprep.subr.mxu0 0.0
      %3245 = vmatpush1.msra.mxu0 0.0
      %3246 = vmatprep.mubr.f32.mxu0 0.0
      %3247 = vmatmul.mubr.f32.gmra.mrb[0].mxu0 %v3103
      %v3248 = vpop.f32.mrb[0].mxu0
      %v3249 = vadd.f32 0.0, %v3248
      %v3250 = vpop.f32.mrb[0].mxu0
      %3251 = vdwg.mxu0
      %v3252 = vadd.f32 %v3084, %v3178
      %v3253 = vadd.f32 %v3085, %v3180
      %v3254 = vadd.f32 %v3086, %v3249
      %v3255 = vld [vmem:[%s4] sm:$0xff]
      %3257 = vset.pattern.permute.xlu0 0
      %3258 = vperm.xlu0 %3257, %v3255
      %v3259 = vpop.permute.xlu0 %3258
      %v3261 = vadd.f32 %v3252, %v3259
      %v3262 = vadd.f32 %v3253, %v3259
      %v3263 = vadd.f32 %v3254, %v3259
      %3264 = vst [vmem:[%s244] sm:$0xff] %v3261
      %3265 = vst [vmem:[%s244 + $0x8] sm:$0xff] %v3262
      %vm3266 = vcmask 261120
      %3267 = vst.msk [vmem:[%s244 + $0x10] sm:$0xff] %vm3266, %v3263
      %p3268 = scmp.lt.s32.totalorder %s16, 1
      %s3269 = scalar_select %p3268, %s16, 1
      %s3270 = smul.addr %s3269, 3
      %s3271 = smul.addr %s3270, 8
      %s3272 = scalar_lea.vmem %s5, %s3271
      // Predicated region
      $region41: #{convt_block_forward.5} parent=39 // pred_check
        %p3273 = pneg %p149
      $region42: #{convt_block_forward.5} parent=39 // pred_check_branch
        %3275 = sbr.rel (%p3273) target = $region44
      $region43: #{convt_block_forward.5} parent=39 // pred_region
        _
      $region44: #{convt_block_forward.5} parent=39 // pred_fallthru
        _
    $region40: #{convt_block_forward.5} parent=5 // pred_fallthru
      _
    %p3276 = scmp.le.s32.totalorder 2, %s11
    // Predicated region
    $region45: #{convt_block_forward.5} parent=5 // pred_check
      %p3277 = pneg %p3276
    $region46: #{convt_block_forward.5} parent=5 // pred_check_branch
      %3279 = sbr.rel (%p3277) target = $region48
    $region47: #{convt_block_forward.5} parent=5 // pred_region
      %s3280 = ssub.s32 %s11, 2
      // Predicated region
      $region49: #{convt_block_forward.5} parent=47 // pred_check
        %p3281 = pneg %p155
      $region50: #{convt_block_forward.5} parent=47 // pred_check_branch
        %3283 = sbr.rel (%p3281) target = $region52
      $region51: #{convt_block_forward.5} parent=47 // pred_region
        %p3284 = scmp.lt.s32.totalorder %s17, 1
        %s3285 = scalar_select %p3284, %s17, 1
        %s3286 = smul.addr %s3285, 3
        %s3287 = smul.addr %s3286, 8
        %s3288 = scalar_lea.vmem %s5, %s3287
      $region52: #{convt_block_forward.5} parent=47 // pred_fallthru
        _
    $region48: #{convt_block_forward.5} parent=5 // pred_fallthru
      _
  $region6: #{convt_block_forward.5} parent=0 // loop_footer
    %s15 = sadd.s32 1, %s11
  $region7: #{convt_block_forward.5} parent=0 // loop_footer_branch
    %10 = sbr.rel target = $region3
  $region8: #{convt_block_forward.5} parent=0 // loop_exit
    _

// kernel: convt_block_forward.6
$region0: #{convt_block_forward.6}
  #allocation0 [shape = 'u32[]', space=smem, size = 0x4, offset = 0x4, fixed_abs, tag = 'smem constant byte address 0x4 - core index']
  #allocation1 [shape = 'u32[144,128]{1,0:T(1,128)}', space=vmem, size = 0x12000, scoped, tag = 'internal scratch']
  %s0 = inlined_call_operand.vmem [shape: f32[2,8,326], index: 0, kind: input, shape index: {}]
  %s1 = inlined_call_operand.vmem [shape: f32[9,8,8], index: 1, kind: input, shape index: {}]
  %s2 = inlined_call_operand.vmem [shape: f32[8,1], index: 2, kind: input, shape index: {}]
  %s3 = inlined_call_operand.vmem [shape: f32[1,288], index: 3, kind: input, shape index: {}]
  %s4 = inlined_call_operand.vmem [shape: f32[2,8,288], index: 4, kind: output, shape index: {0}]
  %s5 = inlined_call_operand.vmem [shape: f32[2,8,2], index: 5, kind: output, shape index: {1}]
  %6 = xla_tuple %s4, %s5
  %s7 = sld [smem:[#allocation0]]
  $region57: #{convt_block_forward.6} parent=0
    _
  %s9 = ssub.s32 1, %s7
  %s10 = scalar_select 0, %s9, %s7
  loop: start=0, step=1, limit=4
  $region2: #{convt_block_forward.6} parent=0 // loop_pre_header
    _
  $region3: #{convt_block_forward.6} parent=0 // loop_header
    %s12 = sphi 0, %s16
    %p13 = scmp.ge.s32.totalorder %s12, 4
    %s22 = sphi 0, %s24
    %s25 = sphi 0, %s22
    %s26 = sphi 0, %s25
    %s42 = sphi 0, %s26
    %s46 = sphi 0, %s46
    %s48 = sphi 0, %s46
    %s49 = sphi 0, %s48
    %s63 = sphi 0, %s49
    %s67 = sphi 0, %s67
    %s69 = sphi 0, %s67
    %s70 = sphi 0, %s69
    %s84 = sphi 0, %s70
    %s88 = sphi 0, %s88
    %s90 = sphi 0, %s88
    %s91 = sphi 0, %s90
    %s105 = sphi 0, %s91
    %s111 = sphi 0, %s113
    %s114 = sphi 0, %s111
    %s115 = sphi 0, %s114
    %s131 = sphi 0, %s115
    %s137 = sphi 0, %s139
    %s140 = sphi 0, %s137
    %s141 = sphi 0, %s140
    %s157 = sphi 0, %s141
  $region4: #{convt_block_forward.6} parent=0 // loop_header_branch
    %15 = sbr.rel (%p13) target = $region8
  $region5: #{convt_block_forward.6} parent=0 // loop_body
    %s17 = ssub.s32 %s12, 1
    %s18 = ssub.s32 %s12, 2
    %s19 = sadd.s32 %s12, 1
    %s20 = ssub.s32 %s12, %s19
    %p21 = scmp.eq.s32.totalorder %s20, 0
    %s23 = sadd.s32 %s22, 1
    %s24 = scalar_select %p21, %s22, %s23
    %p27 = pneg %p21
    %p28 = scmp.eq.s32.totalorder %s12, 1
    %p29 = por %p27, %p28
    %p30 = scmp.ne.s32.totalorder %s22, %s25
    %p31 = scmp.eq.s32.totalorder %s12, 0
    %p32 = por %p30, %p31
    %p33 = scmp.ne.s32.totalorder %s22, %s25
    %p34 = scmp.eq.s32.totalorder %s17, 1
    %p35 = por %p33, %p34
    %p36 = scmp.ne.s32.totalorder %s25, %s26
    %p37 = scmp.eq.s32.totalorder %s17, 0
    %p38 = por %p36, %p37
    %p39 = scmp.ne.s32.totalorder %s25, %s26
    %p40 = scmp.eq.s32.totalorder %s18, 1
    %p41 = por %p39, %p40
    %p43 = scmp.ne.s32.totalorder %s26, %s42
    %p44 = scmp.eq.s32.totalorder %s18, 0
    %p45 = por %p43, %p44
    %s47 = sadd.s32 %s46, 1
    %p50 = scmp.eq.s32.totalorder %s12, 1
    %p51 = scmp.ne.s32.totalorder %s46, %s48
    %p52 = scmp.eq.s32.totalorder %s12, 0
    %p53 = por %p51, %p52
    %p54 = scmp.ne.s32.totalorder %s46, %s48
    %p55 = scmp.eq.s32.totalorder %s17, 1
    %p56 = por %p54, %p55
    %p57 = scmp.ne.s32.totalorder %s48, %s49
    %p58 = scmp.eq.s32.totalorder %s17, 0
    %p59 = por %p57, %p58
    %p60 = scmp.ne.s32.totalorder %s48, %s49
    %p61 = scmp.eq.s32.totalorder %s18, 1
    %p62 = por %p60, %p61
    %p64 = scmp.ne.s32.totalorder %s49, %s63
    %p65 = scmp.eq.s32.totalorder %s18, 0
    %p66 = por %p64, %p65
    %s68 = sadd.s32 %s67, 1
    %p71 = scmp.eq.s32.totalorder %s12, 1
    %p72 = scmp.ne.s32.totalorder %s67, %s69
    %p73 = scmp.eq.s32.totalorder %s12, 0
    %p74 = por %p72, %p73
    %p75 = scmp.ne.s32.totalorder %s67, %s69
    %p76 = scmp.eq.s32.totalorder %s17, 1
    %p77 = por %p75, %p76
    %p78 = scmp.ne.s32.totalorder %s69, %s70
    %p79 = scmp.eq.s32.totalorder %s17, 0
    %p80 = por %p78, %p79
    %p81 = scmp.ne.s32.totalorder %s69, %s70
    %p82 = scmp.eq.s32.totalorder %s18, 1
    %p83 = por %p81, %p82
    %p85 = scmp.ne.s32.totalorder %s70, %s84
    %p86 = scmp.eq.s32.totalorder %s18, 0
    %p87 = por %p85, %p86
    %s89 = sadd.s32 %s88, 1
    %p92 = scmp.eq.s32.totalorder %s12, 1
    %p93 = scmp.ne.s32.totalorder %s88, %s90
    %p94 = scmp.eq.s32.totalorder %s12, 0
    %p95 = por %p93, %p94
    %p96 = scmp.ne.s32.totalorder %s88, %s90
    %p97 = scmp.eq.s32.totalorder %s17, 1
    %p98 = por %p96, %p97
    %p99 = scmp.ne.s32.totalorder %s90, %s91
    %p100 = scmp.eq.s32.totalorder %s17, 0
    %p101 = por %p99, %p100
    %p102 = scmp.ne.s32.totalorder %s90, %s91
    %p103 = scmp.eq.s32.totalorder %s18, 1
    %p104 = por %p102, %p103
    %p106 = scmp.ne.s32.totalorder %s91, %s105
    %p107 = scmp.eq.s32.totalorder %s18, 0
    %p108 = por %p106, %p107
    %s109 = ssub.s32 %s12, %s19
    %p110 = scmp.eq.s32.totalorder %s109, 0
    %s112 = sadd.s32 %s111, 1
    %s113 = scalar_select %p110, %s111, %s112
    %p116 = pneg %p110
    %p117 = scmp.eq.s32.totalorder %s12, 1
    %p118 = por %p116, %p117
    %p119 = scmp.ne.s32.totalorder %s111, %s114
    %p120 = scmp.eq.s32.totalorder %s12, 0
    %p121 = por %p119, %p120
    %p122 = scmp.ne.s32.totalorder %s111, %s114
    %p123 = scmp.eq.s32.totalorder %s17, 1
    %p124 = por %p122, %p123
    %p125 = scmp.ne.s32.totalorder %s114, %s115
    %p126 = scmp.eq.s32.totalorder %s17, 0
    %p127 = por %p125, %p126
    %p128 = scmp.ne.s32.totalorder %s114, %s115
    %p129 = scmp.eq.s32.totalorder %s18, 1
    %p130 = por %p128, %p129
    %p132 = scmp.ne.s32.totalorder %s115, %s131
    %p133 = scmp.eq.s32.totalorder %s18, 0
    %p134 = por %p132, %p133
    %s135 = ssub.s32 %s12, %s19
    %p136 = scmp.eq.s32.totalorder %s135, 0
    %s138 = sadd.s32 %s137, 1
    %s139 = scalar_select %p136, %s137, %s138
    %p142 = pneg %p136
    %p143 = scmp.eq.s32.totalorder %s12, 1
    %p144 = por %p142, %p143
    %p145 = scmp.ne.s32.totalorder %s137, %s140
    %p146 = scmp.eq.s32.totalorder %s12, 0
    %p147 = por %p145, %p146
    %p148 = scmp.ne.s32.totalorder %s137, %s140
    %p149 = scmp.eq.s32.totalorder %s17, 1
    %p150 = por %p148, %p149
    %p151 = scmp.ne.s32.totalorder %s140, %s141
    %p152 = scmp.eq.s32.totalorder %s17, 0
    %p153 = por %p151, %p152
    %p154 = scmp.ne.s32.totalorder %s140, %s141
    %p155 = scmp.eq.s32.totalorder %s18, 1
    %p156 = por %p154, %p155
    %p158 = scmp.ne.s32.totalorder %s141, %s157
    %p159 = scmp.eq.s32.totalorder %s18, 0
    %p160 = por %p158, %p159
    %p161 = scmp.le.s32.totalorder 1, %s12
    %p162 = scmp.lt.s32.totalorder %s12, 3
    %p163 = pnand %p161, %p162
    %p164 = pneg %p163
    // Predicated region
    $region9: #{convt_block_forward.6} parent=5 // pred_check
      _
    $region10: #{convt_block_forward.6} parent=5 // pred_check_branch
      %166 = sbr.rel (%p163) target = $region12
    $region11: #{convt_block_forward.6} parent=5 // pred_region
      %s167 = ssub.s32 %s12, 1
      // Predicated region
      $region13: #{convt_block_forward.6} parent=11 // pred_check
        %p168 = pneg %p59
      $region14: #{convt_block_forward.6} parent=11 // pred_check_branch
        %170 = sbr.rel (%p168) target = $region16
      $region15: #{convt_block_forward.6} parent=11 // pred_region
        _
      $region16: #{convt_block_forward.6} parent=11 // pred_fallthru
        _
      // Predicated region
      $region17: #{convt_block_forward.6} parent=11 // pred_check
        %p171 = pneg %p80
      $region18: #{convt_block_forward.6} parent=11 // pred_check_branch
        %173 = sbr.rel (%p171) target = $region20
      $region19: #{convt_block_forward.6} parent=11 // pred_region
        _
      $region20: #{convt_block_forward.6} parent=11 // pred_fallthru
        _
      // Predicated region
      $region21: #{convt_block_forward.6} parent=11 // pred_check
        %p174 = pneg %p101
      $region22: #{convt_block_forward.6} parent=11 // pred_check_branch
        %176 = sbr.rel (%p174) target = $region24
      $region23: #{convt_block_forward.6} parent=11 // pred_region
        _
      $region24: #{convt_block_forward.6} parent=11 // pred_fallthru
        _
    $region12: #{convt_block_forward.6} parent=5 // pred_fallthru
      _
    %p177 = scmp.lt.s32.totalorder %s12, 2
    // Predicated region
    $region25: #{convt_block_forward.6} parent=5 // pred_check
      %p178 = pneg %p177
    $region26: #{convt_block_forward.6} parent=5 // pred_check_branch
      %180 = sbr.rel (%p178) target = $region28
    $region27: #{convt_block_forward.6} parent=5 // pred_region
      // Predicated region
      $region29: #{convt_block_forward.6} parent=27 // pred_check
        %p181 = pneg %p32
      $region30: #{convt_block_forward.6} parent=27 // pred_check_branch
        %183 = sbr.rel (%p181) target = $region32
      $region31: #{convt_block_forward.6} parent=27 // pred_region
        %p184 = scmp.lt.s32.totalorder %s12, 1
        %s185 = scalar_select %p184, %s12, 1
        %s186 = smul.addr %s185, 3
        %s187 = smul.addr %s186, 8
        %s188 = scalar_lea.vmem %s0, %s187
      $region32: #{convt_block_forward.6} parent=27 // pred_fallthru
        _
    $region28: #{convt_block_forward.6} parent=5 // pred_fallthru
      _
    %p189 = scmp.le.s32.totalorder 1, %s12
    %p190 = scmp.lt.s32.totalorder %s12, 3
    %p191 = pnand %p189, %p190
    %p192 = pneg %p191
    // Predicated region
    $region33: #{convt_block_forward.6} parent=5 // pred_check
      _
    $region34: #{convt_block_forward.6} parent=5 // pred_check_branch
      %194 = sbr.rel (%p191) target = $region36
    $region35: #{convt_block_forward.6} parent=5 // pred_region
      %s195 = ssub.s32 %s12, 1
      %p196 = scmp.lt.s32.totalorder %s17, 1
      %s197 = scalar_select %p196, %s17, 1
      %s198 = smul.addr %s197, 3
      %s199 = smul.addr %s198, 8
      %s200 = scalar_lea.vmem %s0, %s199
      %p201 = pneg %p38
      %p202 = pneg %p35
      %p203 = pneg %p59
      %p204 = pneg %p56
      %p205 = pneg %p80
      %p206 = pneg %p77
      %p207 = pneg %p101
      %p208 = pneg %p98
      %p209 = pneg %p127
      %p210 = pneg %p124
      %p211 = scmp.lt.s32.totalorder %s17, 1
      %s212 = scalar_select %p211, %s17, 1
      %s213 = smul.addr %s212, 3
      %s214 = smul.addr %s213, 8
      %s215 = scalar_lea.vmem %s4, %s214
      %p216 = pneg %p153
      %p217 = pneg %p150
      %p218 = scmp.lt.s32.totalorder %s17, 1
      %s219 = scalar_select %p218, %s17, 1
      %s220 = smul.addr %s219, 8
      %s221 = scalar_lea.vmem %s5, %s220
      %p222 = scmp.lt.s32.totalorder %s17, 1
      %s223 = scalar_select %p222, %s17, 1
      %s224 = smul.addr %s223, 3
      %s225 = smul.addr %s224, 8
      %s226 = scalar_lea.vmem %s0, %s225
      %p227 = scmp.lt.s32.totalorder %s17, 1
      %s228 = scalar_select %p227, %s17, 1
      %s229 = smul.addr %s228, 3
      %s230 = smul.addr %s229, 8
      %s231 = scalar_lea.vmem %s4, %s230
      %p232 = scmp.lt.s32.totalorder %s17, 1
      %s233 = scalar_select %p232, %s17, 1
      %s234 = smul.addr %s233, 8
      %s235 = scalar_lea.vmem %s5, %s234
      %v236 = vld [vmem:[%s226] sm:$0xff]
      %v237 = vld [vmem:[%s226 + $0x8] sm:$0xff]
      %v238 = vld [vmem:[%s226 + $0x10] sm:$0xff]
      %v239 = vld [vmem:[%s1] sm:$0xff]
      %s240 = scalar_lea.vmem %s1, 8
      %v241 = vld [vmem:[%s240] sm:$0xff]
      %245 = vrot.lane.b32.xlu0 %v236, 127
      %v246 = vpop.permute.xlu0 %245
      %247 = vrot.lane.b32.xlu0 %v237, 127
      %v248 = vpop.permute.xlu0 %247
      %249 = vrot.lane.b32.xlu0 %v238, 127
      %v250 = vpop.permute.xlu0 %249
      %vm251 = vcmask 1039360
      %v252 = vsel %vm251, %v246, %v248
      %v253 = vsel %vm251, %v248, %v250
      %vm257 = vcmask 64512
      %v259 = vsel %vm257, %v241, 0
      %261 = vmatprep.subr.mxu0 %v253
      %262 = vmatpush1.msra.mxu0 %v252
      %263 = vmatprep.subr.mxu0 0.0
      %264 = vmatpush1.msra.mxu0 0.0
      %265 = vmatprep.subr.mxu0 0.0
      %266 = vmatpush1.msra.mxu0 0.0
      %267 = vmatprep.subr.mxu0 0.0
      %268 = vmatpush1.msra.mxu0 0.0
      %269 = vmatprep.subr.mxu0 0.0
      %270 = vmatpush1.msra.mxu0 0.0
      %271 = vmatprep.subr.mxu0 0.0
      %272 = vmatpush1.msra.mxu0 0.0
      %273 = vmatprep.subr.mxu0 0.0
      %274 = vmatpush1.msra.mxu0 0.0
      %275 = vmatprep.subr.mxu0 0.0
      %276 = vmatpush1.msra.mxu0 0.0
      %277 = vmatprep.subr.mxu0 0.0
      %278 = vmatpush1.msra.mxu0 0.0
      %279 = vmatprep.subr.mxu0 0.0
      %280 = vmatpush1.msra.mxu0 0.0
      %281 = vmatprep.subr.mxu0 0.0
      %282 = vmatpush1.msra.mxu0 0.0
      %283 = vmatprep.subr.mxu0 0.0
      %284 = vmatpush1.msra.mxu0 0.0
      %285 = vmatprep.subr.mxu0 0.0
      %286 = vmatpush1.msra.mxu0 0.0
      %287 = vmatprep.subr.mxu0 0.0
      %288 = vmatpush1.msra.mxu0 0.0
      %289 = vmatprep.subr.mxu0 0.0
      %290 = vmatpush1.msra.mxu0 0.0
      %291 = vmatprep.subr.mxu0 0.0
      %292 = vmatpush1.msra.mxu0 0.0
      %293 = vmatprep.subr.mxu0 0.0
      %294 = vmatpush1.msra.mxu0 0.0
      %295 = vmatprep.subr.mxu0 0.0
      %296 = vmatpush1.msra.mxu0 0.0
      %297 = vmatprep.subr.mxu0 0.0
      %298 = vmatpush1.msra.mxu0 0.0
      %299 = vmatprep.subr.mxu0 0.0
      %300 = vmatpush1.msra.mxu0 0.0
      %301 = vmatprep.subr.mxu0 0.0
      %302 = vmatpush1.msra.mxu0 0.0
      %303 = vmatprep.subr.mxu0 0.0
      %304 = vmatpush1.msra.mxu0 0.0
      %305 = vmatprep.subr.mxu0 0.0
      %306 = vmatpush1.msra.mxu0 0.0
      %307 = vmatprep.subr.mxu0 0.0
      %308 = vmatpush1.msra.mxu0 0.0
      %309 = vmatprep.subr.mxu0 0.0
      %310 = vmatpush1.msra.mxu0 0.0
      %311 = vmatprep.subr.mxu0 0.0
      %312 = vmatpush1.msra.mxu0 0.0
      %313 = vmatprep.subr.mxu0 0.0
      %314 = vmatpush1.msra.mxu0 0.0
      %315 = vmatprep.subr.mxu0 0.0
      %316 = vmatpush1.msra.mxu0 0.0
      %317 = vmatprep.subr.mxu0 0.0
      %318 = vmatpush1.msra.mxu0 0.0
      %319 = vmatprep.subr.mxu0 0.0
      %320 = vmatpush1.msra.mxu0 0.0
      %321 = vmatprep.subr.mxu0 0.0
      %322 = vmatpush1.msra.mxu0 0.0
      %323 = vmatprep.subr.mxu0 0.0
      %324 = vmatpush1.msra.mxu0 0.0
      %325 = vmatprep.mubr.f32.mxu0 0.0
      %326 = vmatmul.mubr.f32.gmra.mrb[0].mxu0 %v259
      %v327 = vpop.f32.mrb[0].mxu0
      %v328 = vadd.f32 0.0, %v327
      %v329 = vpop.f32.mrb[0].mxu0
      %v330 = vadd.f32 0.0, %v329
      %331 = vdwg.mxu0
      %332 = vmatprep.subr.mxu0 0.0
      %333 = vmatpush1.msra.mxu0 %v250
      %334 = vmatprep.subr.mxu0 0.0
      %335 = vmatpush1.msra.mxu0 0.0
      %336 = vmatprep.subr.mxu0 0.0
      %337 = vmatpush1.msra.mxu0 0.0
      %338 = vmatprep.subr.mxu0 0.0
      %339 = vmatpush1.msra.mxu0 0.0
      %340 = vmatprep.subr.mxu0 0.0
      %341 = vmatpush1.msra.mxu0 0.0
      %342 = vmatprep.subr.mxu0 0.0
      %343 = vmatpush1.msra.mxu0 0.0
      %344 = vmatprep.subr.mxu0 0.0
      %345 = vmatpush1.msra.mxu0 0.0
      %346 = vmatprep.subr.mxu0 0.0
      %347 = vmatpush1.msra.mxu0 0.0
      %348 = vmatprep.subr.mxu0 0.0
      %349 = vmatpush1.msra.mxu0 0.0
      %350 = vmatprep.subr.mxu0 0.0
      %351 = vmatpush1.msra.mxu0 0.0
      %352 = vmatprep.subr.mxu0 0.0
      %353 = vmatpush1.msra.mxu0 0.0
      %354 = vmatprep.subr.mxu0 0.0
      %355 = vmatpush1.msra.mxu0 0.0
      %356 = vmatprep.subr.mxu0 0.0
      %357 = vmatpush1.msra.mxu0 0.0
      %358 = vmatprep.subr.mxu0 0.0
      %359 = vmatpush1.msra.mxu0 0.0
      %360 = vmatprep.subr.mxu0 0.0
      %361 = vmatpush1.msra.mxu0 0.0
      %362 = vmatprep.subr.mxu0 0.0
      %363 = vmatpush1.msra.mxu0 0.0
      %364 = vmatprep.subr.mxu0 0.0
      %365 = vmatpush1.msra.mxu0 0.0
      %366 = vmatprep.subr.mxu0 0.0
      %367 = vmatpush1.msra.mxu0 0.0
      %368 = vmatprep.subr.mxu0 0.0
      %369 = vmatpush1.msra.mxu0 0.0
      %370 = vmatprep.subr.mxu0 0.0
      %371 = vmatpush1.msra.mxu0 0.0
      %372 = vmatprep.subr.mxu0 0.0
      %373 = vmatpush1.msra.mxu0 0.0
      %374 = vmatprep.subr.mxu0 0.0
      %375 = vmatpush1.msra.mxu0 0.0
      %376 = vmatprep.subr.mxu0 0.0
      %377 = vmatpush1.msra.mxu0 0.0
      %378 = vmatprep.subr.mxu0 0.0
      %379 = vmatpush1.msra.mxu0 0.0
      %380 = vmatprep.subr.mxu0 0.0
      %381 = vmatpush1.msra.mxu0 0.0
      %382 = vmatprep.subr.mxu0 0.0
      %383 = vmatpush1.msra.mxu0 0.0
      %384 = vmatprep.subr.mxu0 0.0
      %385 = vmatpush1.msra.mxu0 0.0
      %386 = vmatprep.subr.mxu0 0.0
      %387 = vmatpush1.msra.mxu0 0.0
      %388 = vmatprep.subr.mxu0 0.0
      %389 = vmatpush1.msra.mxu0 0.0
      %390 = vmatprep.subr.mxu0 0.0
      %391 = vmatpush1.msra.mxu0 0.0
      %392 = vmatprep.subr.mxu0 0.0
      %393 = vmatpush1.msra.mxu0 0.0
      %394 = vmatprep.subr.mxu0 0.0
      %395 = vmatpush1.msra.mxu0 0.0
      %396 = vmatprep.mubr.f32.mxu0 0.0
      %397 = vmatmul.mubr.f32.gmra.mrb[0].mxu0 %v259
      %v398 = vpop.f32.mrb[0].mxu0
      %v399 = vadd.f32 0.0, %v398
      %v400 = vpop.f32.mrb[0].mxu0
      %401 = vdwg.mxu0
      %v403 = vsel %vm257, %v239, 0
      %405 = vmatprep.subr.mxu0 %v237
      %406 = vmatpush1.msra.mxu0 %v236
      %407 = vmatprep.subr.mxu0 0.0
      %408 = vmatpush1.msra.mxu0 0.0
      %409 = vmatprep.subr.mxu0 0.0
      %410 = vmatpush1.msra.mxu0 0.0
      %411 = vmatprep.subr.mxu0 0.0
      %412 = vmatpush1.msra.mxu0 0.0
      %413 = vmatprep.subr.mxu0 0.0
      %414 = vmatpush1.msra.mxu0 0.0
      %415 = vmatprep.subr.mxu0 0.0
      %416 = vmatpush1.msra.mxu0 0.0
      %417 = vmatprep.subr.mxu0 0.0
      %418 = vmatpush1.msra.mxu0 0.0
      %419 = vmatprep.subr.mxu0 0.0
      %420 = vmatpush1.msra.mxu0 0.0
      %421 = vmatprep.subr.mxu0 0.0
      %422 = vmatpush1.msra.mxu0 0.0
      %423 = vmatprep.subr.mxu0 0.0
      %424 = vmatpush1.msra.mxu0 0.0
      %425 = vmatprep.subr.mxu0 0.0
      %426 = vmatpush1.msra.mxu0 0.0
      %427 = vmatprep.subr.mxu0 0.0
      %428 = vmatpush1.msra.mxu0 0.0
      %429 = vmatprep.subr.mxu0 0.0
      %430 = vmatpush1.msra.mxu0 0.0
      %431 = vmatprep.subr.mxu0 0.0
      %432 = vmatpush1.msra.mxu0 0.0
      %433 = vmatprep.subr.mxu0 0.0
      %434 = vmatpush1.msra.mxu0 0.0
      %435 = vmatprep.subr.mxu0 0.0
      %436 = vmatpush1.msra.mxu0 0.0
      %437 = vmatprep.subr.mxu0 0.0
      %438 = vmatpush1.msra.mxu0 0.0
      %439 = vmatprep.subr.mxu0 0.0
      %440 = vmatpush1.msra.mxu0 0.0
      %441 = vmatprep.subr.mxu0 0.0
      %442 = vmatpush1.msra.mxu0 0.0
      %443 = vmatprep.subr.mxu0 0.0
      %444 = vmatpush1.msra.mxu0 0.0
      %445 = vmatprep.subr.mxu0 0.0
      %446 = vmatpush1.msra.mxu0 0.0
      %447 = vmatprep.subr.mxu0 0.0
      %448 = vmatpush1.msra.mxu0 0.0
      %449 = vmatprep.subr.mxu0 0.0
      %450 = vmatpush1.msra.mxu0 0.0
      %451 = vmatprep.subr.mxu0 0.0
      %452 = vmatpush1.msra.mxu0 0.0
      %453 = vmatprep.subr.mxu0 0.0
      %454 = vmatpush1.msra.mxu0 0.0
      %455 = vmatprep.subr.mxu0 0.0
      %456 = vmatpush1.msra.mxu0 0.0
      %457 = vmatprep.subr.mxu0 0.0
      %458 = vmatpush1.msra.mxu0 0.0
      %459 = vmatprep.subr.mxu0 0.0
      %460 = vmatpush1.msra.mxu0 0.0
      %461 = vmatprep.subr.mxu0 0.0
      %462 = vmatpush1.msra.mxu0 0.0
      %463 = vmatprep.subr.mxu0 0.0
      %464 = vmatpush1.msra.mxu0 0.0
      %465 = vmatprep.subr.mxu0 0.0
      %466 = vmatpush1.msra.mxu0 0.0
      %467 = vmatprep.subr.mxu0 0.0
      %468 = vmatpush1.msra.mxu0 0.0
      %469 = vmatprep.mubr.f32.mxu0 0.0
      %470 = vmatmul.mubr.f32.gmra.mrb[0].mxu0 %v403
      %v471 = vpop.f32.mrb[0].mxu0
      %v472 = vadd.f32 %v328, %v471
      %v473 = vpop.f32.mrb[0].mxu0
      %v474 = vadd.f32 %v330, %v473
      %475 = vdwg.mxu0
      %476 = vmatprep.subr.mxu0 0.0
      %477 = vmatpush1.msra.mxu0 %v238
      %478 = vmatprep.subr.mxu0 0.0
      %479 = vmatpush1.msra.mxu0 0.0
      %480 = vmatprep.subr.mxu0 0.0
      %481 = vmatpush1.msra.mxu0 0.0
      %482 = vmatprep.subr.mxu0 0.0
      %483 = vmatpush1.msra.mxu0 0.0
      %484 = vmatprep.subr.mxu0 0.0
      %485 = vmatpush1.msra.mxu0 0.0
      %486 = vmatprep.subr.mxu0 0.0
      %487 = vmatpush1.msra.mxu0 0.0
      %488 = vmatprep.subr.mxu0 0.0
      %489 = vmatpush1.msra.mxu0 0.0
      %490 = vmatprep.subr.mxu0 0.0
      %491 = vmatpush1.msra.mxu0 0.0
      %492 = vmatprep.subr.mxu0 0.0
      %493 = vmatpush1.msra.mxu0 0.0
      %494 = vmatprep.subr.mxu0 0.0
      %495 = vmatpush1.msra.mxu0 0.0
      %496 = vmatprep.subr.mxu0 0.0
      %497 = vmatpush1.msra.mxu0 0.0
      %498 = vmatprep.subr.mxu0 0.0
      %499 = vmatpush1.msra.mxu0 0.0
      %500 = vmatprep.subr.mxu0 0.0
      %501 = vmatpush1.msra.mxu0 0.0
      %502 = vmatprep.subr.mxu0 0.0
      %503 = vmatpush1.msra.mxu0 0.0
      %504 = vmatprep.subr.mxu0 0.0
      %505 = vmatpush1.msra.mxu0 0.0
      %506 = vmatprep.subr.mxu0 0.0
      %507 = vmatpush1.msra.mxu0 0.0
      %508 = vmatprep.subr.mxu0 0.0
      %509 = vmatpush1.msra.mxu0 0.0
      %510 = vmatprep.subr.mxu0 0.0
      %511 = vmatpush1.msra.mxu0 0.0
      %512 = vmatprep.subr.mxu0 0.0
      %513 = vmatpush1.msra.mxu0 0.0
      %514 = vmatprep.subr.mxu0 0.0
      %515 = vmatpush1.msra.mxu0 0.0
      %516 = vmatprep.subr.mxu0 0.0
      %517 = vmatpush1.msra.mxu0 0.0
      %518 = vmatprep.subr.mxu0 0.0
      %519 = vmatpush1.msra.mxu0 0.0
      %520 = vmatprep.subr.mxu0 0.0
      %521 = vmatpush1.msra.mxu0 0.0
      %522 = vmatprep.subr.mxu0 0.0
      %523 = vmatpush1.msra.mxu0 0.0
      %524 = vmatprep.subr.mxu0 0.0
      %525 = vmatpush1.msra.mxu0 0.0
      %526 = vmatprep.subr.mxu0 0.0
      %527 = vmatpush1.msra.mxu0 0.0
      %528 = vmatprep.subr.mxu0 0.0
      %529 = vmatpush1.msra.mxu0 0.0
      %530 = vmatprep.subr.mxu0 0.0
      %531 = vmatpush1.msra.mxu0 0.0
      %532 = vmatprep.subr.mxu0 0.0
      %533 = vmatpush1.msra.mxu0 0.0
      %534 = vmatprep.subr.mxu0 0.0
      %535 = vmatpush1.msra.mxu0 0.0
      %536 = vmatprep.subr.mxu0 0.0
      %537 = vmatpush1.msra.mxu0 0.0
      %538 = vmatprep.subr.mxu0 0.0
      %539 = vmatpush1.msra.mxu0 0.0
      %540 = vmatprep.mubr.f32.mxu0 0.0
      %541 = vmatmul.mubr.f32.gmra.mrb[0].mxu0 %v403
      %v542 = vpop.f32.mrb[0].mxu0
      %v543 = vadd.f32 %v399, %v542
      %v544 = vpop.f32.mrb[0].mxu0
      %545 = vdwg.mxu0
      %s546 = scalar_lea.vmem %s1, 16
      %v547 = vld [vmem:[%s546] sm:$0xff]
      %548 = vrot.lane.b32.xlu0 %v236, 126
      %v549 = vpop.permute.xlu0 %548
      %550 = vrot.lane.b32.xlu0 %v237, 126
      %v551 = vpop.permute.xlu0 %550
      %552 = vrot.lane.b32.xlu0 %v238, 126
      %v553 = vpop.permute.xlu0 %552
      %vm554 = vcmask 1031168
      %v555 = vsel %vm554, %v549, %v551
      %v556 = vsel %vm554, %v551, %v553
      %v561 = vsel %vm257, %v547, 0
      %563 = vmatprep.subr.mxu0 %v556
      %564 = vmatpush1.msra.mxu0 %v555
      %565 = vmatprep.subr.mxu0 0.0
      %566 = vmatpush1.msra.mxu0 0.0
      %567 = vmatprep.subr.mxu0 0.0
      %568 = vmatpush1.msra.mxu0 0.0
      %569 = vmatprep.subr.mxu0 0.0
      %570 = vmatpush1.msra.mxu0 0.0
      %571 = vmatprep.subr.mxu0 0.0
      %572 = vmatpush1.msra.mxu0 0.0
      %573 = vmatprep.subr.mxu0 0.0
      %574 = vmatpush1.msra.mxu0 0.0
      %575 = vmatprep.subr.mxu0 0.0
      %576 = vmatpush1.msra.mxu0 0.0
      %577 = vmatprep.subr.mxu0 0.0
      %578 = vmatpush1.msra.mxu0 0.0
      %579 = vmatprep.subr.mxu0 0.0
      %580 = vmatpush1.msra.mxu0 0.0
      %581 = vmatprep.subr.mxu0 0.0
      %582 = vmatpush1.msra.mxu0 0.0
      %583 = vmatprep.subr.mxu0 0.0
      %584 = vmatpush1.msra.mxu0 0.0
      %585 = vmatprep.subr.mxu0 0.0
      %586 = vmatpush1.msra.mxu0 0.0
      %587 = vmatprep.subr.mxu0 0.0
      %588 = vmatpush1.msra.mxu0 0.0
      %589 = vmatprep.subr.mxu0 0.0
      %590 = vmatpush1.msra.mxu0 0.0
      %591 = vmatprep.subr.mxu0 0.0
      %592 = vmatpush1.msra.mxu0 0.0
      %593 = vmatprep.subr.mxu0 0.0
      %594 = vmatpush1.msra.mxu0 0.0
      %595 = vmatprep.subr.mxu0 0.0
      %596 = vmatpush1.msra.mxu0 0.0
      %597 = vmatprep.subr.mxu0 0.0
      %598 = vmatpush1.msra.mxu0 0.0
      %599 = vmatprep.subr.mxu0 0.0
      %600 = vmatpush1.msra.mxu0 0.0
      %601 = vmatprep.subr.mxu0 0.0
      %602 = vmatpush1.msra.mxu0 0.0
      %603 = vmatprep.subr.mxu0 0.0
      %604 = vmatpush1.msra.mxu0 0.0
      %605 = vmatprep.subr.mxu0 0.0
      %606 = vmatpush1.msra.mxu0 0.0
      %607 = vmatprep.subr.mxu0 0.0
      %608 = vmatpush1.msra.mxu0 0.0
      %609 = vmatprep.subr.mxu0 0.0
      %610 = vmatpush1.msra.mxu0 0.0
      %611 = vmatprep.subr.mxu0 0.0
      %612 = vmatpush1.msra.mxu0 0.0
      %613 = vmatprep.subr.mxu0 0.0
      %614 = vmatpush1.msra.mxu0 0.0
      %615 = vmatprep.subr.mxu0 0.0
      %616 = vmatpush1.msra.mxu0 0.0
      %617 = vmatprep.subr.mxu0 0.0
      %618 = vmatpush1.msra.mxu0 0.0
      %619 = vmatprep.subr.mxu0 0.0
      %620 = vmatpush1.msra.mxu0 0.0
      %621 = vmatprep.subr.mxu0 0.0
      %622 = vmatpush1.msra.mxu0 0.0
      %623 = vmatprep.subr.mxu0 0.0
      %624 = vmatpush1.msra.mxu0 0.0
      %625 = vmatprep.subr.mxu0 0.0
      %626 = vmatpush1.msra.mxu0 0.0
      %627 = vmatprep.mubr.f32.mxu0 0.0
      %628 = vmatmul.mubr.f32.gmra.mrb[0].mxu0 %v561
      %v629 = vpop.f32.mrb[0].mxu0
      %v630 = vadd.f32 0.0, %v629
      %v631 = vpop.f32.mrb[0].mxu0
      %v632 = vadd.f32 0.0, %v631
      %633 = vdwg.mxu0
      %634 = vmatprep.subr.mxu0 0.0
      %635 = vmatpush1.msra.mxu0 %v553
      %636 = vmatprep.subr.mxu0 0.0
      %637 = vmatpush1.msra.mxu0 0.0
      %638 = vmatprep.subr.mxu0 0.0
      %639 = vmatpush1.msra.mxu0 0.0
      %640 = vmatprep.subr.mxu0 0.0
      %641 = vmatpush1.msra.mxu0 0.0
      %642 = vmatprep.subr.mxu0 0.0
      %643 = vmatpush1.msra.mxu0 0.0
      %644 = vmatprep.subr.mxu0 0.0
      %645 = vmatpush1.msra.mxu0 0.0
      %646 = vmatprep.subr.mxu0 0.0
      %647 = vmatpush1.msra.mxu0 0.0
      %648 = vmatprep.subr.mxu0 0.0
      %649 = vmatpush1.msra.mxu0 0.0
      %650 = vmatprep.subr.mxu0 0.0
      %651 = vmatpush1.msra.mxu0 0.0
      %652 = vmatprep.subr.mxu0 0.0
      %653 = vmatpush1.msra.mxu0 0.0
      %654 = vmatprep.subr.mxu0 0.0
      %655 = vmatpush1.msra.mxu0 0.0
      %656 = vmatprep.subr.mxu0 0.0
      %657 = vmatpush1.msra.mxu0 0.0
      %658 = vmatprep.subr.mxu0 0.0
      %659 = vmatpush1.msra.mxu0 0.0
      %660 = vmatprep.subr.mxu0 0.0
      %661 = vmatpush1.msra.mxu0 0.0
      %662 = vmatprep.subr.mxu0 0.0
      %663 = vmatpush1.msra.mxu0 0.0
      %664 = vmatprep.subr.mxu0 0.0
      %665 = vmatpush1.msra.mxu0 0.0
      %666 = vmatprep.subr.mxu0 0.0
      %667 = vmatpush1.msra.mxu0 0.0
      %668 = vmatprep.subr.mxu0 0.0
      %669 = vmatpush1.msra.mxu0 0.0
      %670 = vmatprep.subr.mxu0 0.0
      %671 = vmatpush1.msra.mxu0 0.0
      %672 = vmatprep.subr.mxu0 0.0
      %673 = vmatpush1.msra.mxu0 0.0
      %674 = vmatprep.subr.mxu0 0.0
      %675 = vmatpush1.msra.mxu0 0.0
      %676 = vmatprep.subr.mxu0 0.0
      %677 = vmatpush1.msra.mxu0 0.0
      %678 = vmatprep.subr.mxu0 0.0
      %679 = vmatpush1.msra.mxu0 0.0
      %680 = vmatprep.subr.mxu0 0.0
      %681 = vmatpush1.msra.mxu0 0.0
      %682 = vmatprep.subr.mxu0 0.0
      %683 = vmatpush1.msra.mxu0 0.0
      %684 = vmatprep.subr.mxu0 0.0
      %685 = vmatpush1.msra.mxu0 0.0
      %686 = vmatprep.subr.mxu0 0.0
      %687 = vmatpush1.msra.mxu0 0.0
      %688 = vmatprep.subr.mxu0 0.0
      %689 = vmatpush1.msra.mxu0 0.0
      %690 = vmatprep.subr.mxu0 0.0
      %691 = vmatpush1.msra.mxu0 0.0
      %692 = vmatprep.subr.mxu0 0.0
      %693 = vmatpush1.msra.mxu0 0.0
      %694 = vmatprep.subr.mxu0 0.0
      %695 = vmatpush1.msra.mxu0 0.0
      %696 = vmatprep.subr.mxu0 0.0
      %697 = vmatpush1.msra.mxu0 0.0
      %698 = vmatprep.mubr.f32.mxu0 0.0
      %699 = vmatmul.mubr.f32.gmra.mrb[0].mxu0 %v561
      %v700 = vpop.f32.mrb[0].mxu0
      %v701 = vadd.f32 0.0, %v700
      %v702 = vpop.f32.mrb[0].mxu0
      %703 = vdwg.mxu0
      %v704 = vadd.f32 %v472, %v630
      %v705 = vadd.f32 %v474, %v632
      %v706 = vadd.f32 %v543, %v701
      %s707 = scalar_lea.vmem %s1, 24
      %v708 = vld [vmem:[%s707] sm:$0xff]
      %709 = vrot.lane.b32.xlu0 %v236, 110
      %v710 = vpop.permute.xlu0 %709
      %711 = vrot.lane.b32.xlu0 %v237, 110
      %v712 = vpop.permute.xlu0 %711
      %713 = vrot.lane.b32.xlu0 %v238, 110
      %v714 = vpop.permute.xlu0 %713
      %vm715 = vcmask 900096
      %v716 = vsel %vm715, %v710, %v712
      %v717 = vsel %vm715, %v712, %v714
      %v722 = vsel %vm257, %v708, 0
      %724 = vmatprep.subr.mxu0 %v717
      %725 = vmatpush1.msra.mxu0 %v716
      %726 = vmatprep.subr.mxu0 0.0
      %727 = vmatpush1.msra.mxu0 0.0
      %728 = vmatprep.subr.mxu0 0.0
      %729 = vmatpush1.msra.mxu0 0.0
      %730 = vmatprep.subr.mxu0 0.0
      %731 = vmatpush1.msra.mxu0 0.0
      %732 = vmatprep.subr.mxu0 0.0
      %733 = vmatpush1.msra.mxu0 0.0
      %734 = vmatprep.subr.mxu0 0.0
      %735 = vmatpush1.msra.mxu0 0.0
      %736 = vmatprep.subr.mxu0 0.0
      %737 = vmatpush1.msra.mxu0 0.0
      %738 = vmatprep.subr.mxu0 0.0
      %739 = vmatpush1.msra.mxu0 0.0
      %740 = vmatprep.subr.mxu0 0.0
      %741 = vmatpush1.msra.mxu0 0.0
      %742 = vmatprep.subr.mxu0 0.0
      %743 = vmatpush1.msra.mxu0 0.0
      %744 = vmatprep.subr.mxu0 0.0
      %745 = vmatpush1.msra.mxu0 0.0
      %746 = vmatprep.subr.mxu0 0.0
      %747 = vmatpush1.msra.mxu0 0.0
      %748 = vmatprep.subr.mxu0 0.0
      %749 = vmatpush1.msra.mxu0 0.0
      %750 = vmatprep.subr.mxu0 0.0
      %751 = vmatpush1.msra.mxu0 0.0
      %752 = vmatprep.subr.mxu0 0.0
      %753 = vmatpush1.msra.mxu0 0.0
      %754 = vmatprep.subr.mxu0 0.0
      %755 = vmatpush1.msra.mxu0 0.0
      %756 = vmatprep.subr.mxu0 0.0
      %757 = vmatpush1.msra.mxu0 0.0
      %758 = vmatprep.subr.mxu0 0.0
      %759 = vmatpush1.msra.mxu0 0.0
      %760 = vmatprep.subr.mxu0 0.0
      %761 = vmatpush1.msra.mxu0 0.0
      %762 = vmatprep.subr.mxu0 0.0
      %763 = vmatpush1.msra.mxu0 0.0
      %764 = vmatprep.subr.mxu0 0.0
      %765 = vmatpush1.msra.mxu0 0.0
      %766 = vmatprep.subr.mxu0 0.0
      %767 = vmatpush1.msra.mxu0 0.0
      %768 = vmatprep.subr.mxu0 0.0
      %769 = vmatpush1.msra.mxu0 0.0
      %770 = vmatprep.subr.mxu0 0.0
      %771 = vmatpush1.msra.mxu0 0.0
      %772 = vmatprep.subr.mxu0 0.0
      %773 = vmatpush1.msra.mxu0 0.0
      %774 = vmatprep.subr.mxu0 0.0
      %775 = vmatpush1.msra.mxu0 0.0
      %776 = vmatprep.subr.mxu0 0.0
      %777 = vmatpush1.msra.mxu0 0.0
      %778 = vmatprep.subr.mxu0 0.0
      %779 = vmatpush1.msra.mxu0 0.0
      %780 = vmatprep.subr.mxu0 0.0
      %781 = vmatpush1.msra.mxu0 0.0
      %782 = vmatprep.subr.mxu0 0.0
      %783 = vmatpush1.msra.mxu0 0.0
      %784 = vmatprep.subr.mxu0 0.0
      %785 = vmatpush1.msra.mxu0 0.0
      %786 = vmatprep.subr.mxu0 0.0
      %787 = vmatpush1.msra.mxu0 0.0
      %788 = vmatprep.mubr.f32.mxu0 0.0
      %789 = vmatmul.mubr.f32.gmra.mrb[0].mxu0 %v722
      %v790 = vpop.f32.mrb[0].mxu0
      %v791 = vadd.f32 0.0, %v790
      %v792 = vpop.f32.mrb[0].mxu0
      %v793 = vadd.f32 0.0, %v792
      %794 = vdwg.mxu0
      %795 = vmatprep.subr.mxu0 0.0
      %796 = vmatpush1.msra.mxu0 %v714
      %797 = vmatprep.subr.mxu0 0.0
      %798 = vmatpush1.msra.mxu0 0.0
      %799 = vmatprep.subr.mxu0 0.0
      %800 = vmatpush1.msra.mxu0 0.0
      %801 = vmatprep.subr.mxu0 0.0
      %802 = vmatpush1.msra.mxu0 0.0
      %803 = vmatprep.subr.mxu0 0.0
      %804 = vmatpush1.msra.mxu0 0.0
      %805 = vmatprep.subr.mxu0 0.0
      %806 = vmatpush1.msra.mxu0 0.0
      %807 = vmatprep.subr.mxu0 0.0
      %808 = vmatpush1.msra.mxu0 0.0
      %809 = vmatprep.subr.mxu0 0.0
      %810 = vmatpush1.msra.mxu0 0.0
      %811 = vmatprep.subr.mxu0 0.0
      %812 = vmatpush1.msra.mxu0 0.0
      %813 = vmatprep.subr.mxu0 0.0
      %814 = vmatpush1.msra.mxu0 0.0
      %815 = vmatprep.subr.mxu0 0.0
      %816 = vmatpush1.msra.mxu0 0.0
      %817 = vmatprep.subr.mxu0 0.0
      %818 = vmatpush1.msra.mxu0 0.0
      %819 = vmatprep.subr.mxu0 0.0
      %820 = vmatpush1.msra.mxu0 0.0
      %821 = vmatprep.subr.mxu0 0.0
      %822 = vmatpush1.msra.mxu0 0.0
      %823 = vmatprep.subr.mxu0 0.0
      %824 = vmatpush1.msra.mxu0 0.0
      %825 = vmatprep.subr.mxu0 0.0
      %826 = vmatpush1.msra.mxu0 0.0
      %827 = vmatprep.subr.mxu0 0.0
      %828 = vmatpush1.msra.mxu0 0.0
      %829 = vmatprep.subr.mxu0 0.0
      %830 = vmatpush1.msra.mxu0 0.0
      %831 = vmatprep.subr.mxu0 0.0
      %832 = vmatpush1.msra.mxu0 0.0
      %833 = vmatprep.subr.mxu0 0.0
      %834 = vmatpush1.msra.mxu0 0.0
      %835 = vmatprep.subr.mxu0 0.0
      %836 = vmatpush1.msra.mxu0 0.0
      %837 = vmatprep.subr.mxu0 0.0
      %838 = vmatpush1.msra.mxu0 0.0
      %839 = vmatprep.subr.mxu0 0.0
      %840 = vmatpush1.msra.mxu0 0.0
      %841 = vmatprep.subr.mxu0 0.0
      %842 = vmatpush1.msra.mxu0 0.0
      %843 = vmatprep.subr.mxu0 0.0
      %844 = vmatpush1.msra.mxu0 0.0
      %845 = vmatprep.subr.mxu0 0.0
      %846 = vmatpush1.msra.mxu0 0.0
      %847 = vmatprep.subr.mxu0 0.0
      %848 = vmatpush1.msra.mxu0 0.0
      %849 = vmatprep.subr.mxu0 0.0
      %850 = vmatpush1.msra.mxu0 0.0
      %851 = vmatprep.subr.mxu0 0.0
      %852 = vmatpush1.msra.mxu0 0.0
      %853 = vmatprep.subr.mxu0 0.0
      %854 = vmatpush1.msra.mxu0 0.0
      %855 = vmatprep.subr.mxu0 0.0
      %856 = vmatpush1.msra.mxu0 0.0
      %857 = vmatprep.subr.mxu0 0.0
      %858 = vmatpush1.msra.mxu0 0.0
      %859 = vmatprep.mubr.f32.mxu0 0.0
      %860 = vmatmul.mubr.f32.gmra.mrb[0].mxu0 %v722
      %v861 = vpop.f32.mrb[0].mxu0
      %v862 = vadd.f32 0.0, %v861
      %v863 = vpop.f32.mrb[0].mxu0
      %864 = vdwg.mxu0
      %v865 = vadd.f32 %v704, %v791
      %v866 = vadd.f32 %v705, %v793
      %v867 = vadd.f32 %v706, %v862
      %s868 = scalar_lea.vmem %s1, 32
      %v869 = vld [vmem:[%s868] sm:$0xff]
      %870 = vrot.lane.b32.xlu0 %v236, 109
      %v871 = vpop.permute.xlu0 %870
      %872 = vrot.lane.b32.xlu0 %v237, 109
      %v873 = vpop.permute.xlu0 %872
      %874 = vrot.lane.b32.xlu0 %v238, 109
      %v875 = vpop.permute.xlu0 %874
      %vm876 = vcmask 891904
      %v877 = vsel %vm876, %v871, %v873
      %v878 = vsel %vm876, %v873, %v875
      %v883 = vsel %vm257, %v869, 0
      %885 = vmatprep.subr.mxu0 %v878
      %886 = vmatpush1.msra.mxu0 %v877
      %887 = vmatprep.subr.mxu0 0.0
      %888 = vmatpush1.msra.mxu0 0.0
      %889 = vmatprep.subr.mxu0 0.0
      %890 = vmatpush1.msra.mxu0 0.0
      %891 = vmatprep.subr.mxu0 0.0
      %892 = vmatpush1.msra.mxu0 0.0
      %893 = vmatprep.subr.mxu0 0.0
      %894 = vmatpush1.msra.mxu0 0.0
      %895 = vmatprep.subr.mxu0 0.0
      %896 = vmatpush1.msra.mxu0 0.0
      %897 = vmatprep.subr.mxu0 0.0
      %898 = vmatpush1.msra.mxu0 0.0
      %899 = vmatprep.subr.mxu0 0.0
      %900 = vmatpush1.msra.mxu0 0.0
      %901 = vmatprep.subr.mxu0 0.0
      %902 = vmatpush1.msra.mxu0 0.0
      %903 = vmatprep.subr.mxu0 0.0
      %904 = vmatpush1.msra.mxu0 0.0
      %905 = vmatprep.subr.mxu0 0.0
      %906 = vmatpush1.msra.mxu0 0.0
      %907 = vmatprep.subr.mxu0 0.0
      %908 = vmatpush1.msra.mxu0 0.0
      %909 = vmatprep.subr.mxu0 0.0
      %910 = vmatpush1.msra.mxu0 0.0
      %911 = vmatprep.subr.mxu0 0.0
      %912 = vmatpush1.msra.mxu0 0.0
      %913 = vmatprep.subr.mxu0 0.0
      %914 = vmatpush1.msra.mxu0 0.0
      %915 = vmatprep.subr.mxu0 0.0
      %916 = vmatpush1.msra.mxu0 0.0
      %917 = vmatprep.subr.mxu0 0.0
      %918 = vmatpush1.msra.mxu0 0.0
      %919 = vmatprep.subr.mxu0 0.0
      %920 = vmatpush1.msra.mxu0 0.0
      %921 = vmatprep.subr.mxu0 0.0
      %922 = vmatpush1.msra.mxu0 0.0
      %923 = vmatprep.subr.mxu0 0.0
      %924 = vmatpush1.msra.mxu0 0.0
      %925 = vmatprep.subr.mxu0 0.0
      %926 = vmatpush1.msra.mxu0 0.0
      %927 = vmatprep.subr.mxu0 0.0
      %928 = vmatpush1.msra.mxu0 0.0
      %929 = vmatprep.subr.mxu0 0.0
      %930 = vmatpush1.msra.mxu0 0.0
      %931 = vmatprep.subr.mxu0 0.0
      %932 = vmatpush1.msra.mxu0 0.0
      %933 = vmatprep.subr.mxu0 0.0
      %934 = vmatpush1.msra.mxu0 0.0
      %935 = vmatprep.subr.mxu0 0.0
      %936 = vmatpush1.msra.mxu0 0.0
      %937 = vmatprep.subr.mxu0 0.0
      %938 = vmatpush1.msra.mxu0 0.0
      %939 = vmatprep.subr.mxu0 0.0
      %940 = vmatpush1.msra.mxu0 0.0
      %941 = vmatprep.subr.mxu0 0.0
      %942 = vmatpush1.msra.mxu0 0.0
      %943 = vmatprep.subr.mxu0 0.0
      %944 = vmatpush1.msra.mxu0 0.0
      %945 = vmatprep.subr.mxu0 0.0
      %946 = vmatpush1.msra.mxu0 0.0
      %947 = vmatprep.subr.mxu0 0.0
      %948 = vmatpush1.msra.mxu0 0.0
      %949 = vmatprep.mubr.f32.mxu0 0.0
      %950 = vmatmul.mubr.f32.gmra.mrb[0].mxu0 %v883
      %v951 = vpop.f32.mrb[0].mxu0
      %v952 = vadd.f32 0.0, %v951
      %v953 = vpop.f32.mrb[0].mxu0
      %v954 = vadd.f32 0.0, %v953
      %955 = vdwg.mxu0
      %956 = vmatprep.subr.mxu0 0.0
      %957 = vmatpush1.msra.mxu0 %v875
      %958 = vmatprep.subr.mxu0 0.0
      %959 = vmatpush1.msra.mxu0 0.0
      %960 = vmatprep.subr.mxu0 0.0
      %961 = vmatpush1.msra.mxu0 0.0
      %962 = vmatprep.subr.mxu0 0.0
      %963 = vmatpush1.msra.mxu0 0.0
      %964 = vmatprep.subr.mxu0 0.0
      %965 = vmatpush1.msra.mxu0 0.0
      %966 = vmatprep.subr.mxu0 0.0
      %967 = vmatpush1.msra.mxu0 0.0
      %968 = vmatprep.subr.mxu0 0.0
      %969 = vmatpush1.msra.mxu0 0.0
      %970 = vmatprep.subr.mxu0 0.0
      %971 = vmatpush1.msra.mxu0 0.0
      %972 = vmatprep.subr.mxu0 0.0
      %973 = vmatpush1.msra.mxu0 0.0
      %974 = vmatprep.subr.mxu0 0.0
      %975 = vmatpush1.msra.mxu0 0.0
      %976 = vmatprep.subr.mxu0 0.0
      %977 = vmatpush1.msra.mxu0 0.0
      %978 = vmatprep.subr.mxu0 0.0
      %979 = vmatpush1.msra.mxu0 0.0
      %980 = vmatprep.subr.mxu0 0.0
      %981 = vmatpush1.msra.mxu0 0.0
      %982 = vmatprep.subr.mxu0 0.0
      %983 = vmatpush1.msra.mxu0 0.0
      %984 = vmatprep.subr.mxu0 0.0
      %985 = vmatpush1.msra.mxu0 0.0
      %986 = vmatprep.subr.mxu0 0.0
      %987 = vmatpush1.msra.mxu0 0.0
      %988 = vmatprep.subr.mxu0 0.0
      %989 = vmatpush1.msra.mxu0 0.0
      %990 = vmatprep.subr.mxu0 0.0
      %991 = vmatpush1.msra.mxu0 0.0
      %992 = vmatprep.subr.mxu0 0.0
      %993 = vmatpush1.msra.mxu0 0.0
      %994 = vmatprep.subr.mxu0 0.0
      %995 = vmatpush1.msra.mxu0 0.0
      %996 = vmatprep.subr.mxu0 0.0
      %997 = vmatpush1.msra.mxu0 0.0
      %998 = vmatprep.subr.mxu0 0.0
      %999 = vmatpush1.msra.mxu0 0.0
      %1000 = vmatprep.subr.mxu0 0.0
      %1001 = vmatpush1.msra.mxu0 0.0
      %1002 = vmatprep.subr.mxu0 0.0
      %1003 = vmatpush1.msra.mxu0 0.0
      %1004 = vmatprep.subr.mxu0 0.0
      %1005 = vmatpush1.msra.mxu0 0.0
      %1006 = vmatprep.subr.mxu0 0.0
      %1007 = vmatpush1.msra.mxu0 0.0
      %1008 = vmatprep.subr.mxu0 0.0
      %1009 = vmatpush1.msra.mxu0 0.0
      %1010 = vmatprep.subr.mxu0 0.0
      %1011 = vmatpush1.msra.mxu0 0.0
      %1012 = vmatprep.subr.mxu0 0.0
      %1013 = vmatpush1.msra.mxu0 0.0
      %1014 = vmatprep.subr.mxu0 0.0
      %1015 = vmatpush1.msra.mxu0 0.0
      %1016 = vmatprep.subr.mxu0 0.0
      %1017 = vmatpush1.msra.mxu0 0.0
      %1018 = vmatprep.subr.mxu0 0.0
      %1019 = vmatpush1.msra.mxu0 0.0
      %1020 = vmatprep.mubr.f32.mxu0 0.0
      %1021 = vmatmul.mubr.f32.gmra.mrb[0].mxu0 %v883
      %v1022 = vpop.f32.mrb[0].mxu0
      %v1023 = vadd.f32 0.0, %v1022
      %v1024 = vpop.f32.mrb[0].mxu0
      %1025 = vdwg.mxu0
      %v1026 = vadd.f32 %v865, %v952
      %v1027 = vadd.f32 %v866, %v954
      %v1028 = vadd.f32 %v867, %v1023
      %s1029 = scalar_lea.vmem %s1, 40
      %v1030 = vld [vmem:[%s1029] sm:$0xff]
      %1031 = vrot.lane.b32.xlu0 %v236, 108
      %v1032 = vpop.permute.xlu0 %1031
      %1033 = vrot.lane.b32.xlu0 %v237, 108
      %v1034 = vpop.permute.xlu0 %1033
      %1035 = vrot.lane.b32.xlu0 %v238, 108
      %v1036 = vpop.permute.xlu0 %1035
      %vm1037 = vcmask 883712
      %v1038 = vsel %vm1037, %v1032, %v1034
      %v1039 = vsel %vm1037, %v1034, %v1036
      %v1044 = vsel %vm257, %v1030, 0
      %1046 = vmatprep.subr.mxu0 %v1039
      %1047 = vmatpush1.msra.mxu0 %v1038
      %1048 = vmatprep.subr.mxu0 0.0
      %1049 = vmatpush1.msra.mxu0 0.0
      %1050 = vmatprep.subr.mxu0 0.0
      %1051 = vmatpush1.msra.mxu0 0.0
      %1052 = vmatprep.subr.mxu0 0.0
      %1053 = vmatpush1.msra.mxu0 0.0
      %1054 = vmatprep.subr.mxu0 0.0
      %1055 = vmatpush1.msra.mxu0 0.0
      %1056 = vmatprep.subr.mxu0 0.0
      %1057 = vmatpush1.msra.mxu0 0.0
      %1058 = vmatprep.subr.mxu0 0.0
      %1059 = vmatpush1.msra.mxu0 0.0
      %1060 = vmatprep.subr.mxu0 0.0
      %1061 = vmatpush1.msra.mxu0 0.0
      %1062 = vmatprep.subr.mxu0 0.0
      %1063 = vmatpush1.msra.mxu0 0.0
      %1064 = vmatprep.subr.mxu0 0.0
      %1065 = vmatpush1.msra.mxu0 0.0
      %1066 = vmatprep.subr.mxu0 0.0
      %1067 = vmatpush1.msra.mxu0 0.0
      %1068 = vmatprep.subr.mxu0 0.0
      %1069 = vmatpush1.msra.mxu0 0.0
      %1070 = vmatprep.subr.mxu0 0.0
      %1071 = vmatpush1.msra.mxu0 0.0
      %1072 = vmatprep.subr.mxu0 0.0
      %1073 = vmatpush1.msra.mxu0 0.0
      %1074 = vmatprep.subr.mxu0 0.0
      %1075 = vmatpush1.msra.mxu0 0.0
      %1076 = vmatprep.subr.mxu0 0.0
      %1077 = vmatpush1.msra.mxu0 0.0
      %1078 = vmatprep.subr.mxu0 0.0
      %1079 = vmatpush1.msra.mxu0 0.0
      %1080 = vmatprep.subr.mxu0 0.0
      %1081 = vmatpush1.msra.mxu0 0.0
      %1082 = vmatprep.subr.mxu0 0.0
      %1083 = vmatpush1.msra.mxu0 0.0
      %1084 = vmatprep.subr.mxu0 0.0
      %1085 = vmatpush1.msra.mxu0 0.0
      %1086 = vmatprep.subr.mxu0 0.0
      %1087 = vmatpush1.msra.mxu0 0.0
      %1088 = vmatprep.subr.mxu0 0.0
      %1089 = vmatpush1.msra.mxu0 0.0
      %1090 = vmatprep.subr.mxu0 0.0
      %1091 = vmatpush1.msra.mxu0 0.0
      %1092 = vmatprep.subr.mxu0 0.0
      %1093 = vmatpush1.msra.mxu0 0.0
      %1094 = vmatprep.subr.mxu0 0.0
      %1095 = vmatpush1.msra.mxu0 0.0
      %1096 = vmatprep.subr.mxu0 0.0
      %1097 = vmatpush1.msra.mxu0 0.0
      %1098 = vmatprep.subr.mxu0 0.0
      %1099 = vmatpush1.msra.mxu0 0.0
      %1100 = vmatprep.subr.mxu0 0.0
      %1101 = vmatpush1.msra.mxu0 0.0
      %1102 = vmatprep.subr.mxu0 0.0
      %1103 = vmatpush1.msra.mxu0 0.0
      %1104 = vmatprep.subr.mxu0 0.0
      %1105 = vmatpush1.msra.mxu0 0.0
      %1106 = vmatprep.subr.mxu0 0.0
      %1107 = vmatpush1.msra.mxu0 0.0
      %1108 = vmatprep.subr.mxu0 0.0
      %1109 = vmatpush1.msra.mxu0 0.0
      %1110 = vmatprep.mubr.f32.mxu0 0.0
      %1111 = vmatmul.mubr.f32.gmra.mrb[0].mxu0 %v1044
      %v1112 = vpop.f32.mrb[0].mxu0
      %v1113 = vadd.f32 0.0, %v1112
      %v1114 = vpop.f32.mrb[0].mxu0
      %v1115 = vadd.f32 0.0, %v1114
      %1116 = vdwg.mxu0
      %1117 = vmatprep.subr.mxu0 0.0
      %1118 = vmatpush1.msra.mxu0 %v1036
      %1119 = vmatprep.subr.mxu0 0.0
      %1120 = vmatpush1.msra.mxu0 0.0
      %1121 = vmatprep.subr.mxu0 0.0
      %1122 = vmatpush1.msra.mxu0 0.0
      %1123 = vmatprep.subr.mxu0 0.0
      %1124 = vmatpush1.msra.mxu0 0.0
      %1125 = vmatprep.subr.mxu0 0.0
      %1126 = vmatpush1.msra.mxu0 0.0
      %1127 = vmatprep.subr.mxu0 0.0
      %1128 = vmatpush1.msra.mxu0 0.0
      %1129 = vmatprep.subr.mxu0 0.0
      %1130 = vmatpush1.msra.mxu0 0.0
      %1131 = vmatprep.subr.mxu0 0.0
      %1132 = vmatpush1.msra.mxu0 0.0
      %1133 = vmatprep.subr.mxu0 0.0
      %1134 = vmatpush1.msra.mxu0 0.0
      %1135 = vmatprep.subr.mxu0 0.0
      %1136 = vmatpush1.msra.mxu0 0.0
      %1137 = vmatprep.subr.mxu0 0.0
      %1138 = vmatpush1.msra.mxu0 0.0
      %1139 = vmatprep.subr.mxu0 0.0
      %1140 = vmatpush1.msra.mxu0 0.0
      %1141 = vmatprep.subr.mxu0 0.0
      %1142 = vmatpush1.msra.mxu0 0.0
      %1143 = vmatprep.subr.mxu0 0.0
      %1144 = vmatpush1.msra.mxu0 0.0
      %1145 = vmatprep.subr.mxu0 0.0
      %1146 = vmatpush1.msra.mxu0 0.0
      %1147 = vmatprep.subr.mxu0 0.0
      %1148 = vmatpush1.msra.mxu0 0.0
      %1149 = vmatprep.subr.mxu0 0.0
      %1150 = vmatpush1.msra.mxu0 0.0
      %1151 = vmatprep.subr.mxu0 0.0
      %1152 = vmatpush1.msra.mxu0 0.0
      %1153 = vmatprep.subr.mxu0 0.0
      %1154 = vmatpush1.msra.mxu0 0.0
      %1155 = vmatprep.subr.mxu0 0.0
      %1156 = vmatpush1.msra.mxu0 0.0
      %1157 = vmatprep.subr.mxu0 0.0
      %1158 = vmatpush1.msra.mxu0 0.0
      %1159 = vmatprep.subr.mxu0 0.0
      %1160 = vmatpush1.msra.mxu0 0.0
      %1161 = vmatprep.subr.mxu0 0.0
      %1162 = vmatpush1.msra.mxu0 0.0
      %1163 = vmatprep.subr.mxu0 0.0
      %1164 = vmatpush1.msra.mxu0 0.0
      %1165 = vmatprep.subr.mxu0 0.0
      %1166 = vmatpush1.msra.mxu0 0.0
      %1167 = vmatprep.subr.mxu0 0.0
      %1168 = vmatpush1.msra.mxu0 0.0
      %1169 = vmatprep.subr.mxu0 0.0
      %1170 = vmatpush1.msra.mxu0 0.0
      %1171 = vmatprep.subr.mxu0 0.0
      %1172 = vmatpush1.msra.mxu0 0.0
      %1173 = vmatprep.subr.mxu0 0.0
      %1174 = vmatpush1.msra.mxu0 0.0
      %1175 = vmatprep.subr.mxu0 0.0
      %1176 = vmatpush1.msra.mxu0 0.0
      %1177 = vmatprep.subr.mxu0 0.0
      %1178 = vmatpush1.msra.mxu0 0.0
      %1179 = vmatprep.subr.mxu0 0.0
      %1180 = vmatpush1.msra.mxu0 0.0
      %1181 = vmatprep.mubr.f32.mxu0 0.0
      %1182 = vmatmul.mubr.f32.gmra.mrb[0].mxu0 %v1044
      %v1183 = vpop.f32.mrb[0].mxu0
      %v1184 = vadd.f32 0.0, %v1183
      %v1185 = vpop.f32.mrb[0].mxu0
      %1186 = vdwg.mxu0
      %v1187 = vadd.f32 %v1026, %v1113
      %v1188 = vadd.f32 %v1027, %v1115
      %v1189 = vadd.f32 %v1028, %v1184
      %s1190 = scalar_lea.vmem %s1, 48
      %v1191 = vld [vmem:[%s1190] sm:$0xff]
      %1192 = vrot.lane.b32.xlu0 %v236, 92
      %v1193 = vpop.permute.xlu0 %1192
      %1194 = vrot.lane.b32.xlu0 %v237, 92
      %v1195 = vpop.permute.xlu0 %1194
      %1196 = vrot.lane.b32.xlu0 %v238, 92
      %v1197 = vpop.permute.xlu0 %1196
      %vm1198 = vcmask 752640
      %v1199 = vsel %vm1198, %v1193, %v1195
      %v1200 = vsel %vm1198, %v1195, %v1197
      %v1205 = vsel %vm257, %v1191, 0
      %1207 = vmatprep.subr.mxu0 %v1200
      %1208 = vmatpush1.msra.mxu0 %v1199
      %1209 = vmatprep.subr.mxu0 0.0
      %1210 = vmatpush1.msra.mxu0 0.0
      %1211 = vmatprep.subr.mxu0 0.0
      %1212 = vmatpush1.msra.mxu0 0.0
      %1213 = vmatprep.subr.mxu0 0.0
      %1214 = vmatpush1.msra.mxu0 0.0
      %1215 = vmatprep.subr.mxu0 0.0
      %1216 = vmatpush1.msra.mxu0 0.0
      %1217 = vmatprep.subr.mxu0 0.0
      %1218 = vmatpush1.msra.mxu0 0.0
      %1219 = vmatprep.subr.mxu0 0.0
      %1220 = vmatpush1.msra.mxu0 0.0
      %1221 = vmatprep.subr.mxu0 0.0
      %1222 = vmatpush1.msra.mxu0 0.0
      %1223 = vmatprep.subr.mxu0 0.0
      %1224 = vmatpush1.msra.mxu0 0.0
      %1225 = vmatprep.subr.mxu0 0.0
      %1226 = vmatpush1.msra.mxu0 0.0
      %1227 = vmatprep.subr.mxu0 0.0
      %1228 = vmatpush1.msra.mxu0 0.0
      %1229 = vmatprep.subr.mxu0 0.0
      %1230 = vmatpush1.msra.mxu0 0.0
      %1231 = vmatprep.subr.mxu0 0.0
      %1232 = vmatpush1.msra.mxu0 0.0
      %1233 = vmatprep.subr.mxu0 0.0
      %1234 = vmatpush1.msra.mxu0 0.0
      %1235 = vmatprep.subr.mxu0 0.0
      %1236 = vmatpush1.msra.mxu0 0.0
      %1237 = vmatprep.subr.mxu0 0.0
      %1238 = vmatpush1.msra.mxu0 0.0
      %1239 = vmatprep.subr.mxu0 0.0
      %1240 = vmatpush1.msra.mxu0 0.0
      %1241 = vmatprep.subr.mxu0 0.0
      %1242 = vmatpush1.msra.mxu0 0.0
      %1243 = vmatprep.subr.mxu0 0.0
      %1244 = vmatpush1.msra.mxu0 0.0
      %1245 = vmatprep.subr.mxu0 0.0
      %1246 = vmatpush1.msra.mxu0 0.0
      %1247 = vmatprep.subr.mxu0 0.0
      %1248 = vmatpush1.msra.mxu0 0.0
      %1249 = vmatprep.subr.mxu0 0.0
      %1250 = vmatpush1.msra.mxu0 0.0
      %1251 = vmatprep.subr.mxu0 0.0
      %1252 = vmatpush1.msra.mxu0 0.0
      %1253 = vmatprep.subr.mxu0 0.0
      %1254 = vmatpush1.msra.mxu0 0.0
      %1255 = vmatprep.subr.mxu0 0.0
      %1256 = vmatpush1.msra.mxu0 0.0
      %1257 = vmatprep.subr.mxu0 0.0
      %1258 = vmatpush1.msra.mxu0 0.0
      %1259 = vmatprep.subr.mxu0 0.0
      %1260 = vmatpush1.msra.mxu0 0.0
      %1261 = vmatprep.subr.mxu0 0.0
      %1262 = vmatpush1.msra.mxu0 0.0
      %1263 = vmatprep.subr.mxu0 0.0
      %1264 = vmatpush1.msra.mxu0 0.0
      %1265 = vmatprep.subr.mxu0 0.0
      %1266 = vmatpush1.msra.mxu0 0.0
      %1267 = vmatprep.subr.mxu0 0.0
      %1268 = vmatpush1.msra.mxu0 0.0
      %1269 = vmatprep.subr.mxu0 0.0
      %1270 = vmatpush1.msra.mxu0 0.0
      %1271 = vmatprep.mubr.f32.mxu0 0.0
      %1272 = vmatmul.mubr.f32.gmra.mrb[0].mxu0 %v1205
      %v1273 = vpop.f32.mrb[0].mxu0
      %v1274 = vadd.f32 0.0, %v1273
      %v1275 = vpop.f32.mrb[0].mxu0
      %v1276 = vadd.f32 0.0, %v1275
      %1277 = vdwg.mxu0
      %1278 = vmatprep.subr.mxu0 0.0
      %1279 = vmatpush1.msra.mxu0 %v1197
      %1280 = vmatprep.subr.mxu0 0.0
      %1281 = vmatpush1.msra.mxu0 0.0
      %1282 = vmatprep.subr.mxu0 0.0
      %1283 = vmatpush1.msra.mxu0 0.0
      %1284 = vmatprep.subr.mxu0 0.0
      %1285 = vmatpush1.msra.mxu0 0.0
      %1286 = vmatprep.subr.mxu0 0.0
      %1287 = vmatpush1.msra.mxu0 0.0
      %1288 = vmatprep.subr.mxu0 0.0
      %1289 = vmatpush1.msra.mxu0 0.0
      %1290 = vmatprep.subr.mxu0 0.0
      %1291 = vmatpush1.msra.mxu0 0.0
      %1292 = vmatprep.subr.mxu0 0.0
      %1293 = vmatpush1.msra.mxu0 0.0
      %1294 = vmatprep.subr.mxu0 0.0
      %1295 = vmatpush1.msra.mxu0 0.0
      %1296 = vmatprep.subr.mxu0 0.0
      %1297 = vmatpush1.msra.mxu0 0.0
      %1298 = vmatprep.subr.mxu0 0.0
      %1299 = vmatpush1.msra.mxu0 0.0
      %1300 = vmatprep.subr.mxu0 0.0
      %1301 = vmatpush1.msra.mxu0 0.0
      %1302 = vmatprep.subr.mxu0 0.0
      %1303 = vmatpush1.msra.mxu0 0.0
      %1304 = vmatprep.subr.mxu0 0.0
      %1305 = vmatpush1.msra.mxu0 0.0
      %1306 = vmatprep.subr.mxu0 0.0
      %1307 = vmatpush1.msra.mxu0 0.0
      %1308 = vmatprep.subr.mxu0 0.0
      %1309 = vmatpush1.msra.mxu0 0.0
      %1310 = vmatprep.subr.mxu0 0.0
      %1311 = vmatpush1.msra.mxu0 0.0
      %1312 = vmatprep.subr.mxu0 0.0
      %1313 = vmatpush1.msra.mxu0 0.0
      %1314 = vmatprep.subr.mxu0 0.0
      %1315 = vmatpush1.msra.mxu0 0.0
      %1316 = vmatprep.subr.mxu0 0.0
      %1317 = vmatpush1.msra.mxu0 0.0
      %1318 = vmatprep.subr.mxu0 0.0
      %1319 = vmatpush1.msra.mxu0 0.0
      %1320 = vmatprep.subr.mxu0 0.0
      %1321 = vmatpush1.msra.mxu0 0.0
      %1322 = vmatprep.subr.mxu0 0.0
      %1323 = vmatpush1.msra.mxu0 0.0
      %1324 = vmatprep.subr.mxu0 0.0
      %1325 = vmatpush1.msra.mxu0 0.0
      %1326 = vmatprep.subr.mxu0 0.0
      %1327 = vmatpush1.msra.mxu0 0.0
      %1328 = vmatprep.subr.mxu0 0.0
      %1329 = vmatpush1.msra.mxu0 0.0
      %1330 = vmatprep.subr.mxu0 0.0
      %1331 = vmatpush1.msra.mxu0 0.0
      %1332 = vmatprep.subr.mxu0 0.0
      %1333 = vmatpush1.msra.mxu0 0.0
      %1334 = vmatprep.subr.mxu0 0.0
      %1335 = vmatpush1.msra.mxu0 0.0
      %1336 = vmatprep.subr.mxu0 0.0
      %1337 = vmatpush1.msra.mxu0 0.0
      %1338 = vmatprep.subr.mxu0 0.0
      %1339 = vmatpush1.msra.mxu0 0.0
      %1340 = vmatprep.subr.mxu0 0.0
      %1341 = vmatpush1.msra.mxu0 0.0
      %1342 = vmatprep.mubr.f32.mxu0 0.0
      %1343 = vmatmul.mubr.f32.gmra.mrb[0].mxu0 %v1205
      %v1344 = vpop.f32.mrb[0].mxu0
      %v1345 = vadd.f32 0.0, %v1344
      %v1346 = vpop.f32.mrb[0].mxu0
      %1347 = vdwg.mxu0
      %v1348 = vadd.f32 %v1187, %v1274
      %v1349 = vadd.f32 %v1188, %v1276
      %v1350 = vadd.f32 %v1189, %v1345
      %s1351 = scalar_lea.vmem %s1, 56
      %v1352 = vld [vmem:[%s1351] sm:$0xff]
      %1353 = vrot.lane.b32.xlu0 %v236, 91
      %v1354 = vpop.permute.xlu0 %1353
      %1355 = vrot.lane.b32.xlu0 %v237, 91
      %v1356 = vpop.permute.xlu0 %1355
      %1357 = vrot.lane.b32.xlu0 %v238, 91
      %v1358 = vpop.permute.xlu0 %1357
      %vm1359 = vcmask 744448
      %v1360 = vsel %vm1359, %v1354, %v1356
      %v1361 = vsel %vm1359, %v1356, %v1358
      %v1366 = vsel %vm257, %v1352, 0
      %1368 = vmatprep.subr.mxu0 %v1361
      %1369 = vmatpush1.msra.mxu0 %v1360
      %1370 = vmatprep.subr.mxu0 0.0
      %1371 = vmatpush1.msra.mxu0 0.0
      %1372 = vmatprep.subr.mxu0 0.0
      %1373 = vmatpush1.msra.mxu0 0.0
      %1374 = vmatprep.subr.mxu0 0.0
      %1375 = vmatpush1.msra.mxu0 0.0
      %1376 = vmatprep.subr.mxu0 0.0
      %1377 = vmatpush1.msra.mxu0 0.0
      %1378 = vmatprep.subr.mxu0 0.0
      %1379 = vmatpush1.msra.mxu0 0.0
      %1380 = vmatprep.subr.mxu0 0.0
      %1381 = vmatpush1.msra.mxu0 0.0
      %1382 = vmatprep.subr.mxu0 0.0
      %1383 = vmatpush1.msra.mxu0 0.0
      %1384 = vmatprep.subr.mxu0 0.0
      %1385 = vmatpush1.msra.mxu0 0.0
      %1386 = vmatprep.subr.mxu0 0.0
      %1387 = vmatpush1.msra.mxu0 0.0
      %1388 = vmatprep.subr.mxu0 0.0
      %1389 = vmatpush1.msra.mxu0 0.0
      %1390 = vmatprep.subr.mxu0 0.0
      %1391 = vmatpush1.msra.mxu0 0.0
      %1392 = vmatprep.subr.mxu0 0.0
      %1393 = vmatpush1.msra.mxu0 0.0
      %1394 = vmatprep.subr.mxu0 0.0
      %1395 = vmatpush1.msra.mxu0 0.0
      %1396 = vmatprep.subr.mxu0 0.0
      %1397 = vmatpush1.msra.mxu0 0.0
      %1398 = vmatprep.subr.mxu0 0.0
      %1399 = vmatpush1.msra.mxu0 0.0
      %1400 = vmatprep.subr.mxu0 0.0
      %1401 = vmatpush1.msra.mxu0 0.0
      %1402 = vmatprep.subr.mxu0 0.0
      %1403 = vmatpush1.msra.mxu0 0.0
      %1404 = vmatprep.subr.mxu0 0.0
      %1405 = vmatpush1.msra.mxu0 0.0
      %1406 = vmatprep.subr.mxu0 0.0
      %1407 = vmatpush1.msra.mxu0 0.0
      %1408 = vmatprep.subr.mxu0 0.0
      %1409 = vmatpush1.msra.mxu0 0.0
      %1410 = vmatprep.subr.mxu0 0.0
      %1411 = vmatpush1.msra.mxu0 0.0
      %1412 = vmatprep.subr.mxu0 0.0
      %1413 = vmatpush1.msra.mxu0 0.0
      %1414 = vmatprep.subr.mxu0 0.0
      %1415 = vmatpush1.msra.mxu0 0.0
      %1416 = vmatprep.subr.mxu0 0.0
      %1417 = vmatpush1.msra.mxu0 0.0
      %1418 = vmatprep.subr.mxu0 0.0
      %1419 = vmatpush1.msra.mxu0 0.0
      %1420 = vmatprep.subr.mxu0 0.0
      %1421 = vmatpush1.msra.mxu0 0.0
      %1422 = vmatprep.subr.mxu0 0.0
      %1423 = vmatpush1.msra.mxu0 0.0
      %1424 = vmatprep.subr.mxu0 0.0
      %1425 = vmatpush1.msra.mxu0 0.0
      %1426 = vmatprep.subr.mxu0 0.0
      %1427 = vmatpush1.msra.mxu0 0.0
      %1428 = vmatprep.subr.mxu0 0.0
      %1429 = vmatpush1.msra.mxu0 0.0
      %1430 = vmatprep.subr.mxu0 0.0
      %1431 = vmatpush1.msra.mxu0 0.0
      %1432 = vmatprep.mubr.f32.mxu0 0.0
      %1433 = vmatmul.mubr.f32.gmra.mrb[0].mxu0 %v1366
      %v1434 = vpop.f32.mrb[0].mxu0
      %v1435 = vadd.f32 0.0, %v1434
      %v1436 = vpop.f32.mrb[0].mxu0
      %v1437 = vadd.f32 0.0, %v1436
      %1438 = vdwg.mxu0
      %1439 = vmatprep.subr.mxu0 0.0
      %1440 = vmatpush1.msra.mxu0 %v1358
      %1441 = vmatprep.subr.mxu0 0.0
      %1442 = vmatpush1.msra.mxu0 0.0
      %1443 = vmatprep.subr.mxu0 0.0
      %1444 = vmatpush1.msra.mxu0 0.0
      %1445 = vmatprep.subr.mxu0 0.0
      %1446 = vmatpush1.msra.mxu0 0.0
      %1447 = vmatprep.subr.mxu0 0.0
      %1448 = vmatpush1.msra.mxu0 0.0
      %1449 = vmatprep.subr.mxu0 0.0
      %1450 = vmatpush1.msra.mxu0 0.0
      %1451 = vmatprep.subr.mxu0 0.0
      %1452 = vmatpush1.msra.mxu0 0.0
      %1453 = vmatprep.subr.mxu0 0.0
      %1454 = vmatpush1.msra.mxu0 0.0
      %1455 = vmatprep.subr.mxu0 0.0
      %1456 = vmatpush1.msra.mxu0 0.0
      %1457 = vmatprep.subr.mxu0 0.0
      %1458 = vmatpush1.msra.mxu0 0.0
      %1459 = vmatprep.subr.mxu0 0.0
      %1460 = vmatpush1.msra.mxu0 0.0
      %1461 = vmatprep.subr.mxu0 0.0
      %1462 = vmatpush1.msra.mxu0 0.0
      %1463 = vmatprep.subr.mxu0 0.0
      %1464 = vmatpush1.msra.mxu0 0.0
      %1465 = vmatprep.subr.mxu0 0.0
      %1466 = vmatpush1.msra.mxu0 0.0
      %1467 = vmatprep.subr.mxu0 0.0
      %1468 = vmatpush1.msra.mxu0 0.0
      %1469 = vmatprep.subr.mxu0 0.0
      %1470 = vmatpush1.msra.mxu0 0.0
      %1471 = vmatprep.subr.mxu0 0.0
      %1472 = vmatpush1.msra.mxu0 0.0
      %1473 = vmatprep.subr.mxu0 0.0
      %1474 = vmatpush1.msra.mxu0 0.0
      %1475 = vmatprep.subr.mxu0 0.0
      %1476 = vmatpush1.msra.mxu0 0.0
      %1477 = vmatprep.subr.mxu0 0.0
      %1478 = vmatpush1.msra.mxu0 0.0
      %1479 = vmatprep.subr.mxu0 0.0
      %1480 = vmatpush1.msra.mxu0 0.0
      %1481 = vmatprep.subr.mxu0 0.0
      %1482 = vmatpush1.msra.mxu0 0.0
      %1483 = vmatprep.subr.mxu0 0.0
      %1484 = vmatpush1.msra.mxu0 0.0
      %1485 = vmatprep.subr.mxu0 0.0
      %1486 = vmatpush1.msra.mxu0 0.0
      %1487 = vmatprep.subr.mxu0 0.0
      %1488 = vmatpush1.msra.mxu0 0.0
      %1489 = vmatprep.subr.mxu0 0.0
      %1490 = vmatpush1.msra.mxu0 0.0
      %1491 = vmatprep.subr.mxu0 0.0
      %1492 = vmatpush1.msra.mxu0 0.0
      %1493 = vmatprep.subr.mxu0 0.0
      %1494 = vmatpush1.msra.mxu0 0.0
      %1495 = vmatprep.subr.mxu0 0.0
      %1496 = vmatpush1.msra.mxu0 0.0
      %1497 = vmatprep.subr.mxu0 0.0
      %1498 = vmatpush1.msra.mxu0 0.0
      %1499 = vmatprep.subr.mxu0 0.0
      %1500 = vmatpush1.msra.mxu0 0.0
      %1501 = vmatprep.subr.mxu0 0.0
      %1502 = vmatpush1.msra.mxu0 0.0
      %1503 = vmatprep.mubr.f32.mxu0 0.0
      %1504 = vmatmul.mubr.f32.gmra.mrb[0].mxu0 %v1366
      %v1505 = vpop.f32.mrb[0].mxu0
      %v1506 = vadd.f32 0.0, %v1505
      %v1507 = vpop.f32.mrb[0].mxu0
      %1508 = vdwg.mxu0
      %v1509 = vadd.f32 %v1348, %v1435
      %v1510 = vadd.f32 %v1349, %v1437
      %v1511 = vadd.f32 %v1350, %v1506
      %s1512 = scalar_lea.vmem %s1, 64
      %v1513 = vld [vmem:[%s1512] sm:$0xff]
      %1514 = vrot.lane.b32.xlu0 %v236, 90
      %v1515 = vpop.permute.xlu0 %1514
      %1516 = vrot.lane.b32.xlu0 %v237, 90
      %v1517 = vpop.permute.xlu0 %1516
      %1518 = vrot.lane.b32.xlu0 %v238, 90
      %v1519 = vpop.permute.xlu0 %1518
      %vm1520 = vcmask 736256
      %v1521 = vsel %vm1520, %v1515, %v1517
      %v1522 = vsel %vm1520, %v1517, %v1519
      %v1527 = vsel %vm257, %v1513, 0
      %1529 = vmatprep.subr.mxu0 %v1522
      %1530 = vmatpush1.msra.mxu0 %v1521
      %1531 = vmatprep.subr.mxu0 0.0
      %1532 = vmatpush1.msra.mxu0 0.0
      %1533 = vmatprep.subr.mxu0 0.0
      %1534 = vmatpush1.msra.mxu0 0.0
      %1535 = vmatprep.subr.mxu0 0.0
      %1536 = vmatpush1.msra.mxu0 0.0
      %1537 = vmatprep.subr.mxu0 0.0
      %1538 = vmatpush1.msra.mxu0 0.0
      %1539 = vmatprep.subr.mxu0 0.0
      %1540 = vmatpush1.msra.mxu0 0.0
      %1541 = vmatprep.subr.mxu0 0.0
      %1542 = vmatpush1.msra.mxu0 0.0
      %1543 = vmatprep.subr.mxu0 0.0
      %1544 = vmatpush1.msra.mxu0 0.0
      %1545 = vmatprep.subr.mxu0 0.0
      %1546 = vmatpush1.msra.mxu0 0.0
      %1547 = vmatprep.subr.mxu0 0.0
      %1548 = vmatpush1.msra.mxu0 0.0
      %1549 = vmatprep.subr.mxu0 0.0
      %1550 = vmatpush1.msra.mxu0 0.0
      %1551 = vmatprep.subr.mxu0 0.0
      %1552 = vmatpush1.msra.mxu0 0.0
      %1553 = vmatprep.subr.mxu0 0.0
      %1554 = vmatpush1.msra.mxu0 0.0
      %1555 = vmatprep.subr.mxu0 0.0
      %1556 = vmatpush1.msra.mxu0 0.0
      %1557 = vmatprep.subr.mxu0 0.0
      %1558 = vmatpush1.msra.mxu0 0.0
      %1559 = vmatprep.subr.mxu0 0.0
      %1560 = vmatpush1.msra.mxu0 0.0
      %1561 = vmatprep.subr.mxu0 0.0
      %1562 = vmatpush1.msra.mxu0 0.0
      %1563 = vmatprep.subr.mxu0 0.0
      %1564 = vmatpush1.msra.mxu0 0.0
      %1565 = vmatprep.subr.mxu0 0.0
      %1566 = vmatpush1.msra.mxu0 0.0
      %1567 = vmatprep.subr.mxu0 0.0
      %1568 = vmatpush1.msra.mxu0 0.0
      %1569 = vmatprep.subr.mxu0 0.0
      %1570 = vmatpush1.msra.mxu0 0.0
      %1571 = vmatprep.subr.mxu0 0.0
      %1572 = vmatpush1.msra.mxu0 0.0
      %1573 = vmatprep.subr.mxu0 0.0
      %1574 = vmatpush1.msra.mxu0 0.0
      %1575 = vmatprep.subr.mxu0 0.0
      %1576 = vmatpush1.msra.mxu0 0.0
      %1577 = vmatprep.subr.mxu0 0.0
      %1578 = vmatpush1.msra.mxu0 0.0
      %1579 = vmatprep.subr.mxu0 0.0
      %1580 = vmatpush1.msra.mxu0 0.0
      %1581 = vmatprep.subr.mxu0 0.0
      %1582 = vmatpush1.msra.mxu0 0.0
      %1583 = vmatprep.subr.mxu0 0.0
      %1584 = vmatpush1.msra.mxu0 0.0
      %1585 = vmatprep.subr.mxu0 0.0
      %1586 = vmatpush1.msra.mxu0 0.0
      %1587 = vmatprep.subr.mxu0 0.0
      %1588 = vmatpush1.msra.mxu0 0.0
      %1589 = vmatprep.subr.mxu0 0.0
      %1590 = vmatpush1.msra.mxu0 0.0
      %1591 = vmatprep.subr.mxu0 0.0
      %1592 = vmatpush1.msra.mxu0 0.0
      %1593 = vmatprep.mubr.f32.mxu0 0.0
      %1594 = vmatmul.mubr.f32.gmra.mrb[0].mxu0 %v1527
      %v1595 = vpop.f32.mrb[0].mxu0
      %v1596 = vadd.f32 0.0, %v1595
      %v1597 = vpop.f32.mrb[0].mxu0
      %v1598 = vadd.f32 0.0, %v1597
      %1599 = vdwg.mxu0
      %1600 = vmatprep.subr.mxu0 0.0
      %1601 = vmatpush1.msra.mxu0 %v1519
      %1602 = vmatprep.subr.mxu0 0.0
      %1603 = vmatpush1.msra.mxu0 0.0
      %1604 = vmatprep.subr.mxu0 0.0
      %1605 = vmatpush1.msra.mxu0 0.0
      %1606 = vmatprep.subr.mxu0 0.0
      %1607 = vmatpush1.msra.mxu0 0.0
      %1608 = vmatprep.subr.mxu0 0.0
      %1609 = vmatpush1.msra.mxu0 0.0
      %1610 = vmatprep.subr.mxu0 0.0
      %1611 = vmatpush1.msra.mxu0 0.0
      %1612 = vmatprep.subr.mxu0 0.0
      %1613 = vmatpush1.msra.mxu0 0.0
      %1614 = vmatprep.subr.mxu0 0.0
      %1615 = vmatpush1.msra.mxu0 0.0
      %1616 = vmatprep.subr.mxu0 0.0
      %1617 = vmatpush1.msra.mxu0 0.0
      %1618 = vmatprep.subr.mxu0 0.0
      %1619 = vmatpush1.msra.mxu0 0.0
      %1620 = vmatprep.subr.mxu0 0.0
      %1621 = vmatpush1.msra.mxu0 0.0
      %1622 = vmatprep.subr.mxu0 0.0
      %1623 = vmatpush1.msra.mxu0 0.0
      %1624 = vmatprep.subr.mxu0 0.0
      %1625 = vmatpush1.msra.mxu0 0.0
      %1626 = vmatprep.subr.mxu0 0.0
      %1627 = vmatpush1.msra.mxu0 0.0
      %1628 = vmatprep.subr.mxu0 0.0
      %1629 = vmatpush1.msra.mxu0 0.0
      %1630 = vmatprep.subr.mxu0 0.0
      %1631 = vmatpush1.msra.mxu0 0.0
      %1632 = vmatprep.subr.mxu0 0.0
      %1633 = vmatpush1.msra.mxu0 0.0
      %1634 = vmatprep.subr.mxu0 0.0
      %1635 = vmatpush1.msra.mxu0 0.0
      %1636 = vmatprep.subr.mxu0 0.0
      %1637 = vmatpush1.msra.mxu0 0.0
      %1638 = vmatprep.subr.mxu0 0.0
      %1639 = vmatpush1.msra.mxu0 0.0
      %1640 = vmatprep.subr.mxu0 0.0
      %1641 = vmatpush1.msra.mxu0 0.0
      %1642 = vmatprep.subr.mxu0 0.0
      %1643 = vmatpush1.msra.mxu0 0.0
      %1644 = vmatprep.subr.mxu0 0.0
      %1645 = vmatpush1.msra.mxu0 0.0
      %1646 = vmatprep.subr.mxu0 0.0
      %1647 = vmatpush1.msra.mxu0 0.0
      %1648 = vmatprep.subr.mxu0 0.0
      %1649 = vmatpush1.msra.mxu0 0.0
      %1650 = vmatprep.subr.mxu0 0.0
      %1651 = vmatpush1.msra.mxu0 0.0
      %1652 = vmatprep.subr.mxu0 0.0
      %1653 = vmatpush1.msra.mxu0 0.0
      %1654 = vmatprep.subr.mxu0 0.0
      %1655 = vmatpush1.msra.mxu0 0.0
      %1656 = vmatprep.subr.mxu0 0.0
      %1657 = vmatpush1.msra.mxu0 0.0
      %1658 = vmatprep.subr.mxu0 0.0
      %1659 = vmatpush1.msra.mxu0 0.0
      %1660 = vmatprep.subr.mxu0 0.0
      %1661 = vmatpush1.msra.mxu0 0.0
      %1662 = vmatprep.subr.mxu0 0.0
      %1663 = vmatpush1.msra.mxu0 0.0
      %1664 = vmatprep.mubr.f32.mxu0 0.0
      %1665 = vmatmul.mubr.f32.gmra.mrb[0].mxu0 %v1527
      %v1666 = vpop.f32.mrb[0].mxu0
      %v1667 = vadd.f32 0.0, %v1666
      %v1668 = vpop.f32.mrb[0].mxu0
      %1669 = vdwg.mxu0
      %v1670 = vadd.f32 %v1509, %v1596
      %v1671 = vadd.f32 %v1510, %v1598
      %v1672 = vadd.f32 %v1511, %v1667
      %v1673 = vld [vmem:[%s2] sm:$0xff]
      %1675 = vset.pattern.permute.xlu0 0
      %1676 = vperm.xlu0 %1675, %v1673
      %v1677 = vpop.permute.xlu0 %1676
      %v1679 = vadd.f32 %v1670, %v1677
      %v1680 = vadd.f32 %v1671, %v1677
      %v1681 = vadd.f32 %v1672, %v1677
      %1682 = vst [vmem:[%s231] sm:$0xff] %v1679
      %1683 = vst [vmem:[%s231 + $0x8] sm:$0xff] %v1680
      %vm1684 = vcmask 261120
      %1685 = vst.msk [vmem:[%s231 + $0x10] sm:$0xff] %vm1684, %v1681
      %v1686 = vld [vmem:[%s3] sm:$0x7]
      %v1688 = vlaneseq
      %v1689 = vshrl.u32 %v1688, 7
      %v1690 = vsub.s32 0, %v1689
      %v1691 = vrot.slane %v1686, %v1690
      %v1692 = vlaneseq
      %v1693 = vshrl.u32 %v1692, 7
      %v1694 = vsub.s32 1, %v1693
      %v1695 = vrot.slane %v1686, %v1694
      %v1696 = vlaneseq
      %v1697 = vshrl.u32 %v1696, 7
      %v1698 = vsub.s32 2, %v1697
      %v1699 = vrot.slane %v1686, %v1698
      %v1703 = vmul.f32 %v1679, %v1691
      %v1704 = vmul.f32 %v1680, %v1695
      %v1705 = vmul.f32 %v1681, %v1699
      %v1706 = vadd.f32 %v1703, %v1704
      %v1707 = vsel %vm1684, %v1705, 0.0
      %v1708 = vadd.f32 %v1706, %v1707
      %1709 = vadd.xlane.f32.xlu0 %v1708
      %v1710 = vpop.xlane.xlu0 %1709
      %vm1711 = vcmask 7168
      %1712 = vst.msk [vmem:[%s235] sm:$0xff] %vm1711, %v1710
      %v1713 = vmul.f32 %v1703, %v1703
      %v1714 = vmul.f32 %v1704, %v1704
      %v1715 = vmul.f32 %v1705, %v1705
      %v1716 = vadd.f32 %v1713, %v1714
      %v1717 = vsel %vm1684, %v1715, 0.0
      %v1718 = vadd.f32 %v1716, %v1717
      %1719 = vadd.xlane.f32.xlu0 %v1718
      %v1720 = vpop.xlane.xlu0 %1719
      %vm1721 = vcmask 15368
      %1722 = vst.msk [vmem:[%s235] sm:$0xff] %vm1721, %v1720
      %p1723 = scmp.lt.s32.totalorder %s17, 1
      %s1724 = scalar_select %p1723, %s17, 1
      %s1725 = smul.addr %s1724, 3
      %s1726 = smul.addr %s1725, 8
      %s1727 = scalar_lea.vmem %s4, %s1726
      %p1728 = scmp.lt.s32.totalorder %s17, 1
      %s1729 = scalar_select %p1728, %s17, 1
      %s1730 = smul.addr %s1729, 8
      %s1731 = scalar_lea.vmem %s5, %s1730
      // Predicated region
      $region37: #{convt_block_forward.6} parent=35 // pred_check
        %p1732 = pneg %p124
      $region38: #{convt_block_forward.6} parent=35 // pred_check_branch
        %1734 = sbr.rel (%p1732) target = $region40
      $region39: #{convt_block_forward.6} parent=35 // pred_region
        _
      $region40: #{convt_block_forward.6} parent=35 // pred_fallthru
        _
      // Predicated region
      $region41: #{convt_block_forward.6} parent=35 // pred_check
        %p1735 = pneg %p150
      $region42: #{convt_block_forward.6} parent=35 // pred_check_branch
        %1737 = sbr.rel (%p1735) target = $region44
      $region43: #{convt_block_forward.6} parent=35 // pred_region
        _
      $region44: #{convt_block_forward.6} parent=35 // pred_fallthru
        _
    $region36: #{convt_block_forward.6} parent=5 // pred_fallthru
      _
    %p1738 = scmp.le.s32.totalorder 2, %s12
    // Predicated region
    $region45: #{convt_block_forward.6} parent=5 // pred_check
      %p1739 = pneg %p1738
    $region46: #{convt_block_forward.6} parent=5 // pred_check_branch
      %1741 = sbr.rel (%p1739) target = $region48
    $region47: #{convt_block_forward.6} parent=5 // pred_region
      %s1742 = ssub.s32 %s12, 2
      // Predicated region
      $region49: #{convt_block_forward.6} parent=47 // pred_check
        %p1743 = pneg %p130
      $region50: #{convt_block_forward.6} parent=47 // pred_check_branch
        %1745 = sbr.rel (%p1743) target = $region52
      $region51: #{convt_block_forward.6} parent=47 // pred_region
        %p1746 = scmp.lt.s32.totalorder %s18, 1
        %s1747 = scalar_select %p1746, %s18, 1
        %s1748 = smul.addr %s1747, 3
        %s1749 = smul.addr %s1748, 8
        %s1750 = scalar_lea.vmem %s4, %s1749
      $region52: #{convt_block_forward.6} parent=47 // pred_fallthru
        _
      // Predicated region
      $region53: #{convt_block_forward.6} parent=47 // pred_check
        %p1751 = pneg %p156
      $region54: #{convt_block_forward.6} parent=47 // pred_check_branch
        %1753 = sbr.rel (%p1751) target = $region56
      $region55: #{convt_block_forward.6} parent=47 // pred_region
        %p1754 = scmp.lt.s32.totalorder %s18, 1
        %s1755 = scalar_select %p1754, %s18, 1
        %s1756 = smul.addr %s1755, 8
        %s1757 = scalar_lea.vmem %s5, %s1756
      $region56: #{convt_block_forward.6} parent=47 // pred_fallthru
        _
    $region48: #{convt_block_forward.6} parent=5 // pred_fallthru
      _
  $region6: #{convt_block_forward.6} parent=0 // loop_footer
    %s16 = sadd.s32 1, %s12
  $region7: #{convt_block_forward.6} parent=0 // loop_footer_branch
    %11 = sbr.rel target = $region3
  $region8: #{convt_block_forward.6} parent=0 // loop_exit
    _

</llo_original>
